<compile_context>
chip_gen: v5e
topology: v5e:2x2
jax: 0.10.0
libtpu: 0.0.40
codegen_flags: <defaults>
</compile_context>

<pallas_src>
import jax
import jax.numpy as jnp
from jax.experimental import pallas as pl
from jax.experimental.pallas import tpu as pltpu


# ------------------------------- fused kernel -------------------------------- #

def cnn_fused_kernel(x_ref, w1_ref, b1_ref, w2_ref, b2_ref, w3_ref, b3_ref,
                     fcw_ref, fcb_ref, o_ref, pad1_ref, pad2_ref, pad3_ref):
    """One program == one batch sample.

    x_ref   : (1, H, W, Cin)         bf16
    wN_ref  : (9*CinN, CoutN)        bf16  (im2col-reshaped 3x3 conv weights)
    bN_ref  : (1, CoutN)             f32
    fcw_ref : (128, NC_PAD)          f32   (zero-padded to 128 lanes)
    fcb_ref : (1, NC_PAD)            f32
    o_ref   : (1, 1, NC_PAD)         f32
    padK_ref: (H+2, W+2, CinK)       bf16 VMEM scratch (zero-padded activations)
    """
    _, h, w, cin = x_ref.shape
    hw = h * w

    def conv3x3_relu(pad_ref, w_ref, b_ref, c_in, out_dtype):
        # im2col: (hw, 9*c_in) patch matrix, one MXU matmul, f32 accumulate + epilogue.
        taps = [pad_ref[kh:kh + h, kw:kw + w, :].reshape(hw, c_in)
                for kh in range(3) for kw in range(3)]
        patches = jnp.concatenate(taps, axis=1)                      # (hw, 9*c_in) bf16
        acc = jnp.dot(patches, w_ref[...], preferred_element_type=jnp.float32)
        return jnp.maximum(acc + b_ref[...], 0.0).astype(out_dtype)  # (hw, cout)

    # ---- layer 1: stage input into zero-padded VMEM scratch, conv + ReLU ------
    pad1_ref[...] = jnp.zeros_like(pad1_ref)
    pad1_ref[1:h + 1, 1:w + 1, :] = x_ref[0].astype(jnp.bfloat16)
    y1 = conv3x3_relu(pad1_ref, w1_ref, b1_ref, cin, jnp.bfloat16)   # (hw, 32)

    # ---- layer 2 (intermediate stays VMEM-resident) ----------------------------
    c1 = y1.shape[-1]
    pad2_ref[...] = jnp.zeros_like(pad2_ref)
    pad2_ref[1:h + 1, 1:w + 1, :] = y1.reshape(h, w, c1)
    y2 = conv3x3_relu(pad2_ref, w2_ref, b2_ref, c1, jnp.bfloat16)    # (hw, 64)

    # ---- layer 3 ---------------------------------------------------------------
    c2 = y2.shape[-1]
    pad3_ref[...] = jnp.zeros_like(pad3_ref)
    pad3_ref[1:h + 1, 1:w + 1, :] = y2.reshape(h, w, c2)
    y3 = conv3x3_relu(pad3_ref, w3_ref, b3_ref, c2, jnp.float32)     # (hw, 128) f32

    # ---- adaptive avg pool (1,1) + FC head (f32, lane-dense output) ------------
    pooled = jnp.mean(y3, axis=0, keepdims=True)                     # (1, 128)
    logits = (jnp.dot(pooled, fcw_ref[...], preferred_element_type=jnp.float32)
              + fcb_ref[...])                                        # (1, NC_PAD)
    o_ref[...] = logits.reshape(1, 1, -1).astype(o_ref.dtype)


# ------------------------------- JAX wrapper ---------------------------------- #

@jax.jit
def cnn_forward(params, x_nchw):
    """Pallas forward pass.  x_nchw: (N, Cin, H, W), like the PyTorch module."""
    x = jnp.transpose(x_nchw, (0, 2, 3, 1)).astype(jnp.bfloat16)     # NCHW -> NHWC
    n, h, w, cin = x.shape
    c1 = params["w1"].shape[-1]
    c2 = params["w2"].shape[-1]
    c3 = params["w3"].shape[-1]
    nc = params["fc_w"].shape[-1]
    nc_pad = max(128, ((nc + 127) // 128) * 128)                     # lane-dense head

    # im2col weight packing + bf16 cast (would be done once offline in deployment).
    w1 = params["w1"].reshape(9 * cin, c1).astype(jnp.bfloat16)
    w2 = params["w2"].reshape(9 * c1, c2).astype(jnp.bfloat16)
    w3 = params["w3"].reshape(9 * c2, c3).astype(jnp.bfloat16)
    b1 = params["b1"].reshape(1, c1).astype(jnp.float32)
    b2 = params["b2"].reshape(1, c2).astype(jnp.float32)
    b3 = params["b3"].reshape(1, c3).astype(jnp.float32)
    fcw = jnp.zeros((c3, nc_pad), jnp.float32).at[:, :nc].set(
        params["fc_w"].astype(jnp.float32))
    fcb = jnp.zeros((1, nc_pad), jnp.float32).at[:, :nc].set(
        params["fc_b"].reshape(1, nc).astype(jnp.float32))

    const2d = lambda *_: (0, 0)   # weights/biases: same block every step -> DMA'd once

    out = pl.pallas_call(
        cnn_fused_kernel,
        out_shape=jax.ShapeDtypeStruct((n, 1, nc_pad), jnp.float32),
        grid_spec=pltpu.PrefetchScalarGridSpec(
            num_scalar_prefetch=0,
            grid=(n,),                                   # one sample per program
            in_specs=[
                pl.BlockSpec((1, h, w, cin), lambda i: (i, 0, 0, 0)),
                pl.BlockSpec((9 * cin, c1), const2d),
                pl.BlockSpec((1, c1), const2d),
                pl.BlockSpec((9 * c1, c2), const2d),
                pl.BlockSpec((1, c2), const2d),
                pl.BlockSpec((9 * c2, c3), const2d),
                pl.BlockSpec((1, c3), const2d),
                pl.BlockSpec((c3, nc_pad), const2d),
                pl.BlockSpec((1, nc_pad), const2d),
            ],
            out_specs=pl.BlockSpec((1, 1, nc_pad), lambda i: (i, 0, 0)),
            scratch_shapes=[
                pltpu.VMEM((h + 2, w + 2, cin), jnp.bfloat16),
                pltpu.VMEM((h + 2, w + 2, c1), jnp.bfloat16),
                pltpu.VMEM((h + 2, w + 2, c2), jnp.bfloat16),
            ],
        ),
        compiler_params=pltpu.CompilerParams(
            dimension_semantics=("parallel",)),          # v7x: one sample per core
    )(x, w1, b1, w2, b2, w3, b3, fcw, fcb)
    return out[:, 0, :nc]


# ---------------------- deterministic parameter init -------------------------- #

def init_params(key, input_channel, num_classes):
    ks = jax.random.split(key, 4)

    def conv_init(k, cin, cout):
        kw, kb = jax.random.split(k)
        bound = 1.0 / jnp.sqrt(cin * 9.0)         # PyTorch-style kaiming-uniform bound
        w = jax.random.uniform(kw, (3, 3, cin, cout), jnp.float32, -bound, bound)
        b = jax.random.uniform(kb, (cout,), jnp.float32, -bound, bound)
        return w, b

    w1, b1 = conv_init(ks[0], input_channel, 32)
    w2, b2 = conv_init(ks[1], 32, 64)
    w3, b3 = conv_init(ks[2], 64, 128)

    kw, kb = jax.random.split(ks[3])
    bound = 1.0 / jnp.sqrt(128.0)
    fc_w = jax.random.uniform(kw, (128, num_classes), jnp.float32, -bound, bound)
    fc_b = jax.random.uniform(kb, (num_classes,), jnp.float32, -bound, bound)

    return dict(w1=w1, b1=b1, w2=w2, b2=b2, w3=w3, b3=b3, fc_w=fc_w, fc_b=fc_b)


# -------------------------- pure-JAX reference -------------------------------- #
# Mirrors the kernel's precision policy: bf16 matmul inputs, f32 accumulation,
# f32 bias/ReLU epilogue, f32 pool + FC head.

def cnn_reference(params, x_nchw):
    x = jnp.transpose(x_nchw, (0, 2, 3, 1)).astype(jnp.bfloat16)
    dn = ("NHWC", "HWIO", "NHWC")

    def conv(x_bf16, w, b):
        y = jax.lax.conv_general_dilated(
            x_bf16, w.astype(jnp.bfloat16), (1, 1), "SAME",
            dimension_numbers=dn, preferred_element_type=jnp.float32)
        return jax.nn.relu(y + b.astype(jnp.float32))

    y1 = conv(x, params["w1"], params["b1"])
    y2 = conv(y1.astype(jnp.bfloat16), params["w2"], params["b2"])
    y3 = conv(y2.astype(jnp.bfloat16), params["w3"], params["b3"])
    pooled = jnp.mean(y3, axis=(1, 2))             # AdaptiveAvgPool2d((1,1)) + flatten
    return pooled @ params["fc_w"] + params["fc_b"]


# --------------------------------- main ---------------------------------------- #

if __name__ == "__main__":
    num_classes = 10
    input_channel = 4
    N, H, W = 2, 16, 16

    key = jax.random.PRNGKey(0)
    k_param, k_x = jax.random.split(key)
    params = init_params(k_param, input_channel, num_classes)
    x = jax.random.normal(k_x, (N, input_channel, H, W), jnp.float32)  # NCHW like PyTorch

    out = cnn_forward(params, x)
    out = jax.block_until_ready(out)

    ref = cnn_reference(params, x)
    assert out.shape == (N, num_classes)
    # bf16 matmul inputs (matched in the reference) -> modest tolerance
    assert jnp.allclose(out, ref, rtol=2e-2, atol=2e-2), "mismatch vs JAX reference"

    print("KERNEL_OK")
</pallas_src>

<mosaic_0001>
module attributes {stable_mosaic.version = 11 : i64} {
  func.func @cnn_fused_kernel(%arg0: i32, %arg1: memref<1x16x16x4xbf16, #tpu.memory_space<vmem>>, %arg2: memref<36x32xbf16, #tpu.memory_space<vmem>>, %arg3: memref<1x32xf32, #tpu.memory_space<vmem>>, %arg4: memref<288x64xbf16, #tpu.memory_space<vmem>>, %arg5: memref<1x64xf32, #tpu.memory_space<vmem>>, %arg6: memref<576x128xbf16, #tpu.memory_space<vmem>>, %arg7: memref<1x128xf32, #tpu.memory_space<vmem>>, %arg8: memref<128x128xf32, #tpu.memory_space<vmem>>, %arg9: memref<1x128xf32, #tpu.memory_space<vmem>>, %arg10: memref<1x1x128xf32, #tpu.memory_space<vmem>>, %arg11: memref<18x18x4xbf16, #tpu.memory_space<vmem>>, %arg12: memref<18x18x32xbf16, #tpu.memory_space<vmem>>, %arg13: memref<18x18x64xbf16, #tpu.memory_space<vmem>>) attributes {dimension_semantics = [#tpu.dimension_semantics<parallel>], iteration_bounds = array<i64: 2>, scalar_prefetch = 0 : i64, scratch_operands = 3 : i64, tpu.core_type = #tpu.core_type<tc>, window_params = [{transform_indices = @transform_0, window_bounds = array<i64: 1, 16, 16, 4>}, {pipeline_mode = #tpu.pipeline_mode<synchronous>, transform_indices = @transform_1, window_bounds = array<i64: 36, 32>}, {pipeline_mode = #tpu.pipeline_mode<synchronous>, transform_indices = @transform_2, window_bounds = array<i64: 1, 32>}, {pipeline_mode = #tpu.pipeline_mode<synchronous>, transform_indices = @transform_3, window_bounds = array<i64: 288, 64>}, {pipeline_mode = #tpu.pipeline_mode<synchronous>, transform_indices = @transform_4, window_bounds = array<i64: 1, 64>}, {pipeline_mode = #tpu.pipeline_mode<synchronous>, transform_indices = @transform_5, window_bounds = array<i64: 576, 128>}, {pipeline_mode = #tpu.pipeline_mode<synchronous>, transform_indices = @transform_6, window_bounds = array<i64: 1, 128>}, {pipeline_mode = #tpu.pipeline_mode<synchronous>, transform_indices = @transform_7, window_bounds = array<i64: 128, 128>}, {pipeline_mode = #tpu.pipeline_mode<synchronous>, transform_indices = @transform_8, window_bounds = array<i64: 1, 128>}, {transform_indices = @transform_9, window_bounds = array<i64: 1, 1, 128>}]} {
    %cst = arith.constant 0.000000e+00 : bf16
    %0 = vector.broadcast %cst : bf16 to vector<18x18x4xbf16>
    %c0 = arith.constant 0 : index
    %c0_0 = arith.constant 0 : index
    %c0_1 = arith.constant 0 : index
    %1 = vector.load %arg11[%c0, %c0_0, %c0_1] : memref<18x18x4xbf16, #tpu.memory_space<vmem>>, vector<18x18x4xbf16>
    tpu.vector_store %arg11[%c0, %c0_0, %c0_1], %0 {strides = array<i32>} : memref<18x18x4xbf16, #tpu.memory_space<vmem>>, vector<18x18x4xbf16>,
    %c0_2 = arith.constant 0 : index
    %c0_3 = arith.constant 0 : index
    %c0_4 = arith.constant 0 : index
    %c0_5 = arith.constant 0 : index
    %2 = vector.load %arg1[%c0_2, %c0_3, %c0_4, %c0_5] : memref<1x16x16x4xbf16, #tpu.memory_space<vmem>>, vector<1x16x16x4xbf16>
    %3 = vector.shape_cast %2 : vector<1x16x16x4xbf16> to vector<16x16x4xbf16>
    %c1 = arith.constant 1 : index
    %c1_6 = arith.constant 1 : index
    %c0_7 = arith.constant 0 : index
    %4 = vector.load %arg11[%c1, %c1_6, %c0_7] : memref<18x18x4xbf16, #tpu.memory_space<vmem>>, vector<16x16x4xbf16>
    tpu.vector_store %arg11[%c1, %c1_6, %c0_7], %3 {strides = array<i32>} : memref<18x18x4xbf16, #tpu.memory_space<vmem>>, vector<16x16x4xbf16>,
    %c0_8 = arith.constant 0 : index
    %c0_9 = arith.constant 0 : index
    %c0_10 = arith.constant 0 : index
    %5 = vector.load %arg11[%c0_8, %c0_9, %c0_10] : memref<18x18x4xbf16, #tpu.memory_space<vmem>>, vector<16x16x4xbf16>
    %6 = vector.shape_cast %5 : vector<16x16x4xbf16> to vector<256x4xbf16>
    %c0_11 = arith.constant 0 : index
    %c1_12 = arith.constant 1 : index
    %c0_13 = arith.constant 0 : index
    %7 = vector.load %arg11[%c0_11, %c1_12, %c0_13] : memref<18x18x4xbf16, #tpu.memory_space<vmem>>, vector<16x16x4xbf16>
    %8 = vector.shape_cast %7 : vector<16x16x4xbf16> to vector<256x4xbf16>
    %c0_14 = arith.constant 0 : index
    %c2 = arith.constant 2 : index
    %c0_15 = arith.constant 0 : index
    %9 = vector.load %arg11[%c0_14, %c2, %c0_15] : memref<18x18x4xbf16, #tpu.memory_space<vmem>>, vector<16x16x4xbf16>
    %10 = vector.shape_cast %9 : vector<16x16x4xbf16> to vector<256x4xbf16>
    %c1_16 = arith.constant 1 : index
    %c0_17 = arith.constant 0 : index
    %c0_18 = arith.constant 0 : index
    %11 = vector.load %arg11[%c1_16, %c0_17, %c0_18] : memref<18x18x4xbf16, #tpu.memory_space<vmem>>, vector<16x16x4xbf16>
    %12 = vector.shape_cast %11 : vector<16x16x4xbf16> to vector<256x4xbf16>
    %c1_19 = arith.constant 1 : index
    %c1_20 = arith.constant 1 : index
    %c0_21 = arith.constant 0 : index
    %13 = vector.load %arg11[%c1_19, %c1_20, %c0_21] : memref<18x18x4xbf16, #tpu.memory_space<vmem>>, vector<16x16x4xbf16>
    %14 = vector.shape_cast %13 : vector<16x16x4xbf16> to vector<256x4xbf16>
    %c1_22 = arith.constant 1 : index
    %c2_23 = arith.constant 2 : index
    %c0_24 = arith.constant 0 : index
    %15 = vector.load %arg11[%c1_22, %c2_23, %c0_24] : memref<18x18x4xbf16, #tpu.memory_space<vmem>>, vector<16x16x4xbf16>
    %16 = vector.shape_cast %15 : vector<16x16x4xbf16> to vector<256x4xbf16>
    %c2_25 = arith.constant 2 : index
    %c0_26 = arith.constant 0 : index
    %c0_27 = arith.constant 0 : index
    %17 = vector.load %arg11[%c2_25, %c0_26, %c0_27] : memref<18x18x4xbf16, #tpu.memory_space<vmem>>, vector<16x16x4xbf16>
    %18 = vector.shape_cast %17 : vector<16x16x4xbf16> to vector<256x4xbf16>
    %c2_28 = arith.constant 2 : index
    %c1_29 = arith.constant 1 : index
    %c0_30 = arith.constant 0 : index
    %19 = vector.load %arg11[%c2_28, %c1_29, %c0_30] : memref<18x18x4xbf16, #tpu.memory_space<vmem>>, vector<16x16x4xbf16>
    %20 = vector.shape_cast %19 : vector<16x16x4xbf16> to vector<256x4xbf16>
    %c2_31 = arith.constant 2 : index
    %c2_32 = arith.constant 2 : index
    %c0_33 = arith.constant 0 : index
    %21 = vector.load %arg11[%c2_31, %c2_32, %c0_33] : memref<18x18x4xbf16, #tpu.memory_space<vmem>>, vector<16x16x4xbf16>
    %22 = vector.shape_cast %21 : vector<16x16x4xbf16> to vector<256x4xbf16>
    %23 = tpu.concatenate %6, %8, %10, %12, %14, %16, %18, %20, %22 in 1 : vector<256x4xbf16>, vector<256x4xbf16>, vector<256x4xbf16>, vector<256x4xbf16>, vector<256x4xbf16>, vector<256x4xbf16>, vector<256x4xbf16>, vector<256x4xbf16>, vector<256x4xbf16> -> vector<256x36xbf16>
    %c0_34 = arith.constant 0 : index
    %c0_35 = arith.constant 0 : index
    %24 = vector.load %arg2[%c0_34, %c0_35] : memref<36x32xbf16, #tpu.memory_space<vmem>>, vector<36x32xbf16>
    %cst_36 = arith.constant dense<0.000000e+00> : vector<256x32xf32>
    %25 = tpu.matmul %23, %24, %cst_36 {dimension_numbers = #tpu.dot_dimension_numbers<[1], [0], [0], [1], [0, 0, 1, 1], [], []>} : vector<256x36xbf16>, vector<36x32xbf16>, vector<256x32xf32> -> vector<256x32xf32>
    %c0_37 = arith.constant 0 : index
    %c0_38 = arith.constant 0 : index
    %26 = vector.load %arg3[%c0_37, %c0_38] : memref<1x32xf32, #tpu.memory_space<vmem>>, vector<1x32xf32>
    %27 = vector.broadcast %26 : vector<1x32xf32> to vector<256x32xf32>
    %28 = arith.addf %25, %27 : vector<256x32xf32>
    %cst_39 = arith.constant 0.000000e+00 : f32
    %29 = vector.broadcast %cst_39 : f32 to vector<256x32xf32>
    %30 = arith.maximumf %28, %29 : vector<256x32xf32>
    %31 = arith.truncf %30 : vector<256x32xf32> to vector<256x32xbf16>
    %cst_40 = arith.constant 0.000000e+00 : bf16
    %32 = vector.broadcast %cst_40 : bf16 to vector<18x18x32xbf16>
    %c0_41 = arith.constant 0 : index
    %c0_42 = arith.constant 0 : index
    %c0_43 = arith.constant 0 : index
    %33 = vector.load %arg12[%c0_41, %c0_42, %c0_43] : memref<18x18x32xbf16, #tpu.memory_space<vmem>>, vector<18x18x32xbf16>
    tpu.vector_store %arg12[%c0_41, %c0_42, %c0_43], %32 {strides = array<i32>} : memref<18x18x32xbf16, #tpu.memory_space<vmem>>, vector<18x18x32xbf16>,
    %34 = vector.shape_cast %31 : vector<256x32xbf16> to vector<16x16x32xbf16>
    %c1_44 = arith.constant 1 : index
    %c1_45 = arith.constant 1 : index
    %c0_46 = arith.constant 0 : index
    %35 = vector.load %arg12[%c1_44, %c1_45, %c0_46] : memref<18x18x32xbf16, #tpu.memory_space<vmem>>, vector<16x16x32xbf16>
    tpu.vector_store %arg12[%c1_44, %c1_45, %c0_46], %34 {strides = array<i32>} : memref<18x18x32xbf16, #tpu.memory_space<vmem>>, vector<16x16x32xbf16>,
    %c0_47 = arith.constant 0 : index
    %c0_48 = arith.constant 0 : index
    %c0_49 = arith.constant 0 : index
    %36 = vector.load %arg12[%c0_47, %c0_48, %c0_49] : memref<18x18x32xbf16, #tpu.memory_space<vmem>>, vector<16x16x32xbf16>
    %37 = vector.shape_cast %36 : vector<16x16x32xbf16> to vector<256x32xbf16>
    %c0_50 = arith.constant 0 : index
    %c1_51 = arith.constant 1 : index
    %c0_52 = arith.constant 0 : index
    %38 = vector.load %arg12[%c0_50, %c1_51, %c0_52] : memref<18x18x32xbf16, #tpu.memory_space<vmem>>, vector<16x16x32xbf16>
    %39 = vector.shape_cast %38 : vector<16x16x32xbf16> to vector<256x32xbf16>
    %c0_53 = arith.constant 0 : index
    %c2_54 = arith.constant 2 : index
    %c0_55 = arith.constant 0 : index
    %40 = vector.load %arg12[%c0_53, %c2_54, %c0_55] : memref<18x18x32xbf16, #tpu.memory_space<vmem>>, vector<16x16x32xbf16>
    %41 = vector.shape_cast %40 : vector<16x16x32xbf16> to vector<256x32xbf16>
    %c1_56 = arith.constant 1 : index
    %c0_57 = arith.constant 0 : index
    %c0_58 = arith.constant 0 : index
    %42 = vector.load %arg12[%c1_56, %c0_57, %c0_58] : memref<18x18x32xbf16, #tpu.memory_space<vmem>>, vector<16x16x32xbf16>
    %43 = vector.shape_cast %42 : vector<16x16x32xbf16> to vector<256x32xbf16>
    %c1_59 = arith.constant 1 : index
    %c1_60 = arith.constant 1 : index
    %c0_61 = arith.constant 0 : index
    %44 = vector.load %arg12[%c1_59, %c1_60, %c0_61] : memref<18x18x32xbf16, #tpu.memory_space<vmem>>, vector<16x16x32xbf16>
    %45 = vector.shape_cast %44 : vector<16x16x32xbf16> to vector<256x32xbf16>
    %c1_62 = arith.constant 1 : index
    %c2_63 = arith.constant 2 : index
    %c0_64 = arith.constant 0 : index
    %46 = vector.load %arg12[%c1_62, %c2_63, %c0_64] : memref<18x18x32xbf16, #tpu.memory_space<vmem>>, vector<16x16x32xbf16>
    %47 = vector.shape_cast %46 : vector<16x16x32xbf16> to vector<256x32xbf16>
    %c2_65 = arith.constant 2 : index
    %c0_66 = arith.constant 0 : index
    %c0_67 = arith.constant 0 : index
    %48 = vector.load %arg12[%c2_65, %c0_66, %c0_67] : memref<18x18x32xbf16, #tpu.memory_space<vmem>>, vector<16x16x32xbf16>
    %49 = vector.shape_cast %48 : vector<16x16x32xbf16> to vector<256x32xbf16>
    %c2_68 = arith.constant 2 : index
    %c1_69 = arith.constant 1 : index
    %c0_70 = arith.constant 0 : index
    %50 = vector.load %arg12[%c2_68, %c1_69, %c0_70] : memref<18x18x32xbf16, #tpu.memory_space<vmem>>, vector<16x16x32xbf16>
    %51 = vector.shape_cast %50 : vector<16x16x32xbf16> to vector<256x32xbf16>
    %c2_71 = arith.constant 2 : index
    %c2_72 = arith.constant 2 : index
    %c0_73 = arith.constant 0 : index
    %52 = vector.load %arg12[%c2_71, %c2_72, %c0_73] : memref<18x18x32xbf16, #tpu.memory_space<vmem>>, vector<16x16x32xbf16>
    %53 = vector.shape_cast %52 : vector<16x16x32xbf16> to vector<256x32xbf16>
    %54 = tpu.concatenate %37, %39, %41, %43, %45, %47, %49, %51, %53 in 1 : vector<256x32xbf16>, vector<256x32xbf16>, vector<256x32xbf16>, vector<256x32xbf16>, vector<256x32xbf16>, vector<256x32xbf16>, vector<256x32xbf16>, vector<256x32xbf16>, vector<256x32xbf16> -> vector<256x288xbf16>
    %c0_74 = arith.constant 0 : index
    %c0_75 = arith.constant 0 : index
    %55 = vector.load %arg4[%c0_74, %c0_75] : memref<288x64xbf16, #tpu.memory_space<vmem>>, vector<288x64xbf16>
    %cst_76 = arith.constant dense<0.000000e+00> : vector<256x64xf32>
    %56 = tpu.matmul %54, %55, %cst_76 {dimension_numbers = #tpu.dot_dimension_numbers<[1], [0], [0], [1], [0, 0, 1, 1], [], []>} : vector<256x288xbf16>, vector<288x64xbf16>, vector<256x64xf32> -> vector<256x64xf32>
    %c0_77 = arith.constant 0 : index
    %c0_78 = arith.constant 0 : index
    %57 = vector.load %arg5[%c0_77, %c0_78] : memref<1x64xf32, #tpu.memory_space<vmem>>, vector<1x64xf32>
    %58 = vector.broadcast %57 : vector<1x64xf32> to vector<256x64xf32>
    %59 = arith.addf %56, %58 : vector<256x64xf32>
    %cst_79 = arith.constant 0.000000e+00 : f32
    %60 = vector.broadcast %cst_79 : f32 to vector<256x64xf32>
    %61 = arith.maximumf %59, %60 : vector<256x64xf32>
    %62 = arith.truncf %61 : vector<256x64xf32> to vector<256x64xbf16>
    %cst_80 = arith.constant 0.000000e+00 : bf16
    %63 = vector.broadcast %cst_80 : bf16 to vector<18x18x64xbf16>
    %c0_81 = arith.constant 0 : index
    %c0_82 = arith.constant 0 : index
    %c0_83 = arith.constant 0 : index
    %64 = vector.load %arg13[%c0_81, %c0_82, %c0_83] : memref<18x18x64xbf16, #tpu.memory_space<vmem>>, vector<18x18x64xbf16>
    tpu.vector_store %arg13[%c0_81, %c0_82, %c0_83], %63 {strides = array<i32>} : memref<18x18x64xbf16, #tpu.memory_space<vmem>>, vector<18x18x64xbf16>,
    %65 = vector.shape_cast %62 : vector<256x64xbf16> to vector<16x16x64xbf16>
    %c1_84 = arith.constant 1 : index
    %c1_85 = arith.constant 1 : index
    %c0_86 = arith.constant 0 : index
    %66 = vector.load %arg13[%c1_84, %c1_85, %c0_86] : memref<18x18x64xbf16, #tpu.memory_space<vmem>>, vector<16x16x64xbf16>
    tpu.vector_store %arg13[%c1_84, %c1_85, %c0_86], %65 {strides = array<i32>} : memref<18x18x64xbf16, #tpu.memory_space<vmem>>, vector<16x16x64xbf16>,
    %c0_87 = arith.constant 0 : index
    %c0_88 = arith.constant 0 : index
    %c0_89 = arith.constant 0 : index
    %67 = vector.load %arg13[%c0_87, %c0_88, %c0_89] : memref<18x18x64xbf16, #tpu.memory_space<vmem>>, vector<16x16x64xbf16>
    %68 = vector.shape_cast %67 : vector<16x16x64xbf16> to vector<256x64xbf16>
    %c0_90 = arith.constant 0 : index
    %c1_91 = arith.constant 1 : index
    %c0_92 = arith.constant 0 : index
    %69 = vector.load %arg13[%c0_90, %c1_91, %c0_92] : memref<18x18x64xbf16, #tpu.memory_space<vmem>>, vector<16x16x64xbf16>
    %70 = vector.shape_cast %69 : vector<16x16x64xbf16> to vector<256x64xbf16>
    %c0_93 = arith.constant 0 : index
    %c2_94 = arith.constant 2 : index
    %c0_95 = arith.constant 0 : index
    %71 = vector.load %arg13[%c0_93, %c2_94, %c0_95] : memref<18x18x64xbf16, #tpu.memory_space<vmem>>, vector<16x16x64xbf16>
    %72 = vector.shape_cast %71 : vector<16x16x64xbf16> to vector<256x64xbf16>
    %c1_96 = arith.constant 1 : index
    %c0_97 = arith.constant 0 : index
    %c0_98 = arith.constant 0 : index
    %73 = vector.load %arg13[%c1_96, %c0_97, %c0_98] : memref<18x18x64xbf16, #tpu.memory_space<vmem>>, vector<16x16x64xbf16>
    %74 = vector.shape_cast %73 : vector<16x16x64xbf16> to vector<256x64xbf16>
    %c1_99 = arith.constant 1 : index
    %c1_100 = arith.constant 1 : index
    %c0_101 = arith.constant 0 : index
    %75 = vector.load %arg13[%c1_99, %c1_100, %c0_101] : memref<18x18x64xbf16, #tpu.memory_space<vmem>>, vector<16x16x64xbf16>
    %76 = vector.shape_cast %75 : vector<16x16x64xbf16> to vector<256x64xbf16>
    %c1_102 = arith.constant 1 : index
    %c2_103 = arith.constant 2 : index
    %c0_104 = arith.constant 0 : index
    %77 = vector.load %arg13[%c1_102, %c2_103, %c0_104] : memref<18x18x64xbf16, #tpu.memory_space<vmem>>, vector<16x16x64xbf16>
    %78 = vector.shape_cast %77 : vector<16x16x64xbf16> to vector<256x64xbf16>
    %c2_105 = arith.constant 2 : index
    %c0_106 = arith.constant 0 : index
    %c0_107 = arith.constant 0 : index
    %79 = vector.load %arg13[%c2_105, %c0_106, %c0_107] : memref<18x18x64xbf16, #tpu.memory_space<vmem>>, vector<16x16x64xbf16>
    %80 = vector.shape_cast %79 : vector<16x16x64xbf16> to vector<256x64xbf16>
    %c2_108 = arith.constant 2 : index
    %c1_109 = arith.constant 1 : index
    %c0_110 = arith.constant 0 : index
    %81 = vector.load %arg13[%c2_108, %c1_109, %c0_110] : memref<18x18x64xbf16, #tpu.memory_space<vmem>>, vector<16x16x64xbf16>
    %82 = vector.shape_cast %81 : vector<16x16x64xbf16> to vector<256x64xbf16>
    %c2_111 = arith.constant 2 : index
    %c2_112 = arith.constant 2 : index
    %c0_113 = arith.constant 0 : index
    %83 = vector.load %arg13[%c2_111, %c2_112, %c0_113] : memref<18x18x64xbf16, #tpu.memory_space<vmem>>, vector<16x16x64xbf16>
    %84 = vector.shape_cast %83 : vector<16x16x64xbf16> to vector<256x64xbf16>
    %85 = tpu.concatenate %68, %70, %72, %74, %76, %78, %80, %82, %84 in 1 : vector<256x64xbf16>, vector<256x64xbf16>, vector<256x64xbf16>, vector<256x64xbf16>, vector<256x64xbf16>, vector<256x64xbf16>, vector<256x64xbf16>, vector<256x64xbf16>, vector<256x64xbf16> -> vector<256x576xbf16>
    %c0_114 = arith.constant 0 : index
    %c0_115 = arith.constant 0 : index
    %86 = vector.load %arg6[%c0_114, %c0_115] : memref<576x128xbf16, #tpu.memory_space<vmem>>, vector<576x128xbf16>
    %cst_116 = arith.constant dense<0.000000e+00> : vector<256x128xf32>
    %87 = tpu.matmul %85, %86, %cst_116 {dimension_numbers = #tpu.dot_dimension_numbers<[1], [0], [0], [1], [0, 0, 1, 1], [], []>} : vector<256x576xbf16>, vector<576x128xbf16>, vector<256x128xf32> -> vector<256x128xf32>
    %c0_117 = arith.constant 0 : index
    %c0_118 = arith.constant 0 : index
    %88 = vector.load %arg7[%c0_117, %c0_118] : memref<1x128xf32, #tpu.memory_space<vmem>>, vector<1x128xf32>
    %89 = vector.broadcast %88 : vector<1x128xf32> to vector<256x128xf32>
    %90 = arith.addf %87, %89 : vector<256x128xf32>
    %cst_119 = arith.constant 0.000000e+00 : f32
    %91 = vector.broadcast %cst_119 : f32 to vector<256x128xf32>
    %92 = arith.maximumf %90, %91 : vector<256x128xf32>
    %cst_120 = arith.constant dense<0.000000e+00> : vector<128xf32>
    %93 = vector.multi_reduction <add>, %92, %cst_120 [0] : vector<256x128xf32> to vector<128xf32>
    %94 = vector.shape_cast %93 : vector<128xf32> to vector<1x128xf32>
    %cst_121 = arith.constant 2.560000e+02 : f32
    %95 = vector.broadcast %cst_121 : f32 to vector<1x128xf32>
    %96 = arith.divf %94, %95 : vector<1x128xf32>
    %c0_122 = arith.constant 0 : index
    %c0_123 = arith.constant 0 : index
    %97 = vector.load %arg8[%c0_122, %c0_123] : memref<128x128xf32, #tpu.memory_space<vmem>>, vector<128x128xf32>
    %cst_124 = arith.constant dense<0.000000e+00> : vector<1x128xf32>
    %98 = tpu.matmul %96, %97, %cst_124 {dimension_numbers = #tpu.dot_dimension_numbers<[1], [0], [0], [1], [0, 0, 1, 1], [], []>} : vector<1x128xf32>, vector<128x128xf32>, vector<1x128xf32> -> vector<1x128xf32>
    %c0_125 = arith.constant 0 : index
    %c0_126 = arith.constant 0 : index
    %99 = vector.load %arg9[%c0_125, %c0_126] : memref<1x128xf32, #tpu.memory_space<vmem>>, vector<1x128xf32>
    %100 = arith.addf %98, %99 : vector<1x128xf32>
    %101 = vector.shape_cast %100 : vector<1x128xf32> to vector<1x1x128xf32>
    %c0_127 = arith.constant 0 : index
    %c0_128 = arith.constant 0 : index
    %c0_129 = arith.constant 0 : index
    %102 = vector.load %arg10[%c0_127, %c0_128, %c0_129] : memref<1x1x128xf32, #tpu.memory_space<vmem>>, vector<1x1x128xf32>
    tpu.vector_store %arg10[%c0_127, %c0_128, %c0_129], %101 {strides = array<i32>} : memref<1x1x128xf32, #tpu.memory_space<vmem>>, vector<1x1x128xf32>,
    return
  }
  func.func @transform_0(%arg0: i32) -> (i32, i32, i32, i32) {
    %c0_i32 = arith.constant 0 : i32
    %c0_i32_0 = arith.constant 0 : i32
    %c0_i32_1 = arith.constant 0 : i32
    %c0_i32_2 = arith.constant 0 : i32
    return %arg0, %c0_i32, %c0_i32_0, %c0_i32_1 : i32, i32, i32, i32
  }
  func.func @transform_1(%arg0: i32) -> (i32, i32) {
    %c0_i32 = arith.constant 0 : i32
    %c0_i32_0 = arith.constant 0 : i32
    %c0_i32_1 = arith.constant 0 : i32
    return %c0_i32, %c0_i32_0 : i32, i32
  }
  func.func @transform_2(%arg0: i32) -> (i32, i32) {
    %c0_i32 = arith.constant 0 : i32
    %c0_i32_0 = arith.constant 0 : i32
    %c0_i32_1 = arith.constant 0 : i32
    return %c0_i32, %c0_i32_0 : i32, i32
  }
  func.func @transform_3(%arg0: i32) -> (i32, i32) {
    %c0_i32 = arith.constant 0 : i32
    %c0_i32_0 = arith.constant 0 : i32
    %c0_i32_1 = arith.constant 0 : i32
    return %c0_i32, %c0_i32_0 : i32, i32
  }
  func.func @transform_4(%arg0: i32) -> (i32, i32) {
    %c0_i32 = arith.constant 0 : i32
    %c0_i32_0 = arith.constant 0 : i32
    %c0_i32_1 = arith.constant 0 : i32
    return %c0_i32, %c0_i32_0 : i32, i32
  }
  func.func @transform_5(%arg0: i32) -> (i32, i32) {
    %c0_i32 = arith.constant 0 : i32
    %c0_i32_0 = arith.constant 0 : i32
    %c0_i32_1 = arith.constant 0 : i32
    return %c0_i32, %c0_i32_0 : i32, i32
  }
  func.func @transform_6(%arg0: i32) -> (i32, i32) {
    %c0_i32 = arith.constant 0 : i32
    %c0_i32_0 = arith.constant 0 : i32
    %c0_i32_1 = arith.constant 0 : i32
    return %c0_i32, %c0_i32_0 : i32, i32
  }
  func.func @transform_7(%arg0: i32) -> (i32, i32) {
    %c0_i32 = arith.constant 0 : i32
    %c0_i32_0 = arith.constant 0 : i32
    %c0_i32_1 = arith.constant 0 : i32
    return %c0_i32, %c0_i32_0 : i32, i32
  }
  func.func @transform_8(%arg0: i32) -> (i32, i32) {
    %c0_i32 = arith.constant 0 : i32
    %c0_i32_0 = arith.constant 0 : i32
    %c0_i32_1 = arith.constant 0 : i32
    return %c0_i32, %c0_i32_0 : i32, i32
  }
  func.func @transform_9(%arg0: i32) -> (i32, i32, i32) {
    %c0_i32 = arith.constant 0 : i32
    %c0_i32_0 = arith.constant 0 : i32
    %c0_i32_1 = arith.constant 0 : i32
    return %arg0, %c0_i32, %c0_i32_0 : i32, i32, i32
  }
}

</mosaic_0001>

<llo_original>
// kernel: cnn_forward.1
$region0: #{cnn_forward.1}
  #allocation0 [shape = 'u32[]', space=smem, size = 0x4, offset = 0x4, fixed_abs, tag = 'smem constant byte address 0x4 - core index']
  #allocation1 [shape = 'u32[72,128]{1,0:T(1,128)}', space=vmem, size = 0x9000, scoped, tag = 'internal scratch']
  #allocation2 [shape = 'bf16[18,18,4]{2,1,0:T(8,128)(2,1)}', space=vmem, size = 0x1b000, scoped, tag = 'scratch operand']
  #allocation3 [shape = 'bf16[18,18,32]{2,1,0:T(8,128)(2,1)}', space=vmem, size = 0x1b000, scoped, tag = 'scratch operand']
  #allocation4 [shape = 'bf16[18,18,64]{2,1,0:T(8,128)(2,1)}', space=vmem, size = 0x1b000, scoped, tag = 'scratch operand']
  %s0 = inlined_call_operand.vmem [shape: bf16[2,16,16,4], index: 0, kind: input, shape index: {}]
  %s1 = inlined_call_operand.vmem [shape: bf16[36,32], index: 1, kind: input, shape index: {}]
  %s2 = inlined_call_operand.vmem [shape: f32[1,32], index: 2, kind: input, shape index: {}]
  %s3 = inlined_call_operand.vmem [shape: bf16[288,64], index: 3, kind: input, shape index: {}]
  %s4 = inlined_call_operand.vmem [shape: f32[1,64], index: 4, kind: input, shape index: {}]
  %s5 = inlined_call_operand.vmem [shape: bf16[576,128], index: 5, kind: input, shape index: {}]
  %s6 = inlined_call_operand.vmem [shape: f32[1,128], index: 6, kind: input, shape index: {}]
  %s7 = inlined_call_operand.vmem [shape: f32[128,128], index: 7, kind: input, shape index: {}]
  %s8 = inlined_call_operand.vmem [shape: f32[1,128], index: 8, kind: input, shape index: {}]
  %s9 = inlined_call_operand.hbm [shape: f32[2,1,128], index: 9, kind: output, shape index: {}]
  %s10 = sld [smem:[#allocation0]]
  $region69: #{cnn_forward.1} parent=0
    _
  %s12 = ssub.s32 1, %s10
  %s13 = scalar_select 0, %s12, %s10
  $region1: #{cnn_forward.1} parent=0
    #allocation5 [shape = 'u8[1024]{0}', space=vmem, size = 0x400, scoped, tag = 'output window, operand 0']
    #allocation6 [shape = 's32[2]{0}', space=sflag, size = 0x8, scoped, tag = 'scoped memory for cnn_forward.1']
    %14 = vsyncpa [#allocation6], 0
    %s15 = scalar_lea.sflag [#allocation6], 1
    %16 = vsyncpa %s15, 0
    loop: start=0, step=1, limit=4
    $region2: #{cnn_forward.1} parent=1 // loop_pre_header
      _
    $region3: #{cnn_forward.1} parent=1 // loop_header
      %s18 = sphi 0, %s22
      %p19 = scmp.ge.s32.totalorder %s18, 4
      %s28 = sphi 0, %s30
      %s31 = sphi 0, %s28
      %s32 = sphi 0, %s31
      %s48 = sphi 0, %s32
      %s52 = sphi 0, %s52
      %s54 = sphi 0, %s52
      %s55 = sphi 0, %s54
      %s69 = sphi 0, %s55
      %s73 = sphi 0, %s73
      %s75 = sphi 0, %s73
      %s76 = sphi 0, %s75
      %s90 = sphi 0, %s76
      %s94 = sphi 0, %s94
      %s96 = sphi 0, %s94
      %s97 = sphi 0, %s96
      %s111 = sphi 0, %s97
      %s115 = sphi 0, %s115
      %s117 = sphi 0, %s115
      %s118 = sphi 0, %s117
      %s132 = sphi 0, %s118
      %s136 = sphi 0, %s136
      %s138 = sphi 0, %s136
      %s139 = sphi 0, %s138
      %s153 = sphi 0, %s139
      %s157 = sphi 0, %s157
      %s159 = sphi 0, %s157
      %s160 = sphi 0, %s159
      %s174 = sphi 0, %s160
      %s178 = sphi 0, %s178
      %s180 = sphi 0, %s178
      %s181 = sphi 0, %s180
      %s195 = sphi 0, %s181
      %s199 = sphi 0, %s199
      %s201 = sphi 0, %s199
      %s202 = sphi 0, %s201
      %s216 = sphi 0, %s202
      %s222 = sphi 0, %s224
      %s225 = sphi 0, %s222
      %s226 = sphi 0, %s225
      %s242 = sphi 0, %s226
    $region4: #{cnn_forward.1} parent=1 // loop_header_branch
      %21 = sbr.rel (%p19) target = $region8
    $region5: #{cnn_forward.1} parent=1 // loop_body
      %s23 = ssub.s32 %s18, 1
      %s24 = ssub.s32 %s18, 2
      %s25 = sadd.s32 %s18, 1
      %s26 = ssub.s32 %s18, %s25
      %p27 = scmp.eq.s32.totalorder %s26, 0
      %s29 = sadd.s32 %s28, 1
      %s30 = scalar_select %p27, %s28, %s29
      %p33 = pneg %p27
      %p34 = scmp.eq.s32.totalorder %s18, 1
      %p35 = por %p33, %p34
      %p36 = scmp.ne.s32.totalorder %s28, %s31
      %p37 = scmp.eq.s32.totalorder %s18, 0
      %p38 = por %p36, %p37
      %p39 = scmp.ne.s32.totalorder %s28, %s31
      %p40 = scmp.eq.s32.totalorder %s23, 1
      %p41 = por %p39, %p40
      %p42 = scmp.ne.s32.totalorder %s31, %s32
      %p43 = scmp.eq.s32.totalorder %s23, 0
      %p44 = por %p42, %p43
      %p45 = scmp.ne.s32.totalorder %s31, %s32
      %p46 = scmp.eq.s32.totalorder %s24, 1
      %p47 = por %p45, %p46
      %p49 = scmp.ne.s32.totalorder %s32, %s48
      %p50 = scmp.eq.s32.totalorder %s24, 0
      %p51 = por %p49, %p50
      %s53 = sadd.s32 %s52, 1
      %p56 = scmp.eq.s32.totalorder %s18, 1
      %p57 = scmp.ne.s32.totalorder %s52, %s54
      %p58 = scmp.eq.s32.totalorder %s18, 0
      %p59 = por %p57, %p58
      %p60 = scmp.ne.s32.totalorder %s52, %s54
      %p61 = scmp.eq.s32.totalorder %s23, 1
      %p62 = por %p60, %p61
      %p63 = scmp.ne.s32.totalorder %s54, %s55
      %p64 = scmp.eq.s32.totalorder %s23, 0
      %p65 = por %p63, %p64
      %p66 = scmp.ne.s32.totalorder %s54, %s55
      %p67 = scmp.eq.s32.totalorder %s24, 1
      %p68 = por %p66, %p67
      %p70 = scmp.ne.s32.totalorder %s55, %s69
      %p71 = scmp.eq.s32.totalorder %s24, 0
      %p72 = por %p70, %p71
      %s74 = sadd.s32 %s73, 1
      %p77 = scmp.eq.s32.totalorder %s18, 1
      %p78 = scmp.ne.s32.totalorder %s73, %s75
      %p79 = scmp.eq.s32.totalorder %s18, 0
      %p80 = por %p78, %p79
      %p81 = scmp.ne.s32.totalorder %s73, %s75
      %p82 = scmp.eq.s32.totalorder %s23, 1
      %p83 = por %p81, %p82
      %p84 = scmp.ne.s32.totalorder %s75, %s76
      %p85 = scmp.eq.s32.totalorder %s23, 0
      %p86 = por %p84, %p85
      %p87 = scmp.ne.s32.totalorder %s75, %s76
      %p88 = scmp.eq.s32.totalorder %s24, 1
      %p89 = por %p87, %p88
      %p91 = scmp.ne.s32.totalorder %s76, %s90
      %p92 = scmp.eq.s32.totalorder %s24, 0
      %p93 = por %p91, %p92
      %s95 = sadd.s32 %s94, 1
      %p98 = scmp.eq.s32.totalorder %s18, 1
      %p99 = scmp.ne.s32.totalorder %s94, %s96
      %p100 = scmp.eq.s32.totalorder %s18, 0
      %p101 = por %p99, %p100
      %p102 = scmp.ne.s32.totalorder %s94, %s96
      %p103 = scmp.eq.s32.totalorder %s23, 1
      %p104 = por %p102, %p103
      %p105 = scmp.ne.s32.totalorder %s96, %s97
      %p106 = scmp.eq.s32.totalorder %s23, 0
      %p107 = por %p105, %p106
      %p108 = scmp.ne.s32.totalorder %s96, %s97
      %p109 = scmp.eq.s32.totalorder %s24, 1
      %p110 = por %p108, %p109
      %p112 = scmp.ne.s32.totalorder %s97, %s111
      %p113 = scmp.eq.s32.totalorder %s24, 0
      %p114 = por %p112, %p113
      %s116 = sadd.s32 %s115, 1
      %p119 = scmp.eq.s32.totalorder %s18, 1
      %p120 = scmp.ne.s32.totalorder %s115, %s117
      %p121 = scmp.eq.s32.totalorder %s18, 0
      %p122 = por %p120, %p121
      %p123 = scmp.ne.s32.totalorder %s115, %s117
      %p124 = scmp.eq.s32.totalorder %s23, 1
      %p125 = por %p123, %p124
      %p126 = scmp.ne.s32.totalorder %s117, %s118
      %p127 = scmp.eq.s32.totalorder %s23, 0
      %p128 = por %p126, %p127
      %p129 = scmp.ne.s32.totalorder %s117, %s118
      %p130 = scmp.eq.s32.totalorder %s24, 1
      %p131 = por %p129, %p130
      %p133 = scmp.ne.s32.totalorder %s118, %s132
      %p134 = scmp.eq.s32.totalorder %s24, 0
      %p135 = por %p133, %p134
      %s137 = sadd.s32 %s136, 1
      %p140 = scmp.eq.s32.totalorder %s18, 1
      %p141 = scmp.ne.s32.totalorder %s136, %s138
      %p142 = scmp.eq.s32.totalorder %s18, 0
      %p143 = por %p141, %p142
      %p144 = scmp.ne.s32.totalorder %s136, %s138
      %p145 = scmp.eq.s32.totalorder %s23, 1
      %p146 = por %p144, %p145
      %p147 = scmp.ne.s32.totalorder %s138, %s139
      %p148 = scmp.eq.s32.totalorder %s23, 0
      %p149 = por %p147, %p148
      %p150 = scmp.ne.s32.totalorder %s138, %s139
      %p151 = scmp.eq.s32.totalorder %s24, 1
      %p152 = por %p150, %p151
      %p154 = scmp.ne.s32.totalorder %s139, %s153
      %p155 = scmp.eq.s32.totalorder %s24, 0
      %p156 = por %p154, %p155
      %s158 = sadd.s32 %s157, 1
      %p161 = scmp.eq.s32.totalorder %s18, 1
      %p162 = scmp.ne.s32.totalorder %s157, %s159
      %p163 = scmp.eq.s32.totalorder %s18, 0
      %p164 = por %p162, %p163
      %p165 = scmp.ne.s32.totalorder %s157, %s159
      %p166 = scmp.eq.s32.totalorder %s23, 1
      %p167 = por %p165, %p166
      %p168 = scmp.ne.s32.totalorder %s159, %s160
      %p169 = scmp.eq.s32.totalorder %s23, 0
      %p170 = por %p168, %p169
      %p171 = scmp.ne.s32.totalorder %s159, %s160
      %p172 = scmp.eq.s32.totalorder %s24, 1
      %p173 = por %p171, %p172
      %p175 = scmp.ne.s32.totalorder %s160, %s174
      %p176 = scmp.eq.s32.totalorder %s24, 0
      %p177 = por %p175, %p176
      %s179 = sadd.s32 %s178, 1
      %p182 = scmp.eq.s32.totalorder %s18, 1
      %p183 = scmp.ne.s32.totalorder %s178, %s180
      %p184 = scmp.eq.s32.totalorder %s18, 0
      %p185 = por %p183, %p184
      %p186 = scmp.ne.s32.totalorder %s178, %s180
      %p187 = scmp.eq.s32.totalorder %s23, 1
      %p188 = por %p186, %p187
      %p189 = scmp.ne.s32.totalorder %s180, %s181
      %p190 = scmp.eq.s32.totalorder %s23, 0
      %p191 = por %p189, %p190
      %p192 = scmp.ne.s32.totalorder %s180, %s181
      %p193 = scmp.eq.s32.totalorder %s24, 1
      %p194 = por %p192, %p193
      %p196 = scmp.ne.s32.totalorder %s181, %s195
      %p197 = scmp.eq.s32.totalorder %s24, 0
      %p198 = por %p196, %p197
      %s200 = sadd.s32 %s199, 1
      %p203 = scmp.eq.s32.totalorder %s18, 1
      %p204 = scmp.ne.s32.totalorder %s199, %s201
      %p205 = scmp.eq.s32.totalorder %s18, 0
      %p206 = por %p204, %p205
      %p207 = scmp.ne.s32.totalorder %s199, %s201
      %p208 = scmp.eq.s32.totalorder %s23, 1
      %p209 = por %p207, %p208
      %p210 = scmp.ne.s32.totalorder %s201, %s202
      %p211 = scmp.eq.s32.totalorder %s23, 0
      %p212 = por %p210, %p211
      %p213 = scmp.ne.s32.totalorder %s201, %s202
      %p214 = scmp.eq.s32.totalorder %s24, 1
      %p215 = por %p213, %p214
      %p217 = scmp.ne.s32.totalorder %s202, %s216
      %p218 = scmp.eq.s32.totalorder %s24, 0
      %p219 = por %p217, %p218
      %s220 = ssub.s32 %s18, %s25
      %p221 = scmp.eq.s32.totalorder %s220, 0
      %s223 = sadd.s32 %s222, 1
      %s224 = scalar_select %p221, %s222, %s223
      %p227 = pneg %p221
      %p228 = scmp.eq.s32.totalorder %s18, 1
      %p229 = por %p227, %p228
      %p230 = scmp.ne.s32.totalorder %s222, %s225
      %p231 = scmp.eq.s32.totalorder %s18, 0
      %p232 = por %p230, %p231
      %p233 = scmp.ne.s32.totalorder %s222, %s225
      %p234 = scmp.eq.s32.totalorder %s23, 1
      %p235 = por %p233, %p234
      %p236 = scmp.ne.s32.totalorder %s225, %s226
      %p237 = scmp.eq.s32.totalorder %s23, 0
      %p238 = por %p236, %p237
      %p239 = scmp.ne.s32.totalorder %s225, %s226
      %p240 = scmp.eq.s32.totalorder %s24, 1
      %p241 = por %p239, %p240
      %p243 = scmp.ne.s32.totalorder %s226, %s242
      %p244 = scmp.eq.s32.totalorder %s24, 0
      %p245 = por %p243, %p244
      %p246 = scmp.le.s32.totalorder 1, %s18
      %p247 = scmp.lt.s32.totalorder %s18, 3
      %p248 = pnand %p246, %p247
      %p249 = pneg %p248
      // Predicated region
      $region9: #{cnn_forward.1} parent=5 // pred_check
        _
      $region10: #{cnn_forward.1} parent=5 // pred_check_branch
        %251 = sbr.rel (%p248) target = $region12
      $region11: #{cnn_forward.1} parent=5 // pred_region
        %s252 = ssub.s32 %s18, 1
        // Predicated region
        $region13: #{cnn_forward.1} parent=11 // pred_check
          %p253 = pneg %p65
        $region14: #{cnn_forward.1} parent=11 // pred_check_branch
          %255 = sbr.rel (%p253) target = $region16
        $region15: #{cnn_forward.1} parent=11 // pred_region
          _
        $region16: #{cnn_forward.1} parent=11 // pred_fallthru
          _
        // Predicated region
        $region17: #{cnn_forward.1} parent=11 // pred_check
          %p256 = pneg %p86
        $region18: #{cnn_forward.1} parent=11 // pred_check_branch
          %258 = sbr.rel (%p256) target = $region20
        $region19: #{cnn_forward.1} parent=11 // pred_region
          _
        $region20: #{cnn_forward.1} parent=11 // pred_fallthru
          _
        // Predicated region
        $region21: #{cnn_forward.1} parent=11 // pred_check
          %p259 = pneg %p107
        $region22: #{cnn_forward.1} parent=11 // pred_check_branch
          %261 = sbr.rel (%p259) target = $region24
        $region23: #{cnn_forward.1} parent=11 // pred_region
          _
        $region24: #{cnn_forward.1} parent=11 // pred_fallthru
          _
        // Predicated region
        $region25: #{cnn_forward.1} parent=11 // pred_check
          %p262 = pneg %p128
        $region26: #{cnn_forward.1} parent=11 // pred_check_branch
          %264 = sbr.rel (%p262) target = $region28
        $region27: #{cnn_forward.1} parent=11 // pred_region
          _
        $region28: #{cnn_forward.1} parent=11 // pred_fallthru
          _
        // Predicated region
        $region29: #{cnn_forward.1} parent=11 // pred_check
          %p265 = pneg %p149
        $region30: #{cnn_forward.1} parent=11 // pred_check_branch
          %267 = sbr.rel (%p265) target = $region32
        $region31: #{cnn_forward.1} parent=11 // pred_region
          _
        $region32: #{cnn_forward.1} parent=11 // pred_fallthru
          _
        // Predicated region
        $region33: #{cnn_forward.1} parent=11 // pred_check
          %p268 = pneg %p170
        $region34: #{cnn_forward.1} parent=11 // pred_check_branch
          %270 = sbr.rel (%p268) target = $region36
        $region35: #{cnn_forward.1} parent=11 // pred_region
          _
        $region36: #{cnn_forward.1} parent=11 // pred_fallthru
          _
        // Predicated region
        $region37: #{cnn_forward.1} parent=11 // pred_check
          %p271 = pneg %p191
        $region38: #{cnn_forward.1} parent=11 // pred_check_branch
          %273 = sbr.rel (%p271) target = $region40
        $region39: #{cnn_forward.1} parent=11 // pred_region
          _
        $region40: #{cnn_forward.1} parent=11 // pred_fallthru
          _
        // Predicated region
        $region41: #{cnn_forward.1} parent=11 // pred_check
          %p274 = pneg %p212
        $region42: #{cnn_forward.1} parent=11 // pred_check_branch
          %276 = sbr.rel (%p274) target = $region44
        $region43: #{cnn_forward.1} parent=11 // pred_region
          _
        $region44: #{cnn_forward.1} parent=11 // pred_fallthru
          _
      $region12: #{cnn_forward.1} parent=5 // pred_fallthru
        _
      %p277 = scmp.lt.s32.totalorder %s18, 2
      // Predicated region
      $region45: #{cnn_forward.1} parent=5 // pred_check
        %p278 = pneg %p277
      $region46: #{cnn_forward.1} parent=5 // pred_check_branch
        %280 = sbr.rel (%p278) target = $region48
      $region47: #{cnn_forward.1} parent=5 // pred_region
        // Predicated region
        $region49: #{cnn_forward.1} parent=47 // pred_check
          %p281 = pneg %p38
        $region50: #{cnn_forward.1} parent=47 // pred_check_branch
          %283 = sbr.rel (%p281) target = $region52
        $region51: #{cnn_forward.1} parent=47 // pred_region
          %p284 = scmp.lt.s32.totalorder %s18, 1
          %s285 = scalar_select %p284, %s18, 1
          %s286 = smul.addr %s285, 32
          %s287 = smul.addr %s286, 4
          %s288 = scalar_lea.vmem %s0, %s287
        $region52: #{cnn_forward.1} parent=47 // pred_fallthru
          _
      $region48: #{cnn_forward.1} parent=5 // pred_fallthru
        _
      %p289 = scmp.le.s32.totalorder 1, %s18
      %p290 = scmp.lt.s32.totalorder %s18, 3
      %p291 = pnand %p289, %p290
      %p292 = pneg %p291
      // Predicated region
      $region53: #{cnn_forward.1} parent=5 // pred_check
        _
      $region54: #{cnn_forward.1} parent=5 // pred_check_branch
        %294 = sbr.rel (%p291) target = $region56
      $region55: #{cnn_forward.1} parent=5 // pred_region
        %s295 = ssub.s32 %s18, 1
        %p296 = scmp.lt.s32.totalorder %s23, 1
        %s297 = scalar_select %p296, %s23, 1
        %s298 = smul.addr %s297, 32
        %s299 = smul.addr %s298, 4
        %s300 = scalar_lea.vmem %s0, %s299
        %p301 = pneg %p44
        %p302 = pneg %p41
        %p303 = pneg %p65
        %p304 = pneg %p62
        %p305 = pneg %p86
        %p306 = pneg %p83
        %p307 = pneg %p107
        %p308 = pneg %p104
        %p309 = pneg %p128
        %p310 = pneg %p125
        %p311 = pneg %p149
        %p312 = pneg %p146
        %p313 = pneg %p170
        %p314 = pneg %p167
        %p315 = pneg %p191
        %p316 = pneg %p188
        %p317 = pneg %p212
        %p318 = pneg %p209
        %p319 = pneg %p238
        %p320 = pneg %p235
        %s321 = sand.u32 %s225, 1
        %s322 = scalar_lea.sflag [#allocation6], %s321
        %s323 = sand.u32 %s225, 1
        %s324 = scalar_lea.vmem [#allocation5], %s323
        %p325 = scmp.lt.s32.totalorder %s23, 1
        %s326 = scalar_select %p325, %s23, 1
        %s327 = smul.addr %s326, 32
        %s328 = smul.addr %s327, 4
        %s329 = scalar_lea.vmem %s0, %s328
        %vm331 = vcmask 27648
        %332 = vst.msk [vmem:[#allocation2] sm:$0xf] %vm331, 0
        %333 = vst.msk [vmem:[#allocation2 + $0x4] sm:$0xf] %vm331, 0
        %vm334 = vcmask 24576
        %335 = vst.msk [vmem:[#allocation2 + $0x8] sm:$0x1] %vm334, 0
        %336 = vst.msk [vmem:[#allocation2 + $0xc] sm:$0xf] %vm331, 0
        %337 = vst.msk [vmem:[#allocation2 + $0x10] sm:$0xf] %vm331, 0
        %338 = vst.msk [vmem:[#allocation2 + $0x14] sm:$0x1] %vm334, 0
        %339 = vst.msk [vmem:[#allocation2 + $0x18] sm:$0xf] %vm331, 0
        %340 = vst.msk [vmem:[#allocation2 + $0x1c] sm:$0xf] %vm331, 0
        %341 = vst.msk [vmem:[#allocation2 + $0x20] sm:$0x1] %vm334, 0
        %342 = vst.msk [vmem:[#allocation2 + $0x24] sm:$0xf] %vm331, 0
        %343 = vst.msk [vmem:[#allocation2 + $0x28] sm:$0xf] %vm331, 0
        %344 = vst.msk [vmem:[#allocation2 + $0x2c] sm:$0x1] %vm334, 0
        %345 = vst.msk [vmem:[#allocation2 + $0x30] sm:$0xf] %vm331, 0
        %346 = vst.msk [vmem:[#allocation2 + $0x34] sm:$0xf] %vm331, 0
        %347 = vst.msk [vmem:[#allocation2 + $0x38] sm:$0x1] %vm334, 0
        %348 = vst.msk [vmem:[#allocation2 + $0x3c] sm:$0xf] %vm331, 0
        %349 = vst.msk [vmem:[#allocation2 + $0x40] sm:$0xf] %vm331, 0
        %350 = vst.msk [vmem:[#allocation2 + $0x44] sm:$0x1] %vm334, 0
        %351 = vst.msk [vmem:[#allocation2 + $0x48] sm:$0xf] %vm331, 0
        %352 = vst.msk [vmem:[#allocation2 + $0x4c] sm:$0xf] %vm331, 0
        %353 = vst.msk [vmem:[#allocation2 + $0x50] sm:$0x1] %vm334, 0
        %354 = vst.msk [vmem:[#allocation2 + $0x54] sm:$0xf] %vm331, 0
        %355 = vst.msk [vmem:[#allocation2 + $0x58] sm:$0xf] %vm331, 0
        %356 = vst.msk [vmem:[#allocation2 + $0x5c] sm:$0x1] %vm334, 0
        %357 = vst.msk [vmem:[#allocation2 + $0x60] sm:$0xf] %vm331, 0
        %358 = vst.msk [vmem:[#allocation2 + $0x64] sm:$0xf] %vm331, 0
        %359 = vst.msk [vmem:[#allocation2 + $0x68] sm:$0x1] %vm334, 0
        %360 = vst.msk [vmem:[#allocation2 + $0x6c] sm:$0xf] %vm331, 0
        %361 = vst.msk [vmem:[#allocation2 + $0x70] sm:$0xf] %vm331, 0
        %362 = vst.msk [vmem:[#allocation2 + $0x74] sm:$0x1] %vm334, 0
        %363 = vst.msk [vmem:[#allocation2 + $0x78] sm:$0xf] %vm331, 0
        %364 = vst.msk [vmem:[#allocation2 + $0x7c] sm:$0xf] %vm331, 0
        %365 = vst.msk [vmem:[#allocation2 + $0x80] sm:$0x1] %vm334, 0
        %366 = vst.msk [vmem:[#allocation2 + $0x84] sm:$0xf] %vm331, 0
        %367 = vst.msk [vmem:[#allocation2 + $0x88] sm:$0xf] %vm331, 0
        %368 = vst.msk [vmem:[#allocation2 + $0x8c] sm:$0x1] %vm334, 0
        %369 = vst.msk [vmem:[#allocation2 + $0x90] sm:$0xf] %vm331, 0
        %370 = vst.msk [vmem:[#allocation2 + $0x94] sm:$0xf] %vm331, 0
        %371 = vst.msk [vmem:[#allocation2 + $0x98] sm:$0x1] %vm334, 0
        %372 = vst.msk [vmem:[#allocation2 + $0x9c] sm:$0xf] %vm331, 0
        %373 = vst.msk [vmem:[#allocation2 + $0xa0] sm:$0xf] %vm331, 0
        %374 = vst.msk [vmem:[#allocation2 + $0xa4] sm:$0x1] %vm334, 0
        %375 = vst.msk [vmem:[#allocation2 + $0xa8] sm:$0xf] %vm331, 0
        %376 = vst.msk [vmem:[#allocation2 + $0xac] sm:$0xf] %vm331, 0
        %377 = vst.msk [vmem:[#allocation2 + $0xb0] sm:$0x1] %vm334, 0
        %378 = vst.msk [vmem:[#allocation2 + $0xb4] sm:$0xf] %vm331, 0
        %379 = vst.msk [vmem:[#allocation2 + $0xb8] sm:$0xf] %vm331, 0
        %380 = vst.msk [vmem:[#allocation2 + $0xbc] sm:$0x1] %vm334, 0
        %381 = vst.msk [vmem:[#allocation2 + $0xc0] sm:$0xf] %vm331, 0
        %382 = vst.msk [vmem:[#allocation2 + $0xc4] sm:$0xf] %vm331, 0
        %383 = vst.msk [vmem:[#allocation2 + $0xc8] sm:$0x1] %vm334, 0
        %384 = vst.msk [vmem:[#allocation2 + $0xcc] sm:$0xf] %vm331, 0
        %385 = vst.msk [vmem:[#allocation2 + $0xd0] sm:$0xf] %vm331, 0
        %386 = vst.msk [vmem:[#allocation2 + $0xd4] sm:$0x1] %vm334, 0
        %v387 = vld [vmem:[%s329] sm:$0xf]
        %v388 = vld [vmem:[%s329 + $0x4] sm:$0xf]
        %v389 = vld [vmem:[%s329 + $0x8] sm:$0xf]
        %v390 = vld [vmem:[%s329 + $0xc] sm:$0xf]
        %v391 = vld [vmem:[%s329 + $0x10] sm:$0xf]
        %v392 = vld [vmem:[%s329 + $0x14] sm:$0xf]
        %v393 = vld [vmem:[%s329 + $0x18] sm:$0xf]
        %v394 = vld [vmem:[%s329 + $0x1c] sm:$0xf]
        %v395 = vld [vmem:[%s329 + $0x20] sm:$0xf]
        %v396 = vld [vmem:[%s329 + $0x24] sm:$0xf]
        %v397 = vld [vmem:[%s329 + $0x28] sm:$0xf]
        %v398 = vld [vmem:[%s329 + $0x2c] sm:$0xf]
        %v399 = vld [vmem:[%s329 + $0x30] sm:$0xf]
        %v400 = vld [vmem:[%s329 + $0x34] sm:$0xf]
        %v401 = vld [vmem:[%s329 + $0x38] sm:$0xf]
        %v402 = vld [vmem:[%s329 + $0x3c] sm:$0xf]
        %v403 = vld [vmem:[%s329 + $0x40] sm:$0xf]
        %v404 = vld [vmem:[%s329 + $0x44] sm:$0xf]
        %v405 = vld [vmem:[%s329 + $0x48] sm:$0xf]
        %v406 = vld [vmem:[%s329 + $0x4c] sm:$0xf]
        %v407 = vld [vmem:[%s329 + $0x50] sm:$0xf]
        %v408 = vld [vmem:[%s329 + $0x54] sm:$0xf]
        %v409 = vld [vmem:[%s329 + $0x58] sm:$0xf]
        %v410 = vld [vmem:[%s329 + $0x5c] sm:$0xf]
        %v411 = vld [vmem:[%s329 + $0x60] sm:$0xf]
        %v412 = vld [vmem:[%s329 + $0x64] sm:$0xf]
        %v413 = vld [vmem:[%s329 + $0x68] sm:$0xf]
        %v414 = vld [vmem:[%s329 + $0x6c] sm:$0xf]
        %v415 = vld [vmem:[%s329 + $0x70] sm:$0xf]
        %v416 = vld [vmem:[%s329 + $0x74] sm:$0xf]
        %v417 = vld [vmem:[%s329 + $0x78] sm:$0xf]
        %v418 = vld [vmem:[%s329 + $0x7c] sm:$0xf]
        %vm419 = vsmask.f32 256
        %vm420 = vsmask.f32 4368
        %vm421 = vmor %vm419, %vm420
        %v423 = vshrl.u32 %v387, 16
        %v425 = vrot.slane %v423, 7
        %v426 = vshll.u32 %v387, 16
        %v428 = vor.u32 %v425, %v426
        %v429 = vrot.slane %v425, 4
        %v431 = vshrl.u32 %v388, 16
        %v433 = vrot.slane %v431, 7
        %v434 = vshll.u32 %v388, 16
        %v436 = vor.u32 %v433, %v434
        %v437 = vsel %vm421, %v429, %v436
        %v438 = vrot.slane %v433, 4
        %v440 = vshrl.u32 %v389, 16
        %v442 = vrot.slane %v440, 7
        %v443 = vshll.u32 %v389, 16
        %v445 = vor.u32 %v442, %v443
        %v446 = vrot.slane %v442, 4
        %v448 = vshrl.u32 %v390, 16
        %v450 = vrot.slane %v448, 7
        %v451 = vshll.u32 %v390, 16
        %v453 = vor.u32 %v450, %v451
        %v454 = vsel %vm421, %v446, %v453
        %v455 = vrot.slane %v450, 4
        %v457 = vshrl.u32 %v391, 16
        %v459 = vrot.slane %v457, 7
        %v460 = vshll.u32 %v391, 16
        %v462 = vor.u32 %v459, %v460
        %v463 = vrot.slane %v459, 4
        %v465 = vshrl.u32 %v392, 16
        %v467 = vrot.slane %v465, 7
        %v468 = vshll.u32 %v392, 16
        %v470 = vor.u32 %v467, %v468
        %v471 = vsel %vm421, %v463, %v470
        %v472 = vrot.slane %v467, 4
        %v474 = vshrl.u32 %v393, 16
        %v476 = vrot.slane %v474, 7
        %v477 = vshll.u32 %v393, 16
        %v479 = vor.u32 %v476, %v477
        %v480 = vrot.slane %v476, 4
        %v482 = vshrl.u32 %v394, 16
        %v484 = vrot.slane %v482, 7
        %v485 = vshll.u32 %v394, 16
        %v487 = vor.u32 %v484, %v485
        %v488 = vsel %vm421, %v480, %v487
        %v489 = vrot.slane %v484, 4
        %v491 = vshrl.u32 %v395, 16
        %v493 = vrot.slane %v491, 7
        %v494 = vshll.u32 %v395, 16
        %v496 = vor.u32 %v493, %v494
        %v497 = vrot.slane %v493, 4
        %v499 = vshrl.u32 %v396, 16
        %v501 = vrot.slane %v499, 7
        %v502 = vshll.u32 %v396, 16
        %v504 = vor.u32 %v501, %v502
        %v505 = vsel %vm421, %v497, %v504
        %v506 = vrot.slane %v501, 4
        %v508 = vshrl.u32 %v397, 16
        %v510 = vrot.slane %v508, 7
        %v511 = vshll.u32 %v397, 16
        %v513 = vor.u32 %v510, %v511
        %v514 = vrot.slane %v510, 4
        %v516 = vshrl.u32 %v398, 16
        %v518 = vrot.slane %v516, 7
        %v519 = vshll.u32 %v398, 16
        %v521 = vor.u32 %v518, %v519
        %v522 = vsel %vm421, %v514, %v521
        %v523 = vrot.slane %v518, 4
        %v525 = vshrl.u32 %v399, 16
        %v527 = vrot.slane %v525, 7
        %v528 = vshll.u32 %v399, 16
        %v530 = vor.u32 %v527, %v528
        %v531 = vrot.slane %v527, 4
        %v533 = vshrl.u32 %v400, 16
        %v535 = vrot.slane %v533, 7
        %v536 = vshll.u32 %v400, 16
        %v538 = vor.u32 %v535, %v536
        %v539 = vsel %vm421, %v531, %v538
        %v540 = vrot.slane %v535, 4
        %v542 = vshrl.u32 %v401, 16
        %v544 = vrot.slane %v542, 7
        %v545 = vshll.u32 %v401, 16
        %v547 = vor.u32 %v544, %v545
        %v548 = vrot.slane %v544, 4
        %v550 = vshrl.u32 %v402, 16
        %v552 = vrot.slane %v550, 7
        %v553 = vshll.u32 %v402, 16
        %v555 = vor.u32 %v552, %v553
        %v556 = vsel %vm421, %v548, %v555
        %v557 = vrot.slane %v552, 4
        %v559 = vshrl.u32 %v403, 16
        %v561 = vrot.slane %v559, 7
        %v562 = vshll.u32 %v403, 16
        %v564 = vor.u32 %v561, %v562
        %v565 = vrot.slane %v561, 4
        %v567 = vshrl.u32 %v404, 16
        %v569 = vrot.slane %v567, 7
        %v570 = vshll.u32 %v404, 16
        %v572 = vor.u32 %v569, %v570
        %v573 = vsel %vm421, %v565, %v572
        %v574 = vrot.slane %v569, 4
        %v576 = vshrl.u32 %v405, 16
        %v578 = vrot.slane %v576, 7
        %v579 = vshll.u32 %v405, 16
        %v581 = vor.u32 %v578, %v579
        %v582 = vrot.slane %v578, 4
        %v584 = vshrl.u32 %v406, 16
        %v586 = vrot.slane %v584, 7
        %v587 = vshll.u32 %v406, 16
        %v589 = vor.u32 %v586, %v587
        %v590 = vsel %vm421, %v582, %v589
        %v591 = vrot.slane %v586, 4
        %v593 = vshrl.u32 %v407, 16
        %v595 = vrot.slane %v593, 7
        %v596 = vshll.u32 %v407, 16
        %v598 = vor.u32 %v595, %v596
        %v599 = vrot.slane %v595, 4
        %v601 = vshrl.u32 %v408, 16
        %v603 = vrot.slane %v601, 7
        %v604 = vshll.u32 %v408, 16
        %v606 = vor.u32 %v603, %v604
        %v607 = vsel %vm421, %v599, %v606
        %v608 = vrot.slane %v603, 4
        %v610 = vshrl.u32 %v409, 16
        %v612 = vrot.slane %v610, 7
        %v613 = vshll.u32 %v409, 16
        %v615 = vor.u32 %v612, %v613
        %v616 = vrot.slane %v612, 4
        %v618 = vshrl.u32 %v410, 16
        %v620 = vrot.slane %v618, 7
        %v621 = vshll.u32 %v410, 16
        %v623 = vor.u32 %v620, %v621
        %v624 = vsel %vm421, %v616, %v623
        %v625 = vrot.slane %v620, 4
        %v627 = vshrl.u32 %v411, 16
        %v629 = vrot.slane %v627, 7
        %v630 = vshll.u32 %v411, 16
        %v632 = vor.u32 %v629, %v630
        %v633 = vrot.slane %v629, 4
        %v635 = vshrl.u32 %v412, 16
        %v637 = vrot.slane %v635, 7
        %v638 = vshll.u32 %v412, 16
        %v640 = vor.u32 %v637, %v638
        %v641 = vsel %vm421, %v633, %v640
        %v642 = vrot.slane %v637, 4
        %v644 = vshrl.u32 %v413, 16
        %v646 = vrot.slane %v644, 7
        %v647 = vshll.u32 %v413, 16
        %v649 = vor.u32 %v646, %v647
        %v650 = vrot.slane %v646, 4
        %v652 = vshrl.u32 %v414, 16
        %v654 = vrot.slane %v652, 7
        %v655 = vshll.u32 %v414, 16
        %v657 = vor.u32 %v654, %v655
        %v658 = vsel %vm421, %v650, %v657
        %v659 = vrot.slane %v654, 4
        %v661 = vshrl.u32 %v415, 16
        %v663 = vrot.slane %v661, 7
        %v664 = vshll.u32 %v415, 16
        %v666 = vor.u32 %v663, %v664
        %v667 = vrot.slane %v663, 4
        %v669 = vshrl.u32 %v416, 16
        %v671 = vrot.slane %v669, 7
        %v672 = vshll.u32 %v416, 16
        %v674 = vor.u32 %v671, %v672
        %v675 = vsel %vm421, %v667, %v674
        %v676 = vrot.slane %v671, 4
        %v678 = vshrl.u32 %v417, 16
        %v680 = vrot.slane %v678, 7
        %v681 = vshll.u32 %v417, 16
        %v683 = vor.u32 %v680, %v681
        %v684 = vrot.slane %v680, 4
        %v686 = vshrl.u32 %v418, 16
        %v688 = vrot.slane %v686, 7
        %v689 = vshll.u32 %v418, 16
        %v691 = vor.u32 %v688, %v689
        %v692 = vsel %vm421, %v684, %v691
        %v693 = vrot.slane %v688, 4
        %s742 = scalar_lea.vmem [#allocation2], 12
        %vm743 = vcmask 27648
        %vm744 = vsmask.f32 7938
        %vm745 = vmand %vm743, %vm744
        %v746 = vld [vmem:[%s742] sm:$0xf]
        %v747 = vsel %vm745, %v428, %v746
        %748 = vst [vmem:[%s742] sm:$0xf] %v747
        %749 = vst.msk [vmem:[%s742 + $0x4] sm:$0xf] %vm331, %v437
        %vm750 = vcmask 24576
        %vm751 = vmand %vm750, %vm419
        %v752 = vld [vmem:[%s742 + $0x8] sm:$0x1]
        %v753 = vsel %vm751, %v438, %v752
        %754 = vst [vmem:[%s742 + $0x8] sm:$0x1] %v753
        %v755 = vld [vmem:[%s742 + $0xc] sm:$0xf]
        %v756 = vsel %vm745, %v445, %v755
        %757 = vst [vmem:[%s742 + $0xc] sm:$0xf] %v756
        %758 = vst.msk [vmem:[%s742 + $0x10] sm:$0xf] %vm331, %v454
        %v759 = vld [vmem:[%s742 + $0x14] sm:$0x1]
        %v760 = vsel %vm751, %v455, %v759
        %761 = vst [vmem:[%s742 + $0x14] sm:$0x1] %v760
        %v762 = vld [vmem:[%s742 + $0x18] sm:$0xf]
        %v763 = vsel %vm745, %v462, %v762
        %764 = vst [vmem:[%s742 + $0x18] sm:$0xf] %v763
        %765 = vst.msk [vmem:[%s742 + $0x1c] sm:$0xf] %vm331, %v471
        %v766 = vld [vmem:[%s742 + $0x20] sm:$0x1]
        %v767 = vsel %vm751, %v472, %v766
        %768 = vst [vmem:[%s742 + $0x20] sm:$0x1] %v767
        %v769 = vld [vmem:[%s742 + $0x24] sm:$0xf]
        %v770 = vsel %vm745, %v479, %v769
        %771 = vst [vmem:[%s742 + $0x24] sm:$0xf] %v770
        %772 = vst.msk [vmem:[%s742 + $0x28] sm:$0xf] %vm331, %v488
        %v773 = vld [vmem:[%s742 + $0x2c] sm:$0x1]
        %v774 = vsel %vm751, %v489, %v773
        %775 = vst [vmem:[%s742 + $0x2c] sm:$0x1] %v774
        %v776 = vld [vmem:[%s742 + $0x30] sm:$0xf]
        %v777 = vsel %vm745, %v496, %v776
        %778 = vst [vmem:[%s742 + $0x30] sm:$0xf] %v777
        %779 = vst.msk [vmem:[%s742 + $0x34] sm:$0xf] %vm331, %v505
        %v780 = vld [vmem:[%s742 + $0x38] sm:$0x1]
        %v781 = vsel %vm751, %v506, %v780
        %782 = vst [vmem:[%s742 + $0x38] sm:$0x1] %v781
        %v783 = vld [vmem:[%s742 + $0x3c] sm:$0xf]
        %v784 = vsel %vm745, %v513, %v783
        %785 = vst [vmem:[%s742 + $0x3c] sm:$0xf] %v784
        %786 = vst.msk [vmem:[%s742 + $0x40] sm:$0xf] %vm331, %v522
        %v787 = vld [vmem:[%s742 + $0x44] sm:$0x1]
        %v788 = vsel %vm751, %v523, %v787
        %789 = vst [vmem:[%s742 + $0x44] sm:$0x1] %v788
        %v790 = vld [vmem:[%s742 + $0x48] sm:$0xf]
        %v791 = vsel %vm745, %v530, %v790
        %792 = vst [vmem:[%s742 + $0x48] sm:$0xf] %v791
        %793 = vst.msk [vmem:[%s742 + $0x4c] sm:$0xf] %vm331, %v539
        %v794 = vld [vmem:[%s742 + $0x50] sm:$0x1]
        %v795 = vsel %vm751, %v540, %v794
        %796 = vst [vmem:[%s742 + $0x50] sm:$0x1] %v795
        %v797 = vld [vmem:[%s742 + $0x54] sm:$0xf]
        %v798 = vsel %vm745, %v547, %v797
        %799 = vst [vmem:[%s742 + $0x54] sm:$0xf] %v798
        %800 = vst.msk [vmem:[%s742 + $0x58] sm:$0xf] %vm331, %v556
        %v801 = vld [vmem:[%s742 + $0x5c] sm:$0x1]
        %v802 = vsel %vm751, %v557, %v801
        %803 = vst [vmem:[%s742 + $0x5c] sm:$0x1] %v802
        %v804 = vld [vmem:[%s742 + $0x60] sm:$0xf]
        %v805 = vsel %vm745, %v564, %v804
        %806 = vst [vmem:[%s742 + $0x60] sm:$0xf] %v805
        %807 = vst.msk [vmem:[%s742 + $0x64] sm:$0xf] %vm331, %v573
        %v808 = vld [vmem:[%s742 + $0x68] sm:$0x1]
        %v809 = vsel %vm751, %v574, %v808
        %810 = vst [vmem:[%s742 + $0x68] sm:$0x1] %v809
        %v811 = vld [vmem:[%s742 + $0x6c] sm:$0xf]
        %v812 = vsel %vm745, %v581, %v811
        %813 = vst [vmem:[%s742 + $0x6c] sm:$0xf] %v812
        %814 = vst.msk [vmem:[%s742 + $0x70] sm:$0xf] %vm331, %v590
        %v815 = vld [vmem:[%s742 + $0x74] sm:$0x1]
        %v816 = vsel %vm751, %v591, %v815
        %817 = vst [vmem:[%s742 + $0x74] sm:$0x1] %v816
        %v818 = vld [vmem:[%s742 + $0x78] sm:$0xf]
        %v819 = vsel %vm745, %v598, %v818
        %820 = vst [vmem:[%s742 + $0x78] sm:$0xf] %v819
        %821 = vst.msk [vmem:[%s742 + $0x7c] sm:$0xf] %vm331, %v607
        %v822 = vld [vmem:[%s742 + $0x80] sm:$0x1]
        %v823 = vsel %vm751, %v608, %v822
        %824 = vst [vmem:[%s742 + $0x80] sm:$0x1] %v823
        %v825 = vld [vmem:[%s742 + $0x84] sm:$0xf]
        %v826 = vsel %vm745, %v615, %v825
        %827 = vst [vmem:[%s742 + $0x84] sm:$0xf] %v826
        %828 = vst.msk [vmem:[%s742 + $0x88] sm:$0xf] %vm331, %v624
        %v829 = vld [vmem:[%s742 + $0x8c] sm:$0x1]
        %v830 = vsel %vm751, %v625, %v829
        %831 = vst [vmem:[%s742 + $0x8c] sm:$0x1] %v830
        %v832 = vld [vmem:[%s742 + $0x90] sm:$0xf]
        %v833 = vsel %vm745, %v632, %v832
        %834 = vst [vmem:[%s742 + $0x90] sm:$0xf] %v833
        %835 = vst.msk [vmem:[%s742 + $0x94] sm:$0xf] %vm331, %v641
        %v836 = vld [vmem:[%s742 + $0x98] sm:$0x1]
        %v837 = vsel %vm751, %v642, %v836
        %838 = vst [vmem:[%s742 + $0x98] sm:$0x1] %v837
        %v839 = vld [vmem:[%s742 + $0x9c] sm:$0xf]
        %v840 = vsel %vm745, %v649, %v839
        %841 = vst [vmem:[%s742 + $0x9c] sm:$0xf] %v840
        %842 = vst.msk [vmem:[%s742 + $0xa0] sm:$0xf] %vm331, %v658
        %v843 = vld [vmem:[%s742 + $0xa4] sm:$0x1]
        %v844 = vsel %vm751, %v659, %v843
        %845 = vst [vmem:[%s742 + $0xa4] sm:$0x1] %v844
        %v846 = vld [vmem:[%s742 + $0xa8] sm:$0xf]
        %v847 = vsel %vm745, %v666, %v846
        %848 = vst [vmem:[%s742 + $0xa8] sm:$0xf] %v847
        %849 = vst.msk [vmem:[%s742 + $0xac] sm:$0xf] %vm331, %v675
        %v850 = vld [vmem:[%s742 + $0xb0] sm:$0x1]
        %v851 = vsel %vm751, %v676, %v850
        %852 = vst [vmem:[%s742 + $0xb0] sm:$0x1] %v851
        %v853 = vld [vmem:[%s742 + $0xb4] sm:$0xf]
        %v854 = vsel %vm745, %v683, %v853
        %855 = vst [vmem:[%s742 + $0xb4] sm:$0xf] %v854
        %856 = vst.msk [vmem:[%s742 + $0xb8] sm:$0xf] %vm331, %v692
        %v857 = vld [vmem:[%s742 + $0xbc] sm:$0x1]
        %v858 = vsel %vm751, %v693, %v857
        %859 = vst [vmem:[%s742 + $0xbc] sm:$0x1] %v858
        %v860 = vld [vmem:[#allocation2] sm:$0xf]
        %v861 = vld [vmem:[#allocation2 + $0x4] sm:$0xf]
        %v862 = vld [vmem:[#allocation2 + $0xc] sm:$0xf]
        %v863 = vld [vmem:[#allocation2 + $0x10] sm:$0xf]
        %v864 = vld [vmem:[#allocation2 + $0x18] sm:$0xf]
        %v865 = vld [vmem:[#allocation2 + $0x1c] sm:$0xf]
        %v866 = vld [vmem:[#allocation2 + $0x24] sm:$0xf]
        %v867 = vld [vmem:[#allocation2 + $0x28] sm:$0xf]
        %v868 = vld [vmem:[#allocation2 + $0x30] sm:$0xf]
        %v869 = vld [vmem:[#allocation2 + $0x34] sm:$0xf]
        %v870 = vld [vmem:[#allocation2 + $0x3c] sm:$0xf]
        %v871 = vld [vmem:[#allocation2 + $0x40] sm:$0xf]
        %v872 = vld [vmem:[#allocation2 + $0x48] sm:$0xf]
        %v873 = vld [vmem:[#allocation2 + $0x4c] sm:$0xf]
        %v874 = vld [vmem:[#allocation2 + $0x54] sm:$0xf]
        %v875 = vld [vmem:[#allocation2 + $0x58] sm:$0xf]
        %v876 = vld [vmem:[#allocation2 + $0x60] sm:$0xf]
        %v877 = vld [vmem:[#allocation2 + $0x64] sm:$0xf]
        %v878 = vld [vmem:[#allocation2 + $0x6c] sm:$0xf]
        %v879 = vld [vmem:[#allocation2 + $0x70] sm:$0xf]
        %v880 = vld [vmem:[#allocation2 + $0x78] sm:$0xf]
        %v881 = vld [vmem:[#allocation2 + $0x7c] sm:$0xf]
        %v882 = vld [vmem:[#allocation2 + $0x84] sm:$0xf]
        %v883 = vld [vmem:[#allocation2 + $0x88] sm:$0xf]
        %v884 = vld [vmem:[#allocation2 + $0x90] sm:$0xf]
        %v885 = vld [vmem:[#allocation2 + $0x94] sm:$0xf]
        %v886 = vld [vmem:[#allocation2 + $0x9c] sm:$0xf]
        %v887 = vld [vmem:[#allocation2 + $0xa0] sm:$0xf]
        %v888 = vld [vmem:[#allocation2 + $0xa8] sm:$0xf]
        %v889 = vld [vmem:[#allocation2 + $0xac] sm:$0xf]
        %v890 = vld [vmem:[#allocation2 + $0xb4] sm:$0xf]
        %v891 = vld [vmem:[#allocation2 + $0xb8] sm:$0xf]
        %v892 = vld [vmem:[#allocation2 + $0x8] sm:$0x1]
        %v893 = vld [vmem:[#allocation2 + $0x14] sm:$0x1]
        %v894 = vld [vmem:[#allocation2 + $0x20] sm:$0x1]
        %v895 = vld [vmem:[#allocation2 + $0x2c] sm:$0x1]
        %v896 = vld [vmem:[#allocation2 + $0x38] sm:$0x1]
        %v897 = vld [vmem:[#allocation2 + $0x44] sm:$0x1]
        %v898 = vld [vmem:[#allocation2 + $0x50] sm:$0x1]
        %v899 = vld [vmem:[#allocation2 + $0x5c] sm:$0x1]
        %v900 = vld [vmem:[#allocation2 + $0x68] sm:$0x1]
        %v901 = vld [vmem:[#allocation2 + $0x74] sm:$0x1]
        %v902 = vld [vmem:[#allocation2 + $0x80] sm:$0x1]
        %v903 = vld [vmem:[#allocation2 + $0x8c] sm:$0x1]
        %v904 = vld [vmem:[#allocation2 + $0x98] sm:$0x1]
        %v905 = vld [vmem:[#allocation2 + $0xa4] sm:$0x1]
        %v906 = vld [vmem:[#allocation2 + $0xb0] sm:$0x1]
        %v907 = vld [vmem:[#allocation2 + $0xbc] sm:$0x1]
        %vm908 = vsmask.f32 3328
        %vm909 = vsmask.f32 7440
        %vm910 = vmor %vm908, %vm909
        %v912 = vshrl.u32 %v860, 16
        %v914 = vrot.slane %v912, 4
        %v915 = vshll.u32 %v860, 16
        %v917 = vrot.slane %v915, 5
        %v918 = vor.u32 %v914, %v917
        %v919 = vrot.slane %v918, 4
        %v921 = vshll.u32 %v861, 16
        %v923 = vrot.slane %v921, 5
        %v924 = vsel %vm910, %v919, %v923
        %v925 = vshrl.u32 %v861, 16
        %v927 = vrot.slane %v925, 4
        %v928 = vor.u32 %v927, %v923
        %v929 = vrot.slane %v928, 4
        %v931 = vshll.u32 %v892, 16
        %v933 = vrot.slane %v931, 5
        %v934 = vsel %vm910, %v929, %v933
        %v936 = vshrl.u32 %v862, 16
        %v938 = vrot.slane %v936, 4
        %v939 = vshll.u32 %v862, 16
        %v941 = vrot.slane %v939, 5
        %v942 = vor.u32 %v938, %v941
        %v943 = vrot.slane %v942, 4
        %v945 = vshll.u32 %v863, 16
        %v947 = vrot.slane %v945, 5
        %v948 = vsel %vm910, %v943, %v947
        %v949 = vshrl.u32 %v863, 16
        %v951 = vrot.slane %v949, 4
        %v952 = vor.u32 %v951, %v947
        %v953 = vrot.slane %v952, 4
        %v955 = vshll.u32 %v893, 16
        %v957 = vrot.slane %v955, 5
        %v958 = vsel %vm910, %v953, %v957
        %v960 = vshrl.u32 %v864, 16
        %v962 = vrot.slane %v960, 4
        %v963 = vshll.u32 %v864, 16
        %v965 = vrot.slane %v963, 5
        %v966 = vor.u32 %v962, %v965
        %v967 = vrot.slane %v966, 4
        %v969 = vshll.u32 %v865, 16
        %v971 = vrot.slane %v969, 5
        %v972 = vsel %vm910, %v967, %v971
        %v973 = vshrl.u32 %v865, 16
        %v975 = vrot.slane %v973, 4
        %v976 = vor.u32 %v975, %v971
        %v977 = vrot.slane %v976, 4
        %v979 = vshll.u32 %v894, 16
        %v981 = vrot.slane %v979, 5
        %v982 = vsel %vm910, %v977, %v981
        %v984 = vshrl.u32 %v866, 16
        %v986 = vrot.slane %v984, 4
        %v987 = vshll.u32 %v866, 16
        %v989 = vrot.slane %v987, 5
        %v990 = vor.u32 %v986, %v989
        %v991 = vrot.slane %v990, 4
        %v993 = vshll.u32 %v867, 16
        %v995 = vrot.slane %v993, 5
        %v996 = vsel %vm910, %v991, %v995
        %v997 = vshrl.u32 %v867, 16
        %v999 = vrot.slane %v997, 4
        %v1000 = vor.u32 %v999, %v995
        %v1001 = vrot.slane %v1000, 4
        %v1003 = vshll.u32 %v895, 16
        %v1005 = vrot.slane %v1003, 5
        %v1006 = vsel %vm910, %v1001, %v1005
        %v1008 = vshrl.u32 %v868, 16
        %v1010 = vrot.slane %v1008, 4
        %v1011 = vshll.u32 %v868, 16
        %v1013 = vrot.slane %v1011, 5
        %v1014 = vor.u32 %v1010, %v1013
        %v1015 = vrot.slane %v1014, 4
        %v1017 = vshll.u32 %v869, 16
        %v1019 = vrot.slane %v1017, 5
        %v1020 = vsel %vm910, %v1015, %v1019
        %v1021 = vshrl.u32 %v869, 16
        %v1023 = vrot.slane %v1021, 4
        %v1024 = vor.u32 %v1023, %v1019
        %v1025 = vrot.slane %v1024, 4
        %v1027 = vshll.u32 %v896, 16
        %v1029 = vrot.slane %v1027, 5
        %v1030 = vsel %vm910, %v1025, %v1029
        %v1032 = vshrl.u32 %v870, 16
        %v1034 = vrot.slane %v1032, 4
        %v1035 = vshll.u32 %v870, 16
        %v1037 = vrot.slane %v1035, 5
        %v1038 = vor.u32 %v1034, %v1037
        %v1039 = vrot.slane %v1038, 4
        %v1041 = vshll.u32 %v871, 16
        %v1043 = vrot.slane %v1041, 5
        %v1044 = vsel %vm910, %v1039, %v1043
        %v1045 = vshrl.u32 %v871, 16
        %v1047 = vrot.slane %v1045, 4
        %v1048 = vor.u32 %v1047, %v1043
        %v1049 = vrot.slane %v1048, 4
        %v1051 = vshll.u32 %v897, 16
        %v1053 = vrot.slane %v1051, 5
        %v1054 = vsel %vm910, %v1049, %v1053
        %v1056 = vshrl.u32 %v872, 16
        %v1058 = vrot.slane %v1056, 4
        %v1059 = vshll.u32 %v872, 16
        %v1061 = vrot.slane %v1059, 5
        %v1062 = vor.u32 %v1058, %v1061
        %v1063 = vrot.slane %v1062, 4
        %v1065 = vshll.u32 %v873, 16
        %v1067 = vrot.slane %v1065, 5
        %v1068 = vsel %vm910, %v1063, %v1067
        %v1069 = vshrl.u32 %v873, 16
        %v1071 = vrot.slane %v1069, 4
        %v1072 = vor.u32 %v1071, %v1067
        %v1073 = vrot.slane %v1072, 4
        %v1075 = vshll.u32 %v898, 16
        %v1077 = vrot.slane %v1075, 5
        %v1078 = vsel %vm910, %v1073, %v1077
        %v1080 = vshrl.u32 %v874, 16
        %v1082 = vrot.slane %v1080, 4
        %v1083 = vshll.u32 %v874, 16
        %v1085 = vrot.slane %v1083, 5
        %v1086 = vor.u32 %v1082, %v1085
        %v1087 = vrot.slane %v1086, 4
        %v1089 = vshll.u32 %v875, 16
        %v1091 = vrot.slane %v1089, 5
        %v1092 = vsel %vm910, %v1087, %v1091
        %v1093 = vshrl.u32 %v875, 16
        %v1095 = vrot.slane %v1093, 4
        %v1096 = vor.u32 %v1095, %v1091
        %v1097 = vrot.slane %v1096, 4
        %v1099 = vshll.u32 %v899, 16
        %v1101 = vrot.slane %v1099, 5
        %v1102 = vsel %vm910, %v1097, %v1101
        %v1104 = vshrl.u32 %v876, 16
        %v1106 = vrot.slane %v1104, 4
        %v1107 = vshll.u32 %v876, 16
        %v1109 = vrot.slane %v1107, 5
        %v1110 = vor.u32 %v1106, %v1109
        %v1111 = vrot.slane %v1110, 4
        %v1113 = vshll.u32 %v877, 16
        %v1115 = vrot.slane %v1113, 5
        %v1116 = vsel %vm910, %v1111, %v1115
        %v1117 = vshrl.u32 %v877, 16
        %v1119 = vrot.slane %v1117, 4
        %v1120 = vor.u32 %v1119, %v1115
        %v1121 = vrot.slane %v1120, 4
        %v1123 = vshll.u32 %v900, 16
        %v1125 = vrot.slane %v1123, 5
        %v1126 = vsel %vm910, %v1121, %v1125
        %v1128 = vshrl.u32 %v878, 16
        %v1130 = vrot.slane %v1128, 4
        %v1131 = vshll.u32 %v878, 16
        %v1133 = vrot.slane %v1131, 5
        %v1134 = vor.u32 %v1130, %v1133
        %v1135 = vrot.slane %v1134, 4
        %v1137 = vshll.u32 %v879, 16
        %v1139 = vrot.slane %v1137, 5
        %v1140 = vsel %vm910, %v1135, %v1139
        %v1141 = vshrl.u32 %v879, 16
        %v1143 = vrot.slane %v1141, 4
        %v1144 = vor.u32 %v1143, %v1139
        %v1145 = vrot.slane %v1144, 4
        %v1147 = vshll.u32 %v901, 16
        %v1149 = vrot.slane %v1147, 5
        %v1150 = vsel %vm910, %v1145, %v1149
        %v1152 = vshrl.u32 %v880, 16
        %v1154 = vrot.slane %v1152, 4
        %v1155 = vshll.u32 %v880, 16
        %v1157 = vrot.slane %v1155, 5
        %v1158 = vor.u32 %v1154, %v1157
        %v1159 = vrot.slane %v1158, 4
        %v1161 = vshll.u32 %v881, 16
        %v1163 = vrot.slane %v1161, 5
        %v1164 = vsel %vm910, %v1159, %v1163
        %v1165 = vshrl.u32 %v881, 16
        %v1167 = vrot.slane %v1165, 4
        %v1168 = vor.u32 %v1167, %v1163
        %v1169 = vrot.slane %v1168, 4
        %v1171 = vshll.u32 %v902, 16
        %v1173 = vrot.slane %v1171, 5
        %v1174 = vsel %vm910, %v1169, %v1173
        %v1176 = vshrl.u32 %v882, 16
        %v1178 = vrot.slane %v1176, 4
        %v1179 = vshll.u32 %v882, 16
        %v1181 = vrot.slane %v1179, 5
        %v1182 = vor.u32 %v1178, %v1181
        %v1183 = vrot.slane %v1182, 4
        %v1185 = vshll.u32 %v883, 16
        %v1187 = vrot.slane %v1185, 5
        %v1188 = vsel %vm910, %v1183, %v1187
        %v1189 = vshrl.u32 %v883, 16
        %v1191 = vrot.slane %v1189, 4
        %v1192 = vor.u32 %v1191, %v1187
        %v1193 = vrot.slane %v1192, 4
        %v1195 = vshll.u32 %v903, 16
        %v1197 = vrot.slane %v1195, 5
        %v1198 = vsel %vm910, %v1193, %v1197
        %v1200 = vshrl.u32 %v884, 16
        %v1202 = vrot.slane %v1200, 4
        %v1203 = vshll.u32 %v884, 16
        %v1205 = vrot.slane %v1203, 5
        %v1206 = vor.u32 %v1202, %v1205
        %v1207 = vrot.slane %v1206, 4
        %v1209 = vshll.u32 %v885, 16
        %v1211 = vrot.slane %v1209, 5
        %v1212 = vsel %vm910, %v1207, %v1211
        %v1213 = vshrl.u32 %v885, 16
        %v1215 = vrot.slane %v1213, 4
        %v1216 = vor.u32 %v1215, %v1211
        %v1217 = vrot.slane %v1216, 4
        %v1219 = vshll.u32 %v904, 16
        %v1221 = vrot.slane %v1219, 5
        %v1222 = vsel %vm910, %v1217, %v1221
        %v1224 = vshrl.u32 %v886, 16
        %v1226 = vrot.slane %v1224, 4
        %v1227 = vshll.u32 %v886, 16
        %v1229 = vrot.slane %v1227, 5
        %v1230 = vor.u32 %v1226, %v1229
        %v1231 = vrot.slane %v1230, 4
        %v1233 = vshll.u32 %v887, 16
        %v1235 = vrot.slane %v1233, 5
        %v1236 = vsel %vm910, %v1231, %v1235
        %v1237 = vshrl.u32 %v887, 16
        %v1239 = vrot.slane %v1237, 4
        %v1240 = vor.u32 %v1239, %v1235
        %v1241 = vrot.slane %v1240, 4
        %v1243 = vshll.u32 %v905, 16
        %v1245 = vrot.slane %v1243, 5
        %v1246 = vsel %vm910, %v1241, %v1245
        %v1248 = vshrl.u32 %v888, 16
        %v1250 = vrot.slane %v1248, 4
        %v1251 = vshll.u32 %v888, 16
        %v1253 = vrot.slane %v1251, 5
        %v1254 = vor.u32 %v1250, %v1253
        %v1255 = vrot.slane %v1254, 4
        %v1257 = vshll.u32 %v889, 16
        %v1259 = vrot.slane %v1257, 5
        %v1260 = vsel %vm910, %v1255, %v1259
        %v1261 = vshrl.u32 %v889, 16
        %v1263 = vrot.slane %v1261, 4
        %v1264 = vor.u32 %v1263, %v1259
        %v1265 = vrot.slane %v1264, 4
        %v1267 = vshll.u32 %v906, 16
        %v1269 = vrot.slane %v1267, 5
        %v1270 = vsel %vm910, %v1265, %v1269
        %v1272 = vshrl.u32 %v890, 16
        %v1274 = vrot.slane %v1272, 4
        %v1275 = vshll.u32 %v890, 16
        %v1277 = vrot.slane %v1275, 5
        %v1278 = vor.u32 %v1274, %v1277
        %v1279 = vrot.slane %v1278, 4
        %v1281 = vshll.u32 %v891, 16
        %v1283 = vrot.slane %v1281, 5
        %v1284 = vsel %vm910, %v1279, %v1283
        %v1285 = vshrl.u32 %v891, 16
        %v1287 = vrot.slane %v1285, 4
        %v1288 = vor.u32 %v1287, %v1283
        %v1289 = vrot.slane %v1288, 4
        %v1291 = vshll.u32 %v907, 16
        %v1293 = vrot.slane %v1291, 5
        %v1294 = vsel %vm910, %v1289, %v1293
        %v1295 = vld [vmem:[#allocation2] sm:$0xe]
        %v1296 = vld [vmem:[#allocation2 + $0xc] sm:$0xe]
        %v1297 = vld [vmem:[#allocation2 + $0x18] sm:$0xe]
        %v1298 = vld [vmem:[#allocation2 + $0x24] sm:$0xe]
        %v1299 = vld [vmem:[#allocation2 + $0x30] sm:$0xe]
        %v1300 = vld [vmem:[#allocation2 + $0x3c] sm:$0xe]
        %v1301 = vld [vmem:[#allocation2 + $0x48] sm:$0xe]
        %v1302 = vld [vmem:[#allocation2 + $0x54] sm:$0xe]
        %v1303 = vld [vmem:[#allocation2 + $0x60] sm:$0xe]
        %v1304 = vld [vmem:[#allocation2 + $0x6c] sm:$0xe]
        %v1305 = vld [vmem:[#allocation2 + $0x78] sm:$0xe]
        %v1306 = vld [vmem:[#allocation2 + $0x84] sm:$0xe]
        %v1307 = vld [vmem:[#allocation2 + $0x90] sm:$0xe]
        %v1308 = vld [vmem:[#allocation2 + $0x9c] sm:$0xe]
        %v1309 = vld [vmem:[#allocation2 + $0xa8] sm:$0xe]
        %v1310 = vld [vmem:[#allocation2 + $0xb4] sm:$0xe]
        %vm1359 = vcmask 1042432
        %vm1360 = vcmask 1046532
        %vm1361 = vmor %vm1359, %vm1360
        %v1362 = vrot.slane %v1295, 5
        %v1363 = vrot.slane %v1362, 4
        %v1364 = vrot.slane %v861, 5
        %v1365 = vsel %vm1361, %v1363, %v1364
        %v1366 = vrot.slane %v1364, 4
        %v1367 = vrot.slane %v892, 5
        %v1368 = vsel %vm1361, %v1366, %v1367
        %v1369 = vrot.slane %v1296, 5
        %v1370 = vrot.slane %v1369, 4
        %v1371 = vrot.slane %v863, 5
        %v1372 = vsel %vm1361, %v1370, %v1371
        %v1373 = vrot.slane %v1371, 4
        %v1374 = vrot.slane %v893, 5
        %v1375 = vsel %vm1361, %v1373, %v1374
        %v1376 = vrot.slane %v1297, 5
        %v1377 = vrot.slane %v1376, 4
        %v1378 = vrot.slane %v865, 5
        %v1379 = vsel %vm1361, %v1377, %v1378
        %v1380 = vrot.slane %v1378, 4
        %v1381 = vrot.slane %v894, 5
        %v1382 = vsel %vm1361, %v1380, %v1381
        %v1383 = vrot.slane %v1298, 5
        %v1384 = vrot.slane %v1383, 4
        %v1385 = vrot.slane %v867, 5
        %v1386 = vsel %vm1361, %v1384, %v1385
        %v1387 = vrot.slane %v1385, 4
        %v1388 = vrot.slane %v895, 5
        %v1389 = vsel %vm1361, %v1387, %v1388
        %v1390 = vrot.slane %v1299, 5
        %v1391 = vrot.slane %v1390, 4
        %v1392 = vrot.slane %v869, 5
        %v1393 = vsel %vm1361, %v1391, %v1392
        %v1394 = vrot.slane %v1392, 4
        %v1395 = vrot.slane %v896, 5
        %v1396 = vsel %vm1361, %v1394, %v1395
        %v1397 = vrot.slane %v1300, 5
        %v1398 = vrot.slane %v1397, 4
        %v1399 = vrot.slane %v871, 5
        %v1400 = vsel %vm1361, %v1398, %v1399
        %v1401 = vrot.slane %v1399, 4
        %v1402 = vrot.slane %v897, 5
        %v1403 = vsel %vm1361, %v1401, %v1402
        %v1404 = vrot.slane %v1301, 5
        %v1405 = vrot.slane %v1404, 4
        %v1406 = vrot.slane %v873, 5
        %v1407 = vsel %vm1361, %v1405, %v1406
        %v1408 = vrot.slane %v1406, 4
        %v1409 = vrot.slane %v898, 5
        %v1410 = vsel %vm1361, %v1408, %v1409
        %v1411 = vrot.slane %v1302, 5
        %v1412 = vrot.slane %v1411, 4
        %v1413 = vrot.slane %v875, 5
        %v1414 = vsel %vm1361, %v1412, %v1413
        %v1415 = vrot.slane %v1413, 4
        %v1416 = vrot.slane %v899, 5
        %v1417 = vsel %vm1361, %v1415, %v1416
        %v1418 = vrot.slane %v1303, 5
        %v1419 = vrot.slane %v1418, 4
        %v1420 = vrot.slane %v877, 5
        %v1421 = vsel %vm1361, %v1419, %v1420
        %v1422 = vrot.slane %v1420, 4
        %v1423 = vrot.slane %v900, 5
        %v1424 = vsel %vm1361, %v1422, %v1423
        %v1425 = vrot.slane %v1304, 5
        %v1426 = vrot.slane %v1425, 4
        %v1427 = vrot.slane %v879, 5
        %v1428 = vsel %vm1361, %v1426, %v1427
        %v1429 = vrot.slane %v1427, 4
        %v1430 = vrot.slane %v901, 5
        %v1431 = vsel %vm1361, %v1429, %v1430
        %v1432 = vrot.slane %v1305, 5
        %v1433 = vrot.slane %v1432, 4
        %v1434 = vrot.slane %v881, 5
        %v1435 = vsel %vm1361, %v1433, %v1434
        %v1436 = vrot.slane %v1434, 4
        %v1437 = vrot.slane %v902, 5
        %v1438 = vsel %vm1361, %v1436, %v1437
        %v1439 = vrot.slane %v1306, 5
        %v1440 = vrot.slane %v1439, 4
        %v1441 = vrot.slane %v883, 5
        %v1442 = vsel %vm1361, %v1440, %v1441
        %v1443 = vrot.slane %v1441, 4
        %v1444 = vrot.slane %v903, 5
        %v1445 = vsel %vm1361, %v1443, %v1444
        %v1446 = vrot.slane %v1307, 5
        %v1447 = vrot.slane %v1446, 4
        %v1448 = vrot.slane %v885, 5
        %v1449 = vsel %vm1361, %v1447, %v1448
        %v1450 = vrot.slane %v1448, 4
        %v1451 = vrot.slane %v904, 5
        %v1452 = vsel %vm1361, %v1450, %v1451
        %v1453 = vrot.slane %v1308, 5
        %v1454 = vrot.slane %v1453, 4
        %v1455 = vrot.slane %v887, 5
        %v1456 = vsel %vm1361, %v1454, %v1455
        %v1457 = vrot.slane %v1455, 4
        %v1458 = vrot.slane %v905, 5
        %v1459 = vsel %vm1361, %v1457, %v1458
        %v1460 = vrot.slane %v1309, 5
        %v1461 = vrot.slane %v1460, 4
        %v1462 = vrot.slane %v889, 5
        %v1463 = vsel %vm1361, %v1461, %v1462
        %v1464 = vrot.slane %v1462, 4
        %v1465 = vrot.slane %v906, 5
        %v1466 = vsel %vm1361, %v1464, %v1465
        %v1467 = vrot.slane %v1310, 5
        %v1468 = vrot.slane %v1467, 4
        %v1469 = vrot.slane %v891, 5
        %v1470 = vsel %vm1361, %v1468, %v1469
        %v1471 = vrot.slane %v1469, 4
        %v1472 = vrot.slane %v907, 5
        %v1473 = vsel %vm1361, %v1471, %v1472
        %v1474 = vld [vmem:[%s742] sm:$0xf]
        %v1475 = vld [vmem:[%s742 + $0x4] sm:$0xf]
        %v1476 = vld [vmem:[%s742 + $0xc] sm:$0xf]
        %v1477 = vld [vmem:[%s742 + $0x10] sm:$0xf]
        %v1478 = vld [vmem:[%s742 + $0x18] sm:$0xf]
        %v1479 = vld [vmem:[%s742 + $0x1c] sm:$0xf]
        %v1480 = vld [vmem:[%s742 + $0x24] sm:$0xf]
        %v1481 = vld [vmem:[%s742 + $0x28] sm:$0xf]
        %v1482 = vld [vmem:[%s742 + $0x30] sm:$0xf]
        %v1483 = vld [vmem:[%s742 + $0x34] sm:$0xf]
        %v1484 = vld [vmem:[%s742 + $0x3c] sm:$0xf]
        %v1485 = vld [vmem:[%s742 + $0x40] sm:$0xf]
        %v1486 = vld [vmem:[%s742 + $0x48] sm:$0xf]
        %v1487 = vld [vmem:[%s742 + $0x4c] sm:$0xf]
        %v1488 = vld [vmem:[%s742 + $0x54] sm:$0xf]
        %v1489 = vld [vmem:[%s742 + $0x58] sm:$0xf]
        %v1490 = vld [vmem:[%s742 + $0x60] sm:$0xf]
        %v1491 = vld [vmem:[%s742 + $0x64] sm:$0xf]
        %v1492 = vld [vmem:[%s742 + $0x6c] sm:$0xf]
        %v1493 = vld [vmem:[%s742 + $0x70] sm:$0xf]
        %v1494 = vld [vmem:[%s742 + $0x78] sm:$0xf]
        %v1495 = vld [vmem:[%s742 + $0x7c] sm:$0xf]
        %v1496 = vld [vmem:[%s742 + $0x84] sm:$0xf]
        %v1497 = vld [vmem:[%s742 + $0x88] sm:$0xf]
        %v1498 = vld [vmem:[%s742 + $0x90] sm:$0xf]
        %v1499 = vld [vmem:[%s742 + $0x94] sm:$0xf]
        %v1500 = vld [vmem:[%s742 + $0x9c] sm:$0xf]
        %v1501 = vld [vmem:[%s742 + $0xa0] sm:$0xf]
        %v1502 = vld [vmem:[%s742 + $0xa8] sm:$0xf]
        %v1503 = vld [vmem:[%s742 + $0xac] sm:$0xf]
        %v1504 = vld [vmem:[%s742 + $0xb4] sm:$0xf]
        %v1505 = vld [vmem:[%s742 + $0xb8] sm:$0xf]
        %v1506 = vld [vmem:[%s742 + $0x8] sm:$0x1]
        %v1507 = vld [vmem:[%s742 + $0x14] sm:$0x1]
        %v1508 = vld [vmem:[%s742 + $0x20] sm:$0x1]
        %v1509 = vld [vmem:[%s742 + $0x2c] sm:$0x1]
        %v1510 = vld [vmem:[%s742 + $0x38] sm:$0x1]
        %v1511 = vld [vmem:[%s742 + $0x44] sm:$0x1]
        %v1512 = vld [vmem:[%s742 + $0x50] sm:$0x1]
        %v1513 = vld [vmem:[%s742 + $0x5c] sm:$0x1]
        %v1514 = vld [vmem:[%s742 + $0x68] sm:$0x1]
        %v1515 = vld [vmem:[%s742 + $0x74] sm:$0x1]
        %v1516 = vld [vmem:[%s742 + $0x80] sm:$0x1]
        %v1517 = vld [vmem:[%s742 + $0x8c] sm:$0x1]
        %v1518 = vld [vmem:[%s742 + $0x98] sm:$0x1]
        %v1519 = vld [vmem:[%s742 + $0xa4] sm:$0x1]
        %v1520 = vld [vmem:[%s742 + $0xb0] sm:$0x1]
        %v1521 = vld [vmem:[%s742 + $0xbc] sm:$0x1]
        %v1523 = vshrl.u32 %v1474, 16
        %v1525 = vrot.slane %v1523, 4
        %v1526 = vshll.u32 %v1474, 16
        %v1528 = vrot.slane %v1526, 5
        %v1529 = vor.u32 %v1525, %v1528
        %v1530 = vrot.slane %v1529, 4
        %v1532 = vshll.u32 %v1475, 16
        %v1534 = vrot.slane %v1532, 5
        %v1535 = vsel %vm910, %v1530, %v1534
        %v1536 = vshrl.u32 %v1475, 16
        %v1538 = vrot.slane %v1536, 4
        %v1539 = vor.u32 %v1538, %v1534
        %v1540 = vrot.slane %v1539, 4
        %v1542 = vshll.u32 %v1506, 16
        %v1544 = vrot.slane %v1542, 5
        %v1545 = vsel %vm910, %v1540, %v1544
        %v1547 = vshrl.u32 %v1476, 16
        %v1549 = vrot.slane %v1547, 4
        %v1550 = vshll.u32 %v1476, 16
        %v1552 = vrot.slane %v1550, 5
        %v1553 = vor.u32 %v1549, %v1552
        %v1554 = vrot.slane %v1553, 4
        %v1556 = vshll.u32 %v1477, 16
        %v1558 = vrot.slane %v1556, 5
        %v1559 = vsel %vm910, %v1554, %v1558
        %v1560 = vshrl.u32 %v1477, 16
        %v1562 = vrot.slane %v1560, 4
        %v1563 = vor.u32 %v1562, %v1558
        %v1564 = vrot.slane %v1563, 4
        %v1566 = vshll.u32 %v1507, 16
        %v1568 = vrot.slane %v1566, 5
        %v1569 = vsel %vm910, %v1564, %v1568
        %v1571 = vshrl.u32 %v1478, 16
        %v1573 = vrot.slane %v1571, 4
        %v1574 = vshll.u32 %v1478, 16
        %v1576 = vrot.slane %v1574, 5
        %v1577 = vor.u32 %v1573, %v1576
        %v1578 = vrot.slane %v1577, 4
        %v1580 = vshll.u32 %v1479, 16
        %v1582 = vrot.slane %v1580, 5
        %v1583 = vsel %vm910, %v1578, %v1582
        %v1584 = vshrl.u32 %v1479, 16
        %v1586 = vrot.slane %v1584, 4
        %v1587 = vor.u32 %v1586, %v1582
        %v1588 = vrot.slane %v1587, 4
        %v1590 = vshll.u32 %v1508, 16
        %v1592 = vrot.slane %v1590, 5
        %v1593 = vsel %vm910, %v1588, %v1592
        %v1595 = vshrl.u32 %v1480, 16
        %v1597 = vrot.slane %v1595, 4
        %v1598 = vshll.u32 %v1480, 16
        %v1600 = vrot.slane %v1598, 5
        %v1601 = vor.u32 %v1597, %v1600
        %v1602 = vrot.slane %v1601, 4
        %v1604 = vshll.u32 %v1481, 16
        %v1606 = vrot.slane %v1604, 5
        %v1607 = vsel %vm910, %v1602, %v1606
        %v1608 = vshrl.u32 %v1481, 16
        %v1610 = vrot.slane %v1608, 4
        %v1611 = vor.u32 %v1610, %v1606
        %v1612 = vrot.slane %v1611, 4
        %v1614 = vshll.u32 %v1509, 16
        %v1616 = vrot.slane %v1614, 5
        %v1617 = vsel %vm910, %v1612, %v1616
        %v1619 = vshrl.u32 %v1482, 16
        %v1621 = vrot.slane %v1619, 4
        %v1622 = vshll.u32 %v1482, 16
        %v1624 = vrot.slane %v1622, 5
        %v1625 = vor.u32 %v1621, %v1624
        %v1626 = vrot.slane %v1625, 4
        %v1628 = vshll.u32 %v1483, 16
        %v1630 = vrot.slane %v1628, 5
        %v1631 = vsel %vm910, %v1626, %v1630
        %v1632 = vshrl.u32 %v1483, 16
        %v1634 = vrot.slane %v1632, 4
        %v1635 = vor.u32 %v1634, %v1630
        %v1636 = vrot.slane %v1635, 4
        %v1638 = vshll.u32 %v1510, 16
        %v1640 = vrot.slane %v1638, 5
        %v1641 = vsel %vm910, %v1636, %v1640
        %v1643 = vshrl.u32 %v1484, 16
        %v1645 = vrot.slane %v1643, 4
        %v1646 = vshll.u32 %v1484, 16
        %v1648 = vrot.slane %v1646, 5
        %v1649 = vor.u32 %v1645, %v1648
        %v1650 = vrot.slane %v1649, 4
        %v1652 = vshll.u32 %v1485, 16
        %v1654 = vrot.slane %v1652, 5
        %v1655 = vsel %vm910, %v1650, %v1654
        %v1656 = vshrl.u32 %v1485, 16
        %v1658 = vrot.slane %v1656, 4
        %v1659 = vor.u32 %v1658, %v1654
        %v1660 = vrot.slane %v1659, 4
        %v1662 = vshll.u32 %v1511, 16
        %v1664 = vrot.slane %v1662, 5
        %v1665 = vsel %vm910, %v1660, %v1664
        %v1667 = vshrl.u32 %v1486, 16
        %v1669 = vrot.slane %v1667, 4
        %v1670 = vshll.u32 %v1486, 16
        %v1672 = vrot.slane %v1670, 5
        %v1673 = vor.u32 %v1669, %v1672
        %v1674 = vrot.slane %v1673, 4
        %v1676 = vshll.u32 %v1487, 16
        %v1678 = vrot.slane %v1676, 5
        %v1679 = vsel %vm910, %v1674, %v1678
        %v1680 = vshrl.u32 %v1487, 16
        %v1682 = vrot.slane %v1680, 4
        %v1683 = vor.u32 %v1682, %v1678
        %v1684 = vrot.slane %v1683, 4
        %v1686 = vshll.u32 %v1512, 16
        %v1688 = vrot.slane %v1686, 5
        %v1689 = vsel %vm910, %v1684, %v1688
        %v1691 = vshrl.u32 %v1488, 16
        %v1693 = vrot.slane %v1691, 4
        %v1694 = vshll.u32 %v1488, 16
        %v1696 = vrot.slane %v1694, 5
        %v1697 = vor.u32 %v1693, %v1696
        %v1698 = vrot.slane %v1697, 4
        %v1700 = vshll.u32 %v1489, 16
        %v1702 = vrot.slane %v1700, 5
        %v1703 = vsel %vm910, %v1698, %v1702
        %v1704 = vshrl.u32 %v1489, 16
        %v1706 = vrot.slane %v1704, 4
        %v1707 = vor.u32 %v1706, %v1702
        %v1708 = vrot.slane %v1707, 4
        %v1710 = vshll.u32 %v1513, 16
        %v1712 = vrot.slane %v1710, 5
        %v1713 = vsel %vm910, %v1708, %v1712
        %v1715 = vshrl.u32 %v1490, 16
        %v1717 = vrot.slane %v1715, 4
        %v1718 = vshll.u32 %v1490, 16
        %v1720 = vrot.slane %v1718, 5
        %v1721 = vor.u32 %v1717, %v1720
        %v1722 = vrot.slane %v1721, 4
        %v1724 = vshll.u32 %v1491, 16
        %v1726 = vrot.slane %v1724, 5
        %v1727 = vsel %vm910, %v1722, %v1726
        %v1728 = vshrl.u32 %v1491, 16
        %v1730 = vrot.slane %v1728, 4
        %v1731 = vor.u32 %v1730, %v1726
        %v1732 = vrot.slane %v1731, 4
        %v1734 = vshll.u32 %v1514, 16
        %v1736 = vrot.slane %v1734, 5
        %v1737 = vsel %vm910, %v1732, %v1736
        %v1739 = vshrl.u32 %v1492, 16
        %v1741 = vrot.slane %v1739, 4
        %v1742 = vshll.u32 %v1492, 16
        %v1744 = vrot.slane %v1742, 5
        %v1745 = vor.u32 %v1741, %v1744
        %v1746 = vrot.slane %v1745, 4
        %v1748 = vshll.u32 %v1493, 16
        %v1750 = vrot.slane %v1748, 5
        %v1751 = vsel %vm910, %v1746, %v1750
        %v1752 = vshrl.u32 %v1493, 16
        %v1754 = vrot.slane %v1752, 4
        %v1755 = vor.u32 %v1754, %v1750
        %v1756 = vrot.slane %v1755, 4
        %v1758 = vshll.u32 %v1515, 16
        %v1760 = vrot.slane %v1758, 5
        %v1761 = vsel %vm910, %v1756, %v1760
        %v1763 = vshrl.u32 %v1494, 16
        %v1765 = vrot.slane %v1763, 4
        %v1766 = vshll.u32 %v1494, 16
        %v1768 = vrot.slane %v1766, 5
        %v1769 = vor.u32 %v1765, %v1768
        %v1770 = vrot.slane %v1769, 4
        %v1772 = vshll.u32 %v1495, 16
        %v1774 = vrot.slane %v1772, 5
        %v1775 = vsel %vm910, %v1770, %v1774
        %v1776 = vshrl.u32 %v1495, 16
        %v1778 = vrot.slane %v1776, 4
        %v1779 = vor.u32 %v1778, %v1774
        %v1780 = vrot.slane %v1779, 4
        %v1782 = vshll.u32 %v1516, 16
        %v1784 = vrot.slane %v1782, 5
        %v1785 = vsel %vm910, %v1780, %v1784
        %v1787 = vshrl.u32 %v1496, 16
        %v1789 = vrot.slane %v1787, 4
        %v1790 = vshll.u32 %v1496, 16
        %v1792 = vrot.slane %v1790, 5
        %v1793 = vor.u32 %v1789, %v1792
        %v1794 = vrot.slane %v1793, 4
        %v1796 = vshll.u32 %v1497, 16
        %v1798 = vrot.slane %v1796, 5
        %v1799 = vsel %vm910, %v1794, %v1798
        %v1800 = vshrl.u32 %v1497, 16
        %v1802 = vrot.slane %v1800, 4
        %v1803 = vor.u32 %v1802, %v1798
        %v1804 = vrot.slane %v1803, 4
        %v1806 = vshll.u32 %v1517, 16
        %v1808 = vrot.slane %v1806, 5
        %v1809 = vsel %vm910, %v1804, %v1808
        %v1811 = vshrl.u32 %v1498, 16
        %v1813 = vrot.slane %v1811, 4
        %v1814 = vshll.u32 %v1498, 16
        %v1816 = vrot.slane %v1814, 5
        %v1817 = vor.u32 %v1813, %v1816
        %v1818 = vrot.slane %v1817, 4
        %v1820 = vshll.u32 %v1499, 16
        %v1822 = vrot.slane %v1820, 5
        %v1823 = vsel %vm910, %v1818, %v1822
        %v1824 = vshrl.u32 %v1499, 16
        %v1826 = vrot.slane %v1824, 4
        %v1827 = vor.u32 %v1826, %v1822
        %v1828 = vrot.slane %v1827, 4
        %v1830 = vshll.u32 %v1518, 16
        %v1832 = vrot.slane %v1830, 5
        %v1833 = vsel %vm910, %v1828, %v1832
        %v1835 = vshrl.u32 %v1500, 16
        %v1837 = vrot.slane %v1835, 4
        %v1838 = vshll.u32 %v1500, 16
        %v1840 = vrot.slane %v1838, 5
        %v1841 = vor.u32 %v1837, %v1840
        %v1842 = vrot.slane %v1841, 4
        %v1844 = vshll.u32 %v1501, 16
        %v1846 = vrot.slane %v1844, 5
        %v1847 = vsel %vm910, %v1842, %v1846
        %v1848 = vshrl.u32 %v1501, 16
        %v1850 = vrot.slane %v1848, 4
        %v1851 = vor.u32 %v1850, %v1846
        %v1852 = vrot.slane %v1851, 4
        %v1854 = vshll.u32 %v1519, 16
        %v1856 = vrot.slane %v1854, 5
        %v1857 = vsel %vm910, %v1852, %v1856
        %v1859 = vshrl.u32 %v1502, 16
        %v1861 = vrot.slane %v1859, 4
        %v1862 = vshll.u32 %v1502, 16
        %v1864 = vrot.slane %v1862, 5
        %v1865 = vor.u32 %v1861, %v1864
        %v1866 = vrot.slane %v1865, 4
        %v1868 = vshll.u32 %v1503, 16
        %v1870 = vrot.slane %v1868, 5
        %v1871 = vsel %vm910, %v1866, %v1870
        %v1872 = vshrl.u32 %v1503, 16
        %v1874 = vrot.slane %v1872, 4
        %v1875 = vor.u32 %v1874, %v1870
        %v1876 = vrot.slane %v1875, 4
        %v1878 = vshll.u32 %v1520, 16
        %v1880 = vrot.slane %v1878, 5
        %v1881 = vsel %vm910, %v1876, %v1880
        %v1883 = vshrl.u32 %v1504, 16
        %v1885 = vrot.slane %v1883, 4
        %v1886 = vshll.u32 %v1504, 16
        %v1888 = vrot.slane %v1886, 5
        %v1889 = vor.u32 %v1885, %v1888
        %v1890 = vrot.slane %v1889, 4
        %v1892 = vshll.u32 %v1505, 16
        %v1894 = vrot.slane %v1892, 5
        %v1895 = vsel %vm910, %v1890, %v1894
        %v1896 = vshrl.u32 %v1505, 16
        %v1898 = vrot.slane %v1896, 4
        %v1899 = vor.u32 %v1898, %v1894
        %v1900 = vrot.slane %v1899, 4
        %v1902 = vshll.u32 %v1521, 16
        %v1904 = vrot.slane %v1902, 5
        %v1905 = vsel %vm910, %v1900, %v1904
        %v1906 = vld [vmem:[%s742] sm:$0xe]
        %v1907 = vld [vmem:[%s742 + $0xc] sm:$0xe]
        %v1908 = vld [vmem:[%s742 + $0x18] sm:$0xe]
        %v1909 = vld [vmem:[%s742 + $0x24] sm:$0xe]
        %v1910 = vld [vmem:[%s742 + $0x30] sm:$0xe]
        %v1911 = vld [vmem:[%s742 + $0x3c] sm:$0xe]
        %v1912 = vld [vmem:[%s742 + $0x48] sm:$0xe]
        %v1913 = vld [vmem:[%s742 + $0x54] sm:$0xe]
        %v1914 = vld [vmem:[%s742 + $0x60] sm:$0xe]
        %v1915 = vld [vmem:[%s742 + $0x6c] sm:$0xe]
        %v1916 = vld [vmem:[%s742 + $0x78] sm:$0xe]
        %v1917 = vld [vmem:[%s742 + $0x84] sm:$0xe]
        %v1918 = vld [vmem:[%s742 + $0x90] sm:$0xe]
        %v1919 = vld [vmem:[%s742 + $0x9c] sm:$0xe]
        %v1920 = vld [vmem:[%s742 + $0xa8] sm:$0xe]
        %v1921 = vld [vmem:[%s742 + $0xb4] sm:$0xe]
        %v1970 = vrot.slane %v1906, 5
        %v1971 = vrot.slane %v1970, 4
        %v1972 = vrot.slane %v1475, 5
        %v1973 = vsel %vm1361, %v1971, %v1972
        %v1974 = vrot.slane %v1972, 4
        %v1975 = vrot.slane %v1506, 5
        %v1976 = vsel %vm1361, %v1974, %v1975
        %v1977 = vrot.slane %v1907, 5
        %v1978 = vrot.slane %v1977, 4
        %v1979 = vrot.slane %v1477, 5
        %v1980 = vsel %vm1361, %v1978, %v1979
        %v1981 = vrot.slane %v1979, 4
        %v1982 = vrot.slane %v1507, 5
        %v1983 = vsel %vm1361, %v1981, %v1982
        %v1984 = vrot.slane %v1908, 5
        %v1985 = vrot.slane %v1984, 4
        %v1986 = vrot.slane %v1479, 5
        %v1987 = vsel %vm1361, %v1985, %v1986
        %v1988 = vrot.slane %v1986, 4
        %v1989 = vrot.slane %v1508, 5
        %v1990 = vsel %vm1361, %v1988, %v1989
        %v1991 = vrot.slane %v1909, 5
        %v1992 = vrot.slane %v1991, 4
        %v1993 = vrot.slane %v1481, 5
        %v1994 = vsel %vm1361, %v1992, %v1993
        %v1995 = vrot.slane %v1993, 4
        %v1996 = vrot.slane %v1509, 5
        %v1997 = vsel %vm1361, %v1995, %v1996
        %v1998 = vrot.slane %v1910, 5
        %v1999 = vrot.slane %v1998, 4
        %v2000 = vrot.slane %v1483, 5
        %v2001 = vsel %vm1361, %v1999, %v2000
        %v2002 = vrot.slane %v2000, 4
        %v2003 = vrot.slane %v1510, 5
        %v2004 = vsel %vm1361, %v2002, %v2003
        %v2005 = vrot.slane %v1911, 5
        %v2006 = vrot.slane %v2005, 4
        %v2007 = vrot.slane %v1485, 5
        %v2008 = vsel %vm1361, %v2006, %v2007
        %v2009 = vrot.slane %v2007, 4
        %v2010 = vrot.slane %v1511, 5
        %v2011 = vsel %vm1361, %v2009, %v2010
        %v2012 = vrot.slane %v1912, 5
        %v2013 = vrot.slane %v2012, 4
        %v2014 = vrot.slane %v1487, 5
        %v2015 = vsel %vm1361, %v2013, %v2014
        %v2016 = vrot.slane %v2014, 4
        %v2017 = vrot.slane %v1512, 5
        %v2018 = vsel %vm1361, %v2016, %v2017
        %v2019 = vrot.slane %v1913, 5
        %v2020 = vrot.slane %v2019, 4
        %v2021 = vrot.slane %v1489, 5
        %v2022 = vsel %vm1361, %v2020, %v2021
        %v2023 = vrot.slane %v2021, 4
        %v2024 = vrot.slane %v1513, 5
        %v2025 = vsel %vm1361, %v2023, %v2024
        %v2026 = vrot.slane %v1914, 5
        %v2027 = vrot.slane %v2026, 4
        %v2028 = vrot.slane %v1491, 5
        %v2029 = vsel %vm1361, %v2027, %v2028
        %v2030 = vrot.slane %v2028, 4
        %v2031 = vrot.slane %v1514, 5
        %v2032 = vsel %vm1361, %v2030, %v2031
        %v2033 = vrot.slane %v1915, 5
        %v2034 = vrot.slane %v2033, 4
        %v2035 = vrot.slane %v1493, 5
        %v2036 = vsel %vm1361, %v2034, %v2035
        %v2037 = vrot.slane %v2035, 4
        %v2038 = vrot.slane %v1515, 5
        %v2039 = vsel %vm1361, %v2037, %v2038
        %v2040 = vrot.slane %v1916, 5
        %v2041 = vrot.slane %v2040, 4
        %v2042 = vrot.slane %v1495, 5
        %v2043 = vsel %vm1361, %v2041, %v2042
        %v2044 = vrot.slane %v2042, 4
        %v2045 = vrot.slane %v1516, 5
        %v2046 = vsel %vm1361, %v2044, %v2045
        %v2047 = vrot.slane %v1917, 5
        %v2048 = vrot.slane %v2047, 4
        %v2049 = vrot.slane %v1497, 5
        %v2050 = vsel %vm1361, %v2048, %v2049
        %v2051 = vrot.slane %v2049, 4
        %v2052 = vrot.slane %v1517, 5
        %v2053 = vsel %vm1361, %v2051, %v2052
        %v2054 = vrot.slane %v1918, 5
        %v2055 = vrot.slane %v2054, 4
        %v2056 = vrot.slane %v1499, 5
        %v2057 = vsel %vm1361, %v2055, %v2056
        %v2058 = vrot.slane %v2056, 4
        %v2059 = vrot.slane %v1518, 5
        %v2060 = vsel %vm1361, %v2058, %v2059
        %v2061 = vrot.slane %v1919, 5
        %v2062 = vrot.slane %v2061, 4
        %v2063 = vrot.slane %v1501, 5
        %v2064 = vsel %vm1361, %v2062, %v2063
        %v2065 = vrot.slane %v2063, 4
        %v2066 = vrot.slane %v1519, 5
        %v2067 = vsel %vm1361, %v2065, %v2066
        %v2068 = vrot.slane %v1920, 5
        %v2069 = vrot.slane %v2068, 4
        %v2070 = vrot.slane %v1503, 5
        %v2071 = vsel %vm1361, %v2069, %v2070
        %v2072 = vrot.slane %v2070, 4
        %v2073 = vrot.slane %v1520, 5
        %v2074 = vsel %vm1361, %v2072, %v2073
        %v2075 = vrot.slane %v1921, 5
        %v2076 = vrot.slane %v2075, 4
        %v2077 = vrot.slane %v1505, 5
        %v2078 = vsel %vm1361, %v2076, %v2077
        %v2079 = vrot.slane %v2077, 4
        %v2080 = vrot.slane %v1521, 5
        %v2081 = vsel %vm1361, %v2079, %v2080
        %s2082 = scalar_lea.vmem [#allocation2], 24
        %v2083 = vld [vmem:[%s2082] sm:$0xf]
        %v2084 = vld [vmem:[%s2082 + $0x4] sm:$0xf]
        %v2085 = vld [vmem:[%s2082 + $0xc] sm:$0xf]
        %v2086 = vld [vmem:[%s2082 + $0x10] sm:$0xf]
        %v2087 = vld [vmem:[%s2082 + $0x18] sm:$0xf]
        %v2088 = vld [vmem:[%s2082 + $0x1c] sm:$0xf]
        %v2089 = vld [vmem:[%s2082 + $0x24] sm:$0xf]
        %v2090 = vld [vmem:[%s2082 + $0x28] sm:$0xf]
        %v2091 = vld [vmem:[%s2082 + $0x30] sm:$0xf]
        %v2092 = vld [vmem:[%s2082 + $0x34] sm:$0xf]
        %v2093 = vld [vmem:[%s2082 + $0x3c] sm:$0xf]
        %v2094 = vld [vmem:[%s2082 + $0x40] sm:$0xf]
        %v2095 = vld [vmem:[%s2082 + $0x48] sm:$0xf]
        %v2096 = vld [vmem:[%s2082 + $0x4c] sm:$0xf]
        %v2097 = vld [vmem:[%s2082 + $0x54] sm:$0xf]
        %v2098 = vld [vmem:[%s2082 + $0x58] sm:$0xf]
        %v2099 = vld [vmem:[%s2082 + $0x60] sm:$0xf]
        %v2100 = vld [vmem:[%s2082 + $0x64] sm:$0xf]
        %v2101 = vld [vmem:[%s2082 + $0x6c] sm:$0xf]
        %v2102 = vld [vmem:[%s2082 + $0x70] sm:$0xf]
        %v2103 = vld [vmem:[%s2082 + $0x78] sm:$0xf]
        %v2104 = vld [vmem:[%s2082 + $0x7c] sm:$0xf]
        %v2105 = vld [vmem:[%s2082 + $0x84] sm:$0xf]
        %v2106 = vld [vmem:[%s2082 + $0x88] sm:$0xf]
        %v2107 = vld [vmem:[%s2082 + $0x90] sm:$0xf]
        %v2108 = vld [vmem:[%s2082 + $0x94] sm:$0xf]
        %v2109 = vld [vmem:[%s2082 + $0x9c] sm:$0xf]
        %v2110 = vld [vmem:[%s2082 + $0xa0] sm:$0xf]
        %v2111 = vld [vmem:[%s2082 + $0xa8] sm:$0xf]
        %v2112 = vld [vmem:[%s2082 + $0xac] sm:$0xf]
        %v2113 = vld [vmem:[%s2082 + $0xb4] sm:$0xf]
        %v2114 = vld [vmem:[%s2082 + $0xb8] sm:$0xf]
        %v2115 = vld [vmem:[%s2082 + $0x8] sm:$0x1]
        %v2116 = vld [vmem:[%s2082 + $0x14] sm:$0x1]
        %v2117 = vld [vmem:[%s2082 + $0x20] sm:$0x1]
        %v2118 = vld [vmem:[%s2082 + $0x2c] sm:$0x1]
        %v2119 = vld [vmem:[%s2082 + $0x38] sm:$0x1]
        %v2120 = vld [vmem:[%s2082 + $0x44] sm:$0x1]
        %v2121 = vld [vmem:[%s2082 + $0x50] sm:$0x1]
        %v2122 = vld [vmem:[%s2082 + $0x5c] sm:$0x1]
        %v2123 = vld [vmem:[%s2082 + $0x68] sm:$0x1]
        %v2124 = vld [vmem:[%s2082 + $0x74] sm:$0x1]
        %v2125 = vld [vmem:[%s2082 + $0x80] sm:$0x1]
        %v2126 = vld [vmem:[%s2082 + $0x8c] sm:$0x1]
        %v2127 = vld [vmem:[%s2082 + $0x98] sm:$0x1]
        %v2128 = vld [vmem:[%s2082 + $0xa4] sm:$0x1]
        %v2129 = vld [vmem:[%s2082 + $0xb0] sm:$0x1]
        %v2130 = vld [vmem:[%s2082 + $0xbc] sm:$0x1]
        %v2132 = vshrl.u32 %v2083, 16
        %v2134 = vrot.slane %v2132, 4
        %v2135 = vshll.u32 %v2083, 16
        %v2137 = vrot.slane %v2135, 5
        %v2138 = vor.u32 %v2134, %v2137
        %v2139 = vrot.slane %v2138, 4
        %v2141 = vshll.u32 %v2084, 16
        %v2143 = vrot.slane %v2141, 5
        %v2144 = vsel %vm910, %v2139, %v2143
        %v2145 = vshrl.u32 %v2084, 16
        %v2147 = vrot.slane %v2145, 4
        %v2148 = vor.u32 %v2147, %v2143
        %v2149 = vrot.slane %v2148, 4
        %v2151 = vshll.u32 %v2115, 16
        %v2153 = vrot.slane %v2151, 5
        %v2154 = vsel %vm910, %v2149, %v2153
        %v2156 = vshrl.u32 %v2085, 16
        %v2158 = vrot.slane %v2156, 4
        %v2159 = vshll.u32 %v2085, 16
        %v2161 = vrot.slane %v2159, 5
        %v2162 = vor.u32 %v2158, %v2161
        %v2163 = vrot.slane %v2162, 4
        %v2165 = vshll.u32 %v2086, 16
        %v2167 = vrot.slane %v2165, 5
        %v2168 = vsel %vm910, %v2163, %v2167
        %v2169 = vshrl.u32 %v2086, 16
        %v2171 = vrot.slane %v2169, 4
        %v2172 = vor.u32 %v2171, %v2167
        %v2173 = vrot.slane %v2172, 4
        %v2175 = vshll.u32 %v2116, 16
        %v2177 = vrot.slane %v2175, 5
        %v2178 = vsel %vm910, %v2173, %v2177
        %v2180 = vshrl.u32 %v2087, 16
        %v2182 = vrot.slane %v2180, 4
        %v2183 = vshll.u32 %v2087, 16
        %v2185 = vrot.slane %v2183, 5
        %v2186 = vor.u32 %v2182, %v2185
        %v2187 = vrot.slane %v2186, 4
        %v2189 = vshll.u32 %v2088, 16
        %v2191 = vrot.slane %v2189, 5
        %v2192 = vsel %vm910, %v2187, %v2191
        %v2193 = vshrl.u32 %v2088, 16
        %v2195 = vrot.slane %v2193, 4
        %v2196 = vor.u32 %v2195, %v2191
        %v2197 = vrot.slane %v2196, 4
        %v2199 = vshll.u32 %v2117, 16
        %v2201 = vrot.slane %v2199, 5
        %v2202 = vsel %vm910, %v2197, %v2201
        %v2204 = vshrl.u32 %v2089, 16
        %v2206 = vrot.slane %v2204, 4
        %v2207 = vshll.u32 %v2089, 16
        %v2209 = vrot.slane %v2207, 5
        %v2210 = vor.u32 %v2206, %v2209
        %v2211 = vrot.slane %v2210, 4
        %v2213 = vshll.u32 %v2090, 16
        %v2215 = vrot.slane %v2213, 5
        %v2216 = vsel %vm910, %v2211, %v2215
        %v2217 = vshrl.u32 %v2090, 16
        %v2219 = vrot.slane %v2217, 4
        %v2220 = vor.u32 %v2219, %v2215
        %v2221 = vrot.slane %v2220, 4
        %v2223 = vshll.u32 %v2118, 16
        %v2225 = vrot.slane %v2223, 5
        %v2226 = vsel %vm910, %v2221, %v2225
        %v2228 = vshrl.u32 %v2091, 16
        %v2230 = vrot.slane %v2228, 4
        %v2231 = vshll.u32 %v2091, 16
        %v2233 = vrot.slane %v2231, 5
        %v2234 = vor.u32 %v2230, %v2233
        %v2235 = vrot.slane %v2234, 4
        %v2237 = vshll.u32 %v2092, 16
        %v2239 = vrot.slane %v2237, 5
        %v2240 = vsel %vm910, %v2235, %v2239
        %v2241 = vshrl.u32 %v2092, 16
        %v2243 = vrot.slane %v2241, 4
        %v2244 = vor.u32 %v2243, %v2239
        %v2245 = vrot.slane %v2244, 4
        %v2247 = vshll.u32 %v2119, 16
        %v2249 = vrot.slane %v2247, 5
        %v2250 = vsel %vm910, %v2245, %v2249
        %v2252 = vshrl.u32 %v2093, 16
        %v2254 = vrot.slane %v2252, 4
        %v2255 = vshll.u32 %v2093, 16
        %v2257 = vrot.slane %v2255, 5
        %v2258 = vor.u32 %v2254, %v2257
        %v2259 = vrot.slane %v2258, 4
        %v2261 = vshll.u32 %v2094, 16
        %v2263 = vrot.slane %v2261, 5
        %v2264 = vsel %vm910, %v2259, %v2263
        %v2265 = vshrl.u32 %v2094, 16
        %v2267 = vrot.slane %v2265, 4
        %v2268 = vor.u32 %v2267, %v2263
        %v2269 = vrot.slane %v2268, 4
        %v2271 = vshll.u32 %v2120, 16
        %v2273 = vrot.slane %v2271, 5
        %v2274 = vsel %vm910, %v2269, %v2273
        %v2276 = vshrl.u32 %v2095, 16
        %v2278 = vrot.slane %v2276, 4
        %v2279 = vshll.u32 %v2095, 16
        %v2281 = vrot.slane %v2279, 5
        %v2282 = vor.u32 %v2278, %v2281
        %v2283 = vrot.slane %v2282, 4
        %v2285 = vshll.u32 %v2096, 16
        %v2287 = vrot.slane %v2285, 5
        %v2288 = vsel %vm910, %v2283, %v2287
        %v2289 = vshrl.u32 %v2096, 16
        %v2291 = vrot.slane %v2289, 4
        %v2292 = vor.u32 %v2291, %v2287
        %v2293 = vrot.slane %v2292, 4
        %v2295 = vshll.u32 %v2121, 16
        %v2297 = vrot.slane %v2295, 5
        %v2298 = vsel %vm910, %v2293, %v2297
        %v2300 = vshrl.u32 %v2097, 16
        %v2302 = vrot.slane %v2300, 4
        %v2303 = vshll.u32 %v2097, 16
        %v2305 = vrot.slane %v2303, 5
        %v2306 = vor.u32 %v2302, %v2305
        %v2307 = vrot.slane %v2306, 4
        %v2309 = vshll.u32 %v2098, 16
        %v2311 = vrot.slane %v2309, 5
        %v2312 = vsel %vm910, %v2307, %v2311
        %v2313 = vshrl.u32 %v2098, 16
        %v2315 = vrot.slane %v2313, 4
        %v2316 = vor.u32 %v2315, %v2311
        %v2317 = vrot.slane %v2316, 4
        %v2319 = vshll.u32 %v2122, 16
        %v2321 = vrot.slane %v2319, 5
        %v2322 = vsel %vm910, %v2317, %v2321
        %v2324 = vshrl.u32 %v2099, 16
        %v2326 = vrot.slane %v2324, 4
        %v2327 = vshll.u32 %v2099, 16
        %v2329 = vrot.slane %v2327, 5
        %v2330 = vor.u32 %v2326, %v2329
        %v2331 = vrot.slane %v2330, 4
        %v2333 = vshll.u32 %v2100, 16
        %v2335 = vrot.slane %v2333, 5
        %v2336 = vsel %vm910, %v2331, %v2335
        %v2337 = vshrl.u32 %v2100, 16
        %v2339 = vrot.slane %v2337, 4
        %v2340 = vor.u32 %v2339, %v2335
        %v2341 = vrot.slane %v2340, 4
        %v2343 = vshll.u32 %v2123, 16
        %v2345 = vrot.slane %v2343, 5
        %v2346 = vsel %vm910, %v2341, %v2345
        %v2348 = vshrl.u32 %v2101, 16
        %v2350 = vrot.slane %v2348, 4
        %v2351 = vshll.u32 %v2101, 16
        %v2353 = vrot.slane %v2351, 5
        %v2354 = vor.u32 %v2350, %v2353
        %v2355 = vrot.slane %v2354, 4
        %v2357 = vshll.u32 %v2102, 16
        %v2359 = vrot.slane %v2357, 5
        %v2360 = vsel %vm910, %v2355, %v2359
        %v2361 = vshrl.u32 %v2102, 16
        %v2363 = vrot.slane %v2361, 4
        %v2364 = vor.u32 %v2363, %v2359
        %v2365 = vrot.slane %v2364, 4
        %v2367 = vshll.u32 %v2124, 16
        %v2369 = vrot.slane %v2367, 5
        %v2370 = vsel %vm910, %v2365, %v2369
        %v2372 = vshrl.u32 %v2103, 16
        %v2374 = vrot.slane %v2372, 4
        %v2375 = vshll.u32 %v2103, 16
        %v2377 = vrot.slane %v2375, 5
        %v2378 = vor.u32 %v2374, %v2377
        %v2379 = vrot.slane %v2378, 4
        %v2381 = vshll.u32 %v2104, 16
        %v2383 = vrot.slane %v2381, 5
        %v2384 = vsel %vm910, %v2379, %v2383
        %v2385 = vshrl.u32 %v2104, 16
        %v2387 = vrot.slane %v2385, 4
        %v2388 = vor.u32 %v2387, %v2383
        %v2389 = vrot.slane %v2388, 4
        %v2391 = vshll.u32 %v2125, 16
        %v2393 = vrot.slane %v2391, 5
        %v2394 = vsel %vm910, %v2389, %v2393
        %v2396 = vshrl.u32 %v2105, 16
        %v2398 = vrot.slane %v2396, 4
        %v2399 = vshll.u32 %v2105, 16
        %v2401 = vrot.slane %v2399, 5
        %v2402 = vor.u32 %v2398, %v2401
        %v2403 = vrot.slane %v2402, 4
        %v2405 = vshll.u32 %v2106, 16
        %v2407 = vrot.slane %v2405, 5
        %v2408 = vsel %vm910, %v2403, %v2407
        %v2409 = vshrl.u32 %v2106, 16
        %v2411 = vrot.slane %v2409, 4
        %v2412 = vor.u32 %v2411, %v2407
        %v2413 = vrot.slane %v2412, 4
        %v2415 = vshll.u32 %v2126, 16
        %v2417 = vrot.slane %v2415, 5
        %v2418 = vsel %vm910, %v2413, %v2417
        %v2420 = vshrl.u32 %v2107, 16
        %v2422 = vrot.slane %v2420, 4
        %v2423 = vshll.u32 %v2107, 16
        %v2425 = vrot.slane %v2423, 5
        %v2426 = vor.u32 %v2422, %v2425
        %v2427 = vrot.slane %v2426, 4
        %v2429 = vshll.u32 %v2108, 16
        %v2431 = vrot.slane %v2429, 5
        %v2432 = vsel %vm910, %v2427, %v2431
        %v2433 = vshrl.u32 %v2108, 16
        %v2435 = vrot.slane %v2433, 4
        %v2436 = vor.u32 %v2435, %v2431
        %v2437 = vrot.slane %v2436, 4
        %v2439 = vshll.u32 %v2127, 16
        %v2441 = vrot.slane %v2439, 5
        %v2442 = vsel %vm910, %v2437, %v2441
        %v2444 = vshrl.u32 %v2109, 16
        %v2446 = vrot.slane %v2444, 4
        %v2447 = vshll.u32 %v2109, 16
        %v2449 = vrot.slane %v2447, 5
        %v2450 = vor.u32 %v2446, %v2449
        %v2451 = vrot.slane %v2450, 4
        %v2453 = vshll.u32 %v2110, 16
        %v2455 = vrot.slane %v2453, 5
        %v2456 = vsel %vm910, %v2451, %v2455
        %v2457 = vshrl.u32 %v2110, 16
        %v2459 = vrot.slane %v2457, 4
        %v2460 = vor.u32 %v2459, %v2455
        %v2461 = vrot.slane %v2460, 4
        %v2463 = vshll.u32 %v2128, 16
        %v2465 = vrot.slane %v2463, 5
        %v2466 = vsel %vm910, %v2461, %v2465
        %v2468 = vshrl.u32 %v2111, 16
        %v2470 = vrot.slane %v2468, 4
        %v2471 = vshll.u32 %v2111, 16
        %v2473 = vrot.slane %v2471, 5
        %v2474 = vor.u32 %v2470, %v2473
        %v2475 = vrot.slane %v2474, 4
        %v2477 = vshll.u32 %v2112, 16
        %v2479 = vrot.slane %v2477, 5
        %v2480 = vsel %vm910, %v2475, %v2479
        %v2481 = vshrl.u32 %v2112, 16
        %v2483 = vrot.slane %v2481, 4
        %v2484 = vor.u32 %v2483, %v2479
        %v2485 = vrot.slane %v2484, 4
        %v2487 = vshll.u32 %v2129, 16
        %v2489 = vrot.slane %v2487, 5
        %v2490 = vsel %vm910, %v2485, %v2489
        %v2492 = vshrl.u32 %v2113, 16
        %v2494 = vrot.slane %v2492, 4
        %v2495 = vshll.u32 %v2113, 16
        %v2497 = vrot.slane %v2495, 5
        %v2498 = vor.u32 %v2494, %v2497
        %v2499 = vrot.slane %v2498, 4
        %v2501 = vshll.u32 %v2114, 16
        %v2503 = vrot.slane %v2501, 5
        %v2504 = vsel %vm910, %v2499, %v2503
        %v2505 = vshrl.u32 %v2114, 16
        %v2507 = vrot.slane %v2505, 4
        %v2508 = vor.u32 %v2507, %v2503
        %v2509 = vrot.slane %v2508, 4
        %v2511 = vshll.u32 %v2130, 16
        %v2513 = vrot.slane %v2511, 5
        %v2514 = vsel %vm910, %v2509, %v2513
        %v2515 = vld [vmem:[%s2082] sm:$0xe]
        %v2516 = vld [vmem:[%s2082 + $0xc] sm:$0xe]
        %v2517 = vld [vmem:[%s2082 + $0x18] sm:$0xe]
        %v2518 = vld [vmem:[%s2082 + $0x24] sm:$0xe]
        %v2519 = vld [vmem:[%s2082 + $0x30] sm:$0xe]
        %v2520 = vld [vmem:[%s2082 + $0x3c] sm:$0xe]
        %v2521 = vld [vmem:[%s2082 + $0x48] sm:$0xe]
        %v2522 = vld [vmem:[%s2082 + $0x54] sm:$0xe]
        %v2523 = vld [vmem:[%s2082 + $0x60] sm:$0xe]
        %v2524 = vld [vmem:[%s2082 + $0x6c] sm:$0xe]
        %v2525 = vld [vmem:[%s2082 + $0x78] sm:$0xe]
        %v2526 = vld [vmem:[%s2082 + $0x84] sm:$0xe]
        %v2527 = vld [vmem:[%s2082 + $0x90] sm:$0xe]
        %v2528 = vld [vmem:[%s2082 + $0x9c] sm:$0xe]
        %v2529 = vld [vmem:[%s2082 + $0xa8] sm:$0xe]
        %v2530 = vld [vmem:[%s2082 + $0xb4] sm:$0xe]
        %v2579 = vrot.slane %v2515, 5
        %v2580 = vrot.slane %v2579, 4
        %v2581 = vrot.slane %v2084, 5
        %v2582 = vsel %vm1361, %v2580, %v2581
        %v2583 = vrot.slane %v2581, 4
        %v2584 = vrot.slane %v2115, 5
        %v2585 = vsel %vm1361, %v2583, %v2584
        %v2586 = vrot.slane %v2516, 5
        %v2587 = vrot.slane %v2586, 4
        %v2588 = vrot.slane %v2086, 5
        %v2589 = vsel %vm1361, %v2587, %v2588
        %v2590 = vrot.slane %v2588, 4
        %v2591 = vrot.slane %v2116, 5
        %v2592 = vsel %vm1361, %v2590, %v2591
        %v2593 = vrot.slane %v2517, 5
        %v2594 = vrot.slane %v2593, 4
        %v2595 = vrot.slane %v2088, 5
        %v2596 = vsel %vm1361, %v2594, %v2595
        %v2597 = vrot.slane %v2595, 4
        %v2598 = vrot.slane %v2117, 5
        %v2599 = vsel %vm1361, %v2597, %v2598
        %v2600 = vrot.slane %v2518, 5
        %v2601 = vrot.slane %v2600, 4
        %v2602 = vrot.slane %v2090, 5
        %v2603 = vsel %vm1361, %v2601, %v2602
        %v2604 = vrot.slane %v2602, 4
        %v2605 = vrot.slane %v2118, 5
        %v2606 = vsel %vm1361, %v2604, %v2605
        %v2607 = vrot.slane %v2519, 5
        %v2608 = vrot.slane %v2607, 4
        %v2609 = vrot.slane %v2092, 5
        %v2610 = vsel %vm1361, %v2608, %v2609
        %v2611 = vrot.slane %v2609, 4
        %v2612 = vrot.slane %v2119, 5
        %v2613 = vsel %vm1361, %v2611, %v2612
        %v2614 = vrot.slane %v2520, 5
        %v2615 = vrot.slane %v2614, 4
        %v2616 = vrot.slane %v2094, 5
        %v2617 = vsel %vm1361, %v2615, %v2616
        %v2618 = vrot.slane %v2616, 4
        %v2619 = vrot.slane %v2120, 5
        %v2620 = vsel %vm1361, %v2618, %v2619
        %v2621 = vrot.slane %v2521, 5
        %v2622 = vrot.slane %v2621, 4
        %v2623 = vrot.slane %v2096, 5
        %v2624 = vsel %vm1361, %v2622, %v2623
        %v2625 = vrot.slane %v2623, 4
        %v2626 = vrot.slane %v2121, 5
        %v2627 = vsel %vm1361, %v2625, %v2626
        %v2628 = vrot.slane %v2522, 5
        %v2629 = vrot.slane %v2628, 4
        %v2630 = vrot.slane %v2098, 5
        %v2631 = vsel %vm1361, %v2629, %v2630
        %v2632 = vrot.slane %v2630, 4
        %v2633 = vrot.slane %v2122, 5
        %v2634 = vsel %vm1361, %v2632, %v2633
        %v2635 = vrot.slane %v2523, 5
        %v2636 = vrot.slane %v2635, 4
        %v2637 = vrot.slane %v2100, 5
        %v2638 = vsel %vm1361, %v2636, %v2637
        %v2639 = vrot.slane %v2637, 4
        %v2640 = vrot.slane %v2123, 5
        %v2641 = vsel %vm1361, %v2639, %v2640
        %v2642 = vrot.slane %v2524, 5
        %v2643 = vrot.slane %v2642, 4
        %v2644 = vrot.slane %v2102, 5
        %v2645 = vsel %vm1361, %v2643, %v2644
        %v2646 = vrot.slane %v2644, 4
        %v2647 = vrot.slane %v2124, 5
        %v2648 = vsel %vm1361, %v2646, %v2647
        %v2649 = vrot.slane %v2525, 5
        %v2650 = vrot.slane %v2649, 4
        %v2651 = vrot.slane %v2104, 5
        %v2652 = vsel %vm1361, %v2650, %v2651
        %v2653 = vrot.slane %v2651, 4
        %v2654 = vrot.slane %v2125, 5
        %v2655 = vsel %vm1361, %v2653, %v2654
        %v2656 = vrot.slane %v2526, 5
        %v2657 = vrot.slane %v2656, 4
        %v2658 = vrot.slane %v2106, 5
        %v2659 = vsel %vm1361, %v2657, %v2658
        %v2660 = vrot.slane %v2658, 4
        %v2661 = vrot.slane %v2126, 5
        %v2662 = vsel %vm1361, %v2660, %v2661
        %v2663 = vrot.slane %v2527, 5
        %v2664 = vrot.slane %v2663, 4
        %v2665 = vrot.slane %v2108, 5
        %v2666 = vsel %vm1361, %v2664, %v2665
        %v2667 = vrot.slane %v2665, 4
        %v2668 = vrot.slane %v2127, 5
        %v2669 = vsel %vm1361, %v2667, %v2668
        %v2670 = vrot.slane %v2528, 5
        %v2671 = vrot.slane %v2670, 4
        %v2672 = vrot.slane %v2110, 5
        %v2673 = vsel %vm1361, %v2671, %v2672
        %v2674 = vrot.slane %v2672, 4
        %v2675 = vrot.slane %v2128, 5
        %v2676 = vsel %vm1361, %v2674, %v2675
        %v2677 = vrot.slane %v2529, 5
        %v2678 = vrot.slane %v2677, 4
        %v2679 = vrot.slane %v2112, 5
        %v2680 = vsel %vm1361, %v2678, %v2679
        %v2681 = vrot.slane %v2679, 4
        %v2682 = vrot.slane %v2129, 5
        %v2683 = vsel %vm1361, %v2681, %v2682
        %v2684 = vrot.slane %v2530, 5
        %v2685 = vrot.slane %v2684, 4
        %v2686 = vrot.slane %v2114, 5
        %v2687 = vsel %vm1361, %v2685, %v2686
        %v2688 = vrot.slane %v2686, 4
        %v2689 = vrot.slane %v2130, 5
        %v2690 = vsel %vm1361, %v2688, %v2689
        %v2707 = vunpack.c.l.b16 %v860
        %v2708 = vunpack.c.l.b16 %v861
        %v2709 = vunpack.c.l.b16 %v862
        %v2710 = vunpack.c.l.b16 %v863
        %v2711 = vunpack.c.l.b16 %v864
        %v2712 = vunpack.c.l.b16 %v865
        %v2713 = vunpack.c.l.b16 %v866
        %v2714 = vunpack.c.l.b16 %v867
        %v2715 = vunpack.c.l.b16 %v868
        %v2716 = vunpack.c.l.b16 %v869
        %v2717 = vunpack.c.l.b16 %v870
        %v2718 = vunpack.c.l.b16 %v871
        %v2719 = vunpack.c.l.b16 %v872
        %v2720 = vunpack.c.l.b16 %v873
        %v2721 = vunpack.c.l.b16 %v874
        %v2722 = vunpack.c.l.b16 %v875
        %v2723 = vunpack.c.l.b16 %v876
        %v2724 = vunpack.c.l.b16 %v877
        %v2725 = vunpack.c.l.b16 %v878
        %v2726 = vunpack.c.l.b16 %v879
        %v2727 = vunpack.c.l.b16 %v880
        %v2728 = vunpack.c.l.b16 %v881
        %v2729 = vunpack.c.l.b16 %v882
        %v2730 = vunpack.c.l.b16 %v883
        %v2731 = vunpack.c.l.b16 %v884
        %v2732 = vunpack.c.l.b16 %v885
        %v2733 = vunpack.c.l.b16 %v886
        %v2734 = vunpack.c.l.b16 %v887
        %v2735 = vunpack.c.l.b16 %v888
        %v2736 = vunpack.c.l.b16 %v889
        %v2737 = vunpack.c.l.b16 %v890
        %v2738 = vunpack.c.l.b16 %v891
        %v2739 = vpack.c.b16 %v2708, %v2707
        %v2740 = vpack.c.b16 %v2710, %v2709
        %v2741 = vpack.c.b16 %v2712, %v2711
        %v2742 = vpack.c.b16 %v2714, %v2713
        %v2743 = vpack.c.b16 %v2716, %v2715
        %v2744 = vpack.c.b16 %v2718, %v2717
        %v2745 = vpack.c.b16 %v2720, %v2719
        %v2746 = vpack.c.b16 %v2722, %v2721
        %v2747 = vpack.c.b16 %v2724, %v2723
        %v2748 = vpack.c.b16 %v2726, %v2725
        %v2749 = vpack.c.b16 %v2728, %v2727
        %v2750 = vpack.c.b16 %v2730, %v2729
        %v2751 = vpack.c.b16 %v2732, %v2731
        %v2752 = vpack.c.b16 %v2734, %v2733
        %v2753 = vpack.c.b16 %v2736, %v2735
        %v2754 = vpack.c.b16 %v2738, %v2737
        %v2755 = vunpack.c.l.b16 %v924
        %v2756 = vunpack.c.l.b16 %v934
        %v2757 = vunpack.c.l.b16 %v948
        %v2758 = vunpack.c.l.b16 %v958
        %v2759 = vunpack.c.l.b16 %v972
        %v2760 = vunpack.c.l.b16 %v982
        %v2761 = vunpack.c.l.b16 %v996
        %v2762 = vunpack.c.l.b16 %v1006
        %v2763 = vunpack.c.l.b16 %v1020
        %v2764 = vunpack.c.l.b16 %v1030
        %v2765 = vunpack.c.l.b16 %v1044
        %v2766 = vunpack.c.l.b16 %v1054
        %v2767 = vunpack.c.l.b16 %v1068
        %v2768 = vunpack.c.l.b16 %v1078
        %v2769 = vunpack.c.l.b16 %v1092
        %v2770 = vunpack.c.l.b16 %v1102
        %v2771 = vunpack.c.l.b16 %v1116
        %v2772 = vunpack.c.l.b16 %v1126
        %v2773 = vunpack.c.l.b16 %v1140
        %v2774 = vunpack.c.l.b16 %v1150
        %v2775 = vunpack.c.l.b16 %v1164
        %v2776 = vunpack.c.l.b16 %v1174
        %v2777 = vunpack.c.l.b16 %v1188
        %v2778 = vunpack.c.l.b16 %v1198
        %v2779 = vunpack.c.l.b16 %v1212
        %v2780 = vunpack.c.l.b16 %v1222
        %v2781 = vunpack.c.l.b16 %v1236
        %v2782 = vunpack.c.l.b16 %v1246
        %v2783 = vunpack.c.l.b16 %v1260
        %v2784 = vunpack.c.l.b16 %v1270
        %v2785 = vunpack.c.l.b16 %v1284
        %v2786 = vunpack.c.l.b16 %v1294
        %v2787 = vpack.c.b16 %v2756, %v2755
        %v2788 = vpack.c.b16 %v2758, %v2757
        %v2789 = vpack.c.b16 %v2760, %v2759
        %v2790 = vpack.c.b16 %v2762, %v2761
        %v2791 = vpack.c.b16 %v2764, %v2763
        %v2792 = vpack.c.b16 %v2766, %v2765
        %v2793 = vpack.c.b16 %v2768, %v2767
        %v2794 = vpack.c.b16 %v2770, %v2769
        %v2795 = vpack.c.b16 %v2772, %v2771
        %v2796 = vpack.c.b16 %v2774, %v2773
        %v2797 = vpack.c.b16 %v2776, %v2775
        %v2798 = vpack.c.b16 %v2778, %v2777
        %v2799 = vpack.c.b16 %v2780, %v2779
        %v2800 = vpack.c.b16 %v2782, %v2781
        %v2801 = vpack.c.b16 %v2784, %v2783
        %v2802 = vpack.c.b16 %v2786, %v2785
        %2803 = vrot.lane.b32.xlu0 %v2787, 4
        %v2804 = vpop.permute.xlu0 %2803
        %2805 = vrot.lane.b32.xlu0 %v2788, 4
        %v2806 = vpop.permute.xlu0 %2805
        %2807 = vrot.lane.b32.xlu0 %v2789, 4
        %v2808 = vpop.permute.xlu0 %2807
        %2809 = vrot.lane.b32.xlu0 %v2790, 4
        %v2810 = vpop.permute.xlu0 %2809
        %2811 = vrot.lane.b32.xlu0 %v2791, 4
        %v2812 = vpop.permute.xlu0 %2811
        %2813 = vrot.lane.b32.xlu0 %v2792, 4
        %v2814 = vpop.permute.xlu0 %2813
        %2815 = vrot.lane.b32.xlu0 %v2793, 4
        %v2816 = vpop.permute.xlu0 %2815
        %2817 = vrot.lane.b32.xlu0 %v2794, 4
        %v2818 = vpop.permute.xlu0 %2817
        %2819 = vrot.lane.b32.xlu0 %v2795, 4
        %v2820 = vpop.permute.xlu0 %2819
        %2821 = vrot.lane.b32.xlu0 %v2796, 4
        %v2822 = vpop.permute.xlu0 %2821
        %2823 = vrot.lane.b32.xlu0 %v2797, 4
        %v2824 = vpop.permute.xlu0 %2823
        %2825 = vrot.lane.b32.xlu0 %v2798, 4
        %v2826 = vpop.permute.xlu0 %2825
        %2827 = vrot.lane.b32.xlu0 %v2799, 4
        %v2828 = vpop.permute.xlu0 %2827
        %2829 = vrot.lane.b32.xlu0 %v2800, 4
        %v2830 = vpop.permute.xlu0 %2829
        %2831 = vrot.lane.b32.xlu0 %v2801, 4
        %v2832 = vpop.permute.xlu0 %2831
        %2833 = vrot.lane.b32.xlu0 %v2802, 4
        %v2834 = vpop.permute.xlu0 %2833
        %v2835 = vunpack.c.l.b16 %v1365
        %v2836 = vunpack.c.l.b16 %v1368
        %v2837 = vunpack.c.l.b16 %v1372
        %v2838 = vunpack.c.l.b16 %v1375
        %v2839 = vunpack.c.l.b16 %v1379
        %v2840 = vunpack.c.l.b16 %v1382
        %v2841 = vunpack.c.l.b16 %v1386
        %v2842 = vunpack.c.l.b16 %v1389
        %v2843 = vunpack.c.l.b16 %v1393
        %v2844 = vunpack.c.l.b16 %v1396
        %v2845 = vunpack.c.l.b16 %v1400
        %v2846 = vunpack.c.l.b16 %v1403
        %v2847 = vunpack.c.l.b16 %v1407
        %v2848 = vunpack.c.l.b16 %v1410
        %v2849 = vunpack.c.l.b16 %v1414
        %v2850 = vunpack.c.l.b16 %v1417
        %v2851 = vunpack.c.l.b16 %v1421
        %v2852 = vunpack.c.l.b16 %v1424
        %v2853 = vunpack.c.l.b16 %v1428
        %v2854 = vunpack.c.l.b16 %v1431
        %v2855 = vunpack.c.l.b16 %v1435
        %v2856 = vunpack.c.l.b16 %v1438
        %v2857 = vunpack.c.l.b16 %v1442
        %v2858 = vunpack.c.l.b16 %v1445
        %v2859 = vunpack.c.l.b16 %v1449
        %v2860 = vunpack.c.l.b16 %v1452
        %v2861 = vunpack.c.l.b16 %v1456
        %v2862 = vunpack.c.l.b16 %v1459
        %v2863 = vunpack.c.l.b16 %v1463
        %v2864 = vunpack.c.l.b16 %v1466
        %v2865 = vunpack.c.l.b16 %v1470
        %v2866 = vunpack.c.l.b16 %v1473
        %v2867 = vpack.c.b16 %v2836, %v2835
        %v2868 = vpack.c.b16 %v2838, %v2837
        %v2869 = vpack.c.b16 %v2840, %v2839
        %v2870 = vpack.c.b16 %v2842, %v2841
        %v2871 = vpack.c.b16 %v2844, %v2843
        %v2872 = vpack.c.b16 %v2846, %v2845
        %v2873 = vpack.c.b16 %v2848, %v2847
        %v2874 = vpack.c.b16 %v2850, %v2849
        %v2875 = vpack.c.b16 %v2852, %v2851
        %v2876 = vpack.c.b16 %v2854, %v2853
        %v2877 = vpack.c.b16 %v2856, %v2855
        %v2878 = vpack.c.b16 %v2858, %v2857
        %v2879 = vpack.c.b16 %v2860, %v2859
        %v2880 = vpack.c.b16 %v2862, %v2861
        %v2881 = vpack.c.b16 %v2864, %v2863
        %v2882 = vpack.c.b16 %v2866, %v2865
        %2883 = vrot.lane.b32.xlu0 %v2867, 8
        %v2884 = vpop.permute.xlu0 %2883
        %2885 = vrot.lane.b32.xlu0 %v2868, 8
        %v2886 = vpop.permute.xlu0 %2885
        %2887 = vrot.lane.b32.xlu0 %v2869, 8
        %v2888 = vpop.permute.xlu0 %2887
        %2889 = vrot.lane.b32.xlu0 %v2870, 8
        %v2890 = vpop.permute.xlu0 %2889
        %2891 = vrot.lane.b32.xlu0 %v2871, 8
        %v2892 = vpop.permute.xlu0 %2891
        %2893 = vrot.lane.b32.xlu0 %v2872, 8
        %v2894 = vpop.permute.xlu0 %2893
        %2895 = vrot.lane.b32.xlu0 %v2873, 8
        %v2896 = vpop.permute.xlu0 %2895
        %2897 = vrot.lane.b32.xlu0 %v2874, 8
        %v2898 = vpop.permute.xlu0 %2897
        %2899 = vrot.lane.b32.xlu0 %v2875, 8
        %v2900 = vpop.permute.xlu0 %2899
        %2901 = vrot.lane.b32.xlu0 %v2876, 8
        %v2902 = vpop.permute.xlu0 %2901
        %2903 = vrot.lane.b32.xlu0 %v2877, 8
        %v2904 = vpop.permute.xlu0 %2903
        %2905 = vrot.lane.b32.xlu0 %v2878, 8
        %v2906 = vpop.permute.xlu0 %2905
        %2907 = vrot.lane.b32.xlu0 %v2879, 8
        %v2908 = vpop.permute.xlu0 %2907
        %2909 = vrot.lane.b32.xlu0 %v2880, 8
        %v2910 = vpop.permute.xlu0 %2909
        %2911 = vrot.lane.b32.xlu0 %v2881, 8
        %v2912 = vpop.permute.xlu0 %2911
        %2913 = vrot.lane.b32.xlu0 %v2882, 8
        %v2914 = vpop.permute.xlu0 %2913
        %v2931 = vunpack.c.l.b16 %v1474
        %v2932 = vunpack.c.l.b16 %v1475
        %v2933 = vunpack.c.l.b16 %v1476
        %v2934 = vunpack.c.l.b16 %v1477
        %v2935 = vunpack.c.l.b16 %v1478
        %v2936 = vunpack.c.l.b16 %v1479
        %v2937 = vunpack.c.l.b16 %v1480
        %v2938 = vunpack.c.l.b16 %v1481
        %v2939 = vunpack.c.l.b16 %v1482
        %v2940 = vunpack.c.l.b16 %v1483
        %v2941 = vunpack.c.l.b16 %v1484
        %v2942 = vunpack.c.l.b16 %v1485
        %v2943 = vunpack.c.l.b16 %v1486
        %v2944 = vunpack.c.l.b16 %v1487
        %v2945 = vunpack.c.l.b16 %v1488
        %v2946 = vunpack.c.l.b16 %v1489
        %v2947 = vunpack.c.l.b16 %v1490
        %v2948 = vunpack.c.l.b16 %v1491
        %v2949 = vunpack.c.l.b16 %v1492
        %v2950 = vunpack.c.l.b16 %v1493
        %v2951 = vunpack.c.l.b16 %v1494
        %v2952 = vunpack.c.l.b16 %v1495
        %v2953 = vunpack.c.l.b16 %v1496
        %v2954 = vunpack.c.l.b16 %v1497
        %v2955 = vunpack.c.l.b16 %v1498
        %v2956 = vunpack.c.l.b16 %v1499
        %v2957 = vunpack.c.l.b16 %v1500
        %v2958 = vunpack.c.l.b16 %v1501
        %v2959 = vunpack.c.l.b16 %v1502
        %v2960 = vunpack.c.l.b16 %v1503
        %v2961 = vunpack.c.l.b16 %v1504
        %v2962 = vunpack.c.l.b16 %v1505
        %v2963 = vpack.c.b16 %v2932, %v2931
        %v2964 = vpack.c.b16 %v2934, %v2933
        %v2965 = vpack.c.b16 %v2936, %v2935
        %v2966 = vpack.c.b16 %v2938, %v2937
        %v2967 = vpack.c.b16 %v2940, %v2939
        %v2968 = vpack.c.b16 %v2942, %v2941
        %v2969 = vpack.c.b16 %v2944, %v2943
        %v2970 = vpack.c.b16 %v2946, %v2945
        %v2971 = vpack.c.b16 %v2948, %v2947
        %v2972 = vpack.c.b16 %v2950, %v2949
        %v2973 = vpack.c.b16 %v2952, %v2951
        %v2974 = vpack.c.b16 %v2954, %v2953
        %v2975 = vpack.c.b16 %v2956, %v2955
        %v2976 = vpack.c.b16 %v2958, %v2957
        %v2977 = vpack.c.b16 %v2960, %v2959
        %v2978 = vpack.c.b16 %v2962, %v2961
        %2979 = vrot.lane.b32.xlu0 %v2963, 12
        %v2980 = vpop.permute.xlu0 %2979
        %2981 = vrot.lane.b32.xlu0 %v2964, 12
        %v2982 = vpop.permute.xlu0 %2981
        %2983 = vrot.lane.b32.xlu0 %v2965, 12
        %v2984 = vpop.permute.xlu0 %2983
        %2985 = vrot.lane.b32.xlu0 %v2966, 12
        %v2986 = vpop.permute.xlu0 %2985
        %2987 = vrot.lane.b32.xlu0 %v2967, 12
        %v2988 = vpop.permute.xlu0 %2987
        %2989 = vrot.lane.b32.xlu0 %v2968, 12
        %v2990 = vpop.permute.xlu0 %2989
        %2991 = vrot.lane.b32.xlu0 %v2969, 12
        %v2992 = vpop.permute.xlu0 %2991
        %2993 = vrot.lane.b32.xlu0 %v2970, 12
        %v2994 = vpop.permute.xlu0 %2993
        %2995 = vrot.lane.b32.xlu0 %v2971, 12
        %v2996 = vpop.permute.xlu0 %2995
        %2997 = vrot.lane.b32.xlu0 %v2972, 12
        %v2998 = vpop.permute.xlu0 %2997
        %2999 = vrot.lane.b32.xlu0 %v2973, 12
        %v3000 = vpop.permute.xlu0 %2999
        %3001 = vrot.lane.b32.xlu0 %v2974, 12
        %v3002 = vpop.permute.xlu0 %3001
        %3003 = vrot.lane.b32.xlu0 %v2975, 12
        %v3004 = vpop.permute.xlu0 %3003
        %3005 = vrot.lane.b32.xlu0 %v2976, 12
        %v3006 = vpop.permute.xlu0 %3005
        %3007 = vrot.lane.b32.xlu0 %v2977, 12
        %v3008 = vpop.permute.xlu0 %3007
        %3009 = vrot.lane.b32.xlu0 %v2978, 12
        %v3010 = vpop.permute.xlu0 %3009
        %v3011 = vunpack.c.l.b16 %v1535
        %v3012 = vunpack.c.l.b16 %v1545
        %v3013 = vunpack.c.l.b16 %v1559
        %v3014 = vunpack.c.l.b16 %v1569
        %v3015 = vunpack.c.l.b16 %v1583
        %v3016 = vunpack.c.l.b16 %v1593
        %v3017 = vunpack.c.l.b16 %v1607
        %v3018 = vunpack.c.l.b16 %v1617
        %v3019 = vunpack.c.l.b16 %v1631
        %v3020 = vunpack.c.l.b16 %v1641
        %v3021 = vunpack.c.l.b16 %v1655
        %v3022 = vunpack.c.l.b16 %v1665
        %v3023 = vunpack.c.l.b16 %v1679
        %v3024 = vunpack.c.l.b16 %v1689
        %v3025 = vunpack.c.l.b16 %v1703
        %v3026 = vunpack.c.l.b16 %v1713
        %v3027 = vunpack.c.l.b16 %v1727
        %v3028 = vunpack.c.l.b16 %v1737
        %v3029 = vunpack.c.l.b16 %v1751
        %v3030 = vunpack.c.l.b16 %v1761
        %v3031 = vunpack.c.l.b16 %v1775
        %v3032 = vunpack.c.l.b16 %v1785
        %v3033 = vunpack.c.l.b16 %v1799
        %v3034 = vunpack.c.l.b16 %v1809
        %v3035 = vunpack.c.l.b16 %v1823
        %v3036 = vunpack.c.l.b16 %v1833
        %v3037 = vunpack.c.l.b16 %v1847
        %v3038 = vunpack.c.l.b16 %v1857
        %v3039 = vunpack.c.l.b16 %v1871
        %v3040 = vunpack.c.l.b16 %v1881
        %v3041 = vunpack.c.l.b16 %v1895
        %v3042 = vunpack.c.l.b16 %v1905
        %v3043 = vpack.c.b16 %v3012, %v3011
        %v3044 = vpack.c.b16 %v3014, %v3013
        %v3045 = vpack.c.b16 %v3016, %v3015
        %v3046 = vpack.c.b16 %v3018, %v3017
        %v3047 = vpack.c.b16 %v3020, %v3019
        %v3048 = vpack.c.b16 %v3022, %v3021
        %v3049 = vpack.c.b16 %v3024, %v3023
        %v3050 = vpack.c.b16 %v3026, %v3025
        %v3051 = vpack.c.b16 %v3028, %v3027
        %v3052 = vpack.c.b16 %v3030, %v3029
        %v3053 = vpack.c.b16 %v3032, %v3031
        %v3054 = vpack.c.b16 %v3034, %v3033
        %v3055 = vpack.c.b16 %v3036, %v3035
        %v3056 = vpack.c.b16 %v3038, %v3037
        %v3057 = vpack.c.b16 %v3040, %v3039
        %v3058 = vpack.c.b16 %v3042, %v3041
        %3059 = vrot.lane.b32.xlu0 %v3043, 16
        %v3060 = vpop.permute.xlu0 %3059
        %3061 = vrot.lane.b32.xlu0 %v3044, 16
        %v3062 = vpop.permute.xlu0 %3061
        %3063 = vrot.lane.b32.xlu0 %v3045, 16
        %v3064 = vpop.permute.xlu0 %3063
        %3065 = vrot.lane.b32.xlu0 %v3046, 16
        %v3066 = vpop.permute.xlu0 %3065
        %3067 = vrot.lane.b32.xlu0 %v3047, 16
        %v3068 = vpop.permute.xlu0 %3067
        %3069 = vrot.lane.b32.xlu0 %v3048, 16
        %v3070 = vpop.permute.xlu0 %3069
        %3071 = vrot.lane.b32.xlu0 %v3049, 16
        %v3072 = vpop.permute.xlu0 %3071
        %3073 = vrot.lane.b32.xlu0 %v3050, 16
        %v3074 = vpop.permute.xlu0 %3073
        %3075 = vrot.lane.b32.xlu0 %v3051, 16
        %v3076 = vpop.permute.xlu0 %3075
        %3077 = vrot.lane.b32.xlu0 %v3052, 16
        %v3078 = vpop.permute.xlu0 %3077
        %3079 = vrot.lane.b32.xlu0 %v3053, 16
        %v3080 = vpop.permute.xlu0 %3079
        %3081 = vrot.lane.b32.xlu0 %v3054, 16
        %v3082 = vpop.permute.xlu0 %3081
        %3083 = vrot.lane.b32.xlu0 %v3055, 16
        %v3084 = vpop.permute.xlu0 %3083
        %3085 = vrot.lane.b32.xlu0 %v3056, 16
        %v3086 = vpop.permute.xlu0 %3085
        %3087 = vrot.lane.b32.xlu0 %v3057, 16
        %v3088 = vpop.permute.xlu0 %3087
        %3089 = vrot.lane.b32.xlu0 %v3058, 16
        %v3090 = vpop.permute.xlu0 %3089
        %v3091 = vunpack.c.l.b16 %v1973
        %v3092 = vunpack.c.l.b16 %v1976
        %v3093 = vunpack.c.l.b16 %v1980
        %v3094 = vunpack.c.l.b16 %v1983
        %v3095 = vunpack.c.l.b16 %v1987
        %v3096 = vunpack.c.l.b16 %v1990
        %v3097 = vunpack.c.l.b16 %v1994
        %v3098 = vunpack.c.l.b16 %v1997
        %v3099 = vunpack.c.l.b16 %v2001
        %v3100 = vunpack.c.l.b16 %v2004
        %v3101 = vunpack.c.l.b16 %v2008
        %v3102 = vunpack.c.l.b16 %v2011
        %v3103 = vunpack.c.l.b16 %v2015
        %v3104 = vunpack.c.l.b16 %v2018
        %v3105 = vunpack.c.l.b16 %v2022
        %v3106 = vunpack.c.l.b16 %v2025
        %v3107 = vunpack.c.l.b16 %v2029
        %v3108 = vunpack.c.l.b16 %v2032
        %v3109 = vunpack.c.l.b16 %v2036
        %v3110 = vunpack.c.l.b16 %v2039
        %v3111 = vunpack.c.l.b16 %v2043
        %v3112 = vunpack.c.l.b16 %v2046
        %v3113 = vunpack.c.l.b16 %v2050
        %v3114 = vunpack.c.l.b16 %v2053
        %v3115 = vunpack.c.l.b16 %v2057
        %v3116 = vunpack.c.l.b16 %v2060
        %v3117 = vunpack.c.l.b16 %v2064
        %v3118 = vunpack.c.l.b16 %v2067
        %v3119 = vunpack.c.l.b16 %v2071
        %v3120 = vunpack.c.l.b16 %v2074
        %v3121 = vunpack.c.l.b16 %v2078
        %v3122 = vunpack.c.l.b16 %v2081
        %v3123 = vpack.c.b16 %v3092, %v3091
        %v3124 = vpack.c.b16 %v3094, %v3093
        %v3125 = vpack.c.b16 %v3096, %v3095
        %v3126 = vpack.c.b16 %v3098, %v3097
        %v3127 = vpack.c.b16 %v3100, %v3099
        %v3128 = vpack.c.b16 %v3102, %v3101
        %v3129 = vpack.c.b16 %v3104, %v3103
        %v3130 = vpack.c.b16 %v3106, %v3105
        %v3131 = vpack.c.b16 %v3108, %v3107
        %v3132 = vpack.c.b16 %v3110, %v3109
        %v3133 = vpack.c.b16 %v3112, %v3111
        %v3134 = vpack.c.b16 %v3114, %v3113
        %v3135 = vpack.c.b16 %v3116, %v3115
        %v3136 = vpack.c.b16 %v3118, %v3117
        %v3137 = vpack.c.b16 %v3120, %v3119
        %v3138 = vpack.c.b16 %v3122, %v3121
        %3139 = vrot.lane.b32.xlu0 %v3123, 20
        %v3140 = vpop.permute.xlu0 %3139
        %3141 = vrot.lane.b32.xlu0 %v3124, 20
        %v3142 = vpop.permute.xlu0 %3141
        %3143 = vrot.lane.b32.xlu0 %v3125, 20
        %v3144 = vpop.permute.xlu0 %3143
        %3145 = vrot.lane.b32.xlu0 %v3126, 20
        %v3146 = vpop.permute.xlu0 %3145
        %3147 = vrot.lane.b32.xlu0 %v3127, 20
        %v3148 = vpop.permute.xlu0 %3147
        %3149 = vrot.lane.b32.xlu0 %v3128, 20
        %v3150 = vpop.permute.xlu0 %3149
        %3151 = vrot.lane.b32.xlu0 %v3129, 20
        %v3152 = vpop.permute.xlu0 %3151
        %3153 = vrot.lane.b32.xlu0 %v3130, 20
        %v3154 = vpop.permute.xlu0 %3153
        %3155 = vrot.lane.b32.xlu0 %v3131, 20
        %v3156 = vpop.permute.xlu0 %3155
        %3157 = vrot.lane.b32.xlu0 %v3132, 20
        %v3158 = vpop.permute.xlu0 %3157
        %3159 = vrot.lane.b32.xlu0 %v3133, 20
        %v3160 = vpop.permute.xlu0 %3159
        %3161 = vrot.lane.b32.xlu0 %v3134, 20
        %v3162 = vpop.permute.xlu0 %3161
        %3163 = vrot.lane.b32.xlu0 %v3135, 20
        %v3164 = vpop.permute.xlu0 %3163
        %3165 = vrot.lane.b32.xlu0 %v3136, 20
        %v3166 = vpop.permute.xlu0 %3165
        %3167 = vrot.lane.b32.xlu0 %v3137, 20
        %v3168 = vpop.permute.xlu0 %3167
        %3169 = vrot.lane.b32.xlu0 %v3138, 20
        %v3170 = vpop.permute.xlu0 %3169
        %v3187 = vunpack.c.l.b16 %v2083
        %v3188 = vunpack.c.l.b16 %v2084
        %v3189 = vunpack.c.l.b16 %v2085
        %v3190 = vunpack.c.l.b16 %v2086
        %v3191 = vunpack.c.l.b16 %v2087
        %v3192 = vunpack.c.l.b16 %v2088
        %v3193 = vunpack.c.l.b16 %v2089
        %v3194 = vunpack.c.l.b16 %v2090
        %v3195 = vunpack.c.l.b16 %v2091
        %v3196 = vunpack.c.l.b16 %v2092
        %v3197 = vunpack.c.l.b16 %v2093
        %v3198 = vunpack.c.l.b16 %v2094
        %v3199 = vunpack.c.l.b16 %v2095
        %v3200 = vunpack.c.l.b16 %v2096
        %v3201 = vunpack.c.l.b16 %v2097
        %v3202 = vunpack.c.l.b16 %v2098
        %v3203 = vunpack.c.l.b16 %v2099
        %v3204 = vunpack.c.l.b16 %v2100
        %v3205 = vunpack.c.l.b16 %v2101
        %v3206 = vunpack.c.l.b16 %v2102
        %v3207 = vunpack.c.l.b16 %v2103
        %v3208 = vunpack.c.l.b16 %v2104
        %v3209 = vunpack.c.l.b16 %v2105
        %v3210 = vunpack.c.l.b16 %v2106
        %v3211 = vunpack.c.l.b16 %v2107
        %v3212 = vunpack.c.l.b16 %v2108
        %v3213 = vunpack.c.l.b16 %v2109
        %v3214 = vunpack.c.l.b16 %v2110
        %v3215 = vunpack.c.l.b16 %v2111
        %v3216 = vunpack.c.l.b16 %v2112
        %v3217 = vunpack.c.l.b16 %v2113
        %v3218 = vunpack.c.l.b16 %v2114
        %v3219 = vpack.c.b16 %v3188, %v3187
        %v3220 = vpack.c.b16 %v3190, %v3189
        %v3221 = vpack.c.b16 %v3192, %v3191
        %v3222 = vpack.c.b16 %v3194, %v3193
        %v3223 = vpack.c.b16 %v3196, %v3195
        %v3224 = vpack.c.b16 %v3198, %v3197
        %v3225 = vpack.c.b16 %v3200, %v3199
        %v3226 = vpack.c.b16 %v3202, %v3201
        %v3227 = vpack.c.b16 %v3204, %v3203
        %v3228 = vpack.c.b16 %v3206, %v3205
        %v3229 = vpack.c.b16 %v3208, %v3207
        %v3230 = vpack.c.b16 %v3210, %v3209
        %v3231 = vpack.c.b16 %v3212, %v3211
        %v3232 = vpack.c.b16 %v3214, %v3213
        %v3233 = vpack.c.b16 %v3216, %v3215
        %v3234 = vpack.c.b16 %v3218, %v3217
        %3235 = vrot.lane.b32.xlu0 %v3219, 24
        %v3236 = vpop.permute.xlu0 %3235
        %3237 = vrot.lane.b32.xlu0 %v3220, 24
        %v3238 = vpop.permute.xlu0 %3237
        %3239 = vrot.lane.b32.xlu0 %v3221, 24
        %v3240 = vpop.permute.xlu0 %3239
        %3241 = vrot.lane.b32.xlu0 %v3222, 24
        %v3242 = vpop.permute.xlu0 %3241
        %3243 = vrot.lane.b32.xlu0 %v3223, 24
        %v3244 = vpop.permute.xlu0 %3243
        %3245 = vrot.lane.b32.xlu0 %v3224, 24
        %v3246 = vpop.permute.xlu0 %3245
        %3247 = vrot.lane.b32.xlu0 %v3225, 24
        %v3248 = vpop.permute.xlu0 %3247
        %3249 = vrot.lane.b32.xlu0 %v3226, 24
        %v3250 = vpop.permute.xlu0 %3249
        %3251 = vrot.lane.b32.xlu0 %v3227, 24
        %v3252 = vpop.permute.xlu0 %3251
        %3253 = vrot.lane.b32.xlu0 %v3228, 24
        %v3254 = vpop.permute.xlu0 %3253
        %3255 = vrot.lane.b32.xlu0 %v3229, 24
        %v3256 = vpop.permute.xlu0 %3255
        %3257 = vrot.lane.b32.xlu0 %v3230, 24
        %v3258 = vpop.permute.xlu0 %3257
        %3259 = vrot.lane.b32.xlu0 %v3231, 24
        %v3260 = vpop.permute.xlu0 %3259
        %3261 = vrot.lane.b32.xlu0 %v3232, 24
        %v3262 = vpop.permute.xlu0 %3261
        %3263 = vrot.lane.b32.xlu0 %v3233, 24
        %v3264 = vpop.permute.xlu0 %3263
        %3265 = vrot.lane.b32.xlu0 %v3234, 24
        %v3266 = vpop.permute.xlu0 %3265
        %v3267 = vunpack.c.l.b16 %v2144
        %v3268 = vunpack.c.l.b16 %v2154
        %v3269 = vunpack.c.l.b16 %v2168
        %v3270 = vunpack.c.l.b16 %v2178
        %v3271 = vunpack.c.l.b16 %v2192
        %v3272 = vunpack.c.l.b16 %v2202
        %v3273 = vunpack.c.l.b16 %v2216
        %v3274 = vunpack.c.l.b16 %v2226
        %v3275 = vunpack.c.l.b16 %v2240
        %v3276 = vunpack.c.l.b16 %v2250
        %v3277 = vunpack.c.l.b16 %v2264
        %v3278 = vunpack.c.l.b16 %v2274
        %v3279 = vunpack.c.l.b16 %v2288
        %v3280 = vunpack.c.l.b16 %v2298
        %v3281 = vunpack.c.l.b16 %v2312
        %v3282 = vunpack.c.l.b16 %v2322
        %v3283 = vunpack.c.l.b16 %v2336
        %v3284 = vunpack.c.l.b16 %v2346
        %v3285 = vunpack.c.l.b16 %v2360
        %v3286 = vunpack.c.l.b16 %v2370
        %v3287 = vunpack.c.l.b16 %v2384
        %v3288 = vunpack.c.l.b16 %v2394
        %v3289 = vunpack.c.l.b16 %v2408
        %v3290 = vunpack.c.l.b16 %v2418
        %v3291 = vunpack.c.l.b16 %v2432
        %v3292 = vunpack.c.l.b16 %v2442
        %v3293 = vunpack.c.l.b16 %v2456
        %v3294 = vunpack.c.l.b16 %v2466
        %v3295 = vunpack.c.l.b16 %v2480
        %v3296 = vunpack.c.l.b16 %v2490
        %v3297 = vunpack.c.l.b16 %v2504
        %v3298 = vunpack.c.l.b16 %v2514
        %v3299 = vpack.c.b16 %v3268, %v3267
        %v3300 = vpack.c.b16 %v3270, %v3269
        %v3301 = vpack.c.b16 %v3272, %v3271
        %v3302 = vpack.c.b16 %v3274, %v3273
        %v3303 = vpack.c.b16 %v3276, %v3275
        %v3304 = vpack.c.b16 %v3278, %v3277
        %v3305 = vpack.c.b16 %v3280, %v3279
        %v3306 = vpack.c.b16 %v3282, %v3281
        %v3307 = vpack.c.b16 %v3284, %v3283
        %v3308 = vpack.c.b16 %v3286, %v3285
        %v3309 = vpack.c.b16 %v3288, %v3287
        %v3310 = vpack.c.b16 %v3290, %v3289
        %v3311 = vpack.c.b16 %v3292, %v3291
        %v3312 = vpack.c.b16 %v3294, %v3293
        %v3313 = vpack.c.b16 %v3296, %v3295
        %v3314 = vpack.c.b16 %v3298, %v3297
        %3315 = vrot.lane.b32.xlu0 %v3299, 28
        %v3316 = vpop.permute.xlu0 %3315
        %3317 = vrot.lane.b32.xlu0 %v3300, 28
        %v3318 = vpop.permute.xlu0 %3317
        %3319 = vrot.lane.b32.xlu0 %v3301, 28
        %v3320 = vpop.permute.xlu0 %3319
        %3321 = vrot.lane.b32.xlu0 %v3302, 28
        %v3322 = vpop.permute.xlu0 %3321
        %3323 = vrot.lane.b32.xlu0 %v3303, 28
        %v3324 = vpop.permute.xlu0 %3323
        %3325 = vrot.lane.b32.xlu0 %v3304, 28
        %v3326 = vpop.permute.xlu0 %3325
        %3327 = vrot.lane.b32.xlu0 %v3305, 28
        %v3328 = vpop.permute.xlu0 %3327
        %3329 = vrot.lane.b32.xlu0 %v3306, 28
        %v3330 = vpop.permute.xlu0 %3329
        %3331 = vrot.lane.b32.xlu0 %v3307, 28
        %v3332 = vpop.permute.xlu0 %3331
        %3333 = vrot.lane.b32.xlu0 %v3308, 28
        %v3334 = vpop.permute.xlu0 %3333
        %3335 = vrot.lane.b32.xlu0 %v3309, 28
        %v3336 = vpop.permute.xlu0 %3335
        %3337 = vrot.lane.b32.xlu0 %v3310, 28
        %v3338 = vpop.permute.xlu0 %3337
        %3339 = vrot.lane.b32.xlu0 %v3311, 28
        %v3340 = vpop.permute.xlu0 %3339
        %3341 = vrot.lane.b32.xlu0 %v3312, 28
        %v3342 = vpop.permute.xlu0 %3341
        %3343 = vrot.lane.b32.xlu0 %v3313, 28
        %v3344 = vpop.permute.xlu0 %3343
        %3345 = vrot.lane.b32.xlu0 %v3314, 28
        %v3346 = vpop.permute.xlu0 %3345
        %v3347 = vunpack.c.l.b16 %v2582
        %v3348 = vunpack.c.l.b16 %v2585
        %v3349 = vunpack.c.l.b16 %v2589
        %v3350 = vunpack.c.l.b16 %v2592
        %v3351 = vunpack.c.l.b16 %v2596
        %v3352 = vunpack.c.l.b16 %v2599
        %v3353 = vunpack.c.l.b16 %v2603
        %v3354 = vunpack.c.l.b16 %v2606
        %v3355 = vunpack.c.l.b16 %v2610
        %v3356 = vunpack.c.l.b16 %v2613
        %v3357 = vunpack.c.l.b16 %v2617
        %v3358 = vunpack.c.l.b16 %v2620
        %v3359 = vunpack.c.l.b16 %v2624
        %v3360 = vunpack.c.l.b16 %v2627
        %v3361 = vunpack.c.l.b16 %v2631
        %v3362 = vunpack.c.l.b16 %v2634
        %v3363 = vunpack.c.l.b16 %v2638
        %v3364 = vunpack.c.l.b16 %v2641
        %v3365 = vunpack.c.l.b16 %v2645
        %v3366 = vunpack.c.l.b16 %v2648
        %v3367 = vunpack.c.l.b16 %v2652
        %v3368 = vunpack.c.l.b16 %v2655
        %v3369 = vunpack.c.l.b16 %v2659
        %v3370 = vunpack.c.l.b16 %v2662
        %v3371 = vunpack.c.l.b16 %v2666
        %v3372 = vunpack.c.l.b16 %v2669
        %v3373 = vunpack.c.l.b16 %v2673
        %v3374 = vunpack.c.l.b16 %v2676
        %v3375 = vunpack.c.l.b16 %v2680
        %v3376 = vunpack.c.l.b16 %v2683
        %v3377 = vunpack.c.l.b16 %v2687
        %v3378 = vunpack.c.l.b16 %v2690
        %v3379 = vpack.c.b16 %v3348, %v3347
        %v3380 = vpack.c.b16 %v3350, %v3349
        %v3381 = vpack.c.b16 %v3352, %v3351
        %v3382 = vpack.c.b16 %v3354, %v3353
        %v3383 = vpack.c.b16 %v3356, %v3355
        %v3384 = vpack.c.b16 %v3358, %v3357
        %v3385 = vpack.c.b16 %v3360, %v3359
        %v3386 = vpack.c.b16 %v3362, %v3361
        %v3387 = vpack.c.b16 %v3364, %v3363
        %v3388 = vpack.c.b16 %v3366, %v3365
        %v3389 = vpack.c.b16 %v3368, %v3367
        %v3390 = vpack.c.b16 %v3370, %v3369
        %v3391 = vpack.c.b16 %v3372, %v3371
        %v3392 = vpack.c.b16 %v3374, %v3373
        %v3393 = vpack.c.b16 %v3376, %v3375
        %v3394 = vpack.c.b16 %v3378, %v3377
        %3395 = vrot.lane.b32.xlu0 %v3379, 32
        %v3396 = vpop.permute.xlu0 %3395
        %3397 = vrot.lane.b32.xlu0 %v3380, 32
        %v3398 = vpop.permute.xlu0 %3397
        %3399 = vrot.lane.b32.xlu0 %v3381, 32
        %v3400 = vpop.permute.xlu0 %3399
        %3401 = vrot.lane.b32.xlu0 %v3382, 32
        %v3402 = vpop.permute.xlu0 %3401
        %3403 = vrot.lane.b32.xlu0 %v3383, 32
        %v3404 = vpop.permute.xlu0 %3403
        %3405 = vrot.lane.b32.xlu0 %v3384, 32
        %v3406 = vpop.permute.xlu0 %3405
        %3407 = vrot.lane.b32.xlu0 %v3385, 32
        %v3408 = vpop.permute.xlu0 %3407
        %3409 = vrot.lane.b32.xlu0 %v3386, 32
        %v3410 = vpop.permute.xlu0 %3409
        %3411 = vrot.lane.b32.xlu0 %v3387, 32
        %v3412 = vpop.permute.xlu0 %3411
        %3413 = vrot.lane.b32.xlu0 %v3388, 32
        %v3414 = vpop.permute.xlu0 %3413
        %3415 = vrot.lane.b32.xlu0 %v3389, 32
        %v3416 = vpop.permute.xlu0 %3415
        %3417 = vrot.lane.b32.xlu0 %v3390, 32
        %v3418 = vpop.permute.xlu0 %3417
        %3419 = vrot.lane.b32.xlu0 %v3391, 32
        %v3420 = vpop.permute.xlu0 %3419
        %3421 = vrot.lane.b32.xlu0 %v3392, 32
        %v3422 = vpop.permute.xlu0 %3421
        %3423 = vrot.lane.b32.xlu0 %v3393, 32
        %v3424 = vpop.permute.xlu0 %3423
        %3425 = vrot.lane.b32.xlu0 %v3394, 32
        %v3426 = vpop.permute.xlu0 %3425
        %vm3427 = vcmask 31744
        %v3430 = vsel %vm3427, %v2739, %v2804
        %v3433 = vsel %vm3427, %v2740, %v2806
        %v3436 = vsel %vm3427, %v2741, %v2808
        %v3439 = vsel %vm3427, %v2742, %v2810
        %v3442 = vsel %vm3427, %v2743, %v2812
        %v3445 = vsel %vm3427, %v2744, %v2814
        %v3448 = vsel %vm3427, %v2745, %v2816
        %v3451 = vsel %vm3427, %v2746, %v2818
        %v3454 = vsel %vm3427, %v2747, %v2820
        %v3457 = vsel %vm3427, %v2748, %v2822
        %v3460 = vsel %vm3427, %v2749, %v2824
        %v3463 = vsel %vm3427, %v2750, %v2826
        %v3466 = vsel %vm3427, %v2751, %v2828
        %v3469 = vsel %vm3427, %v2752, %v2830
        %v3472 = vsel %vm3427, %v2753, %v2832
        %v3475 = vsel %vm3427, %v2754, %v2834
        %vm3476 = vcmask 64512
        %v3478 = vsel %vm3476, %v3430, %v2884
        %v3480 = vsel %vm3476, %v3433, %v2886
        %v3482 = vsel %vm3476, %v3436, %v2888
        %v3484 = vsel %vm3476, %v3439, %v2890
        %v3486 = vsel %vm3476, %v3442, %v2892
        %v3488 = vsel %vm3476, %v3445, %v2894
        %v3490 = vsel %vm3476, %v3448, %v2896
        %v3492 = vsel %vm3476, %v3451, %v2898
        %v3494 = vsel %vm3476, %v3454, %v2900
        %v3496 = vsel %vm3476, %v3457, %v2902
        %v3498 = vsel %vm3476, %v3460, %v2904
        %v3500 = vsel %vm3476, %v3463, %v2906
        %v3502 = vsel %vm3476, %v3466, %v2908
        %v3504 = vsel %vm3476, %v3469, %v2910
        %v3506 = vsel %vm3476, %v3472, %v2912
        %v3508 = vsel %vm3476, %v3475, %v2914
        %vm3509 = vcmask 97280
        %v3511 = vsel %vm3509, %v3478, %v2980
        %v3513 = vsel %vm3509, %v3480, %v2982
        %v3515 = vsel %vm3509, %v3482, %v2984
        %v3517 = vsel %vm3509, %v3484, %v2986
        %v3519 = vsel %vm3509, %v3486, %v2988
        %v3521 = vsel %vm3509, %v3488, %v2990
        %v3523 = vsel %vm3509, %v3490, %v2992
        %v3525 = vsel %vm3509, %v3492, %v2994
        %v3527 = vsel %vm3509, %v3494, %v2996
        %v3529 = vsel %vm3509, %v3496, %v2998
        %v3531 = vsel %vm3509, %v3498, %v3000
        %v3533 = vsel %vm3509, %v3500, %v3002
        %v3535 = vsel %vm3509, %v3502, %v3004
        %v3537 = vsel %vm3509, %v3504, %v3006
        %v3539 = vsel %vm3509, %v3506, %v3008
        %v3541 = vsel %vm3509, %v3508, %v3010
        %vm3542 = vcmask 130048
        %v3544 = vsel %vm3542, %v3511, %v3060
        %v3546 = vsel %vm3542, %v3513, %v3062
        %v3548 = vsel %vm3542, %v3515, %v3064
        %v3550 = vsel %vm3542, %v3517, %v3066
        %v3552 = vsel %vm3542, %v3519, %v3068
        %v3554 = vsel %vm3542, %v3521, %v3070
        %v3556 = vsel %vm3542, %v3523, %v3072
        %v3558 = vsel %vm3542, %v3525, %v3074
        %v3560 = vsel %vm3542, %v3527, %v3076
        %v3562 = vsel %vm3542, %v3529, %v3078
        %v3564 = vsel %vm3542, %v3531, %v3080
        %v3566 = vsel %vm3542, %v3533, %v3082
        %v3568 = vsel %vm3542, %v3535, %v3084
        %v3570 = vsel %vm3542, %v3537, %v3086
        %v3572 = vsel %vm3542, %v3539, %v3088
        %v3574 = vsel %vm3542, %v3541, %v3090
        %vm3575 = vcmask 162816
        %v3577 = vsel %vm3575, %v3544, %v3140
        %v3579 = vsel %vm3575, %v3546, %v3142
        %v3581 = vsel %vm3575, %v3548, %v3144
        %v3583 = vsel %vm3575, %v3550, %v3146
        %v3585 = vsel %vm3575, %v3552, %v3148
        %v3587 = vsel %vm3575, %v3554, %v3150
        %v3589 = vsel %vm3575, %v3556, %v3152
        %v3591 = vsel %vm3575, %v3558, %v3154
        %v3593 = vsel %vm3575, %v3560, %v3156
        %v3595 = vsel %vm3575, %v3562, %v3158
        %v3597 = vsel %vm3575, %v3564, %v3160
        %v3599 = vsel %vm3575, %v3566, %v3162
        %v3601 = vsel %vm3575, %v3568, %v3164
        %v3603 = vsel %vm3575, %v3570, %v3166
        %v3605 = vsel %vm3575, %v3572, %v3168
        %v3607 = vsel %vm3575, %v3574, %v3170
        %vm3608 = vcmask 195584
        %v3610 = vsel %vm3608, %v3577, %v3236
        %v3612 = vsel %vm3608, %v3579, %v3238
        %v3614 = vsel %vm3608, %v3581, %v3240
        %v3616 = vsel %vm3608, %v3583, %v3242
        %v3618 = vsel %vm3608, %v3585, %v3244
        %v3620 = vsel %vm3608, %v3587, %v3246
        %v3622 = vsel %vm3608, %v3589, %v3248
        %v3624 = vsel %vm3608, %v3591, %v3250
        %v3626 = vsel %vm3608, %v3593, %v3252
        %v3628 = vsel %vm3608, %v3595, %v3254
        %v3630 = vsel %vm3608, %v3597, %v3256
        %v3632 = vsel %vm3608, %v3599, %v3258
        %v3634 = vsel %vm3608, %v3601, %v3260
        %v3636 = vsel %vm3608, %v3603, %v3262
        %v3638 = vsel %vm3608, %v3605, %v3264
        %v3640 = vsel %vm3608, %v3607, %v3266
        %vm3641 = vcmask 228352
        %v3643 = vsel %vm3641, %v3610, %v3316
        %v3645 = vsel %vm3641, %v3612, %v3318
        %v3647 = vsel %vm3641, %v3614, %v3320
        %v3649 = vsel %vm3641, %v3616, %v3322
        %v3651 = vsel %vm3641, %v3618, %v3324
        %v3653 = vsel %vm3641, %v3620, %v3326
        %v3655 = vsel %vm3641, %v3622, %v3328
        %v3657 = vsel %vm3641, %v3624, %v3330
        %v3659 = vsel %vm3641, %v3626, %v3332
        %v3661 = vsel %vm3641, %v3628, %v3334
        %v3663 = vsel %vm3641, %v3630, %v3336
        %v3665 = vsel %vm3641, %v3632, %v3338
        %v3667 = vsel %vm3641, %v3634, %v3340
        %v3669 = vsel %vm3641, %v3636, %v3342
        %v3671 = vsel %vm3641, %v3638, %v3344
        %v3673 = vsel %vm3641, %v3640, %v3346
        %vm3674 = vcmask 261120
        %v3676 = vsel %vm3674, %v3643, %v3396
        %v3678 = vsel %vm3674, %v3645, %v3398
        %v3680 = vsel %vm3674, %v3647, %v3400
        %v3682 = vsel %vm3674, %v3649, %v3402
        %v3684 = vsel %vm3674, %v3651, %v3404
        %v3686 = vsel %vm3674, %v3653, %v3406
        %v3688 = vsel %vm3674, %v3655, %v3408
        %v3690 = vsel %vm3674, %v3657, %v3410
        %v3692 = vsel %vm3674, %v3659, %v3412
        %v3694 = vsel %vm3674, %v3661, %v3414
        %v3696 = vsel %vm3674, %v3663, %v3416
        %v3698 = vsel %vm3674, %v3665, %v3418
        %v3700 = vsel %vm3674, %v3667, %v3420
        %v3702 = vsel %vm3674, %v3669, %v3422
        %v3704 = vsel %vm3674, %v3671, %v3424
        %v3706 = vsel %vm3674, %v3673, %v3426
        %v3707 = vld [vmem:[%s1] sm:$0xf]
        %v3708 = vld [vmem:[%s1 + $0x4] sm:$0xf]
        %v3709 = vld [vmem:[%s1 + $0x8] sm:$0xf]
        %v3710 = vld [vmem:[%s1 + $0xc] sm:$0xf]
        %v3711 = vld [vmem:[%s1 + $0x10] sm:$0x3]
        %v3712 = vld [vmem:[%s2] sm:$0x1]
        %v3714 = vperm.slane %v3712, 0
        %v3721 = vunpack.c.l.b16 %v3707
        %v3722 = vunpack.c.l.b16 %v3708
        %v3723 = vunpack.c.l.b16 %v3709
        %v3724 = vunpack.c.l.b16 %v3710
        %v3725 = vunpack.c.l.b16 %v3711
        %v3726 = vpack.c.b16 %v3722, %v3721
        %v3727 = vpack.c.b16 %v3724, %v3723
        %v3728 = vpack.c.b16 %v3725, %v3725
        %vm3731 = vcmask 293888
        %v3732 = vsel %vm3731, %v3676, 0
        %v3734 = vsel %vm3731, %v3678, 0
        %v3736 = vsel %vm3731, %v3680, 0
        %v3738 = vsel %vm3731, %v3682, 0
        %v3740 = vsel %vm3731, %v3684, 0
        %v3742 = vsel %vm3731, %v3686, 0
        %v3744 = vsel %vm3731, %v3688, 0
        %v3746 = vsel %vm3731, %v3690, 0
        %v3748 = vsel %vm3731, %v3692, 0
        %v3750 = vsel %vm3731, %v3694, 0
        %v3752 = vsel %vm3731, %v3696, 0
        %v3754 = vsel %vm3731, %v3698, 0
        %v3756 = vsel %vm3731, %v3700, 0
        %v3758 = vsel %vm3731, %v3702, 0
        %v3760 = vsel %vm3731, %v3704, 0
        %v3762 = vsel %vm3731, %v3706, 0
        %vm3764 = vcmask 1041408
        %v3766 = vsel %vm3764, %v3728, 0
        %3768 = vmatpush.bf16.msra.mxu0 0
        %3769 = vmatpush.bf16.msra.mxu0 0
        %3770 = vmatpush.bf16.msra.mxu0 0
        %3771 = vmatpush.bf16.msra.mxu0 0
        %3772 = vmatpush.bf16.msra.mxu0 0
        %3773 = vmatpush.bf16.msra.mxu0 %v3766
        %3774 = vmatpush.bf16.msra.mxu0 %v3727
        %3775 = vmatpush.bf16.msra.mxu0 %v3726
        %3776 = vmatmul.bf16.gmra.mxu0 %v3732
        %v3777 = vpop.f32.mrf.mxu0
        %v3778 = vadd.f32 %v3714, %v3777
        %v3779 = vpop.f32.mrf.mxu0
        %v3780 = vadd.f32 %v3714, %v3779
        %3781 = vmatmul.bf16.gmra.mxu0 %v3734
        %v3782 = vpop.f32.mrf.mxu0
        %v3783 = vadd.f32 %v3714, %v3782
        %v3784 = vpop.f32.mrf.mxu0
        %v3785 = vadd.f32 %v3714, %v3784
        %3786 = vmatmul.bf16.gmra.mxu0 %v3736
        %v3787 = vpop.f32.mrf.mxu0
        %v3788 = vadd.f32 %v3714, %v3787
        %v3789 = vpop.f32.mrf.mxu0
        %v3790 = vadd.f32 %v3714, %v3789
        %3791 = vmatmul.bf16.gmra.mxu0 %v3738
        %v3792 = vpop.f32.mrf.mxu0
        %v3793 = vadd.f32 %v3714, %v3792
        %v3794 = vpop.f32.mrf.mxu0
        %v3795 = vadd.f32 %v3714, %v3794
        %3796 = vmatmul.bf16.gmra.mxu0 %v3740
        %v3797 = vpop.f32.mrf.mxu0
        %v3798 = vadd.f32 %v3714, %v3797
        %v3799 = vpop.f32.mrf.mxu0
        %v3800 = vadd.f32 %v3714, %v3799
        %3801 = vmatmul.bf16.gmra.mxu0 %v3742
        %v3802 = vpop.f32.mrf.mxu0
        %v3803 = vadd.f32 %v3714, %v3802
        %v3804 = vpop.f32.mrf.mxu0
        %v3805 = vadd.f32 %v3714, %v3804
        %3806 = vmatmul.bf16.gmra.mxu0 %v3744
        %v3807 = vpop.f32.mrf.mxu0
        %v3808 = vadd.f32 %v3714, %v3807
        %v3809 = vpop.f32.mrf.mxu0
        %v3810 = vadd.f32 %v3714, %v3809
        %3811 = vmatmul.bf16.gmra.mxu0 %v3746
        %v3812 = vpop.f32.mrf.mxu0
        %v3813 = vadd.f32 %v3714, %v3812
        %v3814 = vpop.f32.mrf.mxu0
        %v3815 = vadd.f32 %v3714, %v3814
        %3816 = vmatmul.bf16.gmra.mxu0 %v3748
        %v3817 = vpop.f32.mrf.mxu0
        %v3818 = vadd.f32 %v3714, %v3817
        %v3819 = vpop.f32.mrf.mxu0
        %v3820 = vadd.f32 %v3714, %v3819
        %3821 = vmatmul.bf16.gmra.mxu0 %v3750
        %v3822 = vpop.f32.mrf.mxu0
        %v3823 = vadd.f32 %v3714, %v3822
        %v3824 = vpop.f32.mrf.mxu0
        %v3825 = vadd.f32 %v3714, %v3824
        %3826 = vmatmul.bf16.gmra.mxu0 %v3752
        %v3827 = vpop.f32.mrf.mxu0
        %v3828 = vadd.f32 %v3714, %v3827
        %v3829 = vpop.f32.mrf.mxu0
        %v3830 = vadd.f32 %v3714, %v3829
        %3831 = vmatmul.bf16.gmra.mxu0 %v3754
        %v3832 = vpop.f32.mrf.mxu0
        %v3833 = vadd.f32 %v3714, %v3832
        %v3834 = vpop.f32.mrf.mxu0
        %v3835 = vadd.f32 %v3714, %v3834
        %3836 = vmatmul.bf16.gmra.mxu0 %v3756
        %v3837 = vpop.f32.mrf.mxu0
        %v3838 = vadd.f32 %v3714, %v3837
        %v3839 = vpop.f32.mrf.mxu0
        %v3840 = vadd.f32 %v3714, %v3839
        %3841 = vmatmul.bf16.gmra.mxu0 %v3758
        %v3842 = vpop.f32.mrf.mxu0
        %v3843 = vadd.f32 %v3714, %v3842
        %v3844 = vpop.f32.mrf.mxu0
        %v3845 = vadd.f32 %v3714, %v3844
        %3846 = vmatmul.bf16.gmra.mxu0 %v3760
        %v3847 = vpop.f32.mrf.mxu0
        %v3848 = vadd.f32 %v3714, %v3847
        %v3849 = vpop.f32.mrf.mxu0
        %v3850 = vadd.f32 %v3714, %v3849
        %3851 = vmatmul.bf16.gmra.mxu0 %v3762
        %v3852 = vpop.f32.mrf.mxu0
        %v3853 = vadd.f32 %v3714, %v3852
        %v3854 = vpop.f32.mrf.mxu0
        %v3855 = vadd.f32 %v3714, %v3854
        %3856 = vdwg.mxu0
        %v3857 = vmax.f32 %v3778, 0.0
        %v3858 = vmax.f32 %v3780, 0.0
        %v3859 = vmax.f32 %v3783, 0.0
        %v3860 = vmax.f32 %v3785, 0.0
        %v3861 = vmax.f32 %v3788, 0.0
        %v3862 = vmax.f32 %v3790, 0.0
        %v3863 = vmax.f32 %v3793, 0.0
        %v3864 = vmax.f32 %v3795, 0.0
        %v3865 = vmax.f32 %v3798, 0.0
        %v3866 = vmax.f32 %v3800, 0.0
        %v3867 = vmax.f32 %v3803, 0.0
        %v3868 = vmax.f32 %v3805, 0.0
        %v3869 = vmax.f32 %v3808, 0.0
        %v3870 = vmax.f32 %v3810, 0.0
        %v3871 = vmax.f32 %v3813, 0.0
        %v3872 = vmax.f32 %v3815, 0.0
        %v3873 = vmax.f32 %v3818, 0.0
        %v3874 = vmax.f32 %v3820, 0.0
        %v3875 = vmax.f32 %v3823, 0.0
        %v3876 = vmax.f32 %v3825, 0.0
        %v3877 = vmax.f32 %v3828, 0.0
        %v3878 = vmax.f32 %v3830, 0.0
        %v3879 = vmax.f32 %v3833, 0.0
        %v3880 = vmax.f32 %v3835, 0.0
        %v3881 = vmax.f32 %v3838, 0.0
        %v3882 = vmax.f32 %v3840, 0.0
        %v3883 = vmax.f32 %v3843, 0.0
        %v3884 = vmax.f32 %v3845, 0.0
        %v3885 = vmax.f32 %v3848, 0.0
        %v3886 = vmax.f32 %v3850, 0.0
        %v3887 = vmax.f32 %v3853, 0.0
        %v3888 = vmax.f32 %v3855, 0.0
        %v3889 = vpack.c.bf16 %v3857, %v3857
        %v3890 = vpack.c.bf16 %v3858, %v3858
        %v3891 = vpack.c.bf16 %v3859, %v3859
        %v3892 = vpack.c.bf16 %v3860, %v3860
        %v3893 = vpack.c.bf16 %v3861, %v3861
        %v3894 = vpack.c.bf16 %v3862, %v3862
        %v3895 = vpack.c.bf16 %v3863, %v3863
        %v3896 = vpack.c.bf16 %v3864, %v3864
        %v3897 = vpack.c.bf16 %v3865, %v3865
        %v3898 = vpack.c.bf16 %v3866, %v3866
        %v3899 = vpack.c.bf16 %v3867, %v3867
        %v3900 = vpack.c.bf16 %v3868, %v3868
        %v3901 = vpack.c.bf16 %v3869, %v3869
        %v3902 = vpack.c.bf16 %v3870, %v3870
        %v3903 = vpack.c.bf16 %v3871, %v3871
        %v3904 = vpack.c.bf16 %v3872, %v3872
        %v3905 = vpack.c.bf16 %v3873, %v3873
        %v3906 = vpack.c.bf16 %v3874, %v3874
        %v3907 = vpack.c.bf16 %v3875, %v3875
        %v3908 = vpack.c.bf16 %v3876, %v3876
        %v3909 = vpack.c.bf16 %v3877, %v3877
        %v3910 = vpack.c.bf16 %v3878, %v3878
        %v3911 = vpack.c.bf16 %v3879, %v3879
        %v3912 = vpack.c.bf16 %v3880, %v3880
        %v3913 = vpack.c.bf16 %v3881, %v3881
        %v3914 = vpack.c.bf16 %v3882, %v3882
        %v3915 = vpack.c.bf16 %v3883, %v3883
        %v3916 = vpack.c.bf16 %v3884, %v3884
        %v3917 = vpack.c.bf16 %v3885, %v3885
        %v3918 = vpack.c.bf16 %v3886, %v3886
        %v3919 = vpack.c.bf16 %v3887, %v3887
        %v3920 = vpack.c.bf16 %v3888, %v3888
        %vm3921 = vcmask 257024
        %3922 = vst.msk [vmem:[#allocation3] sm:$0xf] %vm3921, 0
        %3923 = vst.msk [vmem:[#allocation3 + $0x4] sm:$0xf] %vm3921, 0
        %vm3924 = vcmask 253952
        %3925 = vst.msk [vmem:[#allocation3 + $0x8] sm:$0x1] %vm3924, 0
        %3926 = vst.msk [vmem:[#allocation3 + $0xc] sm:$0xf] %vm3921, 0
        %3927 = vst.msk [vmem:[#allocation3 + $0x10] sm:$0xf] %vm3921, 0
        %3928 = vst.msk [vmem:[#allocation3 + $0x14] sm:$0x1] %vm3924, 0
        %3929 = vst.msk [vmem:[#allocation3 + $0x18] sm:$0xf] %vm3921, 0
        %3930 = vst.msk [vmem:[#allocation3 + $0x1c] sm:$0xf] %vm3921, 0
        %3931 = vst.msk [vmem:[#allocation3 + $0x20] sm:$0x1] %vm3924, 0
        %3932 = vst.msk [vmem:[#allocation3 + $0x24] sm:$0xf] %vm3921, 0
        %3933 = vst.msk [vmem:[#allocation3 + $0x28] sm:$0xf] %vm3921, 0
        %3934 = vst.msk [vmem:[#allocation3 + $0x2c] sm:$0x1] %vm3924, 0
        %3935 = vst.msk [vmem:[#allocation3 + $0x30] sm:$0xf] %vm3921, 0
        %3936 = vst.msk [vmem:[#allocation3 + $0x34] sm:$0xf] %vm3921, 0
        %3937 = vst.msk [vmem:[#allocation3 + $0x38] sm:$0x1] %vm3924, 0
        %3938 = vst.msk [vmem:[#allocation3 + $0x3c] sm:$0xf] %vm3921, 0
        %3939 = vst.msk [vmem:[#allocation3 + $0x40] sm:$0xf] %vm3921, 0
        %3940 = vst.msk [vmem:[#allocation3 + $0x44] sm:$0x1] %vm3924, 0
        %3941 = vst.msk [vmem:[#allocation3 + $0x48] sm:$0xf] %vm3921, 0
        %3942 = vst.msk [vmem:[#allocation3 + $0x4c] sm:$0xf] %vm3921, 0
        %3943 = vst.msk [vmem:[#allocation3 + $0x50] sm:$0x1] %vm3924, 0
        %3944 = vst.msk [vmem:[#allocation3 + $0x54] sm:$0xf] %vm3921, 0
        %3945 = vst.msk [vmem:[#allocation3 + $0x58] sm:$0xf] %vm3921, 0
        %3946 = vst.msk [vmem:[#allocation3 + $0x5c] sm:$0x1] %vm3924, 0
        %3947 = vst.msk [vmem:[#allocation3 + $0x60] sm:$0xf] %vm3921, 0
        %3948 = vst.msk [vmem:[#allocation3 + $0x64] sm:$0xf] %vm3921, 0
        %3949 = vst.msk [vmem:[#allocation3 + $0x68] sm:$0x1] %vm3924, 0
        %3950 = vst.msk [vmem:[#allocation3 + $0x6c] sm:$0xf] %vm3921, 0
        %3951 = vst.msk [vmem:[#allocation3 + $0x70] sm:$0xf] %vm3921, 0
        %3952 = vst.msk [vmem:[#allocation3 + $0x74] sm:$0x1] %vm3924, 0
        %3953 = vst.msk [vmem:[#allocation3 + $0x78] sm:$0xf] %vm3921, 0
        %3954 = vst.msk [vmem:[#allocation3 + $0x7c] sm:$0xf] %vm3921, 0
        %3955 = vst.msk [vmem:[#allocation3 + $0x80] sm:$0x1] %vm3924, 0
        %3956 = vst.msk [vmem:[#allocation3 + $0x84] sm:$0xf] %vm3921, 0
        %3957 = vst.msk [vmem:[#allocation3 + $0x88] sm:$0xf] %vm3921, 0
        %3958 = vst.msk [vmem:[#allocation3 + $0x8c] sm:$0x1] %vm3924, 0
        %3959 = vst.msk [vmem:[#allocation3 + $0x90] sm:$0xf] %vm3921, 0
        %3960 = vst.msk [vmem:[#allocation3 + $0x94] sm:$0xf] %vm3921, 0
        %3961 = vst.msk [vmem:[#allocation3 + $0x98] sm:$0x1] %vm3924, 0
        %3962 = vst.msk [vmem:[#allocation3 + $0x9c] sm:$0xf] %vm3921, 0
        %3963 = vst.msk [vmem:[#allocation3 + $0xa0] sm:$0xf] %vm3921, 0
        %3964 = vst.msk [vmem:[#allocation3 + $0xa4] sm:$0x1] %vm3924, 0
        %3965 = vst.msk [vmem:[#allocation3 + $0xa8] sm:$0xf] %vm3921, 0
        %3966 = vst.msk [vmem:[#allocation3 + $0xac] sm:$0xf] %vm3921, 0
        %3967 = vst.msk [vmem:[#allocation3 + $0xb0] sm:$0x1] %vm3924, 0
        %3968 = vst.msk [vmem:[#allocation3 + $0xb4] sm:$0xf] %vm3921, 0
        %3969 = vst.msk [vmem:[#allocation3 + $0xb8] sm:$0xf] %vm3921, 0
        %3970 = vst.msk [vmem:[#allocation3 + $0xbc] sm:$0x1] %vm3924, 0
        %3971 = vst.msk [vmem:[#allocation3 + $0xc0] sm:$0xf] %vm3921, 0
        %3972 = vst.msk [vmem:[#allocation3 + $0xc4] sm:$0xf] %vm3921, 0
        %3973 = vst.msk [vmem:[#allocation3 + $0xc8] sm:$0x1] %vm3924, 0
        %3974 = vst.msk [vmem:[#allocation3 + $0xcc] sm:$0xf] %vm3921, 0
        %3975 = vst.msk [vmem:[#allocation3 + $0xd0] sm:$0xf] %vm3921, 0
        %3976 = vst.msk [vmem:[#allocation3 + $0xd4] sm:$0x1] %vm3924, 0
        %v3978 = vshrl.u32 %v3889, 16
        %v3980 = vrot.slane %v3978, 7
        %v3981 = vshll.u32 %v3889, 16
        %v3983 = vor.u32 %v3980, %v3981
        %v3984 = vrot.slane %v3980, 4
        %v3986 = vshrl.u32 %v3890, 16
        %v3988 = vrot.slane %v3986, 7
        %v3989 = vshll.u32 %v3890, 16
        %v3991 = vor.u32 %v3988, %v3989
        %v3992 = vsel %vm421, %v3984, %v3991
        %v3993 = vrot.slane %v3988, 4
        %v3995 = vshrl.u32 %v3891, 16
        %v3997 = vrot.slane %v3995, 7
        %v3998 = vshll.u32 %v3891, 16
        %v4000 = vor.u32 %v3997, %v3998
        %v4001 = vrot.slane %v3997, 4
        %v4003 = vshrl.u32 %v3892, 16
        %v4005 = vrot.slane %v4003, 7
        %v4006 = vshll.u32 %v3892, 16
        %v4008 = vor.u32 %v4005, %v4006
        %v4009 = vsel %vm421, %v4001, %v4008
        %v4010 = vrot.slane %v4005, 4
        %v4012 = vshrl.u32 %v3893, 16
        %v4014 = vrot.slane %v4012, 7
        %v4015 = vshll.u32 %v3893, 16
        %v4017 = vor.u32 %v4014, %v4015
        %v4018 = vrot.slane %v4014, 4
        %v4020 = vshrl.u32 %v3894, 16
        %v4022 = vrot.slane %v4020, 7
        %v4023 = vshll.u32 %v3894, 16
        %v4025 = vor.u32 %v4022, %v4023
        %v4026 = vsel %vm421, %v4018, %v4025
        %v4027 = vrot.slane %v4022, 4
        %v4029 = vshrl.u32 %v3895, 16
        %v4031 = vrot.slane %v4029, 7
        %v4032 = vshll.u32 %v3895, 16
        %v4034 = vor.u32 %v4031, %v4032
        %v4035 = vrot.slane %v4031, 4
        %v4037 = vshrl.u32 %v3896, 16
        %v4039 = vrot.slane %v4037, 7
        %v4040 = vshll.u32 %v3896, 16
        %v4042 = vor.u32 %v4039, %v4040
        %v4043 = vsel %vm421, %v4035, %v4042
        %v4044 = vrot.slane %v4039, 4
        %v4046 = vshrl.u32 %v3897, 16
        %v4048 = vrot.slane %v4046, 7
        %v4049 = vshll.u32 %v3897, 16
        %v4051 = vor.u32 %v4048, %v4049
        %v4052 = vrot.slane %v4048, 4
        %v4054 = vshrl.u32 %v3898, 16
        %v4056 = vrot.slane %v4054, 7
        %v4057 = vshll.u32 %v3898, 16
        %v4059 = vor.u32 %v4056, %v4057
        %v4060 = vsel %vm421, %v4052, %v4059
        %v4061 = vrot.slane %v4056, 4
        %v4063 = vshrl.u32 %v3899, 16
        %v4065 = vrot.slane %v4063, 7
        %v4066 = vshll.u32 %v3899, 16
        %v4068 = vor.u32 %v4065, %v4066
        %v4069 = vrot.slane %v4065, 4
        %v4071 = vshrl.u32 %v3900, 16
        %v4073 = vrot.slane %v4071, 7
        %v4074 = vshll.u32 %v3900, 16
        %v4076 = vor.u32 %v4073, %v4074
        %v4077 = vsel %vm421, %v4069, %v4076
        %v4078 = vrot.slane %v4073, 4
        %v4080 = vshrl.u32 %v3901, 16
        %v4082 = vrot.slane %v4080, 7
        %v4083 = vshll.u32 %v3901, 16
        %v4085 = vor.u32 %v4082, %v4083
        %v4086 = vrot.slane %v4082, 4
        %v4088 = vshrl.u32 %v3902, 16
        %v4090 = vrot.slane %v4088, 7
        %v4091 = vshll.u32 %v3902, 16
        %v4093 = vor.u32 %v4090, %v4091
        %v4094 = vsel %vm421, %v4086, %v4093
        %v4095 = vrot.slane %v4090, 4
        %v4097 = vshrl.u32 %v3903, 16
        %v4099 = vrot.slane %v4097, 7
        %v4100 = vshll.u32 %v3903, 16
        %v4102 = vor.u32 %v4099, %v4100
        %v4103 = vrot.slane %v4099, 4
        %v4105 = vshrl.u32 %v3904, 16
        %v4107 = vrot.slane %v4105, 7
        %v4108 = vshll.u32 %v3904, 16
        %v4110 = vor.u32 %v4107, %v4108
        %v4111 = vsel %vm421, %v4103, %v4110
        %v4112 = vrot.slane %v4107, 4
        %v4114 = vshrl.u32 %v3905, 16
        %v4116 = vrot.slane %v4114, 7
        %v4117 = vshll.u32 %v3905, 16
        %v4119 = vor.u32 %v4116, %v4117
        %v4120 = vrot.slane %v4116, 4
        %v4122 = vshrl.u32 %v3906, 16
        %v4124 = vrot.slane %v4122, 7
        %v4125 = vshll.u32 %v3906, 16
        %v4127 = vor.u32 %v4124, %v4125
        %v4128 = vsel %vm421, %v4120, %v4127
        %v4129 = vrot.slane %v4124, 4
        %v4131 = vshrl.u32 %v3907, 16
        %v4133 = vrot.slane %v4131, 7
        %v4134 = vshll.u32 %v3907, 16
        %v4136 = vor.u32 %v4133, %v4134
        %v4137 = vrot.slane %v4133, 4
        %v4139 = vshrl.u32 %v3908, 16
        %v4141 = vrot.slane %v4139, 7
        %v4142 = vshll.u32 %v3908, 16
        %v4144 = vor.u32 %v4141, %v4142
        %v4145 = vsel %vm421, %v4137, %v4144
        %v4146 = vrot.slane %v4141, 4
        %v4148 = vshrl.u32 %v3909, 16
        %v4150 = vrot.slane %v4148, 7
        %v4151 = vshll.u32 %v3909, 16
        %v4153 = vor.u32 %v4150, %v4151
        %v4154 = vrot.slane %v4150, 4
        %v4156 = vshrl.u32 %v3910, 16
        %v4158 = vrot.slane %v4156, 7
        %v4159 = vshll.u32 %v3910, 16
        %v4161 = vor.u32 %v4158, %v4159
        %v4162 = vsel %vm421, %v4154, %v4161
        %v4163 = vrot.slane %v4158, 4
        %v4165 = vshrl.u32 %v3911, 16
        %v4167 = vrot.slane %v4165, 7
        %v4168 = vshll.u32 %v3911, 16
        %v4170 = vor.u32 %v4167, %v4168
        %v4171 = vrot.slane %v4167, 4
        %v4173 = vshrl.u32 %v3912, 16
        %v4175 = vrot.slane %v4173, 7
        %v4176 = vshll.u32 %v3912, 16
        %v4178 = vor.u32 %v4175, %v4176
        %v4179 = vsel %vm421, %v4171, %v4178
        %v4180 = vrot.slane %v4175, 4
        %v4182 = vshrl.u32 %v3913, 16
        %v4184 = vrot.slane %v4182, 7
        %v4185 = vshll.u32 %v3913, 16
        %v4187 = vor.u32 %v4184, %v4185
        %v4188 = vrot.slane %v4184, 4
        %v4190 = vshrl.u32 %v3914, 16
        %v4192 = vrot.slane %v4190, 7
        %v4193 = vshll.u32 %v3914, 16
        %v4195 = vor.u32 %v4192, %v4193
        %v4196 = vsel %vm421, %v4188, %v4195
        %v4197 = vrot.slane %v4192, 4
        %v4199 = vshrl.u32 %v3915, 16
        %v4201 = vrot.slane %v4199, 7
        %v4202 = vshll.u32 %v3915, 16
        %v4204 = vor.u32 %v4201, %v4202
        %v4205 = vrot.slane %v4201, 4
        %v4207 = vshrl.u32 %v3916, 16
        %v4209 = vrot.slane %v4207, 7
        %v4210 = vshll.u32 %v3916, 16
        %v4212 = vor.u32 %v4209, %v4210
        %v4213 = vsel %vm421, %v4205, %v4212
        %v4214 = vrot.slane %v4209, 4
        %v4216 = vshrl.u32 %v3917, 16
        %v4218 = vrot.slane %v4216, 7
        %v4219 = vshll.u32 %v3917, 16
        %v4221 = vor.u32 %v4218, %v4219
        %v4222 = vrot.slane %v4218, 4
        %v4224 = vshrl.u32 %v3918, 16
        %v4226 = vrot.slane %v4224, 7
        %v4227 = vshll.u32 %v3918, 16
        %v4229 = vor.u32 %v4226, %v4227
        %v4230 = vsel %vm421, %v4222, %v4229
        %v4231 = vrot.slane %v4226, 4
        %v4233 = vshrl.u32 %v3919, 16
        %v4235 = vrot.slane %v4233, 7
        %v4236 = vshll.u32 %v3919, 16
        %v4238 = vor.u32 %v4235, %v4236
        %v4239 = vrot.slane %v4235, 4
        %v4241 = vshrl.u32 %v3920, 16
        %v4243 = vrot.slane %v4241, 7
        %v4244 = vshll.u32 %v3920, 16
        %v4246 = vor.u32 %v4243, %v4244
        %v4247 = vsel %vm421, %v4239, %v4246
        %v4248 = vrot.slane %v4243, 4
        %s4297 = scalar_lea.vmem [#allocation3], 12
        %vm4298 = vcmask 257024
        %vm4299 = vmand %vm4298, %vm744
        %v4300 = vld [vmem:[%s4297] sm:$0xf]
        %v4301 = vsel %vm4299, %v3983, %v4300
        %4302 = vst [vmem:[%s4297] sm:$0xf] %v4301
        %4303 = vst.msk [vmem:[%s4297 + $0x4] sm:$0xf] %vm3921, %v3992
        %vm4304 = vcmask 253952
        %vm4305 = vmand %vm4304, %vm419
        %v4306 = vld [vmem:[%s4297 + $0x8] sm:$0x1]
        %v4307 = vsel %vm4305, %v3993, %v4306
        %4308 = vst [vmem:[%s4297 + $0x8] sm:$0x1] %v4307
        %v4309 = vld [vmem:[%s4297 + $0xc] sm:$0xf]
        %v4310 = vsel %vm4299, %v4000, %v4309
        %4311 = vst [vmem:[%s4297 + $0xc] sm:$0xf] %v4310
        %4312 = vst.msk [vmem:[%s4297 + $0x10] sm:$0xf] %vm3921, %v4009
        %v4313 = vld [vmem:[%s4297 + $0x14] sm:$0x1]
        %v4314 = vsel %vm4305, %v4010, %v4313
        %4315 = vst [vmem:[%s4297 + $0x14] sm:$0x1] %v4314
        %v4316 = vld [vmem:[%s4297 + $0x18] sm:$0xf]
        %v4317 = vsel %vm4299, %v4017, %v4316
        %4318 = vst [vmem:[%s4297 + $0x18] sm:$0xf] %v4317
        %4319 = vst.msk [vmem:[%s4297 + $0x1c] sm:$0xf] %vm3921, %v4026
        %v4320 = vld [vmem:[%s4297 + $0x20] sm:$0x1]
        %v4321 = vsel %vm4305, %v4027, %v4320
        %4322 = vst [vmem:[%s4297 + $0x20] sm:$0x1] %v4321
        %v4323 = vld [vmem:[%s4297 + $0x24] sm:$0xf]
        %v4324 = vsel %vm4299, %v4034, %v4323
        %4325 = vst [vmem:[%s4297 + $0x24] sm:$0xf] %v4324
        %4326 = vst.msk [vmem:[%s4297 + $0x28] sm:$0xf] %vm3921, %v4043
        %v4327 = vld [vmem:[%s4297 + $0x2c] sm:$0x1]
        %v4328 = vsel %vm4305, %v4044, %v4327
        %4329 = vst [vmem:[%s4297 + $0x2c] sm:$0x1] %v4328
        %v4330 = vld [vmem:[%s4297 + $0x30] sm:$0xf]
        %v4331 = vsel %vm4299, %v4051, %v4330
        %4332 = vst [vmem:[%s4297 + $0x30] sm:$0xf] %v4331
        %4333 = vst.msk [vmem:[%s4297 + $0x34] sm:$0xf] %vm3921, %v4060
        %v4334 = vld [vmem:[%s4297 + $0x38] sm:$0x1]
        %v4335 = vsel %vm4305, %v4061, %v4334
        %4336 = vst [vmem:[%s4297 + $0x38] sm:$0x1] %v4335
        %v4337 = vld [vmem:[%s4297 + $0x3c] sm:$0xf]
        %v4338 = vsel %vm4299, %v4068, %v4337
        %4339 = vst [vmem:[%s4297 + $0x3c] sm:$0xf] %v4338
        %4340 = vst.msk [vmem:[%s4297 + $0x40] sm:$0xf] %vm3921, %v4077
        %v4341 = vld [vmem:[%s4297 + $0x44] sm:$0x1]
        %v4342 = vsel %vm4305, %v4078, %v4341
        %4343 = vst [vmem:[%s4297 + $0x44] sm:$0x1] %v4342
        %v4344 = vld [vmem:[%s4297 + $0x48] sm:$0xf]
        %v4345 = vsel %vm4299, %v4085, %v4344
        %4346 = vst [vmem:[%s4297 + $0x48] sm:$0xf] %v4345
        %4347 = vst.msk [vmem:[%s4297 + $0x4c] sm:$0xf] %vm3921, %v4094
        %v4348 = vld [vmem:[%s4297 + $0x50] sm:$0x1]
        %v4349 = vsel %vm4305, %v4095, %v4348
        %4350 = vst [vmem:[%s4297 + $0x50] sm:$0x1] %v4349
        %v4351 = vld [vmem:[%s4297 + $0x54] sm:$0xf]
        %v4352 = vsel %vm4299, %v4102, %v4351
        %4353 = vst [vmem:[%s4297 + $0x54] sm:$0xf] %v4352
        %4354 = vst.msk [vmem:[%s4297 + $0x58] sm:$0xf] %vm3921, %v4111
        %v4355 = vld [vmem:[%s4297 + $0x5c] sm:$0x1]
        %v4356 = vsel %vm4305, %v4112, %v4355
        %4357 = vst [vmem:[%s4297 + $0x5c] sm:$0x1] %v4356
        %v4358 = vld [vmem:[%s4297 + $0x60] sm:$0xf]
        %v4359 = vsel %vm4299, %v4119, %v4358
        %4360 = vst [vmem:[%s4297 + $0x60] sm:$0xf] %v4359
        %4361 = vst.msk [vmem:[%s4297 + $0x64] sm:$0xf] %vm3921, %v4128
        %v4362 = vld [vmem:[%s4297 + $0x68] sm:$0x1]
        %v4363 = vsel %vm4305, %v4129, %v4362
        %4364 = vst [vmem:[%s4297 + $0x68] sm:$0x1] %v4363
        %v4365 = vld [vmem:[%s4297 + $0x6c] sm:$0xf]
        %v4366 = vsel %vm4299, %v4136, %v4365
        %4367 = vst [vmem:[%s4297 + $0x6c] sm:$0xf] %v4366
        %4368 = vst.msk [vmem:[%s4297 + $0x70] sm:$0xf] %vm3921, %v4145
        %v4369 = vld [vmem:[%s4297 + $0x74] sm:$0x1]
        %v4370 = vsel %vm4305, %v4146, %v4369
        %4371 = vst [vmem:[%s4297 + $0x74] sm:$0x1] %v4370
        %v4372 = vld [vmem:[%s4297 + $0x78] sm:$0xf]
        %v4373 = vsel %vm4299, %v4153, %v4372
        %4374 = vst [vmem:[%s4297 + $0x78] sm:$0xf] %v4373
        %4375 = vst.msk [vmem:[%s4297 + $0x7c] sm:$0xf] %vm3921, %v4162
        %v4376 = vld [vmem:[%s4297 + $0x80] sm:$0x1]
        %v4377 = vsel %vm4305, %v4163, %v4376
        %4378 = vst [vmem:[%s4297 + $0x80] sm:$0x1] %v4377
        %v4379 = vld [vmem:[%s4297 + $0x84] sm:$0xf]
        %v4380 = vsel %vm4299, %v4170, %v4379
        %4381 = vst [vmem:[%s4297 + $0x84] sm:$0xf] %v4380
        %4382 = vst.msk [vmem:[%s4297 + $0x88] sm:$0xf] %vm3921, %v4179
        %v4383 = vld [vmem:[%s4297 + $0x8c] sm:$0x1]
        %v4384 = vsel %vm4305, %v4180, %v4383
        %4385 = vst [vmem:[%s4297 + $0x8c] sm:$0x1] %v4384
        %v4386 = vld [vmem:[%s4297 + $0x90] sm:$0xf]
        %v4387 = vsel %vm4299, %v4187, %v4386
        %4388 = vst [vmem:[%s4297 + $0x90] sm:$0xf] %v4387
        %4389 = vst.msk [vmem:[%s4297 + $0x94] sm:$0xf] %vm3921, %v4196
        %v4390 = vld [vmem:[%s4297 + $0x98] sm:$0x1]
        %v4391 = vsel %vm4305, %v4197, %v4390
        %4392 = vst [vmem:[%s4297 + $0x98] sm:$0x1] %v4391
        %v4393 = vld [vmem:[%s4297 + $0x9c] sm:$0xf]
        %v4394 = vsel %vm4299, %v4204, %v4393
        %4395 = vst [vmem:[%s4297 + $0x9c] sm:$0xf] %v4394
        %4396 = vst.msk [vmem:[%s4297 + $0xa0] sm:$0xf] %vm3921, %v4213
        %v4397 = vld [vmem:[%s4297 + $0xa4] sm:$0x1]
        %v4398 = vsel %vm4305, %v4214, %v4397
        %4399 = vst [vmem:[%s4297 + $0xa4] sm:$0x1] %v4398
        %v4400 = vld [vmem:[%s4297 + $0xa8] sm:$0xf]
        %v4401 = vsel %vm4299, %v4221, %v4400
        %4402 = vst [vmem:[%s4297 + $0xa8] sm:$0xf] %v4401
        %4403 = vst.msk [vmem:[%s4297 + $0xac] sm:$0xf] %vm3921, %v4230
        %v4404 = vld [vmem:[%s4297 + $0xb0] sm:$0x1]
        %v4405 = vsel %vm4305, %v4231, %v4404
        %4406 = vst [vmem:[%s4297 + $0xb0] sm:$0x1] %v4405
        %v4407 = vld [vmem:[%s4297 + $0xb4] sm:$0xf]
        %v4408 = vsel %vm4299, %v4238, %v4407
        %4409 = vst [vmem:[%s4297 + $0xb4] sm:$0xf] %v4408
        %4410 = vst.msk [vmem:[%s4297 + $0xb8] sm:$0xf] %vm3921, %v4247
        %v4411 = vld [vmem:[%s4297 + $0xbc] sm:$0x1]
        %v4412 = vsel %vm4305, %v4248, %v4411
        %4413 = vst [vmem:[%s4297 + $0xbc] sm:$0x1] %v4412
        %v4414 = vld [vmem:[#allocation3] sm:$0xf]
        %v4415 = vld [vmem:[#allocation3 + $0x4] sm:$0xf]
        %v4416 = vld [vmem:[#allocation3 + $0xc] sm:$0xf]
        %v4417 = vld [vmem:[#allocation3 + $0x10] sm:$0xf]
        %v4418 = vld [vmem:[#allocation3 + $0x18] sm:$0xf]
        %v4419 = vld [vmem:[#allocation3 + $0x1c] sm:$0xf]
        %v4420 = vld [vmem:[#allocation3 + $0x24] sm:$0xf]
        %v4421 = vld [vmem:[#allocation3 + $0x28] sm:$0xf]
        %v4422 = vld [vmem:[#allocation3 + $0x30] sm:$0xf]
        %v4423 = vld [vmem:[#allocation3 + $0x34] sm:$0xf]
        %v4424 = vld [vmem:[#allocation3 + $0x3c] sm:$0xf]
        %v4425 = vld [vmem:[#allocation3 + $0x40] sm:$0xf]
        %v4426 = vld [vmem:[#allocation3 + $0x48] sm:$0xf]
        %v4427 = vld [vmem:[#allocation3 + $0x4c] sm:$0xf]
        %v4428 = vld [vmem:[#allocation3 + $0x54] sm:$0xf]
        %v4429 = vld [vmem:[#allocation3 + $0x58] sm:$0xf]
        %v4430 = vld [vmem:[#allocation3 + $0x60] sm:$0xf]
        %v4431 = vld [vmem:[#allocation3 + $0x64] sm:$0xf]
        %v4432 = vld [vmem:[#allocation3 + $0x6c] sm:$0xf]
        %v4433 = vld [vmem:[#allocation3 + $0x70] sm:$0xf]
        %v4434 = vld [vmem:[#allocation3 + $0x78] sm:$0xf]
        %v4435 = vld [vmem:[#allocation3 + $0x7c] sm:$0xf]
        %v4436 = vld [vmem:[#allocation3 + $0x84] sm:$0xf]
        %v4437 = vld [vmem:[#allocation3 + $0x88] sm:$0xf]
        %v4438 = vld [vmem:[#allocation3 + $0x90] sm:$0xf]
        %v4439 = vld [vmem:[#allocation3 + $0x94] sm:$0xf]
        %v4440 = vld [vmem:[#allocation3 + $0x9c] sm:$0xf]
        %v4441 = vld [vmem:[#allocation3 + $0xa0] sm:$0xf]
        %v4442 = vld [vmem:[#allocation3 + $0xa8] sm:$0xf]
        %v4443 = vld [vmem:[#allocation3 + $0xac] sm:$0xf]
        %v4444 = vld [vmem:[#allocation3 + $0xb4] sm:$0xf]
        %v4445 = vld [vmem:[#allocation3 + $0xb8] sm:$0xf]
        %v4446 = vld [vmem:[#allocation3 + $0x8] sm:$0x1]
        %v4447 = vld [vmem:[#allocation3 + $0x14] sm:$0x1]
        %v4448 = vld [vmem:[#allocation3 + $0x20] sm:$0x1]
        %v4449 = vld [vmem:[#allocation3 + $0x2c] sm:$0x1]
        %v4450 = vld [vmem:[#allocation3 + $0x38] sm:$0x1]
        %v4451 = vld [vmem:[#allocation3 + $0x44] sm:$0x1]
        %v4452 = vld [vmem:[#allocation3 + $0x50] sm:$0x1]
        %v4453 = vld [vmem:[#allocation3 + $0x5c] sm:$0x1]
        %v4454 = vld [vmem:[#allocation3 + $0x68] sm:$0x1]
        %v4455 = vld [vmem:[#allocation3 + $0x74] sm:$0x1]
        %v4456 = vld [vmem:[#allocation3 + $0x80] sm:$0x1]
        %v4457 = vld [vmem:[#allocation3 + $0x8c] sm:$0x1]
        %v4458 = vld [vmem:[#allocation3 + $0x98] sm:$0x1]
        %v4459 = vld [vmem:[#allocation3 + $0xa4] sm:$0x1]
        %v4460 = vld [vmem:[#allocation3 + $0xb0] sm:$0x1]
        %v4461 = vld [vmem:[#allocation3 + $0xbc] sm:$0x1]
        %v4463 = vshrl.u32 %v4414, 16
        %v4465 = vrot.slane %v4463, 4
        %v4466 = vshll.u32 %v4414, 16
        %v4468 = vrot.slane %v4466, 5
        %v4469 = vor.u32 %v4465, %v4468
        %v4470 = vrot.slane %v4469, 4
        %v4472 = vshll.u32 %v4415, 16
        %v4474 = vrot.slane %v4472, 5
        %v4475 = vsel %vm910, %v4470, %v4474
        %v4476 = vshrl.u32 %v4415, 16
        %v4478 = vrot.slane %v4476, 4
        %v4479 = vor.u32 %v4478, %v4474
        %v4480 = vrot.slane %v4479, 4
        %v4482 = vshll.u32 %v4446, 16
        %v4484 = vrot.slane %v4482, 5
        %v4485 = vsel %vm910, %v4480, %v4484
        %v4487 = vshrl.u32 %v4416, 16
        %v4489 = vrot.slane %v4487, 4
        %v4490 = vshll.u32 %v4416, 16
        %v4492 = vrot.slane %v4490, 5
        %v4493 = vor.u32 %v4489, %v4492
        %v4494 = vrot.slane %v4493, 4
        %v4496 = vshll.u32 %v4417, 16
        %v4498 = vrot.slane %v4496, 5
        %v4499 = vsel %vm910, %v4494, %v4498
        %v4500 = vshrl.u32 %v4417, 16
        %v4502 = vrot.slane %v4500, 4
        %v4503 = vor.u32 %v4502, %v4498
        %v4504 = vrot.slane %v4503, 4
        %v4506 = vshll.u32 %v4447, 16
        %v4508 = vrot.slane %v4506, 5
        %v4509 = vsel %vm910, %v4504, %v4508
        %v4511 = vshrl.u32 %v4418, 16
        %v4513 = vrot.slane %v4511, 4
        %v4514 = vshll.u32 %v4418, 16
        %v4516 = vrot.slane %v4514, 5
        %v4517 = vor.u32 %v4513, %v4516
        %v4518 = vrot.slane %v4517, 4
        %v4520 = vshll.u32 %v4419, 16
        %v4522 = vrot.slane %v4520, 5
        %v4523 = vsel %vm910, %v4518, %v4522
        %v4524 = vshrl.u32 %v4419, 16
        %v4526 = vrot.slane %v4524, 4
        %v4527 = vor.u32 %v4526, %v4522
        %v4528 = vrot.slane %v4527, 4
        %v4530 = vshll.u32 %v4448, 16
        %v4532 = vrot.slane %v4530, 5
        %v4533 = vsel %vm910, %v4528, %v4532
        %v4535 = vshrl.u32 %v4420, 16
        %v4537 = vrot.slane %v4535, 4
        %v4538 = vshll.u32 %v4420, 16
        %v4540 = vrot.slane %v4538, 5
        %v4541 = vor.u32 %v4537, %v4540
        %v4542 = vrot.slane %v4541, 4
        %v4544 = vshll.u32 %v4421, 16
        %v4546 = vrot.slane %v4544, 5
        %v4547 = vsel %vm910, %v4542, %v4546
        %v4548 = vshrl.u32 %v4421, 16
        %v4550 = vrot.slane %v4548, 4
        %v4551 = vor.u32 %v4550, %v4546
        %v4552 = vrot.slane %v4551, 4
        %v4554 = vshll.u32 %v4449, 16
        %v4556 = vrot.slane %v4554, 5
        %v4557 = vsel %vm910, %v4552, %v4556
        %v4559 = vshrl.u32 %v4422, 16
        %v4561 = vrot.slane %v4559, 4
        %v4562 = vshll.u32 %v4422, 16
        %v4564 = vrot.slane %v4562, 5
        %v4565 = vor.u32 %v4561, %v4564
        %v4566 = vrot.slane %v4565, 4
        %v4568 = vshll.u32 %v4423, 16
        %v4570 = vrot.slane %v4568, 5
        %v4571 = vsel %vm910, %v4566, %v4570
        %v4572 = vshrl.u32 %v4423, 16
        %v4574 = vrot.slane %v4572, 4
        %v4575 = vor.u32 %v4574, %v4570
        %v4576 = vrot.slane %v4575, 4
        %v4578 = vshll.u32 %v4450, 16
        %v4580 = vrot.slane %v4578, 5
        %v4581 = vsel %vm910, %v4576, %v4580
        %v4583 = vshrl.u32 %v4424, 16
        %v4585 = vrot.slane %v4583, 4
        %v4586 = vshll.u32 %v4424, 16
        %v4588 = vrot.slane %v4586, 5
        %v4589 = vor.u32 %v4585, %v4588
        %v4590 = vrot.slane %v4589, 4
        %v4592 = vshll.u32 %v4425, 16
        %v4594 = vrot.slane %v4592, 5
        %v4595 = vsel %vm910, %v4590, %v4594
        %v4596 = vshrl.u32 %v4425, 16
        %v4598 = vrot.slane %v4596, 4
        %v4599 = vor.u32 %v4598, %v4594
        %v4600 = vrot.slane %v4599, 4
        %v4602 = vshll.u32 %v4451, 16
        %v4604 = vrot.slane %v4602, 5
        %v4605 = vsel %vm910, %v4600, %v4604
        %v4607 = vshrl.u32 %v4426, 16
        %v4609 = vrot.slane %v4607, 4
        %v4610 = vshll.u32 %v4426, 16
        %v4612 = vrot.slane %v4610, 5
        %v4613 = vor.u32 %v4609, %v4612
        %v4614 = vrot.slane %v4613, 4
        %v4616 = vshll.u32 %v4427, 16
        %v4618 = vrot.slane %v4616, 5
        %v4619 = vsel %vm910, %v4614, %v4618
        %v4620 = vshrl.u32 %v4427, 16
        %v4622 = vrot.slane %v4620, 4
        %v4623 = vor.u32 %v4622, %v4618
        %v4624 = vrot.slane %v4623, 4
        %v4626 = vshll.u32 %v4452, 16
        %v4628 = vrot.slane %v4626, 5
        %v4629 = vsel %vm910, %v4624, %v4628
        %v4631 = vshrl.u32 %v4428, 16
        %v4633 = vrot.slane %v4631, 4
        %v4634 = vshll.u32 %v4428, 16
        %v4636 = vrot.slane %v4634, 5
        %v4637 = vor.u32 %v4633, %v4636
        %v4638 = vrot.slane %v4637, 4
        %v4640 = vshll.u32 %v4429, 16
        %v4642 = vrot.slane %v4640, 5
        %v4643 = vsel %vm910, %v4638, %v4642
        %v4644 = vshrl.u32 %v4429, 16
        %v4646 = vrot.slane %v4644, 4
        %v4647 = vor.u32 %v4646, %v4642
        %v4648 = vrot.slane %v4647, 4
        %v4650 = vshll.u32 %v4453, 16
        %v4652 = vrot.slane %v4650, 5
        %v4653 = vsel %vm910, %v4648, %v4652
        %v4655 = vshrl.u32 %v4430, 16
        %v4657 = vrot.slane %v4655, 4
        %v4658 = vshll.u32 %v4430, 16
        %v4660 = vrot.slane %v4658, 5
        %v4661 = vor.u32 %v4657, %v4660
        %v4662 = vrot.slane %v4661, 4
        %v4664 = vshll.u32 %v4431, 16
        %v4666 = vrot.slane %v4664, 5
        %v4667 = vsel %vm910, %v4662, %v4666
        %v4668 = vshrl.u32 %v4431, 16
        %v4670 = vrot.slane %v4668, 4
        %v4671 = vor.u32 %v4670, %v4666
        %v4672 = vrot.slane %v4671, 4
        %v4674 = vshll.u32 %v4454, 16
        %v4676 = vrot.slane %v4674, 5
        %v4677 = vsel %vm910, %v4672, %v4676
        %v4679 = vshrl.u32 %v4432, 16
        %v4681 = vrot.slane %v4679, 4
        %v4682 = vshll.u32 %v4432, 16
        %v4684 = vrot.slane %v4682, 5
        %v4685 = vor.u32 %v4681, %v4684
        %v4686 = vrot.slane %v4685, 4
        %v4688 = vshll.u32 %v4433, 16
        %v4690 = vrot.slane %v4688, 5
        %v4691 = vsel %vm910, %v4686, %v4690
        %v4692 = vshrl.u32 %v4433, 16
        %v4694 = vrot.slane %v4692, 4
        %v4695 = vor.u32 %v4694, %v4690
        %v4696 = vrot.slane %v4695, 4
        %v4698 = vshll.u32 %v4455, 16
        %v4700 = vrot.slane %v4698, 5
        %v4701 = vsel %vm910, %v4696, %v4700
        %v4703 = vshrl.u32 %v4434, 16
        %v4705 = vrot.slane %v4703, 4
        %v4706 = vshll.u32 %v4434, 16
        %v4708 = vrot.slane %v4706, 5
        %v4709 = vor.u32 %v4705, %v4708
        %v4710 = vrot.slane %v4709, 4
        %v4712 = vshll.u32 %v4435, 16
        %v4714 = vrot.slane %v4712, 5
        %v4715 = vsel %vm910, %v4710, %v4714
        %v4716 = vshrl.u32 %v4435, 16
        %v4718 = vrot.slane %v4716, 4
        %v4719 = vor.u32 %v4718, %v4714
        %v4720 = vrot.slane %v4719, 4
        %v4722 = vshll.u32 %v4456, 16
        %v4724 = vrot.slane %v4722, 5
        %v4725 = vsel %vm910, %v4720, %v4724
        %v4727 = vshrl.u32 %v4436, 16
        %v4729 = vrot.slane %v4727, 4
        %v4730 = vshll.u32 %v4436, 16
        %v4732 = vrot.slane %v4730, 5
        %v4733 = vor.u32 %v4729, %v4732
        %v4734 = vrot.slane %v4733, 4
        %v4736 = vshll.u32 %v4437, 16
        %v4738 = vrot.slane %v4736, 5
        %v4739 = vsel %vm910, %v4734, %v4738
        %v4740 = vshrl.u32 %v4437, 16
        %v4742 = vrot.slane %v4740, 4
        %v4743 = vor.u32 %v4742, %v4738
        %v4744 = vrot.slane %v4743, 4
        %v4746 = vshll.u32 %v4457, 16
        %v4748 = vrot.slane %v4746, 5
        %v4749 = vsel %vm910, %v4744, %v4748
        %v4751 = vshrl.u32 %v4438, 16
        %v4753 = vrot.slane %v4751, 4
        %v4754 = vshll.u32 %v4438, 16
        %v4756 = vrot.slane %v4754, 5
        %v4757 = vor.u32 %v4753, %v4756
        %v4758 = vrot.slane %v4757, 4
        %v4760 = vshll.u32 %v4439, 16
        %v4762 = vrot.slane %v4760, 5
        %v4763 = vsel %vm910, %v4758, %v4762
        %v4764 = vshrl.u32 %v4439, 16
        %v4766 = vrot.slane %v4764, 4
        %v4767 = vor.u32 %v4766, %v4762
        %v4768 = vrot.slane %v4767, 4
        %v4770 = vshll.u32 %v4458, 16
        %v4772 = vrot.slane %v4770, 5
        %v4773 = vsel %vm910, %v4768, %v4772
        %v4775 = vshrl.u32 %v4440, 16
        %v4777 = vrot.slane %v4775, 4
        %v4778 = vshll.u32 %v4440, 16
        %v4780 = vrot.slane %v4778, 5
        %v4781 = vor.u32 %v4777, %v4780
        %v4782 = vrot.slane %v4781, 4
        %v4784 = vshll.u32 %v4441, 16
        %v4786 = vrot.slane %v4784, 5
        %v4787 = vsel %vm910, %v4782, %v4786
        %v4788 = vshrl.u32 %v4441, 16
        %v4790 = vrot.slane %v4788, 4
        %v4791 = vor.u32 %v4790, %v4786
        %v4792 = vrot.slane %v4791, 4
        %v4794 = vshll.u32 %v4459, 16
        %v4796 = vrot.slane %v4794, 5
        %v4797 = vsel %vm910, %v4792, %v4796
        %v4799 = vshrl.u32 %v4442, 16
        %v4801 = vrot.slane %v4799, 4
        %v4802 = vshll.u32 %v4442, 16
        %v4804 = vrot.slane %v4802, 5
        %v4805 = vor.u32 %v4801, %v4804
        %v4806 = vrot.slane %v4805, 4
        %v4808 = vshll.u32 %v4443, 16
        %v4810 = vrot.slane %v4808, 5
        %v4811 = vsel %vm910, %v4806, %v4810
        %v4812 = vshrl.u32 %v4443, 16
        %v4814 = vrot.slane %v4812, 4
        %v4815 = vor.u32 %v4814, %v4810
        %v4816 = vrot.slane %v4815, 4
        %v4818 = vshll.u32 %v4460, 16
        %v4820 = vrot.slane %v4818, 5
        %v4821 = vsel %vm910, %v4816, %v4820
        %v4823 = vshrl.u32 %v4444, 16
        %v4825 = vrot.slane %v4823, 4
        %v4826 = vshll.u32 %v4444, 16
        %v4828 = vrot.slane %v4826, 5
        %v4829 = vor.u32 %v4825, %v4828
        %v4830 = vrot.slane %v4829, 4
        %v4832 = vshll.u32 %v4445, 16
        %v4834 = vrot.slane %v4832, 5
        %v4835 = vsel %vm910, %v4830, %v4834
        %v4836 = vshrl.u32 %v4445, 16
        %v4838 = vrot.slane %v4836, 4
        %v4839 = vor.u32 %v4838, %v4834
        %v4840 = vrot.slane %v4839, 4
        %v4842 = vshll.u32 %v4461, 16
        %v4844 = vrot.slane %v4842, 5
        %v4845 = vsel %vm910, %v4840, %v4844
        %v4846 = vld [vmem:[#allocation3] sm:$0xe]
        %v4847 = vld [vmem:[#allocation3 + $0xc] sm:$0xe]
        %v4848 = vld [vmem:[#allocation3 + $0x18] sm:$0xe]
        %v4849 = vld [vmem:[#allocation3 + $0x24] sm:$0xe]
        %v4850 = vld [vmem:[#allocation3 + $0x30] sm:$0xe]
        %v4851 = vld [vmem:[#allocation3 + $0x3c] sm:$0xe]
        %v4852 = vld [vmem:[#allocation3 + $0x48] sm:$0xe]
        %v4853 = vld [vmem:[#allocation3 + $0x54] sm:$0xe]
        %v4854 = vld [vmem:[#allocation3 + $0x60] sm:$0xe]
        %v4855 = vld [vmem:[#allocation3 + $0x6c] sm:$0xe]
        %v4856 = vld [vmem:[#allocation3 + $0x78] sm:$0xe]
        %v4857 = vld [vmem:[#allocation3 + $0x84] sm:$0xe]
        %v4858 = vld [vmem:[#allocation3 + $0x90] sm:$0xe]
        %v4859 = vld [vmem:[#allocation3 + $0x9c] sm:$0xe]
        %v4860 = vld [vmem:[#allocation3 + $0xa8] sm:$0xe]
        %v4861 = vld [vmem:[#allocation3 + $0xb4] sm:$0xe]
        %v4910 = vrot.slane %v4846, 5
        %v4911 = vrot.slane %v4910, 4
        %v4912 = vrot.slane %v4415, 5
        %v4913 = vsel %vm1361, %v4911, %v4912
        %v4914 = vrot.slane %v4912, 4
        %v4915 = vrot.slane %v4446, 5
        %v4916 = vsel %vm1361, %v4914, %v4915
        %v4917 = vrot.slane %v4847, 5
        %v4918 = vrot.slane %v4917, 4
        %v4919 = vrot.slane %v4417, 5
        %v4920 = vsel %vm1361, %v4918, %v4919
        %v4921 = vrot.slane %v4919, 4
        %v4922 = vrot.slane %v4447, 5
        %v4923 = vsel %vm1361, %v4921, %v4922
        %v4924 = vrot.slane %v4848, 5
        %v4925 = vrot.slane %v4924, 4
        %v4926 = vrot.slane %v4419, 5
        %v4927 = vsel %vm1361, %v4925, %v4926
        %v4928 = vrot.slane %v4926, 4
        %v4929 = vrot.slane %v4448, 5
        %v4930 = vsel %vm1361, %v4928, %v4929
        %v4931 = vrot.slane %v4849, 5
        %v4932 = vrot.slane %v4931, 4
        %v4933 = vrot.slane %v4421, 5
        %v4934 = vsel %vm1361, %v4932, %v4933
        %v4935 = vrot.slane %v4933, 4
        %v4936 = vrot.slane %v4449, 5
        %v4937 = vsel %vm1361, %v4935, %v4936
        %v4938 = vrot.slane %v4850, 5
        %v4939 = vrot.slane %v4938, 4
        %v4940 = vrot.slane %v4423, 5
        %v4941 = vsel %vm1361, %v4939, %v4940
        %v4942 = vrot.slane %v4940, 4
        %v4943 = vrot.slane %v4450, 5
        %v4944 = vsel %vm1361, %v4942, %v4943
        %v4945 = vrot.slane %v4851, 5
        %v4946 = vrot.slane %v4945, 4
        %v4947 = vrot.slane %v4425, 5
        %v4948 = vsel %vm1361, %v4946, %v4947
        %v4949 = vrot.slane %v4947, 4
        %v4950 = vrot.slane %v4451, 5
        %v4951 = vsel %vm1361, %v4949, %v4950
        %v4952 = vrot.slane %v4852, 5
        %v4953 = vrot.slane %v4952, 4
        %v4954 = vrot.slane %v4427, 5
        %v4955 = vsel %vm1361, %v4953, %v4954
        %v4956 = vrot.slane %v4954, 4
        %v4957 = vrot.slane %v4452, 5
        %v4958 = vsel %vm1361, %v4956, %v4957
        %v4959 = vrot.slane %v4853, 5
        %v4960 = vrot.slane %v4959, 4
        %v4961 = vrot.slane %v4429, 5
        %v4962 = vsel %vm1361, %v4960, %v4961
        %v4963 = vrot.slane %v4961, 4
        %v4964 = vrot.slane %v4453, 5
        %v4965 = vsel %vm1361, %v4963, %v4964
        %v4966 = vrot.slane %v4854, 5
        %v4967 = vrot.slane %v4966, 4
        %v4968 = vrot.slane %v4431, 5
        %v4969 = vsel %vm1361, %v4967, %v4968
        %v4970 = vrot.slane %v4968, 4
        %v4971 = vrot.slane %v4454, 5
        %v4972 = vsel %vm1361, %v4970, %v4971
        %v4973 = vrot.slane %v4855, 5
        %v4974 = vrot.slane %v4973, 4
        %v4975 = vrot.slane %v4433, 5
        %v4976 = vsel %vm1361, %v4974, %v4975
        %v4977 = vrot.slane %v4975, 4
        %v4978 = vrot.slane %v4455, 5
        %v4979 = vsel %vm1361, %v4977, %v4978
        %v4980 = vrot.slane %v4856, 5
        %v4981 = vrot.slane %v4980, 4
        %v4982 = vrot.slane %v4435, 5
        %v4983 = vsel %vm1361, %v4981, %v4982
        %v4984 = vrot.slane %v4982, 4
        %v4985 = vrot.slane %v4456, 5
        %v4986 = vsel %vm1361, %v4984, %v4985
        %v4987 = vrot.slane %v4857, 5
        %v4988 = vrot.slane %v4987, 4
        %v4989 = vrot.slane %v4437, 5
        %v4990 = vsel %vm1361, %v4988, %v4989
        %v4991 = vrot.slane %v4989, 4
        %v4992 = vrot.slane %v4457, 5
        %v4993 = vsel %vm1361, %v4991, %v4992
        %v4994 = vrot.slane %v4858, 5
        %v4995 = vrot.slane %v4994, 4
        %v4996 = vrot.slane %v4439, 5
        %v4997 = vsel %vm1361, %v4995, %v4996
        %v4998 = vrot.slane %v4996, 4
        %v4999 = vrot.slane %v4458, 5
        %v5000 = vsel %vm1361, %v4998, %v4999
        %v5001 = vrot.slane %v4859, 5
        %v5002 = vrot.slane %v5001, 4
        %v5003 = vrot.slane %v4441, 5
        %v5004 = vsel %vm1361, %v5002, %v5003
        %v5005 = vrot.slane %v5003, 4
        %v5006 = vrot.slane %v4459, 5
        %v5007 = vsel %vm1361, %v5005, %v5006
        %v5008 = vrot.slane %v4860, 5
        %v5009 = vrot.slane %v5008, 4
        %v5010 = vrot.slane %v4443, 5
        %v5011 = vsel %vm1361, %v5009, %v5010
        %v5012 = vrot.slane %v5010, 4
        %v5013 = vrot.slane %v4460, 5
        %v5014 = vsel %vm1361, %v5012, %v5013
        %v5015 = vrot.slane %v4861, 5
        %v5016 = vrot.slane %v5015, 4
        %v5017 = vrot.slane %v4445, 5
        %v5018 = vsel %vm1361, %v5016, %v5017
        %v5019 = vrot.slane %v5017, 4
        %v5020 = vrot.slane %v4461, 5
        %v5021 = vsel %vm1361, %v5019, %v5020
        %v5022 = vld [vmem:[%s4297] sm:$0xf]
        %v5023 = vld [vmem:[%s4297 + $0x4] sm:$0xf]
        %v5024 = vld [vmem:[%s4297 + $0xc] sm:$0xf]
        %v5025 = vld [vmem:[%s4297 + $0x10] sm:$0xf]
        %v5026 = vld [vmem:[%s4297 + $0x18] sm:$0xf]
        %v5027 = vld [vmem:[%s4297 + $0x1c] sm:$0xf]
        %v5028 = vld [vmem:[%s4297 + $0x24] sm:$0xf]
        %v5029 = vld [vmem:[%s4297 + $0x28] sm:$0xf]
        %v5030 = vld [vmem:[%s4297 + $0x30] sm:$0xf]
        %v5031 = vld [vmem:[%s4297 + $0x34] sm:$0xf]
        %v5032 = vld [vmem:[%s4297 + $0x3c] sm:$0xf]
        %v5033 = vld [vmem:[%s4297 + $0x40] sm:$0xf]
        %v5034 = vld [vmem:[%s4297 + $0x48] sm:$0xf]
        %v5035 = vld [vmem:[%s4297 + $0x4c] sm:$0xf]
        %v5036 = vld [vmem:[%s4297 + $0x54] sm:$0xf]
        %v5037 = vld [vmem:[%s4297 + $0x58] sm:$0xf]
        %v5038 = vld [vmem:[%s4297 + $0x60] sm:$0xf]
        %v5039 = vld [vmem:[%s4297 + $0x64] sm:$0xf]
        %v5040 = vld [vmem:[%s4297 + $0x6c] sm:$0xf]
        %v5041 = vld [vmem:[%s4297 + $0x70] sm:$0xf]
        %v5042 = vld [vmem:[%s4297 + $0x78] sm:$0xf]
        %v5043 = vld [vmem:[%s4297 + $0x7c] sm:$0xf]
        %v5044 = vld [vmem:[%s4297 + $0x84] sm:$0xf]
        %v5045 = vld [vmem:[%s4297 + $0x88] sm:$0xf]
        %v5046 = vld [vmem:[%s4297 + $0x90] sm:$0xf]
        %v5047 = vld [vmem:[%s4297 + $0x94] sm:$0xf]
        %v5048 = vld [vmem:[%s4297 + $0x9c] sm:$0xf]
        %v5049 = vld [vmem:[%s4297 + $0xa0] sm:$0xf]
        %v5050 = vld [vmem:[%s4297 + $0xa8] sm:$0xf]
        %v5051 = vld [vmem:[%s4297 + $0xac] sm:$0xf]
        %v5052 = vld [vmem:[%s4297 + $0xb4] sm:$0xf]
        %v5053 = vld [vmem:[%s4297 + $0xb8] sm:$0xf]
        %v5054 = vld [vmem:[%s4297 + $0x8] sm:$0x1]
        %v5055 = vld [vmem:[%s4297 + $0x14] sm:$0x1]
        %v5056 = vld [vmem:[%s4297 + $0x20] sm:$0x1]
        %v5057 = vld [vmem:[%s4297 + $0x2c] sm:$0x1]
        %v5058 = vld [vmem:[%s4297 + $0x38] sm:$0x1]
        %v5059 = vld [vmem:[%s4297 + $0x44] sm:$0x1]
        %v5060 = vld [vmem:[%s4297 + $0x50] sm:$0x1]
        %v5061 = vld [vmem:[%s4297 + $0x5c] sm:$0x1]
        %v5062 = vld [vmem:[%s4297 + $0x68] sm:$0x1]
        %v5063 = vld [vmem:[%s4297 + $0x74] sm:$0x1]
        %v5064 = vld [vmem:[%s4297 + $0x80] sm:$0x1]
        %v5065 = vld [vmem:[%s4297 + $0x8c] sm:$0x1]
        %v5066 = vld [vmem:[%s4297 + $0x98] sm:$0x1]
        %v5067 = vld [vmem:[%s4297 + $0xa4] sm:$0x1]
        %v5068 = vld [vmem:[%s4297 + $0xb0] sm:$0x1]
        %v5069 = vld [vmem:[%s4297 + $0xbc] sm:$0x1]
        %v5071 = vshrl.u32 %v5022, 16
        %v5073 = vrot.slane %v5071, 4
        %v5074 = vshll.u32 %v5022, 16
        %v5076 = vrot.slane %v5074, 5
        %v5077 = vor.u32 %v5073, %v5076
        %v5078 = vrot.slane %v5077, 4
        %v5080 = vshll.u32 %v5023, 16
        %v5082 = vrot.slane %v5080, 5
        %v5083 = vsel %vm910, %v5078, %v5082
        %v5084 = vshrl.u32 %v5023, 16
        %v5086 = vrot.slane %v5084, 4
        %v5087 = vor.u32 %v5086, %v5082
        %v5088 = vrot.slane %v5087, 4
        %v5090 = vshll.u32 %v5054, 16
        %v5092 = vrot.slane %v5090, 5
        %v5093 = vsel %vm910, %v5088, %v5092
        %v5095 = vshrl.u32 %v5024, 16
        %v5097 = vrot.slane %v5095, 4
        %v5098 = vshll.u32 %v5024, 16
        %v5100 = vrot.slane %v5098, 5
        %v5101 = vor.u32 %v5097, %v5100
        %v5102 = vrot.slane %v5101, 4
        %v5104 = vshll.u32 %v5025, 16
        %v5106 = vrot.slane %v5104, 5
        %v5107 = vsel %vm910, %v5102, %v5106
        %v5108 = vshrl.u32 %v5025, 16
        %v5110 = vrot.slane %v5108, 4
        %v5111 = vor.u32 %v5110, %v5106
        %v5112 = vrot.slane %v5111, 4
        %v5114 = vshll.u32 %v5055, 16
        %v5116 = vrot.slane %v5114, 5
        %v5117 = vsel %vm910, %v5112, %v5116
        %v5119 = vshrl.u32 %v5026, 16
        %v5121 = vrot.slane %v5119, 4
        %v5122 = vshll.u32 %v5026, 16
        %v5124 = vrot.slane %v5122, 5
        %v5125 = vor.u32 %v5121, %v5124
        %v5126 = vrot.slane %v5125, 4
        %v5128 = vshll.u32 %v5027, 16
        %v5130 = vrot.slane %v5128, 5
        %v5131 = vsel %vm910, %v5126, %v5130
        %v5132 = vshrl.u32 %v5027, 16
        %v5134 = vrot.slane %v5132, 4
        %v5135 = vor.u32 %v5134, %v5130
        %v5136 = vrot.slane %v5135, 4
        %v5138 = vshll.u32 %v5056, 16
        %v5140 = vrot.slane %v5138, 5
        %v5141 = vsel %vm910, %v5136, %v5140
        %v5143 = vshrl.u32 %v5028, 16
        %v5145 = vrot.slane %v5143, 4
        %v5146 = vshll.u32 %v5028, 16
        %v5148 = vrot.slane %v5146, 5
        %v5149 = vor.u32 %v5145, %v5148
        %v5150 = vrot.slane %v5149, 4
        %v5152 = vshll.u32 %v5029, 16
        %v5154 = vrot.slane %v5152, 5
        %v5155 = vsel %vm910, %v5150, %v5154
        %v5156 = vshrl.u32 %v5029, 16
        %v5158 = vrot.slane %v5156, 4
        %v5159 = vor.u32 %v5158, %v5154
        %v5160 = vrot.slane %v5159, 4
        %v5162 = vshll.u32 %v5057, 16
        %v5164 = vrot.slane %v5162, 5
        %v5165 = vsel %vm910, %v5160, %v5164
        %v5167 = vshrl.u32 %v5030, 16
        %v5169 = vrot.slane %v5167, 4
        %v5170 = vshll.u32 %v5030, 16
        %v5172 = vrot.slane %v5170, 5
        %v5173 = vor.u32 %v5169, %v5172
        %v5174 = vrot.slane %v5173, 4
        %v5176 = vshll.u32 %v5031, 16
        %v5178 = vrot.slane %v5176, 5
        %v5179 = vsel %vm910, %v5174, %v5178
        %v5180 = vshrl.u32 %v5031, 16
        %v5182 = vrot.slane %v5180, 4
        %v5183 = vor.u32 %v5182, %v5178
        %v5184 = vrot.slane %v5183, 4
        %v5186 = vshll.u32 %v5058, 16
        %v5188 = vrot.slane %v5186, 5
        %v5189 = vsel %vm910, %v5184, %v5188
        %v5191 = vshrl.u32 %v5032, 16
        %v5193 = vrot.slane %v5191, 4
        %v5194 = vshll.u32 %v5032, 16
        %v5196 = vrot.slane %v5194, 5
        %v5197 = vor.u32 %v5193, %v5196
        %v5198 = vrot.slane %v5197, 4
        %v5200 = vshll.u32 %v5033, 16
        %v5202 = vrot.slane %v5200, 5
        %v5203 = vsel %vm910, %v5198, %v5202
        %v5204 = vshrl.u32 %v5033, 16
        %v5206 = vrot.slane %v5204, 4
        %v5207 = vor.u32 %v5206, %v5202
        %v5208 = vrot.slane %v5207, 4
        %v5210 = vshll.u32 %v5059, 16
        %v5212 = vrot.slane %v5210, 5
        %v5213 = vsel %vm910, %v5208, %v5212
        %v5215 = vshrl.u32 %v5034, 16
        %v5217 = vrot.slane %v5215, 4
        %v5218 = vshll.u32 %v5034, 16
        %v5220 = vrot.slane %v5218, 5
        %v5221 = vor.u32 %v5217, %v5220
        %v5222 = vrot.slane %v5221, 4
        %v5224 = vshll.u32 %v5035, 16
        %v5226 = vrot.slane %v5224, 5
        %v5227 = vsel %vm910, %v5222, %v5226
        %v5228 = vshrl.u32 %v5035, 16
        %v5230 = vrot.slane %v5228, 4
        %v5231 = vor.u32 %v5230, %v5226
        %v5232 = vrot.slane %v5231, 4
        %v5234 = vshll.u32 %v5060, 16
        %v5236 = vrot.slane %v5234, 5
        %v5237 = vsel %vm910, %v5232, %v5236
        %v5239 = vshrl.u32 %v5036, 16
        %v5241 = vrot.slane %v5239, 4
        %v5242 = vshll.u32 %v5036, 16
        %v5244 = vrot.slane %v5242, 5
        %v5245 = vor.u32 %v5241, %v5244
        %v5246 = vrot.slane %v5245, 4
        %v5248 = vshll.u32 %v5037, 16
        %v5250 = vrot.slane %v5248, 5
        %v5251 = vsel %vm910, %v5246, %v5250
        %v5252 = vshrl.u32 %v5037, 16
        %v5254 = vrot.slane %v5252, 4
        %v5255 = vor.u32 %v5254, %v5250
        %v5256 = vrot.slane %v5255, 4
        %v5258 = vshll.u32 %v5061, 16
        %v5260 = vrot.slane %v5258, 5
        %v5261 = vsel %vm910, %v5256, %v5260
        %v5263 = vshrl.u32 %v5038, 16
        %v5265 = vrot.slane %v5263, 4
        %v5266 = vshll.u32 %v5038, 16
        %v5268 = vrot.slane %v5266, 5
        %v5269 = vor.u32 %v5265, %v5268
        %v5270 = vrot.slane %v5269, 4
        %v5272 = vshll.u32 %v5039, 16
        %v5274 = vrot.slane %v5272, 5
        %v5275 = vsel %vm910, %v5270, %v5274
        %v5276 = vshrl.u32 %v5039, 16
        %v5278 = vrot.slane %v5276, 4
        %v5279 = vor.u32 %v5278, %v5274
        %v5280 = vrot.slane %v5279, 4
        %v5282 = vshll.u32 %v5062, 16
        %v5284 = vrot.slane %v5282, 5
        %v5285 = vsel %vm910, %v5280, %v5284
        %v5287 = vshrl.u32 %v5040, 16
        %v5289 = vrot.slane %v5287, 4
        %v5290 = vshll.u32 %v5040, 16
        %v5292 = vrot.slane %v5290, 5
        %v5293 = vor.u32 %v5289, %v5292
        %v5294 = vrot.slane %v5293, 4
        %v5296 = vshll.u32 %v5041, 16
        %v5298 = vrot.slane %v5296, 5
        %v5299 = vsel %vm910, %v5294, %v5298
        %v5300 = vshrl.u32 %v5041, 16
        %v5302 = vrot.slane %v5300, 4
        %v5303 = vor.u32 %v5302, %v5298
        %v5304 = vrot.slane %v5303, 4
        %v5306 = vshll.u32 %v5063, 16
        %v5308 = vrot.slane %v5306, 5
        %v5309 = vsel %vm910, %v5304, %v5308
        %v5311 = vshrl.u32 %v5042, 16
        %v5313 = vrot.slane %v5311, 4
        %v5314 = vshll.u32 %v5042, 16
        %v5316 = vrot.slane %v5314, 5
        %v5317 = vor.u32 %v5313, %v5316
        %v5318 = vrot.slane %v5317, 4
        %v5320 = vshll.u32 %v5043, 16
        %v5322 = vrot.slane %v5320, 5
        %v5323 = vsel %vm910, %v5318, %v5322
        %v5324 = vshrl.u32 %v5043, 16
        %v5326 = vrot.slane %v5324, 4
        %v5327 = vor.u32 %v5326, %v5322
        %v5328 = vrot.slane %v5327, 4
        %v5330 = vshll.u32 %v5064, 16
        %v5332 = vrot.slane %v5330, 5
        %v5333 = vsel %vm910, %v5328, %v5332
        %v5335 = vshrl.u32 %v5044, 16
        %v5337 = vrot.slane %v5335, 4
        %v5338 = vshll.u32 %v5044, 16
        %v5340 = vrot.slane %v5338, 5
        %v5341 = vor.u32 %v5337, %v5340
        %v5342 = vrot.slane %v5341, 4
        %v5344 = vshll.u32 %v5045, 16
        %v5346 = vrot.slane %v5344, 5
        %v5347 = vsel %vm910, %v5342, %v5346
        %v5348 = vshrl.u32 %v5045, 16
        %v5350 = vrot.slane %v5348, 4
        %v5351 = vor.u32 %v5350, %v5346
        %v5352 = vrot.slane %v5351, 4
        %v5354 = vshll.u32 %v5065, 16
        %v5356 = vrot.slane %v5354, 5
        %v5357 = vsel %vm910, %v5352, %v5356
        %v5359 = vshrl.u32 %v5046, 16
        %v5361 = vrot.slane %v5359, 4
        %v5362 = vshll.u32 %v5046, 16
        %v5364 = vrot.slane %v5362, 5
        %v5365 = vor.u32 %v5361, %v5364
        %v5366 = vrot.slane %v5365, 4
        %v5368 = vshll.u32 %v5047, 16
        %v5370 = vrot.slane %v5368, 5
        %v5371 = vsel %vm910, %v5366, %v5370
        %v5372 = vshrl.u32 %v5047, 16
        %v5374 = vrot.slane %v5372, 4
        %v5375 = vor.u32 %v5374, %v5370
        %v5376 = vrot.slane %v5375, 4
        %v5378 = vshll.u32 %v5066, 16
        %v5380 = vrot.slane %v5378, 5
        %v5381 = vsel %vm910, %v5376, %v5380
        %v5383 = vshrl.u32 %v5048, 16
        %v5385 = vrot.slane %v5383, 4
        %v5386 = vshll.u32 %v5048, 16
        %v5388 = vrot.slane %v5386, 5
        %v5389 = vor.u32 %v5385, %v5388
        %v5390 = vrot.slane %v5389, 4
        %v5392 = vshll.u32 %v5049, 16
        %v5394 = vrot.slane %v5392, 5
        %v5395 = vsel %vm910, %v5390, %v5394
        %v5396 = vshrl.u32 %v5049, 16
        %v5398 = vrot.slane %v5396, 4
        %v5399 = vor.u32 %v5398, %v5394
        %v5400 = vrot.slane %v5399, 4
        %v5402 = vshll.u32 %v5067, 16
        %v5404 = vrot.slane %v5402, 5
        %v5405 = vsel %vm910, %v5400, %v5404
        %v5407 = vshrl.u32 %v5050, 16
        %v5409 = vrot.slane %v5407, 4
        %v5410 = vshll.u32 %v5050, 16
        %v5412 = vrot.slane %v5410, 5
        %v5413 = vor.u32 %v5409, %v5412
        %v5414 = vrot.slane %v5413, 4
        %v5416 = vshll.u32 %v5051, 16
        %v5418 = vrot.slane %v5416, 5
        %v5419 = vsel %vm910, %v5414, %v5418
        %v5420 = vshrl.u32 %v5051, 16
        %v5422 = vrot.slane %v5420, 4
        %v5423 = vor.u32 %v5422, %v5418
        %v5424 = vrot.slane %v5423, 4
        %v5426 = vshll.u32 %v5068, 16
        %v5428 = vrot.slane %v5426, 5
        %v5429 = vsel %vm910, %v5424, %v5428
        %v5431 = vshrl.u32 %v5052, 16
        %v5433 = vrot.slane %v5431, 4
        %v5434 = vshll.u32 %v5052, 16
        %v5436 = vrot.slane %v5434, 5
        %v5437 = vor.u32 %v5433, %v5436
        %v5438 = vrot.slane %v5437, 4
        %v5440 = vshll.u32 %v5053, 16
        %v5442 = vrot.slane %v5440, 5
        %v5443 = vsel %vm910, %v5438, %v5442
        %v5444 = vshrl.u32 %v5053, 16
        %v5446 = vrot.slane %v5444, 4
        %v5447 = vor.u32 %v5446, %v5442
        %v5448 = vrot.slane %v5447, 4
        %v5450 = vshll.u32 %v5069, 16
        %v5452 = vrot.slane %v5450, 5
        %v5453 = vsel %vm910, %v5448, %v5452
        %v5454 = vld [vmem:[%s4297] sm:$0xe]
        %v5455 = vld [vmem:[%s4297 + $0xc] sm:$0xe]
        %v5456 = vld [vmem:[%s4297 + $0x18] sm:$0xe]
        %v5457 = vld [vmem:[%s4297 + $0x24] sm:$0xe]
        %v5458 = vld [vmem:[%s4297 + $0x30] sm:$0xe]
        %v5459 = vld [vmem:[%s4297 + $0x3c] sm:$0xe]
        %v5460 = vld [vmem:[%s4297 + $0x48] sm:$0xe]
        %v5461 = vld [vmem:[%s4297 + $0x54] sm:$0xe]
        %v5462 = vld [vmem:[%s4297 + $0x60] sm:$0xe]
        %v5463 = vld [vmem:[%s4297 + $0x6c] sm:$0xe]
        %v5464 = vld [vmem:[%s4297 + $0x78] sm:$0xe]
        %v5465 = vld [vmem:[%s4297 + $0x84] sm:$0xe]
        %v5466 = vld [vmem:[%s4297 + $0x90] sm:$0xe]
        %v5467 = vld [vmem:[%s4297 + $0x9c] sm:$0xe]
        %v5468 = vld [vmem:[%s4297 + $0xa8] sm:$0xe]
        %v5469 = vld [vmem:[%s4297 + $0xb4] sm:$0xe]
        %v5518 = vrot.slane %v5454, 5
        %v5519 = vrot.slane %v5518, 4
        %v5520 = vrot.slane %v5023, 5
        %v5521 = vsel %vm1361, %v5519, %v5520
        %v5522 = vrot.slane %v5520, 4
        %v5523 = vrot.slane %v5054, 5
        %v5524 = vsel %vm1361, %v5522, %v5523
        %v5525 = vrot.slane %v5455, 5
        %v5526 = vrot.slane %v5525, 4
        %v5527 = vrot.slane %v5025, 5
        %v5528 = vsel %vm1361, %v5526, %v5527
        %v5529 = vrot.slane %v5527, 4
        %v5530 = vrot.slane %v5055, 5
        %v5531 = vsel %vm1361, %v5529, %v5530
        %v5532 = vrot.slane %v5456, 5
        %v5533 = vrot.slane %v5532, 4
        %v5534 = vrot.slane %v5027, 5
        %v5535 = vsel %vm1361, %v5533, %v5534
        %v5536 = vrot.slane %v5534, 4
        %v5537 = vrot.slane %v5056, 5
        %v5538 = vsel %vm1361, %v5536, %v5537
        %v5539 = vrot.slane %v5457, 5
        %v5540 = vrot.slane %v5539, 4
        %v5541 = vrot.slane %v5029, 5
        %v5542 = vsel %vm1361, %v5540, %v5541
        %v5543 = vrot.slane %v5541, 4
        %v5544 = vrot.slane %v5057, 5
        %v5545 = vsel %vm1361, %v5543, %v5544
        %v5546 = vrot.slane %v5458, 5
        %v5547 = vrot.slane %v5546, 4
        %v5548 = vrot.slane %v5031, 5
        %v5549 = vsel %vm1361, %v5547, %v5548
        %v5550 = vrot.slane %v5548, 4
        %v5551 = vrot.slane %v5058, 5
        %v5552 = vsel %vm1361, %v5550, %v5551
        %v5553 = vrot.slane %v5459, 5
        %v5554 = vrot.slane %v5553, 4
        %v5555 = vrot.slane %v5033, 5
        %v5556 = vsel %vm1361, %v5554, %v5555
        %v5557 = vrot.slane %v5555, 4
        %v5558 = vrot.slane %v5059, 5
        %v5559 = vsel %vm1361, %v5557, %v5558
        %v5560 = vrot.slane %v5460, 5
        %v5561 = vrot.slane %v5560, 4
        %v5562 = vrot.slane %v5035, 5
        %v5563 = vsel %vm1361, %v5561, %v5562
        %v5564 = vrot.slane %v5562, 4
        %v5565 = vrot.slane %v5060, 5
        %v5566 = vsel %vm1361, %v5564, %v5565
        %v5567 = vrot.slane %v5461, 5
        %v5568 = vrot.slane %v5567, 4
        %v5569 = vrot.slane %v5037, 5
        %v5570 = vsel %vm1361, %v5568, %v5569
        %v5571 = vrot.slane %v5569, 4
        %v5572 = vrot.slane %v5061, 5
        %v5573 = vsel %vm1361, %v5571, %v5572
        %v5574 = vrot.slane %v5462, 5
        %v5575 = vrot.slane %v5574, 4
        %v5576 = vrot.slane %v5039, 5
        %v5577 = vsel %vm1361, %v5575, %v5576
        %v5578 = vrot.slane %v5576, 4
        %v5579 = vrot.slane %v5062, 5
        %v5580 = vsel %vm1361, %v5578, %v5579
        %v5581 = vrot.slane %v5463, 5
        %v5582 = vrot.slane %v5581, 4
        %v5583 = vrot.slane %v5041, 5
        %v5584 = vsel %vm1361, %v5582, %v5583
        %v5585 = vrot.slane %v5583, 4
        %v5586 = vrot.slane %v5063, 5
        %v5587 = vsel %vm1361, %v5585, %v5586
        %v5588 = vrot.slane %v5464, 5
        %v5589 = vrot.slane %v5588, 4
        %v5590 = vrot.slane %v5043, 5
        %v5591 = vsel %vm1361, %v5589, %v5590
        %v5592 = vrot.slane %v5590, 4
        %v5593 = vrot.slane %v5064, 5
        %v5594 = vsel %vm1361, %v5592, %v5593
        %v5595 = vrot.slane %v5465, 5
        %v5596 = vrot.slane %v5595, 4
        %v5597 = vrot.slane %v5045, 5
        %v5598 = vsel %vm1361, %v5596, %v5597
        %v5599 = vrot.slane %v5597, 4
        %v5600 = vrot.slane %v5065, 5
        %v5601 = vsel %vm1361, %v5599, %v5600
        %v5602 = vrot.slane %v5466, 5
        %v5603 = vrot.slane %v5602, 4
        %v5604 = vrot.slane %v5047, 5
        %v5605 = vsel %vm1361, %v5603, %v5604
        %v5606 = vrot.slane %v5604, 4
        %v5607 = vrot.slane %v5066, 5
        %v5608 = vsel %vm1361, %v5606, %v5607
        %v5609 = vrot.slane %v5467, 5
        %v5610 = vrot.slane %v5609, 4
        %v5611 = vrot.slane %v5049, 5
        %v5612 = vsel %vm1361, %v5610, %v5611
        %v5613 = vrot.slane %v5611, 4
        %v5614 = vrot.slane %v5067, 5
        %v5615 = vsel %vm1361, %v5613, %v5614
        %v5616 = vrot.slane %v5468, 5
        %v5617 = vrot.slane %v5616, 4
        %v5618 = vrot.slane %v5051, 5
        %v5619 = vsel %vm1361, %v5617, %v5618
        %v5620 = vrot.slane %v5618, 4
        %v5621 = vrot.slane %v5068, 5
        %v5622 = vsel %vm1361, %v5620, %v5621
        %v5623 = vrot.slane %v5469, 5
        %v5624 = vrot.slane %v5623, 4
        %v5625 = vrot.slane %v5053, 5
        %v5626 = vsel %vm1361, %v5624, %v5625
        %v5627 = vrot.slane %v5625, 4
        %v5628 = vrot.slane %v5069, 5
        %v5629 = vsel %vm1361, %v5627, %v5628
        %s5630 = scalar_lea.vmem [#allocation3], 24
        %v5631 = vld [vmem:[%s5630] sm:$0xf]
        %v5632 = vld [vmem:[%s5630 + $0x4] sm:$0xf]
        %v5633 = vld [vmem:[%s5630 + $0xc] sm:$0xf]
        %v5634 = vld [vmem:[%s5630 + $0x10] sm:$0xf]
        %v5635 = vld [vmem:[%s5630 + $0x18] sm:$0xf]
        %v5636 = vld [vmem:[%s5630 + $0x1c] sm:$0xf]
        %v5637 = vld [vmem:[%s5630 + $0x24] sm:$0xf]
        %v5638 = vld [vmem:[%s5630 + $0x28] sm:$0xf]
        %v5639 = vld [vmem:[%s5630 + $0x30] sm:$0xf]
        %v5640 = vld [vmem:[%s5630 + $0x34] sm:$0xf]
        %v5641 = vld [vmem:[%s5630 + $0x3c] sm:$0xf]
        %v5642 = vld [vmem:[%s5630 + $0x40] sm:$0xf]
        %v5643 = vld [vmem:[%s5630 + $0x48] sm:$0xf]
        %v5644 = vld [vmem:[%s5630 + $0x4c] sm:$0xf]
        %v5645 = vld [vmem:[%s5630 + $0x54] sm:$0xf]
        %v5646 = vld [vmem:[%s5630 + $0x58] sm:$0xf]
        %v5647 = vld [vmem:[%s5630 + $0x60] sm:$0xf]
        %v5648 = vld [vmem:[%s5630 + $0x64] sm:$0xf]
        %v5649 = vld [vmem:[%s5630 + $0x6c] sm:$0xf]
        %v5650 = vld [vmem:[%s5630 + $0x70] sm:$0xf]
        %v5651 = vld [vmem:[%s5630 + $0x78] sm:$0xf]
        %v5652 = vld [vmem:[%s5630 + $0x7c] sm:$0xf]
        %v5653 = vld [vmem:[%s5630 + $0x84] sm:$0xf]
        %v5654 = vld [vmem:[%s5630 + $0x88] sm:$0xf]
        %v5655 = vld [vmem:[%s5630 + $0x90] sm:$0xf]
        %v5656 = vld [vmem:[%s5630 + $0x94] sm:$0xf]
        %v5657 = vld [vmem:[%s5630 + $0x9c] sm:$0xf]
        %v5658 = vld [vmem:[%s5630 + $0xa0] sm:$0xf]
        %v5659 = vld [vmem:[%s5630 + $0xa8] sm:$0xf]
        %v5660 = vld [vmem:[%s5630 + $0xac] sm:$0xf]
        %v5661 = vld [vmem:[%s5630 + $0xb4] sm:$0xf]
        %v5662 = vld [vmem:[%s5630 + $0xb8] sm:$0xf]
        %v5663 = vld [vmem:[%s5630 + $0x8] sm:$0x1]
        %v5664 = vld [vmem:[%s5630 + $0x14] sm:$0x1]
        %v5665 = vld [vmem:[%s5630 + $0x20] sm:$0x1]
        %v5666 = vld [vmem:[%s5630 + $0x2c] sm:$0x1]
        %v5667 = vld [vmem:[%s5630 + $0x38] sm:$0x1]
        %v5668 = vld [vmem:[%s5630 + $0x44] sm:$0x1]
        %v5669 = vld [vmem:[%s5630 + $0x50] sm:$0x1]
        %v5670 = vld [vmem:[%s5630 + $0x5c] sm:$0x1]
        %v5671 = vld [vmem:[%s5630 + $0x68] sm:$0x1]
        %v5672 = vld [vmem:[%s5630 + $0x74] sm:$0x1]
        %v5673 = vld [vmem:[%s5630 + $0x80] sm:$0x1]
        %v5674 = vld [vmem:[%s5630 + $0x8c] sm:$0x1]
        %v5675 = vld [vmem:[%s5630 + $0x98] sm:$0x1]
        %v5676 = vld [vmem:[%s5630 + $0xa4] sm:$0x1]
        %v5677 = vld [vmem:[%s5630 + $0xb0] sm:$0x1]
        %v5678 = vld [vmem:[%s5630 + $0xbc] sm:$0x1]
        %v5680 = vshrl.u32 %v5631, 16
        %v5682 = vrot.slane %v5680, 4
        %v5683 = vshll.u32 %v5631, 16
        %v5685 = vrot.slane %v5683, 5
        %v5686 = vor.u32 %v5682, %v5685
        %v5687 = vrot.slane %v5686, 4
        %v5689 = vshll.u32 %v5632, 16
        %v5691 = vrot.slane %v5689, 5
        %v5692 = vsel %vm910, %v5687, %v5691
        %v5693 = vshrl.u32 %v5632, 16
        %v5695 = vrot.slane %v5693, 4
        %v5696 = vor.u32 %v5695, %v5691
        %v5697 = vrot.slane %v5696, 4
        %v5699 = vshll.u32 %v5663, 16
        %v5701 = vrot.slane %v5699, 5
        %v5702 = vsel %vm910, %v5697, %v5701
        %v5704 = vshrl.u32 %v5633, 16
        %v5706 = vrot.slane %v5704, 4
        %v5707 = vshll.u32 %v5633, 16
        %v5709 = vrot.slane %v5707, 5
        %v5710 = vor.u32 %v5706, %v5709
        %v5711 = vrot.slane %v5710, 4
        %v5713 = vshll.u32 %v5634, 16
        %v5715 = vrot.slane %v5713, 5
        %v5716 = vsel %vm910, %v5711, %v5715
        %v5717 = vshrl.u32 %v5634, 16
        %v5719 = vrot.slane %v5717, 4
        %v5720 = vor.u32 %v5719, %v5715
        %v5721 = vrot.slane %v5720, 4
        %v5723 = vshll.u32 %v5664, 16
        %v5725 = vrot.slane %v5723, 5
        %v5726 = vsel %vm910, %v5721, %v5725
        %v5728 = vshrl.u32 %v5635, 16
        %v5730 = vrot.slane %v5728, 4
        %v5731 = vshll.u32 %v5635, 16
        %v5733 = vrot.slane %v5731, 5
        %v5734 = vor.u32 %v5730, %v5733
        %v5735 = vrot.slane %v5734, 4
        %v5737 = vshll.u32 %v5636, 16
        %v5739 = vrot.slane %v5737, 5
        %v5740 = vsel %vm910, %v5735, %v5739
        %v5741 = vshrl.u32 %v5636, 16
        %v5743 = vrot.slane %v5741, 4
        %v5744 = vor.u32 %v5743, %v5739
        %v5745 = vrot.slane %v5744, 4
        %v5747 = vshll.u32 %v5665, 16
        %v5749 = vrot.slane %v5747, 5
        %v5750 = vsel %vm910, %v5745, %v5749
        %v5752 = vshrl.u32 %v5637, 16
        %v5754 = vrot.slane %v5752, 4
        %v5755 = vshll.u32 %v5637, 16
        %v5757 = vrot.slane %v5755, 5
        %v5758 = vor.u32 %v5754, %v5757
        %v5759 = vrot.slane %v5758, 4
        %v5761 = vshll.u32 %v5638, 16
        %v5763 = vrot.slane %v5761, 5
        %v5764 = vsel %vm910, %v5759, %v5763
        %v5765 = vshrl.u32 %v5638, 16
        %v5767 = vrot.slane %v5765, 4
        %v5768 = vor.u32 %v5767, %v5763
        %v5769 = vrot.slane %v5768, 4
        %v5771 = vshll.u32 %v5666, 16
        %v5773 = vrot.slane %v5771, 5
        %v5774 = vsel %vm910, %v5769, %v5773
        %v5776 = vshrl.u32 %v5639, 16
        %v5778 = vrot.slane %v5776, 4
        %v5779 = vshll.u32 %v5639, 16
        %v5781 = vrot.slane %v5779, 5
        %v5782 = vor.u32 %v5778, %v5781
        %v5783 = vrot.slane %v5782, 4
        %v5785 = vshll.u32 %v5640, 16
        %v5787 = vrot.slane %v5785, 5
        %v5788 = vsel %vm910, %v5783, %v5787
        %v5789 = vshrl.u32 %v5640, 16
        %v5791 = vrot.slane %v5789, 4
        %v5792 = vor.u32 %v5791, %v5787
        %v5793 = vrot.slane %v5792, 4
        %v5795 = vshll.u32 %v5667, 16
        %v5797 = vrot.slane %v5795, 5
        %v5798 = vsel %vm910, %v5793, %v5797
        %v5800 = vshrl.u32 %v5641, 16
        %v5802 = vrot.slane %v5800, 4
        %v5803 = vshll.u32 %v5641, 16
        %v5805 = vrot.slane %v5803, 5
        %v5806 = vor.u32 %v5802, %v5805
        %v5807 = vrot.slane %v5806, 4
        %v5809 = vshll.u32 %v5642, 16
        %v5811 = vrot.slane %v5809, 5
        %v5812 = vsel %vm910, %v5807, %v5811
        %v5813 = vshrl.u32 %v5642, 16
        %v5815 = vrot.slane %v5813, 4
        %v5816 = vor.u32 %v5815, %v5811
        %v5817 = vrot.slane %v5816, 4
        %v5819 = vshll.u32 %v5668, 16
        %v5821 = vrot.slane %v5819, 5
        %v5822 = vsel %vm910, %v5817, %v5821
        %v5824 = vshrl.u32 %v5643, 16
        %v5826 = vrot.slane %v5824, 4
        %v5827 = vshll.u32 %v5643, 16
        %v5829 = vrot.slane %v5827, 5
        %v5830 = vor.u32 %v5826, %v5829
        %v5831 = vrot.slane %v5830, 4
        %v5833 = vshll.u32 %v5644, 16
        %v5835 = vrot.slane %v5833, 5
        %v5836 = vsel %vm910, %v5831, %v5835
        %v5837 = vshrl.u32 %v5644, 16
        %v5839 = vrot.slane %v5837, 4
        %v5840 = vor.u32 %v5839, %v5835
        %v5841 = vrot.slane %v5840, 4
        %v5843 = vshll.u32 %v5669, 16
        %v5845 = vrot.slane %v5843, 5
        %v5846 = vsel %vm910, %v5841, %v5845
        %v5848 = vshrl.u32 %v5645, 16
        %v5850 = vrot.slane %v5848, 4
        %v5851 = vshll.u32 %v5645, 16
        %v5853 = vrot.slane %v5851, 5
        %v5854 = vor.u32 %v5850, %v5853
        %v5855 = vrot.slane %v5854, 4
        %v5857 = vshll.u32 %v5646, 16
        %v5859 = vrot.slane %v5857, 5
        %v5860 = vsel %vm910, %v5855, %v5859
        %v5861 = vshrl.u32 %v5646, 16
        %v5863 = vrot.slane %v5861, 4
        %v5864 = vor.u32 %v5863, %v5859
        %v5865 = vrot.slane %v5864, 4
        %v5867 = vshll.u32 %v5670, 16
        %v5869 = vrot.slane %v5867, 5
        %v5870 = vsel %vm910, %v5865, %v5869
        %v5872 = vshrl.u32 %v5647, 16
        %v5874 = vrot.slane %v5872, 4
        %v5875 = vshll.u32 %v5647, 16
        %v5877 = vrot.slane %v5875, 5
        %v5878 = vor.u32 %v5874, %v5877
        %v5879 = vrot.slane %v5878, 4
        %v5881 = vshll.u32 %v5648, 16
        %v5883 = vrot.slane %v5881, 5
        %v5884 = vsel %vm910, %v5879, %v5883
        %v5885 = vshrl.u32 %v5648, 16
        %v5887 = vrot.slane %v5885, 4
        %v5888 = vor.u32 %v5887, %v5883
        %v5889 = vrot.slane %v5888, 4
        %v5891 = vshll.u32 %v5671, 16
        %v5893 = vrot.slane %v5891, 5
        %v5894 = vsel %vm910, %v5889, %v5893
        %v5896 = vshrl.u32 %v5649, 16
        %v5898 = vrot.slane %v5896, 4
        %v5899 = vshll.u32 %v5649, 16
        %v5901 = vrot.slane %v5899, 5
        %v5902 = vor.u32 %v5898, %v5901
        %v5903 = vrot.slane %v5902, 4
        %v5905 = vshll.u32 %v5650, 16
        %v5907 = vrot.slane %v5905, 5
        %v5908 = vsel %vm910, %v5903, %v5907
        %v5909 = vshrl.u32 %v5650, 16
        %v5911 = vrot.slane %v5909, 4
        %v5912 = vor.u32 %v5911, %v5907
        %v5913 = vrot.slane %v5912, 4
        %v5915 = vshll.u32 %v5672, 16
        %v5917 = vrot.slane %v5915, 5
        %v5918 = vsel %vm910, %v5913, %v5917
        %v5920 = vshrl.u32 %v5651, 16
        %v5922 = vrot.slane %v5920, 4
        %v5923 = vshll.u32 %v5651, 16
        %v5925 = vrot.slane %v5923, 5
        %v5926 = vor.u32 %v5922, %v5925
        %v5927 = vrot.slane %v5926, 4
        %v5929 = vshll.u32 %v5652, 16
        %v5931 = vrot.slane %v5929, 5
        %v5932 = vsel %vm910, %v5927, %v5931
        %v5933 = vshrl.u32 %v5652, 16
        %v5935 = vrot.slane %v5933, 4
        %v5936 = vor.u32 %v5935, %v5931
        %v5937 = vrot.slane %v5936, 4
        %v5939 = vshll.u32 %v5673, 16
        %v5941 = vrot.slane %v5939, 5
        %v5942 = vsel %vm910, %v5937, %v5941
        %v5944 = vshrl.u32 %v5653, 16
        %v5946 = vrot.slane %v5944, 4
        %v5947 = vshll.u32 %v5653, 16
        %v5949 = vrot.slane %v5947, 5
        %v5950 = vor.u32 %v5946, %v5949
        %v5951 = vrot.slane %v5950, 4
        %v5953 = vshll.u32 %v5654, 16
        %v5955 = vrot.slane %v5953, 5
        %v5956 = vsel %vm910, %v5951, %v5955
        %v5957 = vshrl.u32 %v5654, 16
        %v5959 = vrot.slane %v5957, 4
        %v5960 = vor.u32 %v5959, %v5955
        %v5961 = vrot.slane %v5960, 4
        %v5963 = vshll.u32 %v5674, 16
        %v5965 = vrot.slane %v5963, 5
        %v5966 = vsel %vm910, %v5961, %v5965
        %v5968 = vshrl.u32 %v5655, 16
        %v5970 = vrot.slane %v5968, 4
        %v5971 = vshll.u32 %v5655, 16
        %v5973 = vrot.slane %v5971, 5
        %v5974 = vor.u32 %v5970, %v5973
        %v5975 = vrot.slane %v5974, 4
        %v5977 = vshll.u32 %v5656, 16
        %v5979 = vrot.slane %v5977, 5
        %v5980 = vsel %vm910, %v5975, %v5979
        %v5981 = vshrl.u32 %v5656, 16
        %v5983 = vrot.slane %v5981, 4
        %v5984 = vor.u32 %v5983, %v5979
        %v5985 = vrot.slane %v5984, 4
        %v5987 = vshll.u32 %v5675, 16
        %v5989 = vrot.slane %v5987, 5
        %v5990 = vsel %vm910, %v5985, %v5989
        %v5992 = vshrl.u32 %v5657, 16
        %v5994 = vrot.slane %v5992, 4
        %v5995 = vshll.u32 %v5657, 16
        %v5997 = vrot.slane %v5995, 5
        %v5998 = vor.u32 %v5994, %v5997
        %v5999 = vrot.slane %v5998, 4
        %v6001 = vshll.u32 %v5658, 16
        %v6003 = vrot.slane %v6001, 5
        %v6004 = vsel %vm910, %v5999, %v6003
        %v6005 = vshrl.u32 %v5658, 16
        %v6007 = vrot.slane %v6005, 4
        %v6008 = vor.u32 %v6007, %v6003
        %v6009 = vrot.slane %v6008, 4
        %v6011 = vshll.u32 %v5676, 16
        %v6013 = vrot.slane %v6011, 5
        %v6014 = vsel %vm910, %v6009, %v6013
        %v6016 = vshrl.u32 %v5659, 16
        %v6018 = vrot.slane %v6016, 4
        %v6019 = vshll.u32 %v5659, 16
        %v6021 = vrot.slane %v6019, 5
        %v6022 = vor.u32 %v6018, %v6021
        %v6023 = vrot.slane %v6022, 4
        %v6025 = vshll.u32 %v5660, 16
        %v6027 = vrot.slane %v6025, 5
        %v6028 = vsel %vm910, %v6023, %v6027
        %v6029 = vshrl.u32 %v5660, 16
        %v6031 = vrot.slane %v6029, 4
        %v6032 = vor.u32 %v6031, %v6027
        %v6033 = vrot.slane %v6032, 4
        %v6035 = vshll.u32 %v5677, 16
        %v6037 = vrot.slane %v6035, 5
        %v6038 = vsel %vm910, %v6033, %v6037
        %v6040 = vshrl.u32 %v5661, 16
        %v6042 = vrot.slane %v6040, 4
        %v6043 = vshll.u32 %v5661, 16
        %v6045 = vrot.slane %v6043, 5
        %v6046 = vor.u32 %v6042, %v6045
        %v6047 = vrot.slane %v6046, 4
        %v6049 = vshll.u32 %v5662, 16
        %v6051 = vrot.slane %v6049, 5
        %v6052 = vsel %vm910, %v6047, %v6051
        %v6053 = vshrl.u32 %v5662, 16
        %v6055 = vrot.slane %v6053, 4
        %v6056 = vor.u32 %v6055, %v6051
        %v6057 = vrot.slane %v6056, 4
        %v6059 = vshll.u32 %v5678, 16
        %v6061 = vrot.slane %v6059, 5
        %v6062 = vsel %vm910, %v6057, %v6061
        %v6063 = vld [vmem:[%s5630] sm:$0xe]
        %v6064 = vld [vmem:[%s5630 + $0xc] sm:$0xe]
        %v6065 = vld [vmem:[%s5630 + $0x18] sm:$0xe]
        %v6066 = vld [vmem:[%s5630 + $0x24] sm:$0xe]
        %v6067 = vld [vmem:[%s5630 + $0x30] sm:$0xe]
        %v6068 = vld [vmem:[%s5630 + $0x3c] sm:$0xe]
        %v6069 = vld [vmem:[%s5630 + $0x48] sm:$0xe]
        %v6070 = vld [vmem:[%s5630 + $0x54] sm:$0xe]
        %v6071 = vld [vmem:[%s5630 + $0x60] sm:$0xe]
        %v6072 = vld [vmem:[%s5630 + $0x6c] sm:$0xe]
        %v6073 = vld [vmem:[%s5630 + $0x78] sm:$0xe]
        %v6074 = vld [vmem:[%s5630 + $0x84] sm:$0xe]
        %v6075 = vld [vmem:[%s5630 + $0x90] sm:$0xe]
        %v6076 = vld [vmem:[%s5630 + $0x9c] sm:$0xe]
        %v6077 = vld [vmem:[%s5630 + $0xa8] sm:$0xe]
        %v6078 = vld [vmem:[%s5630 + $0xb4] sm:$0xe]
        %v6127 = vrot.slane %v6063, 5
        %v6128 = vrot.slane %v6127, 4
        %v6129 = vrot.slane %v5632, 5
        %v6130 = vsel %vm1361, %v6128, %v6129
        %v6131 = vrot.slane %v6129, 4
        %v6132 = vrot.slane %v5663, 5
        %v6133 = vsel %vm1361, %v6131, %v6132
        %v6134 = vrot.slane %v6064, 5
        %v6135 = vrot.slane %v6134, 4
        %v6136 = vrot.slane %v5634, 5
        %v6137 = vsel %vm1361, %v6135, %v6136
        %v6138 = vrot.slane %v6136, 4
        %v6139 = vrot.slane %v5664, 5
        %v6140 = vsel %vm1361, %v6138, %v6139
        %v6141 = vrot.slane %v6065, 5
        %v6142 = vrot.slane %v6141, 4
        %v6143 = vrot.slane %v5636, 5
        %v6144 = vsel %vm1361, %v6142, %v6143
        %v6145 = vrot.slane %v6143, 4
        %v6146 = vrot.slane %v5665, 5
        %v6147 = vsel %vm1361, %v6145, %v6146
        %v6148 = vrot.slane %v6066, 5
        %v6149 = vrot.slane %v6148, 4
        %v6150 = vrot.slane %v5638, 5
        %v6151 = vsel %vm1361, %v6149, %v6150
        %v6152 = vrot.slane %v6150, 4
        %v6153 = vrot.slane %v5666, 5
        %v6154 = vsel %vm1361, %v6152, %v6153
        %v6155 = vrot.slane %v6067, 5
        %v6156 = vrot.slane %v6155, 4
        %v6157 = vrot.slane %v5640, 5
        %v6158 = vsel %vm1361, %v6156, %v6157
        %v6159 = vrot.slane %v6157, 4
        %v6160 = vrot.slane %v5667, 5
        %v6161 = vsel %vm1361, %v6159, %v6160
        %v6162 = vrot.slane %v6068, 5
        %v6163 = vrot.slane %v6162, 4
        %v6164 = vrot.slane %v5642, 5
        %v6165 = vsel %vm1361, %v6163, %v6164
        %v6166 = vrot.slane %v6164, 4
        %v6167 = vrot.slane %v5668, 5
        %v6168 = vsel %vm1361, %v6166, %v6167
        %v6169 = vrot.slane %v6069, 5
        %v6170 = vrot.slane %v6169, 4
        %v6171 = vrot.slane %v5644, 5
        %v6172 = vsel %vm1361, %v6170, %v6171
        %v6173 = vrot.slane %v6171, 4
        %v6174 = vrot.slane %v5669, 5
        %v6175 = vsel %vm1361, %v6173, %v6174
        %v6176 = vrot.slane %v6070, 5
        %v6177 = vrot.slane %v6176, 4
        %v6178 = vrot.slane %v5646, 5
        %v6179 = vsel %vm1361, %v6177, %v6178
        %v6180 = vrot.slane %v6178, 4
        %v6181 = vrot.slane %v5670, 5
        %v6182 = vsel %vm1361, %v6180, %v6181
        %v6183 = vrot.slane %v6071, 5
        %v6184 = vrot.slane %v6183, 4
        %v6185 = vrot.slane %v5648, 5
        %v6186 = vsel %vm1361, %v6184, %v6185
        %v6187 = vrot.slane %v6185, 4
        %v6188 = vrot.slane %v5671, 5
        %v6189 = vsel %vm1361, %v6187, %v6188
        %v6190 = vrot.slane %v6072, 5
        %v6191 = vrot.slane %v6190, 4
        %v6192 = vrot.slane %v5650, 5
        %v6193 = vsel %vm1361, %v6191, %v6192
        %v6194 = vrot.slane %v6192, 4
        %v6195 = vrot.slane %v5672, 5
        %v6196 = vsel %vm1361, %v6194, %v6195
        %v6197 = vrot.slane %v6073, 5
        %v6198 = vrot.slane %v6197, 4
        %v6199 = vrot.slane %v5652, 5
        %v6200 = vsel %vm1361, %v6198, %v6199
        %v6201 = vrot.slane %v6199, 4
        %v6202 = vrot.slane %v5673, 5
        %v6203 = vsel %vm1361, %v6201, %v6202
        %v6204 = vrot.slane %v6074, 5
        %v6205 = vrot.slane %v6204, 4
        %v6206 = vrot.slane %v5654, 5
        %v6207 = vsel %vm1361, %v6205, %v6206
        %v6208 = vrot.slane %v6206, 4
        %v6209 = vrot.slane %v5674, 5
        %v6210 = vsel %vm1361, %v6208, %v6209
        %v6211 = vrot.slane %v6075, 5
        %v6212 = vrot.slane %v6211, 4
        %v6213 = vrot.slane %v5656, 5
        %v6214 = vsel %vm1361, %v6212, %v6213
        %v6215 = vrot.slane %v6213, 4
        %v6216 = vrot.slane %v5675, 5
        %v6217 = vsel %vm1361, %v6215, %v6216
        %v6218 = vrot.slane %v6076, 5
        %v6219 = vrot.slane %v6218, 4
        %v6220 = vrot.slane %v5658, 5
        %v6221 = vsel %vm1361, %v6219, %v6220
        %v6222 = vrot.slane %v6220, 4
        %v6223 = vrot.slane %v5676, 5
        %v6224 = vsel %vm1361, %v6222, %v6223
        %v6225 = vrot.slane %v6077, 5
        %v6226 = vrot.slane %v6225, 4
        %v6227 = vrot.slane %v5660, 5
        %v6228 = vsel %vm1361, %v6226, %v6227
        %v6229 = vrot.slane %v6227, 4
        %v6230 = vrot.slane %v5677, 5
        %v6231 = vsel %vm1361, %v6229, %v6230
        %v6232 = vrot.slane %v6078, 5
        %v6233 = vrot.slane %v6232, 4
        %v6234 = vrot.slane %v5662, 5
        %v6235 = vsel %vm1361, %v6233, %v6234
        %v6236 = vrot.slane %v6234, 4
        %v6237 = vrot.slane %v5678, 5
        %v6238 = vsel %vm1361, %v6236, %v6237
        %v6255 = vunpack.c.l.b16 %v4414
        %v6256 = vunpack.c.l.b16 %v4415
        %v6257 = vunpack.c.l.b16 %v4416
        %v6258 = vunpack.c.l.b16 %v4417
        %v6259 = vunpack.c.l.b16 %v4418
        %v6260 = vunpack.c.l.b16 %v4419
        %v6261 = vunpack.c.l.b16 %v4420
        %v6262 = vunpack.c.l.b16 %v4421
        %v6263 = vunpack.c.l.b16 %v4422
        %v6264 = vunpack.c.l.b16 %v4423
        %v6265 = vunpack.c.l.b16 %v4424
        %v6266 = vunpack.c.l.b16 %v4425
        %v6267 = vunpack.c.l.b16 %v4426
        %v6268 = vunpack.c.l.b16 %v4427
        %v6269 = vunpack.c.l.b16 %v4428
        %v6270 = vunpack.c.l.b16 %v4429
        %v6271 = vunpack.c.l.b16 %v4430
        %v6272 = vunpack.c.l.b16 %v4431
        %v6273 = vunpack.c.l.b16 %v4432
        %v6274 = vunpack.c.l.b16 %v4433
        %v6275 = vunpack.c.l.b16 %v4434
        %v6276 = vunpack.c.l.b16 %v4435
        %v6277 = vunpack.c.l.b16 %v4436
        %v6278 = vunpack.c.l.b16 %v4437
        %v6279 = vunpack.c.l.b16 %v4438
        %v6280 = vunpack.c.l.b16 %v4439
        %v6281 = vunpack.c.l.b16 %v4440
        %v6282 = vunpack.c.l.b16 %v4441
        %v6283 = vunpack.c.l.b16 %v4442
        %v6284 = vunpack.c.l.b16 %v4443
        %v6285 = vunpack.c.l.b16 %v4444
        %v6286 = vunpack.c.l.b16 %v4445
        %v6287 = vpack.c.b16 %v6256, %v6255
        %v6288 = vpack.c.b16 %v6258, %v6257
        %v6289 = vpack.c.b16 %v6260, %v6259
        %v6290 = vpack.c.b16 %v6262, %v6261
        %v6291 = vpack.c.b16 %v6264, %v6263
        %v6292 = vpack.c.b16 %v6266, %v6265
        %v6293 = vpack.c.b16 %v6268, %v6267
        %v6294 = vpack.c.b16 %v6270, %v6269
        %v6295 = vpack.c.b16 %v6272, %v6271
        %v6296 = vpack.c.b16 %v6274, %v6273
        %v6297 = vpack.c.b16 %v6276, %v6275
        %v6298 = vpack.c.b16 %v6278, %v6277
        %v6299 = vpack.c.b16 %v6280, %v6279
        %v6300 = vpack.c.b16 %v6282, %v6281
        %v6301 = vpack.c.b16 %v6284, %v6283
        %v6302 = vpack.c.b16 %v6286, %v6285
        %v6303 = vunpack.c.l.b16 %v4475
        %v6304 = vunpack.c.l.b16 %v4485
        %v6305 = vunpack.c.l.b16 %v4499
        %v6306 = vunpack.c.l.b16 %v4509
        %v6307 = vunpack.c.l.b16 %v4523
        %v6308 = vunpack.c.l.b16 %v4533
        %v6309 = vunpack.c.l.b16 %v4547
        %v6310 = vunpack.c.l.b16 %v4557
        %v6311 = vunpack.c.l.b16 %v4571
        %v6312 = vunpack.c.l.b16 %v4581
        %v6313 = vunpack.c.l.b16 %v4595
        %v6314 = vunpack.c.l.b16 %v4605
        %v6315 = vunpack.c.l.b16 %v4619
        %v6316 = vunpack.c.l.b16 %v4629
        %v6317 = vunpack.c.l.b16 %v4643
        %v6318 = vunpack.c.l.b16 %v4653
        %v6319 = vunpack.c.l.b16 %v4667
        %v6320 = vunpack.c.l.b16 %v4677
        %v6321 = vunpack.c.l.b16 %v4691
        %v6322 = vunpack.c.l.b16 %v4701
        %v6323 = vunpack.c.l.b16 %v4715
        %v6324 = vunpack.c.l.b16 %v4725
        %v6325 = vunpack.c.l.b16 %v4739
        %v6326 = vunpack.c.l.b16 %v4749
        %v6327 = vunpack.c.l.b16 %v4763
        %v6328 = vunpack.c.l.b16 %v4773
        %v6329 = vunpack.c.l.b16 %v4787
        %v6330 = vunpack.c.l.b16 %v4797
        %v6331 = vunpack.c.l.b16 %v4811
        %v6332 = vunpack.c.l.b16 %v4821
        %v6333 = vunpack.c.l.b16 %v4835
        %v6334 = vunpack.c.l.b16 %v4845
        %v6335 = vpack.c.b16 %v6304, %v6303
        %v6336 = vpack.c.b16 %v6306, %v6305
        %v6337 = vpack.c.b16 %v6308, %v6307
        %v6338 = vpack.c.b16 %v6310, %v6309
        %v6339 = vpack.c.b16 %v6312, %v6311
        %v6340 = vpack.c.b16 %v6314, %v6313
        %v6341 = vpack.c.b16 %v6316, %v6315
        %v6342 = vpack.c.b16 %v6318, %v6317
        %v6343 = vpack.c.b16 %v6320, %v6319
        %v6344 = vpack.c.b16 %v6322, %v6321
        %v6345 = vpack.c.b16 %v6324, %v6323
        %v6346 = vpack.c.b16 %v6326, %v6325
        %v6347 = vpack.c.b16 %v6328, %v6327
        %v6348 = vpack.c.b16 %v6330, %v6329
        %v6349 = vpack.c.b16 %v6332, %v6331
        %v6350 = vpack.c.b16 %v6334, %v6333
        %6351 = vrot.lane.b32.xlu0 %v6335, 32
        %v6352 = vpop.permute.xlu0 %6351
        %6353 = vrot.lane.b32.xlu0 %v6336, 32
        %v6354 = vpop.permute.xlu0 %6353
        %6355 = vrot.lane.b32.xlu0 %v6337, 32
        %v6356 = vpop.permute.xlu0 %6355
        %6357 = vrot.lane.b32.xlu0 %v6338, 32
        %v6358 = vpop.permute.xlu0 %6357
        %6359 = vrot.lane.b32.xlu0 %v6339, 32
        %v6360 = vpop.permute.xlu0 %6359
        %6361 = vrot.lane.b32.xlu0 %v6340, 32
        %v6362 = vpop.permute.xlu0 %6361
        %6363 = vrot.lane.b32.xlu0 %v6341, 32
        %v6364 = vpop.permute.xlu0 %6363
        %6365 = vrot.lane.b32.xlu0 %v6342, 32
        %v6366 = vpop.permute.xlu0 %6365
        %6367 = vrot.lane.b32.xlu0 %v6343, 32
        %v6368 = vpop.permute.xlu0 %6367
        %6369 = vrot.lane.b32.xlu0 %v6344, 32
        %v6370 = vpop.permute.xlu0 %6369
        %6371 = vrot.lane.b32.xlu0 %v6345, 32
        %v6372 = vpop.permute.xlu0 %6371
        %6373 = vrot.lane.b32.xlu0 %v6346, 32
        %v6374 = vpop.permute.xlu0 %6373
        %6375 = vrot.lane.b32.xlu0 %v6347, 32
        %v6376 = vpop.permute.xlu0 %6375
        %6377 = vrot.lane.b32.xlu0 %v6348, 32
        %v6378 = vpop.permute.xlu0 %6377
        %6379 = vrot.lane.b32.xlu0 %v6349, 32
        %v6380 = vpop.permute.xlu0 %6379
        %6381 = vrot.lane.b32.xlu0 %v6350, 32
        %v6382 = vpop.permute.xlu0 %6381
        %v6383 = vunpack.c.l.b16 %v4913
        %v6384 = vunpack.c.l.b16 %v4916
        %v6385 = vunpack.c.l.b16 %v4920
        %v6386 = vunpack.c.l.b16 %v4923
        %v6387 = vunpack.c.l.b16 %v4927
        %v6388 = vunpack.c.l.b16 %v4930
        %v6389 = vunpack.c.l.b16 %v4934
        %v6390 = vunpack.c.l.b16 %v4937
        %v6391 = vunpack.c.l.b16 %v4941
        %v6392 = vunpack.c.l.b16 %v4944
        %v6393 = vunpack.c.l.b16 %v4948
        %v6394 = vunpack.c.l.b16 %v4951
        %v6395 = vunpack.c.l.b16 %v4955
        %v6396 = vunpack.c.l.b16 %v4958
        %v6397 = vunpack.c.l.b16 %v4962
        %v6398 = vunpack.c.l.b16 %v4965
        %v6399 = vunpack.c.l.b16 %v4969
        %v6400 = vunpack.c.l.b16 %v4972
        %v6401 = vunpack.c.l.b16 %v4976
        %v6402 = vunpack.c.l.b16 %v4979
        %v6403 = vunpack.c.l.b16 %v4983
        %v6404 = vunpack.c.l.b16 %v4986
        %v6405 = vunpack.c.l.b16 %v4990
        %v6406 = vunpack.c.l.b16 %v4993
        %v6407 = vunpack.c.l.b16 %v4997
        %v6408 = vunpack.c.l.b16 %v5000
        %v6409 = vunpack.c.l.b16 %v5004
        %v6410 = vunpack.c.l.b16 %v5007
        %v6411 = vunpack.c.l.b16 %v5011
        %v6412 = vunpack.c.l.b16 %v5014
        %v6413 = vunpack.c.l.b16 %v5018
        %v6414 = vunpack.c.l.b16 %v5021
        %v6415 = vpack.c.b16 %v6384, %v6383
        %v6416 = vpack.c.b16 %v6386, %v6385
        %v6417 = vpack.c.b16 %v6388, %v6387
        %v6418 = vpack.c.b16 %v6390, %v6389
        %v6419 = vpack.c.b16 %v6392, %v6391
        %v6420 = vpack.c.b16 %v6394, %v6393
        %v6421 = vpack.c.b16 %v6396, %v6395
        %v6422 = vpack.c.b16 %v6398, %v6397
        %v6423 = vpack.c.b16 %v6400, %v6399
        %v6424 = vpack.c.b16 %v6402, %v6401
        %v6425 = vpack.c.b16 %v6404, %v6403
        %v6426 = vpack.c.b16 %v6406, %v6405
        %v6427 = vpack.c.b16 %v6408, %v6407
        %v6428 = vpack.c.b16 %v6410, %v6409
        %v6429 = vpack.c.b16 %v6412, %v6411
        %v6430 = vpack.c.b16 %v6414, %v6413
        %6431 = vrot.lane.b32.xlu0 %v6415, 64
        %v6432 = vpop.permute.xlu0 %6431
        %6433 = vrot.lane.b32.xlu0 %v6416, 64
        %v6434 = vpop.permute.xlu0 %6433
        %6435 = vrot.lane.b32.xlu0 %v6417, 64
        %v6436 = vpop.permute.xlu0 %6435
        %6437 = vrot.lane.b32.xlu0 %v6418, 64
        %v6438 = vpop.permute.xlu0 %6437
        %6439 = vrot.lane.b32.xlu0 %v6419, 64
        %v6440 = vpop.permute.xlu0 %6439
        %6441 = vrot.lane.b32.xlu0 %v6420, 64
        %v6442 = vpop.permute.xlu0 %6441
        %6443 = vrot.lane.b32.xlu0 %v6421, 64
        %v6444 = vpop.permute.xlu0 %6443
        %6445 = vrot.lane.b32.xlu0 %v6422, 64
        %v6446 = vpop.permute.xlu0 %6445
        %6447 = vrot.lane.b32.xlu0 %v6423, 64
        %v6448 = vpop.permute.xlu0 %6447
        %6449 = vrot.lane.b32.xlu0 %v6424, 64
        %v6450 = vpop.permute.xlu0 %6449
        %6451 = vrot.lane.b32.xlu0 %v6425, 64
        %v6452 = vpop.permute.xlu0 %6451
        %6453 = vrot.lane.b32.xlu0 %v6426, 64
        %v6454 = vpop.permute.xlu0 %6453
        %6455 = vrot.lane.b32.xlu0 %v6427, 64
        %v6456 = vpop.permute.xlu0 %6455
        %6457 = vrot.lane.b32.xlu0 %v6428, 64
        %v6458 = vpop.permute.xlu0 %6457
        %6459 = vrot.lane.b32.xlu0 %v6429, 64
        %v6460 = vpop.permute.xlu0 %6459
        %6461 = vrot.lane.b32.xlu0 %v6430, 64
        %v6462 = vpop.permute.xlu0 %6461
        %v6479 = vunpack.c.l.b16 %v5022
        %v6480 = vunpack.c.l.b16 %v5023
        %v6481 = vunpack.c.l.b16 %v5024
        %v6482 = vunpack.c.l.b16 %v5025
        %v6483 = vunpack.c.l.b16 %v5026
        %v6484 = vunpack.c.l.b16 %v5027
        %v6485 = vunpack.c.l.b16 %v5028
        %v6486 = vunpack.c.l.b16 %v5029
        %v6487 = vunpack.c.l.b16 %v5030
        %v6488 = vunpack.c.l.b16 %v5031
        %v6489 = vunpack.c.l.b16 %v5032
        %v6490 = vunpack.c.l.b16 %v5033
        %v6491 = vunpack.c.l.b16 %v5034
        %v6492 = vunpack.c.l.b16 %v5035
        %v6493 = vunpack.c.l.b16 %v5036
        %v6494 = vunpack.c.l.b16 %v5037
        %v6495 = vunpack.c.l.b16 %v5038
        %v6496 = vunpack.c.l.b16 %v5039
        %v6497 = vunpack.c.l.b16 %v5040
        %v6498 = vunpack.c.l.b16 %v5041
        %v6499 = vunpack.c.l.b16 %v5042
        %v6500 = vunpack.c.l.b16 %v5043
        %v6501 = vunpack.c.l.b16 %v5044
        %v6502 = vunpack.c.l.b16 %v5045
        %v6503 = vunpack.c.l.b16 %v5046
        %v6504 = vunpack.c.l.b16 %v5047
        %v6505 = vunpack.c.l.b16 %v5048
        %v6506 = vunpack.c.l.b16 %v5049
        %v6507 = vunpack.c.l.b16 %v5050
        %v6508 = vunpack.c.l.b16 %v5051
        %v6509 = vunpack.c.l.b16 %v5052
        %v6510 = vunpack.c.l.b16 %v5053
        %v6511 = vpack.c.b16 %v6480, %v6479
        %v6512 = vpack.c.b16 %v6482, %v6481
        %v6513 = vpack.c.b16 %v6484, %v6483
        %v6514 = vpack.c.b16 %v6486, %v6485
        %v6515 = vpack.c.b16 %v6488, %v6487
        %v6516 = vpack.c.b16 %v6490, %v6489
        %v6517 = vpack.c.b16 %v6492, %v6491
        %v6518 = vpack.c.b16 %v6494, %v6493
        %v6519 = vpack.c.b16 %v6496, %v6495
        %v6520 = vpack.c.b16 %v6498, %v6497
        %v6521 = vpack.c.b16 %v6500, %v6499
        %v6522 = vpack.c.b16 %v6502, %v6501
        %v6523 = vpack.c.b16 %v6504, %v6503
        %v6524 = vpack.c.b16 %v6506, %v6505
        %v6525 = vpack.c.b16 %v6508, %v6507
        %v6526 = vpack.c.b16 %v6510, %v6509
        %6527 = vrot.lane.b32.xlu0 %v6511, 96
        %v6528 = vpop.permute.xlu0 %6527
        %6529 = vrot.lane.b32.xlu0 %v6512, 96
        %v6530 = vpop.permute.xlu0 %6529
        %6531 = vrot.lane.b32.xlu0 %v6513, 96
        %v6532 = vpop.permute.xlu0 %6531
        %6533 = vrot.lane.b32.xlu0 %v6514, 96
        %v6534 = vpop.permute.xlu0 %6533
        %6535 = vrot.lane.b32.xlu0 %v6515, 96
        %v6536 = vpop.permute.xlu0 %6535
        %6537 = vrot.lane.b32.xlu0 %v6516, 96
        %v6538 = vpop.permute.xlu0 %6537
        %6539 = vrot.lane.b32.xlu0 %v6517, 96
        %v6540 = vpop.permute.xlu0 %6539
        %6541 = vrot.lane.b32.xlu0 %v6518, 96
        %v6542 = vpop.permute.xlu0 %6541
        %6543 = vrot.lane.b32.xlu0 %v6519, 96
        %v6544 = vpop.permute.xlu0 %6543
        %6545 = vrot.lane.b32.xlu0 %v6520, 96
        %v6546 = vpop.permute.xlu0 %6545
        %6547 = vrot.lane.b32.xlu0 %v6521, 96
        %v6548 = vpop.permute.xlu0 %6547
        %6549 = vrot.lane.b32.xlu0 %v6522, 96
        %v6550 = vpop.permute.xlu0 %6549
        %6551 = vrot.lane.b32.xlu0 %v6523, 96
        %v6552 = vpop.permute.xlu0 %6551
        %6553 = vrot.lane.b32.xlu0 %v6524, 96
        %v6554 = vpop.permute.xlu0 %6553
        %6555 = vrot.lane.b32.xlu0 %v6525, 96
        %v6556 = vpop.permute.xlu0 %6555
        %6557 = vrot.lane.b32.xlu0 %v6526, 96
        %v6558 = vpop.permute.xlu0 %6557
        %v6559 = vunpack.c.l.b16 %v5083
        %v6560 = vunpack.c.l.b16 %v5093
        %v6561 = vunpack.c.l.b16 %v5107
        %v6562 = vunpack.c.l.b16 %v5117
        %v6563 = vunpack.c.l.b16 %v5131
        %v6564 = vunpack.c.l.b16 %v5141
        %v6565 = vunpack.c.l.b16 %v5155
        %v6566 = vunpack.c.l.b16 %v5165
        %v6567 = vunpack.c.l.b16 %v5179
        %v6568 = vunpack.c.l.b16 %v5189
        %v6569 = vunpack.c.l.b16 %v5203
        %v6570 = vunpack.c.l.b16 %v5213
        %v6571 = vunpack.c.l.b16 %v5227
        %v6572 = vunpack.c.l.b16 %v5237
        %v6573 = vunpack.c.l.b16 %v5251
        %v6574 = vunpack.c.l.b16 %v5261
        %v6575 = vunpack.c.l.b16 %v5275
        %v6576 = vunpack.c.l.b16 %v5285
        %v6577 = vunpack.c.l.b16 %v5299
        %v6578 = vunpack.c.l.b16 %v5309
        %v6579 = vunpack.c.l.b16 %v5323
        %v6580 = vunpack.c.l.b16 %v5333
        %v6581 = vunpack.c.l.b16 %v5347
        %v6582 = vunpack.c.l.b16 %v5357
        %v6583 = vunpack.c.l.b16 %v5371
        %v6584 = vunpack.c.l.b16 %v5381
        %v6585 = vunpack.c.l.b16 %v5395
        %v6586 = vunpack.c.l.b16 %v5405
        %v6587 = vunpack.c.l.b16 %v5419
        %v6588 = vunpack.c.l.b16 %v5429
        %v6589 = vunpack.c.l.b16 %v5443
        %v6590 = vunpack.c.l.b16 %v5453
        %v6591 = vpack.c.b16 %v6560, %v6559
        %v6592 = vpack.c.b16 %v6562, %v6561
        %v6593 = vpack.c.b16 %v6564, %v6563
        %v6594 = vpack.c.b16 %v6566, %v6565
        %v6595 = vpack.c.b16 %v6568, %v6567
        %v6596 = vpack.c.b16 %v6570, %v6569
        %v6597 = vpack.c.b16 %v6572, %v6571
        %v6598 = vpack.c.b16 %v6574, %v6573
        %v6599 = vpack.c.b16 %v6576, %v6575
        %v6600 = vpack.c.b16 %v6578, %v6577
        %v6601 = vpack.c.b16 %v6580, %v6579
        %v6602 = vpack.c.b16 %v6582, %v6581
        %v6603 = vpack.c.b16 %v6584, %v6583
        %v6604 = vpack.c.b16 %v6586, %v6585
        %v6605 = vpack.c.b16 %v6588, %v6587
        %v6606 = vpack.c.b16 %v6590, %v6589
        %v6607 = vunpack.c.l.b16 %v5521
        %v6608 = vunpack.c.l.b16 %v5524
        %v6609 = vunpack.c.l.b16 %v5528
        %v6610 = vunpack.c.l.b16 %v5531
        %v6611 = vunpack.c.l.b16 %v5535
        %v6612 = vunpack.c.l.b16 %v5538
        %v6613 = vunpack.c.l.b16 %v5542
        %v6614 = vunpack.c.l.b16 %v5545
        %v6615 = vunpack.c.l.b16 %v5549
        %v6616 = vunpack.c.l.b16 %v5552
        %v6617 = vunpack.c.l.b16 %v5556
        %v6618 = vunpack.c.l.b16 %v5559
        %v6619 = vunpack.c.l.b16 %v5563
        %v6620 = vunpack.c.l.b16 %v5566
        %v6621 = vunpack.c.l.b16 %v5570
        %v6622 = vunpack.c.l.b16 %v5573
        %v6623 = vunpack.c.l.b16 %v5577
        %v6624 = vunpack.c.l.b16 %v5580
        %v6625 = vunpack.c.l.b16 %v5584
        %v6626 = vunpack.c.l.b16 %v5587
        %v6627 = vunpack.c.l.b16 %v5591
        %v6628 = vunpack.c.l.b16 %v5594
        %v6629 = vunpack.c.l.b16 %v5598
        %v6630 = vunpack.c.l.b16 %v5601
        %v6631 = vunpack.c.l.b16 %v5605
        %v6632 = vunpack.c.l.b16 %v5608
        %v6633 = vunpack.c.l.b16 %v5612
        %v6634 = vunpack.c.l.b16 %v5615
        %v6635 = vunpack.c.l.b16 %v5619
        %v6636 = vunpack.c.l.b16 %v5622
        %v6637 = vunpack.c.l.b16 %v5626
        %v6638 = vunpack.c.l.b16 %v5629
        %v6639 = vpack.c.b16 %v6608, %v6607
        %v6640 = vpack.c.b16 %v6610, %v6609
        %v6641 = vpack.c.b16 %v6612, %v6611
        %v6642 = vpack.c.b16 %v6614, %v6613
        %v6643 = vpack.c.b16 %v6616, %v6615
        %v6644 = vpack.c.b16 %v6618, %v6617
        %v6645 = vpack.c.b16 %v6620, %v6619
        %v6646 = vpack.c.b16 %v6622, %v6621
        %v6647 = vpack.c.b16 %v6624, %v6623
        %v6648 = vpack.c.b16 %v6626, %v6625
        %v6649 = vpack.c.b16 %v6628, %v6627
        %v6650 = vpack.c.b16 %v6630, %v6629
        %v6651 = vpack.c.b16 %v6632, %v6631
        %v6652 = vpack.c.b16 %v6634, %v6633
        %v6653 = vpack.c.b16 %v6636, %v6635
        %v6654 = vpack.c.b16 %v6638, %v6637
        %6655 = vrot.lane.b32.xlu0 %v6639, 32
        %v6656 = vpop.permute.xlu0 %6655
        %6657 = vrot.lane.b32.xlu0 %v6640, 32
        %v6658 = vpop.permute.xlu0 %6657
        %6659 = vrot.lane.b32.xlu0 %v6641, 32
        %v6660 = vpop.permute.xlu0 %6659
        %6661 = vrot.lane.b32.xlu0 %v6642, 32
        %v6662 = vpop.permute.xlu0 %6661
        %6663 = vrot.lane.b32.xlu0 %v6643, 32
        %v6664 = vpop.permute.xlu0 %6663
        %6665 = vrot.lane.b32.xlu0 %v6644, 32
        %v6666 = vpop.permute.xlu0 %6665
        %6667 = vrot.lane.b32.xlu0 %v6645, 32
        %v6668 = vpop.permute.xlu0 %6667
        %6669 = vrot.lane.b32.xlu0 %v6646, 32
        %v6670 = vpop.permute.xlu0 %6669
        %6671 = vrot.lane.b32.xlu0 %v6647, 32
        %v6672 = vpop.permute.xlu0 %6671
        %6673 = vrot.lane.b32.xlu0 %v6648, 32
        %v6674 = vpop.permute.xlu0 %6673
        %6675 = vrot.lane.b32.xlu0 %v6649, 32
        %v6676 = vpop.permute.xlu0 %6675
        %6677 = vrot.lane.b32.xlu0 %v6650, 32
        %v6678 = vpop.permute.xlu0 %6677
        %6679 = vrot.lane.b32.xlu0 %v6651, 32
        %v6680 = vpop.permute.xlu0 %6679
        %6681 = vrot.lane.b32.xlu0 %v6652, 32
        %v6682 = vpop.permute.xlu0 %6681
        %6683 = vrot.lane.b32.xlu0 %v6653, 32
        %v6684 = vpop.permute.xlu0 %6683
        %6685 = vrot.lane.b32.xlu0 %v6654, 32
        %v6686 = vpop.permute.xlu0 %6685
        %v6703 = vunpack.c.l.b16 %v5631
        %v6704 = vunpack.c.l.b16 %v5632
        %v6705 = vunpack.c.l.b16 %v5633
        %v6706 = vunpack.c.l.b16 %v5634
        %v6707 = vunpack.c.l.b16 %v5635
        %v6708 = vunpack.c.l.b16 %v5636
        %v6709 = vunpack.c.l.b16 %v5637
        %v6710 = vunpack.c.l.b16 %v5638
        %v6711 = vunpack.c.l.b16 %v5639
        %v6712 = vunpack.c.l.b16 %v5640
        %v6713 = vunpack.c.l.b16 %v5641
        %v6714 = vunpack.c.l.b16 %v5642
        %v6715 = vunpack.c.l.b16 %v5643
        %v6716 = vunpack.c.l.b16 %v5644
        %v6717 = vunpack.c.l.b16 %v5645
        %v6718 = vunpack.c.l.b16 %v5646
        %v6719 = vunpack.c.l.b16 %v5647
        %v6720 = vunpack.c.l.b16 %v5648
        %v6721 = vunpack.c.l.b16 %v5649
        %v6722 = vunpack.c.l.b16 %v5650
        %v6723 = vunpack.c.l.b16 %v5651
        %v6724 = vunpack.c.l.b16 %v5652
        %v6725 = vunpack.c.l.b16 %v5653
        %v6726 = vunpack.c.l.b16 %v5654
        %v6727 = vunpack.c.l.b16 %v5655
        %v6728 = vunpack.c.l.b16 %v5656
        %v6729 = vunpack.c.l.b16 %v5657
        %v6730 = vunpack.c.l.b16 %v5658
        %v6731 = vunpack.c.l.b16 %v5659
        %v6732 = vunpack.c.l.b16 %v5660
        %v6733 = vunpack.c.l.b16 %v5661
        %v6734 = vunpack.c.l.b16 %v5662
        %v6735 = vpack.c.b16 %v6704, %v6703
        %v6736 = vpack.c.b16 %v6706, %v6705
        %v6737 = vpack.c.b16 %v6708, %v6707
        %v6738 = vpack.c.b16 %v6710, %v6709
        %v6739 = vpack.c.b16 %v6712, %v6711
        %v6740 = vpack.c.b16 %v6714, %v6713
        %v6741 = vpack.c.b16 %v6716, %v6715
        %v6742 = vpack.c.b16 %v6718, %v6717
        %v6743 = vpack.c.b16 %v6720, %v6719
        %v6744 = vpack.c.b16 %v6722, %v6721
        %v6745 = vpack.c.b16 %v6724, %v6723
        %v6746 = vpack.c.b16 %v6726, %v6725
        %v6747 = vpack.c.b16 %v6728, %v6727
        %v6748 = vpack.c.b16 %v6730, %v6729
        %v6749 = vpack.c.b16 %v6732, %v6731
        %v6750 = vpack.c.b16 %v6734, %v6733
        %6751 = vrot.lane.b32.xlu0 %v6735, 64
        %v6752 = vpop.permute.xlu0 %6751
        %6753 = vrot.lane.b32.xlu0 %v6736, 64
        %v6754 = vpop.permute.xlu0 %6753
        %6755 = vrot.lane.b32.xlu0 %v6737, 64
        %v6756 = vpop.permute.xlu0 %6755
        %6757 = vrot.lane.b32.xlu0 %v6738, 64
        %v6758 = vpop.permute.xlu0 %6757
        %6759 = vrot.lane.b32.xlu0 %v6739, 64
        %v6760 = vpop.permute.xlu0 %6759
        %6761 = vrot.lane.b32.xlu0 %v6740, 64
        %v6762 = vpop.permute.xlu0 %6761
        %6763 = vrot.lane.b32.xlu0 %v6741, 64
        %v6764 = vpop.permute.xlu0 %6763
        %6765 = vrot.lane.b32.xlu0 %v6742, 64
        %v6766 = vpop.permute.xlu0 %6765
        %6767 = vrot.lane.b32.xlu0 %v6743, 64
        %v6768 = vpop.permute.xlu0 %6767
        %6769 = vrot.lane.b32.xlu0 %v6744, 64
        %v6770 = vpop.permute.xlu0 %6769
        %6771 = vrot.lane.b32.xlu0 %v6745, 64
        %v6772 = vpop.permute.xlu0 %6771
        %6773 = vrot.lane.b32.xlu0 %v6746, 64
        %v6774 = vpop.permute.xlu0 %6773
        %6775 = vrot.lane.b32.xlu0 %v6747, 64
        %v6776 = vpop.permute.xlu0 %6775
        %6777 = vrot.lane.b32.xlu0 %v6748, 64
        %v6778 = vpop.permute.xlu0 %6777
        %6779 = vrot.lane.b32.xlu0 %v6749, 64
        %v6780 = vpop.permute.xlu0 %6779
        %6781 = vrot.lane.b32.xlu0 %v6750, 64
        %v6782 = vpop.permute.xlu0 %6781
        %v6783 = vunpack.c.l.b16 %v5692
        %v6784 = vunpack.c.l.b16 %v5702
        %v6785 = vunpack.c.l.b16 %v5716
        %v6786 = vunpack.c.l.b16 %v5726
        %v6787 = vunpack.c.l.b16 %v5740
        %v6788 = vunpack.c.l.b16 %v5750
        %v6789 = vunpack.c.l.b16 %v5764
        %v6790 = vunpack.c.l.b16 %v5774
        %v6791 = vunpack.c.l.b16 %v5788
        %v6792 = vunpack.c.l.b16 %v5798
        %v6793 = vunpack.c.l.b16 %v5812
        %v6794 = vunpack.c.l.b16 %v5822
        %v6795 = vunpack.c.l.b16 %v5836
        %v6796 = vunpack.c.l.b16 %v5846
        %v6797 = vunpack.c.l.b16 %v5860
        %v6798 = vunpack.c.l.b16 %v5870
        %v6799 = vunpack.c.l.b16 %v5884
        %v6800 = vunpack.c.l.b16 %v5894
        %v6801 = vunpack.c.l.b16 %v5908
        %v6802 = vunpack.c.l.b16 %v5918
        %v6803 = vunpack.c.l.b16 %v5932
        %v6804 = vunpack.c.l.b16 %v5942
        %v6805 = vunpack.c.l.b16 %v5956
        %v6806 = vunpack.c.l.b16 %v5966
        %v6807 = vunpack.c.l.b16 %v5980
        %v6808 = vunpack.c.l.b16 %v5990
        %v6809 = vunpack.c.l.b16 %v6004
        %v6810 = vunpack.c.l.b16 %v6014
        %v6811 = vunpack.c.l.b16 %v6028
        %v6812 = vunpack.c.l.b16 %v6038
        %v6813 = vunpack.c.l.b16 %v6052
        %v6814 = vunpack.c.l.b16 %v6062
        %v6815 = vpack.c.b16 %v6784, %v6783
        %v6816 = vpack.c.b16 %v6786, %v6785
        %v6817 = vpack.c.b16 %v6788, %v6787
        %v6818 = vpack.c.b16 %v6790, %v6789
        %v6819 = vpack.c.b16 %v6792, %v6791
        %v6820 = vpack.c.b16 %v6794, %v6793
        %v6821 = vpack.c.b16 %v6796, %v6795
        %v6822 = vpack.c.b16 %v6798, %v6797
        %v6823 = vpack.c.b16 %v6800, %v6799
        %v6824 = vpack.c.b16 %v6802, %v6801
        %v6825 = vpack.c.b16 %v6804, %v6803
        %v6826 = vpack.c.b16 %v6806, %v6805
        %v6827 = vpack.c.b16 %v6808, %v6807
        %v6828 = vpack.c.b16 %v6810, %v6809
        %v6829 = vpack.c.b16 %v6812, %v6811
        %v6830 = vpack.c.b16 %v6814, %v6813
        %6831 = vrot.lane.b32.xlu0 %v6815, 96
        %v6832 = vpop.permute.xlu0 %6831
        %6833 = vrot.lane.b32.xlu0 %v6816, 96
        %v6834 = vpop.permute.xlu0 %6833
        %6835 = vrot.lane.b32.xlu0 %v6817, 96
        %v6836 = vpop.permute.xlu0 %6835
        %6837 = vrot.lane.b32.xlu0 %v6818, 96
        %v6838 = vpop.permute.xlu0 %6837
        %6839 = vrot.lane.b32.xlu0 %v6819, 96
        %v6840 = vpop.permute.xlu0 %6839
        %6841 = vrot.lane.b32.xlu0 %v6820, 96
        %v6842 = vpop.permute.xlu0 %6841
        %6843 = vrot.lane.b32.xlu0 %v6821, 96
        %v6844 = vpop.permute.xlu0 %6843
        %6845 = vrot.lane.b32.xlu0 %v6822, 96
        %v6846 = vpop.permute.xlu0 %6845
        %6847 = vrot.lane.b32.xlu0 %v6823, 96
        %v6848 = vpop.permute.xlu0 %6847
        %6849 = vrot.lane.b32.xlu0 %v6824, 96
        %v6850 = vpop.permute.xlu0 %6849
        %6851 = vrot.lane.b32.xlu0 %v6825, 96
        %v6852 = vpop.permute.xlu0 %6851
        %6853 = vrot.lane.b32.xlu0 %v6826, 96
        %v6854 = vpop.permute.xlu0 %6853
        %6855 = vrot.lane.b32.xlu0 %v6827, 96
        %v6856 = vpop.permute.xlu0 %6855
        %6857 = vrot.lane.b32.xlu0 %v6828, 96
        %v6858 = vpop.permute.xlu0 %6857
        %6859 = vrot.lane.b32.xlu0 %v6829, 96
        %v6860 = vpop.permute.xlu0 %6859
        %6861 = vrot.lane.b32.xlu0 %v6830, 96
        %v6862 = vpop.permute.xlu0 %6861
        %v6863 = vunpack.c.l.b16 %v6130
        %v6864 = vunpack.c.l.b16 %v6133
        %v6865 = vunpack.c.l.b16 %v6137
        %v6866 = vunpack.c.l.b16 %v6140
        %v6867 = vunpack.c.l.b16 %v6144
        %v6868 = vunpack.c.l.b16 %v6147
        %v6869 = vunpack.c.l.b16 %v6151
        %v6870 = vunpack.c.l.b16 %v6154
        %v6871 = vunpack.c.l.b16 %v6158
        %v6872 = vunpack.c.l.b16 %v6161
        %v6873 = vunpack.c.l.b16 %v6165
        %v6874 = vunpack.c.l.b16 %v6168
        %v6875 = vunpack.c.l.b16 %v6172
        %v6876 = vunpack.c.l.b16 %v6175
        %v6877 = vunpack.c.l.b16 %v6179
        %v6878 = vunpack.c.l.b16 %v6182
        %v6879 = vunpack.c.l.b16 %v6186
        %v6880 = vunpack.c.l.b16 %v6189
        %v6881 = vunpack.c.l.b16 %v6193
        %v6882 = vunpack.c.l.b16 %v6196
        %v6883 = vunpack.c.l.b16 %v6200
        %v6884 = vunpack.c.l.b16 %v6203
        %v6885 = vunpack.c.l.b16 %v6207
        %v6886 = vunpack.c.l.b16 %v6210
        %v6887 = vunpack.c.l.b16 %v6214
        %v6888 = vunpack.c.l.b16 %v6217
        %v6889 = vunpack.c.l.b16 %v6221
        %v6890 = vunpack.c.l.b16 %v6224
        %v6891 = vunpack.c.l.b16 %v6228
        %v6892 = vunpack.c.l.b16 %v6231
        %v6893 = vunpack.c.l.b16 %v6235
        %v6894 = vunpack.c.l.b16 %v6238
        %v6895 = vpack.c.b16 %v6864, %v6863
        %v6896 = vpack.c.b16 %v6866, %v6865
        %v6897 = vpack.c.b16 %v6868, %v6867
        %v6898 = vpack.c.b16 %v6870, %v6869
        %v6899 = vpack.c.b16 %v6872, %v6871
        %v6900 = vpack.c.b16 %v6874, %v6873
        %v6901 = vpack.c.b16 %v6876, %v6875
        %v6902 = vpack.c.b16 %v6878, %v6877
        %v6903 = vpack.c.b16 %v6880, %v6879
        %v6904 = vpack.c.b16 %v6882, %v6881
        %v6905 = vpack.c.b16 %v6884, %v6883
        %v6906 = vpack.c.b16 %v6886, %v6885
        %v6907 = vpack.c.b16 %v6888, %v6887
        %v6908 = vpack.c.b16 %v6890, %v6889
        %v6909 = vpack.c.b16 %v6892, %v6891
        %v6910 = vpack.c.b16 %v6894, %v6893
        %v6913 = vsel %vm3674, %v6287, %v6352
        %v6916 = vsel %vm3674, %v6288, %v6354
        %v6919 = vsel %vm3674, %v6289, %v6356
        %v6922 = vsel %vm3674, %v6290, %v6358
        %v6925 = vsel %vm3674, %v6291, %v6360
        %v6928 = vsel %vm3674, %v6292, %v6362
        %v6931 = vsel %vm3674, %v6293, %v6364
        %v6934 = vsel %vm3674, %v6294, %v6366
        %v6937 = vsel %vm3674, %v6295, %v6368
        %v6940 = vsel %vm3674, %v6296, %v6370
        %v6943 = vsel %vm3674, %v6297, %v6372
        %v6946 = vsel %vm3674, %v6298, %v6374
        %v6949 = vsel %vm3674, %v6299, %v6376
        %v6952 = vsel %vm3674, %v6300, %v6378
        %v6955 = vsel %vm3674, %v6301, %v6380
        %v6958 = vsel %vm3674, %v6302, %v6382
        %vm6959 = vcmask 523264
        %v6961 = vsel %vm6959, %v6913, %v6432
        %v6963 = vsel %vm6959, %v6916, %v6434
        %v6965 = vsel %vm6959, %v6919, %v6436
        %v6967 = vsel %vm6959, %v6922, %v6438
        %v6969 = vsel %vm6959, %v6925, %v6440
        %v6971 = vsel %vm6959, %v6928, %v6442
        %v6973 = vsel %vm6959, %v6931, %v6444
        %v6975 = vsel %vm6959, %v6934, %v6446
        %v6977 = vsel %vm6959, %v6937, %v6448
        %v6979 = vsel %vm6959, %v6940, %v6450
        %v6981 = vsel %vm6959, %v6943, %v6452
        %v6983 = vsel %vm6959, %v6946, %v6454
        %v6985 = vsel %vm6959, %v6949, %v6456
        %v6987 = vsel %vm6959, %v6952, %v6458
        %v6989 = vsel %vm6959, %v6955, %v6460
        %v6991 = vsel %vm6959, %v6958, %v6462
        %vm6992 = vcmask 785408
        %v6994 = vsel %vm6992, %v6961, %v6528
        %v6997 = vsel %vm6992, %v6963, %v6530
        %v7000 = vsel %vm6992, %v6965, %v6532
        %v7003 = vsel %vm6992, %v6967, %v6534
        %v7006 = vsel %vm6992, %v6969, %v6536
        %v7009 = vsel %vm6992, %v6971, %v6538
        %v7012 = vsel %vm6992, %v6973, %v6540
        %v7015 = vsel %vm6992, %v6975, %v6542
        %v7018 = vsel %vm6992, %v6977, %v6544
        %v7021 = vsel %vm6992, %v6979, %v6546
        %v7024 = vsel %vm6992, %v6981, %v6548
        %v7027 = vsel %vm6992, %v6983, %v6550
        %v7030 = vsel %vm6992, %v6985, %v6552
        %v7033 = vsel %vm6992, %v6987, %v6554
        %v7036 = vsel %vm6992, %v6989, %v6556
        %v7039 = vsel %vm6992, %v6991, %v6558
        %v7043 = vsel %vm3674, %v6591, %v6656
        %v7046 = vsel %vm3674, %v6592, %v6658
        %v7049 = vsel %vm3674, %v6593, %v6660
        %v7052 = vsel %vm3674, %v6594, %v6662
        %v7055 = vsel %vm3674, %v6595, %v6664
        %v7058 = vsel %vm3674, %v6596, %v6666
        %v7061 = vsel %vm3674, %v6597, %v6668
        %v7064 = vsel %vm3674, %v6598, %v6670
        %v7067 = vsel %vm3674, %v6599, %v6672
        %v7070 = vsel %vm3674, %v6600, %v6674
        %v7073 = vsel %vm3674, %v6601, %v6676
        %v7076 = vsel %vm3674, %v6602, %v6678
        %v7079 = vsel %vm3674, %v6603, %v6680
        %v7082 = vsel %vm3674, %v6604, %v6682
        %v7085 = vsel %vm3674, %v6605, %v6684
        %v7088 = vsel %vm3674, %v6606, %v6686
        %v7090 = vsel %vm6959, %v7043, %v6752
        %v7092 = vsel %vm6959, %v7046, %v6754
        %v7094 = vsel %vm6959, %v7049, %v6756
        %v7096 = vsel %vm6959, %v7052, %v6758
        %v7098 = vsel %vm6959, %v7055, %v6760
        %v7100 = vsel %vm6959, %v7058, %v6762
        %v7102 = vsel %vm6959, %v7061, %v6764
        %v7104 = vsel %vm6959, %v7064, %v6766
        %v7106 = vsel %vm6959, %v7067, %v6768
        %v7108 = vsel %vm6959, %v7070, %v6770
        %v7110 = vsel %vm6959, %v7073, %v6772
        %v7112 = vsel %vm6959, %v7076, %v6774
        %v7114 = vsel %vm6959, %v7079, %v6776
        %v7116 = vsel %vm6959, %v7082, %v6778
        %v7118 = vsel %vm6959, %v7085, %v6780
        %v7120 = vsel %vm6959, %v7088, %v6782
        %v7122 = vsel %vm6992, %v7090, %v6832
        %v7125 = vsel %vm6992, %v7092, %v6834
        %v7128 = vsel %vm6992, %v7094, %v6836
        %v7131 = vsel %vm6992, %v7096, %v6838
        %v7134 = vsel %vm6992, %v7098, %v6840
        %v7137 = vsel %vm6992, %v7100, %v6842
        %v7140 = vsel %vm6992, %v7102, %v6844
        %v7143 = vsel %vm6992, %v7104, %v6846
        %v7146 = vsel %vm6992, %v7106, %v6848
        %v7149 = vsel %vm6992, %v7108, %v6850
        %v7152 = vsel %vm6992, %v7110, %v6852
        %v7155 = vsel %vm6992, %v7112, %v6854
        %v7158 = vsel %vm6992, %v7114, %v6856
        %v7161 = vsel %vm6992, %v7116, %v6858
        %v7164 = vsel %vm6992, %v7118, %v6860
        %v7167 = vsel %vm6992, %v7120, %v6862
        %v7169 = vld [vmem:[%s3] sm:$0xf]
        %v7170 = vld [vmem:[%s3 + $0x4] sm:$0xf]
        %v7171 = vld [vmem:[%s3 + $0x8] sm:$0xf]
        %v7172 = vld [vmem:[%s3 + $0xc] sm:$0xf]
        %v7173 = vld [vmem:[%s3 + $0x10] sm:$0xf]
        %v7174 = vld [vmem:[%s3 + $0x14] sm:$0xf]
        %v7175 = vld [vmem:[%s3 + $0x18] sm:$0xf]
        %v7176 = vld [vmem:[%s3 + $0x1c] sm:$0xf]
        %v7177 = vld [vmem:[%s3 + $0x20] sm:$0xf]
        %v7178 = vld [vmem:[%s3 + $0x24] sm:$0xf]
        %v7179 = vld [vmem:[%s3 + $0x28] sm:$0xf]
        %v7180 = vld [vmem:[%s3 + $0x2c] sm:$0xf]
        %v7181 = vld [vmem:[%s3 + $0x30] sm:$0xf]
        %v7182 = vld [vmem:[%s3 + $0x34] sm:$0xf]
        %v7183 = vld [vmem:[%s3 + $0x38] sm:$0xf]
        %v7184 = vld [vmem:[%s3 + $0x3c] sm:$0xf]
        %v7185 = vld [vmem:[%s3 + $0x40] sm:$0xf]
        %v7186 = vld [vmem:[%s3 + $0x44] sm:$0xf]
        %v7187 = vld [vmem:[%s3 + $0x48] sm:$0xf]
        %v7188 = vld [vmem:[%s3 + $0x4c] sm:$0xf]
        %v7189 = vld [vmem:[%s3 + $0x50] sm:$0xf]
        %v7190 = vld [vmem:[%s3 + $0x54] sm:$0xf]
        %v7191 = vld [vmem:[%s3 + $0x58] sm:$0xf]
        %v7192 = vld [vmem:[%s3 + $0x5c] sm:$0xf]
        %v7193 = vld [vmem:[%s3 + $0x60] sm:$0xf]
        %v7194 = vld [vmem:[%s3 + $0x64] sm:$0xf]
        %v7195 = vld [vmem:[%s3 + $0x68] sm:$0xf]
        %v7196 = vld [vmem:[%s3 + $0x6c] sm:$0xf]
        %v7197 = vld [vmem:[%s3 + $0x70] sm:$0xf]
        %v7198 = vld [vmem:[%s3 + $0x74] sm:$0xf]
        %v7199 = vld [vmem:[%s3 + $0x78] sm:$0xf]
        %v7200 = vld [vmem:[%s3 + $0x7c] sm:$0xf]
        %v7201 = vld [vmem:[%s3 + $0x80] sm:$0xf]
        %v7202 = vld [vmem:[%s3 + $0x84] sm:$0xf]
        %v7203 = vld [vmem:[%s3 + $0x88] sm:$0xf]
        %v7204 = vld [vmem:[%s3 + $0x8c] sm:$0xf]
        %v7205 = vld [vmem:[%s4] sm:$0x1]
        %v7207 = vperm.slane %v7205, 0
        %v7245 = vunpack.c.l.b16 %v7169
        %v7246 = vunpack.c.l.b16 %v7170
        %v7247 = vunpack.c.l.b16 %v7171
        %v7248 = vunpack.c.l.b16 %v7172
        %v7249 = vunpack.c.l.b16 %v7173
        %v7250 = vunpack.c.l.b16 %v7174
        %v7251 = vunpack.c.l.b16 %v7175
        %v7252 = vunpack.c.l.b16 %v7176
        %v7253 = vunpack.c.l.b16 %v7177
        %v7254 = vunpack.c.l.b16 %v7178
        %v7255 = vunpack.c.l.b16 %v7179
        %v7256 = vunpack.c.l.b16 %v7180
        %v7257 = vunpack.c.l.b16 %v7181
        %v7258 = vunpack.c.l.b16 %v7182
        %v7259 = vunpack.c.l.b16 %v7183
        %v7260 = vunpack.c.l.b16 %v7184
        %v7261 = vunpack.c.l.b16 %v7185
        %v7262 = vunpack.c.l.b16 %v7186
        %v7263 = vunpack.c.l.b16 %v7187
        %v7264 = vunpack.c.l.b16 %v7188
        %v7265 = vunpack.c.l.b16 %v7189
        %v7266 = vunpack.c.l.b16 %v7190
        %v7267 = vunpack.c.l.b16 %v7191
        %v7268 = vunpack.c.l.b16 %v7192
        %v7269 = vunpack.c.l.b16 %v7193
        %v7270 = vunpack.c.l.b16 %v7194
        %v7271 = vunpack.c.l.b16 %v7195
        %v7272 = vunpack.c.l.b16 %v7196
        %v7273 = vunpack.c.l.b16 %v7197
        %v7274 = vunpack.c.l.b16 %v7198
        %v7275 = vunpack.c.l.b16 %v7199
        %v7276 = vunpack.c.l.b16 %v7200
        %v7277 = vunpack.c.l.b16 %v7201
        %v7278 = vunpack.c.l.b16 %v7202
        %v7279 = vunpack.c.l.b16 %v7203
        %v7280 = vunpack.c.l.b16 %v7204
        %v7281 = vpack.c.b16 %v7246, %v7245
        %v7282 = vpack.c.b16 %v7248, %v7247
        %v7283 = vpack.c.b16 %v7250, %v7249
        %v7284 = vpack.c.b16 %v7252, %v7251
        %v7285 = vpack.c.b16 %v7254, %v7253
        %v7286 = vpack.c.b16 %v7256, %v7255
        %v7287 = vpack.c.b16 %v7258, %v7257
        %v7288 = vpack.c.b16 %v7260, %v7259
        %v7289 = vpack.c.b16 %v7262, %v7261
        %v7290 = vpack.c.b16 %v7264, %v7263
        %v7291 = vpack.c.b16 %v7266, %v7265
        %v7292 = vpack.c.b16 %v7268, %v7267
        %v7293 = vpack.c.b16 %v7270, %v7269
        %v7294 = vpack.c.b16 %v7272, %v7271
        %v7295 = vpack.c.b16 %v7274, %v7273
        %v7296 = vpack.c.b16 %v7276, %v7275
        %v7297 = vpack.c.b16 %v7278, %v7277
        %v7298 = vpack.c.b16 %v7280, %v7279
        %v7318 = vsel %vm3674, %v6895, 0
        %v7321 = vsel %vm3674, %v6896, 0
        %v7324 = vsel %vm3674, %v6897, 0
        %v7327 = vsel %vm3674, %v6898, 0
        %v7330 = vsel %vm3674, %v6899, 0
        %v7333 = vsel %vm3674, %v6900, 0
        %v7336 = vsel %vm3674, %v6901, 0
        %v7339 = vsel %vm3674, %v6902, 0
        %v7342 = vsel %vm3674, %v6903, 0
        %v7345 = vsel %vm3674, %v6904, 0
        %v7348 = vsel %vm3674, %v6905, 0
        %v7351 = vsel %vm3674, %v6906, 0
        %v7354 = vsel %vm3674, %v6907, 0
        %v7357 = vsel %vm3674, %v6908, 0
        %v7360 = vsel %vm3674, %v6909, 0
        %v7363 = vsel %vm3674, %v6910, 0
        %7365 = vmatpush.bf16.msra.mxu0 %v7288
        %7366 = vmatpush.bf16.msra.mxu0 %v7287
        %7367 = vmatpush.bf16.msra.mxu0 %v7286
        %7368 = vmatpush.bf16.msra.mxu0 %v7285
        %7369 = vmatpush.bf16.msra.mxu0 %v7284
        %7370 = vmatpush.bf16.msra.mxu0 %v7283
        %7371 = vmatpush.bf16.msra.mxu0 %v7282
        %7372 = vmatpush.bf16.msra.mxu0 %v7281
        %7373 = vmatmul.bf16.gmra.mxu0 %v6994
        %v7374 = vpop.f32.mrf.mxu0
        %v7375 = vadd.f32 %v7207, %v7374
        %v7376 = vpop.f32.mrf.mxu0
        %v7377 = vadd.f32 %v7207, %v7376
        %7378 = vmatmul.bf16.gmra.mxu0 %v6997
        %v7379 = vpop.f32.mrf.mxu0
        %v7380 = vadd.f32 %v7207, %v7379
        %v7381 = vpop.f32.mrf.mxu0
        %v7382 = vadd.f32 %v7207, %v7381
        %7383 = vmatmul.bf16.gmra.mxu0 %v7000
        %v7384 = vpop.f32.mrf.mxu0
        %v7385 = vadd.f32 %v7207, %v7384
        %v7386 = vpop.f32.mrf.mxu0
        %v7387 = vadd.f32 %v7207, %v7386
        %7388 = vmatmul.bf16.gmra.mxu0 %v7003
        %v7389 = vpop.f32.mrf.mxu0
        %v7390 = vadd.f32 %v7207, %v7389
        %v7391 = vpop.f32.mrf.mxu0
        %v7392 = vadd.f32 %v7207, %v7391
        %7393 = vmatmul.bf16.gmra.mxu0 %v7006
        %v7394 = vpop.f32.mrf.mxu0
        %v7395 = vadd.f32 %v7207, %v7394
        %v7396 = vpop.f32.mrf.mxu0
        %v7397 = vadd.f32 %v7207, %v7396
        %7398 = vmatmul.bf16.gmra.mxu0 %v7009
        %v7399 = vpop.f32.mrf.mxu0
        %v7400 = vadd.f32 %v7207, %v7399
        %v7401 = vpop.f32.mrf.mxu0
        %v7402 = vadd.f32 %v7207, %v7401
        %7403 = vmatmul.bf16.gmra.mxu0 %v7012
        %v7404 = vpop.f32.mrf.mxu0
        %v7405 = vadd.f32 %v7207, %v7404
        %v7406 = vpop.f32.mrf.mxu0
        %v7407 = vadd.f32 %v7207, %v7406
        %7408 = vmatmul.bf16.gmra.mxu0 %v7015
        %v7409 = vpop.f32.mrf.mxu0
        %v7410 = vadd.f32 %v7207, %v7409
        %v7411 = vpop.f32.mrf.mxu0
        %v7412 = vadd.f32 %v7207, %v7411
        %7413 = vmatmul.bf16.gmra.mxu0 %v7018
        %v7414 = vpop.f32.mrf.mxu0
        %v7415 = vadd.f32 %v7207, %v7414
        %v7416 = vpop.f32.mrf.mxu0
        %v7417 = vadd.f32 %v7207, %v7416
        %7418 = vmatmul.bf16.gmra.mxu0 %v7021
        %v7419 = vpop.f32.mrf.mxu0
        %v7420 = vadd.f32 %v7207, %v7419
        %v7421 = vpop.f32.mrf.mxu0
        %v7422 = vadd.f32 %v7207, %v7421
        %7423 = vmatmul.bf16.gmra.mxu0 %v7024
        %v7424 = vpop.f32.mrf.mxu0
        %v7425 = vadd.f32 %v7207, %v7424
        %v7426 = vpop.f32.mrf.mxu0
        %v7427 = vadd.f32 %v7207, %v7426
        %7428 = vmatmul.bf16.gmra.mxu0 %v7027
        %v7429 = vpop.f32.mrf.mxu0
        %v7430 = vadd.f32 %v7207, %v7429
        %v7431 = vpop.f32.mrf.mxu0
        %v7432 = vadd.f32 %v7207, %v7431
        %7433 = vmatmul.bf16.gmra.mxu0 %v7030
        %v7434 = vpop.f32.mrf.mxu0
        %v7435 = vadd.f32 %v7207, %v7434
        %v7436 = vpop.f32.mrf.mxu0
        %v7437 = vadd.f32 %v7207, %v7436
        %7438 = vmatmul.bf16.gmra.mxu0 %v7033
        %v7439 = vpop.f32.mrf.mxu0
        %v7440 = vadd.f32 %v7207, %v7439
        %v7441 = vpop.f32.mrf.mxu0
        %v7442 = vadd.f32 %v7207, %v7441
        %7443 = vmatmul.bf16.gmra.mxu0 %v7036
        %v7444 = vpop.f32.mrf.mxu0
        %v7445 = vadd.f32 %v7207, %v7444
        %v7446 = vpop.f32.mrf.mxu0
        %v7447 = vadd.f32 %v7207, %v7446
        %7448 = vmatmul.bf16.gmra.mxu0 %v7039
        %v7449 = vpop.f32.mrf.mxu0
        %v7450 = vadd.f32 %v7207, %v7449
        %v7451 = vpop.f32.mrf.mxu0
        %v7452 = vadd.f32 %v7207, %v7451
        %7453 = vdwg.mxu0
        %7454 = vmatpush.bf16.msra.mxu0 %v7296
        %7455 = vmatpush.bf16.msra.mxu0 %v7295
        %7456 = vmatpush.bf16.msra.mxu0 %v7294
        %7457 = vmatpush.bf16.msra.mxu0 %v7293
        %7458 = vmatpush.bf16.msra.mxu0 %v7292
        %7459 = vmatpush.bf16.msra.mxu0 %v7291
        %7460 = vmatpush.bf16.msra.mxu0 %v7290
        %7461 = vmatpush.bf16.msra.mxu0 %v7289
        %7462 = vmatmul.bf16.gmra.mxu0 %v7122
        %v7463 = vpop.f32.mrf.mxu0
        %v7464 = vadd.f32 %v7375, %v7463
        %v7465 = vpop.f32.mrf.mxu0
        %v7466 = vadd.f32 %v7377, %v7465
        %7467 = vmatmul.bf16.gmra.mxu0 %v7125
        %v7468 = vpop.f32.mrf.mxu0
        %v7469 = vadd.f32 %v7380, %v7468
        %v7470 = vpop.f32.mrf.mxu0
        %v7471 = vadd.f32 %v7382, %v7470
        %7472 = vmatmul.bf16.gmra.mxu0 %v7128
        %v7473 = vpop.f32.mrf.mxu0
        %v7474 = vadd.f32 %v7385, %v7473
        %v7475 = vpop.f32.mrf.mxu0
        %v7476 = vadd.f32 %v7387, %v7475
        %7477 = vmatmul.bf16.gmra.mxu0 %v7131
        %v7478 = vpop.f32.mrf.mxu0
        %v7479 = vadd.f32 %v7390, %v7478
        %v7480 = vpop.f32.mrf.mxu0
        %v7481 = vadd.f32 %v7392, %v7480
        %7482 = vmatmul.bf16.gmra.mxu0 %v7134
        %v7483 = vpop.f32.mrf.mxu0
        %v7484 = vadd.f32 %v7395, %v7483
        %v7485 = vpop.f32.mrf.mxu0
        %v7486 = vadd.f32 %v7397, %v7485
        %7487 = vmatmul.bf16.gmra.mxu0 %v7137
        %v7488 = vpop.f32.mrf.mxu0
        %v7489 = vadd.f32 %v7400, %v7488
        %v7490 = vpop.f32.mrf.mxu0
        %v7491 = vadd.f32 %v7402, %v7490
        %7492 = vmatmul.bf16.gmra.mxu0 %v7140
        %v7493 = vpop.f32.mrf.mxu0
        %v7494 = vadd.f32 %v7405, %v7493
        %v7495 = vpop.f32.mrf.mxu0
        %v7496 = vadd.f32 %v7407, %v7495
        %7497 = vmatmul.bf16.gmra.mxu0 %v7143
        %v7498 = vpop.f32.mrf.mxu0
        %v7499 = vadd.f32 %v7410, %v7498
        %v7500 = vpop.f32.mrf.mxu0
        %v7501 = vadd.f32 %v7412, %v7500
        %7502 = vmatmul.bf16.gmra.mxu0 %v7146
        %v7503 = vpop.f32.mrf.mxu0
        %v7504 = vadd.f32 %v7415, %v7503
        %v7505 = vpop.f32.mrf.mxu0
        %v7506 = vadd.f32 %v7417, %v7505
        %7507 = vmatmul.bf16.gmra.mxu0 %v7149
        %v7508 = vpop.f32.mrf.mxu0
        %v7509 = vadd.f32 %v7420, %v7508
        %v7510 = vpop.f32.mrf.mxu0
        %v7511 = vadd.f32 %v7422, %v7510
        %7512 = vmatmul.bf16.gmra.mxu0 %v7152
        %v7513 = vpop.f32.mrf.mxu0
        %v7514 = vadd.f32 %v7425, %v7513
        %v7515 = vpop.f32.mrf.mxu0
        %v7516 = vadd.f32 %v7427, %v7515
        %7517 = vmatmul.bf16.gmra.mxu0 %v7155
        %v7518 = vpop.f32.mrf.mxu0
        %v7519 = vadd.f32 %v7430, %v7518
        %v7520 = vpop.f32.mrf.mxu0
        %v7521 = vadd.f32 %v7432, %v7520
        %7522 = vmatmul.bf16.gmra.mxu0 %v7158
        %v7523 = vpop.f32.mrf.mxu0
        %v7524 = vadd.f32 %v7435, %v7523
        %v7525 = vpop.f32.mrf.mxu0
        %v7526 = vadd.f32 %v7437, %v7525
        %7527 = vmatmul.bf16.gmra.mxu0 %v7161
        %v7528 = vpop.f32.mrf.mxu0
        %v7529 = vadd.f32 %v7440, %v7528
        %v7530 = vpop.f32.mrf.mxu0
        %v7531 = vadd.f32 %v7442, %v7530
        %7532 = vmatmul.bf16.gmra.mxu0 %v7164
        %v7533 = vpop.f32.mrf.mxu0
        %v7534 = vadd.f32 %v7445, %v7533
        %v7535 = vpop.f32.mrf.mxu0
        %v7536 = vadd.f32 %v7447, %v7535
        %7537 = vmatmul.bf16.gmra.mxu0 %v7167
        %v7538 = vpop.f32.mrf.mxu0
        %v7539 = vadd.f32 %v7450, %v7538
        %v7540 = vpop.f32.mrf.mxu0
        %v7541 = vadd.f32 %v7452, %v7540
        %7542 = vdwg.mxu0
        %7543 = vmatpush.bf16.msra.mxu0 0
        %7544 = vmatpush.bf16.msra.mxu0 0
        %7545 = vmatpush.bf16.msra.mxu0 0
        %7546 = vmatpush.bf16.msra.mxu0 0
        %7547 = vmatpush.bf16.msra.mxu0 0
        %7548 = vmatpush.bf16.msra.mxu0 0
        %7549 = vmatpush.bf16.msra.mxu0 %v7298
        %7550 = vmatpush.bf16.msra.mxu0 %v7297
        %7551 = vmatmul.bf16.gmra.mxu0 %v7318
        %v7552 = vpop.f32.mrf.mxu0
        %v7553 = vadd.f32 %v7464, %v7552
        %v7554 = vpop.f32.mrf.mxu0
        %v7555 = vadd.f32 %v7466, %v7554
        %7556 = vmatmul.bf16.gmra.mxu0 %v7321
        %v7557 = vpop.f32.mrf.mxu0
        %v7558 = vadd.f32 %v7469, %v7557
        %v7559 = vpop.f32.mrf.mxu0
        %v7560 = vadd.f32 %v7471, %v7559
        %7561 = vmatmul.bf16.gmra.mxu0 %v7324
        %v7562 = vpop.f32.mrf.mxu0
        %v7563 = vadd.f32 %v7474, %v7562
        %v7564 = vpop.f32.mrf.mxu0
        %v7565 = vadd.f32 %v7476, %v7564
        %7566 = vmatmul.bf16.gmra.mxu0 %v7327
        %v7567 = vpop.f32.mrf.mxu0
        %v7568 = vadd.f32 %v7479, %v7567
        %v7569 = vpop.f32.mrf.mxu0
        %v7570 = vadd.f32 %v7481, %v7569
        %7571 = vmatmul.bf16.gmra.mxu0 %v7330
        %v7572 = vpop.f32.mrf.mxu0
        %v7573 = vadd.f32 %v7484, %v7572
        %v7574 = vpop.f32.mrf.mxu0
        %v7575 = vadd.f32 %v7486, %v7574
        %7576 = vmatmul.bf16.gmra.mxu0 %v7333
        %v7577 = vpop.f32.mrf.mxu0
        %v7578 = vadd.f32 %v7489, %v7577
        %v7579 = vpop.f32.mrf.mxu0
        %v7580 = vadd.f32 %v7491, %v7579
        %7581 = vmatmul.bf16.gmra.mxu0 %v7336
        %v7582 = vpop.f32.mrf.mxu0
        %v7583 = vadd.f32 %v7494, %v7582
        %v7584 = vpop.f32.mrf.mxu0
        %v7585 = vadd.f32 %v7496, %v7584
        %7586 = vmatmul.bf16.gmra.mxu0 %v7339
        %v7587 = vpop.f32.mrf.mxu0
        %v7588 = vadd.f32 %v7499, %v7587
        %v7589 = vpop.f32.mrf.mxu0
        %v7590 = vadd.f32 %v7501, %v7589
        %7591 = vmatmul.bf16.gmra.mxu0 %v7342
        %v7592 = vpop.f32.mrf.mxu0
        %v7593 = vadd.f32 %v7504, %v7592
        %v7594 = vpop.f32.mrf.mxu0
        %v7595 = vadd.f32 %v7506, %v7594
        %7596 = vmatmul.bf16.gmra.mxu0 %v7345
        %v7597 = vpop.f32.mrf.mxu0
        %v7598 = vadd.f32 %v7509, %v7597
        %v7599 = vpop.f32.mrf.mxu0
        %v7600 = vadd.f32 %v7511, %v7599
        %7601 = vmatmul.bf16.gmra.mxu0 %v7348
        %v7602 = vpop.f32.mrf.mxu0
        %v7603 = vadd.f32 %v7514, %v7602
        %v7604 = vpop.f32.mrf.mxu0
        %v7605 = vadd.f32 %v7516, %v7604
        %7606 = vmatmul.bf16.gmra.mxu0 %v7351
        %v7607 = vpop.f32.mrf.mxu0
        %v7608 = vadd.f32 %v7519, %v7607
        %v7609 = vpop.f32.mrf.mxu0
        %v7610 = vadd.f32 %v7521, %v7609
        %7611 = vmatmul.bf16.gmra.mxu0 %v7354
        %v7612 = vpop.f32.mrf.mxu0
        %v7613 = vadd.f32 %v7524, %v7612
        %v7614 = vpop.f32.mrf.mxu0
        %v7615 = vadd.f32 %v7526, %v7614
        %7616 = vmatmul.bf16.gmra.mxu0 %v7357
        %v7617 = vpop.f32.mrf.mxu0
        %v7618 = vadd.f32 %v7529, %v7617
        %v7619 = vpop.f32.mrf.mxu0
        %v7620 = vadd.f32 %v7531, %v7619
        %7621 = vmatmul.bf16.gmra.mxu0 %v7360
        %v7622 = vpop.f32.mrf.mxu0
        %v7623 = vadd.f32 %v7534, %v7622
        %v7624 = vpop.f32.mrf.mxu0
        %v7625 = vadd.f32 %v7536, %v7624
        %7626 = vmatmul.bf16.gmra.mxu0 %v7363
        %v7627 = vpop.f32.mrf.mxu0
        %v7628 = vadd.f32 %v7539, %v7627
        %v7629 = vpop.f32.mrf.mxu0
        %v7630 = vadd.f32 %v7541, %v7629
        %7631 = vdwg.mxu0
        %v7632 = vmax.f32 %v7553, 0.0
        %v7633 = vmax.f32 %v7555, 0.0
        %v7634 = vmax.f32 %v7558, 0.0
        %v7635 = vmax.f32 %v7560, 0.0
        %v7636 = vmax.f32 %v7563, 0.0
        %v7637 = vmax.f32 %v7565, 0.0
        %v7638 = vmax.f32 %v7568, 0.0
        %v7639 = vmax.f32 %v7570, 0.0
        %v7640 = vmax.f32 %v7573, 0.0
        %v7641 = vmax.f32 %v7575, 0.0
        %v7642 = vmax.f32 %v7578, 0.0
        %v7643 = vmax.f32 %v7580, 0.0
        %v7644 = vmax.f32 %v7583, 0.0
        %v7645 = vmax.f32 %v7585, 0.0
        %v7646 = vmax.f32 %v7588, 0.0
        %v7647 = vmax.f32 %v7590, 0.0
        %v7648 = vmax.f32 %v7593, 0.0
        %v7649 = vmax.f32 %v7595, 0.0
        %v7650 = vmax.f32 %v7598, 0.0
        %v7651 = vmax.f32 %v7600, 0.0
        %v7652 = vmax.f32 %v7603, 0.0
        %v7653 = vmax.f32 %v7605, 0.0
        %v7654 = vmax.f32 %v7608, 0.0
        %v7655 = vmax.f32 %v7610, 0.0
        %v7656 = vmax.f32 %v7613, 0.0
        %v7657 = vmax.f32 %v7615, 0.0
        %v7658 = vmax.f32 %v7618, 0.0
        %v7659 = vmax.f32 %v7620, 0.0
        %v7660 = vmax.f32 %v7623, 0.0
        %v7661 = vmax.f32 %v7625, 0.0
        %v7662 = vmax.f32 %v7628, 0.0
        %v7663 = vmax.f32 %v7630, 0.0
        %v7664 = vpack.c.bf16 %v7632, %v7632
        %v7665 = vpack.c.bf16 %v7633, %v7633
        %v7666 = vpack.c.bf16 %v7634, %v7634
        %v7667 = vpack.c.bf16 %v7635, %v7635
        %v7668 = vpack.c.bf16 %v7636, %v7636
        %v7669 = vpack.c.bf16 %v7637, %v7637
        %v7670 = vpack.c.bf16 %v7638, %v7638
        %v7671 = vpack.c.bf16 %v7639, %v7639
        %v7672 = vpack.c.bf16 %v7640, %v7640
        %v7673 = vpack.c.bf16 %v7641, %v7641
        %v7674 = vpack.c.bf16 %v7642, %v7642
        %v7675 = vpack.c.bf16 %v7643, %v7643
        %v7676 = vpack.c.bf16 %v7644, %v7644
        %v7677 = vpack.c.bf16 %v7645, %v7645
        %v7678 = vpack.c.bf16 %v7646, %v7646
        %v7679 = vpack.c.bf16 %v7647, %v7647
        %v7680 = vpack.c.bf16 %v7648, %v7648
        %v7681 = vpack.c.bf16 %v7649, %v7649
        %v7682 = vpack.c.bf16 %v7650, %v7650
        %v7683 = vpack.c.bf16 %v7651, %v7651
        %v7684 = vpack.c.bf16 %v7652, %v7652
        %v7685 = vpack.c.bf16 %v7653, %v7653
        %v7686 = vpack.c.bf16 %v7654, %v7654
        %v7687 = vpack.c.bf16 %v7655, %v7655
        %v7688 = vpack.c.bf16 %v7656, %v7656
        %v7689 = vpack.c.bf16 %v7657, %v7657
        %v7690 = vpack.c.bf16 %v7658, %v7658
        %v7691 = vpack.c.bf16 %v7659, %v7659
        %v7692 = vpack.c.bf16 %v7660, %v7660
        %v7693 = vpack.c.bf16 %v7661, %v7661
        %v7694 = vpack.c.bf16 %v7662, %v7662
        %v7695 = vpack.c.bf16 %v7663, %v7663
        %vm7696 = vcmask 519168
        %7697 = vst.msk [vmem:[#allocation4] sm:$0xf] %vm7696, 0
        %7698 = vst.msk [vmem:[#allocation4 + $0x4] sm:$0xf] %vm7696, 0
        %vm7699 = vcmask 516096
        %7700 = vst.msk [vmem:[#allocation4 + $0x8] sm:$0x1] %vm7699, 0
        %7701 = vst.msk [vmem:[#allocation4 + $0xc] sm:$0xf] %vm7696, 0
        %7702 = vst.msk [vmem:[#allocation4 + $0x10] sm:$0xf] %vm7696, 0
        %7703 = vst.msk [vmem:[#allocation4 + $0x14] sm:$0x1] %vm7699, 0
        %7704 = vst.msk [vmem:[#allocation4 + $0x18] sm:$0xf] %vm7696, 0
        %7705 = vst.msk [vmem:[#allocation4 + $0x1c] sm:$0xf] %vm7696, 0
        %7706 = vst.msk [vmem:[#allocation4 + $0x20] sm:$0x1] %vm7699, 0
        %7707 = vst.msk [vmem:[#allocation4 + $0x24] sm:$0xf] %vm7696, 0
        %7708 = vst.msk [vmem:[#allocation4 + $0x28] sm:$0xf] %vm7696, 0
        %7709 = vst.msk [vmem:[#allocation4 + $0x2c] sm:$0x1] %vm7699, 0
        %7710 = vst.msk [vmem:[#allocation4 + $0x30] sm:$0xf] %vm7696, 0
        %7711 = vst.msk [vmem:[#allocation4 + $0x34] sm:$0xf] %vm7696, 0
        %7712 = vst.msk [vmem:[#allocation4 + $0x38] sm:$0x1] %vm7699, 0
        %7713 = vst.msk [vmem:[#allocation4 + $0x3c] sm:$0xf] %vm7696, 0
        %7714 = vst.msk [vmem:[#allocation4 + $0x40] sm:$0xf] %vm7696, 0
        %7715 = vst.msk [vmem:[#allocation4 + $0x44] sm:$0x1] %vm7699, 0
        %7716 = vst.msk [vmem:[#allocation4 + $0x48] sm:$0xf] %vm7696, 0
        %7717 = vst.msk [vmem:[#allocation4 + $0x4c] sm:$0xf] %vm7696, 0
        %7718 = vst.msk [vmem:[#allocation4 + $0x50] sm:$0x1] %vm7699, 0
        %7719 = vst.msk [vmem:[#allocation4 + $0x54] sm:$0xf] %vm7696, 0
        %7720 = vst.msk [vmem:[#allocation4 + $0x58] sm:$0xf] %vm7696, 0
        %7721 = vst.msk [vmem:[#allocation4 + $0x5c] sm:$0x1] %vm7699, 0
        %7722 = vst.msk [vmem:[#allocation4 + $0x60] sm:$0xf] %vm7696, 0
        %7723 = vst.msk [vmem:[#allocation4 + $0x64] sm:$0xf] %vm7696, 0
        %7724 = vst.msk [vmem:[#allocation4 + $0x68] sm:$0x1] %vm7699, 0
        %7725 = vst.msk [vmem:[#allocation4 + $0x6c] sm:$0xf] %vm7696, 0
        %7726 = vst.msk [vmem:[#allocation4 + $0x70] sm:$0xf] %vm7696, 0
        %7727 = vst.msk [vmem:[#allocation4 + $0x74] sm:$0x1] %vm7699, 0
        %7728 = vst.msk [vmem:[#allocation4 + $0x78] sm:$0xf] %vm7696, 0
        %7729 = vst.msk [vmem:[#allocation4 + $0x7c] sm:$0xf] %vm7696, 0
        %7730 = vst.msk [vmem:[#allocation4 + $0x80] sm:$0x1] %vm7699, 0
        %7731 = vst.msk [vmem:[#allocation4 + $0x84] sm:$0xf] %vm7696, 0
        %7732 = vst.msk [vmem:[#allocation4 + $0x88] sm:$0xf] %vm7696, 0
        %7733 = vst.msk [vmem:[#allocation4 + $0x8c] sm:$0x1] %vm7699, 0
        %7734 = vst.msk [vmem:[#allocation4 + $0x90] sm:$0xf] %vm7696, 0
        %7735 = vst.msk [vmem:[#allocation4 + $0x94] sm:$0xf] %vm7696, 0
        %7736 = vst.msk [vmem:[#allocation4 + $0x98] sm:$0x1] %vm7699, 0
        %7737 = vst.msk [vmem:[#allocation4 + $0x9c] sm:$0xf] %vm7696, 0
        %7738 = vst.msk [vmem:[#allocation4 + $0xa0] sm:$0xf] %vm7696, 0
        %7739 = vst.msk [vmem:[#allocation4 + $0xa4] sm:$0x1] %vm7699, 0
        %7740 = vst.msk [vmem:[#allocation4 + $0xa8] sm:$0xf] %vm7696, 0
        %7741 = vst.msk [vmem:[#allocation4 + $0xac] sm:$0xf] %vm7696, 0
        %7742 = vst.msk [vmem:[#allocation4 + $0xb0] sm:$0x1] %vm7699, 0
        %7743 = vst.msk [vmem:[#allocation4 + $0xb4] sm:$0xf] %vm7696, 0
        %7744 = vst.msk [vmem:[#allocation4 + $0xb8] sm:$0xf] %vm7696, 0
        %7745 = vst.msk [vmem:[#allocation4 + $0xbc] sm:$0x1] %vm7699, 0
        %7746 = vst.msk [vmem:[#allocation4 + $0xc0] sm:$0xf] %vm7696, 0
        %7747 = vst.msk [vmem:[#allocation4 + $0xc4] sm:$0xf] %vm7696, 0
        %7748 = vst.msk [vmem:[#allocation4 + $0xc8] sm:$0x1] %vm7699, 0
        %7749 = vst.msk [vmem:[#allocation4 + $0xcc] sm:$0xf] %vm7696, 0
        %7750 = vst.msk [vmem:[#allocation4 + $0xd0] sm:$0xf] %vm7696, 0
        %7751 = vst.msk [vmem:[#allocation4 + $0xd4] sm:$0x1] %vm7699, 0
        %v7753 = vshrl.u32 %v7664, 16
        %v7755 = vrot.slane %v7753, 7
        %v7756 = vshll.u32 %v7664, 16
        %v7758 = vor.u32 %v7755, %v7756
        %v7759 = vrot.slane %v7755, 4
        %v7761 = vshrl.u32 %v7665, 16
        %v7763 = vrot.slane %v7761, 7
        %v7764 = vshll.u32 %v7665, 16
        %v7766 = vor.u32 %v7763, %v7764
        %v7767 = vsel %vm421, %v7759, %v7766
        %v7768 = vrot.slane %v7763, 4
        %v7770 = vshrl.u32 %v7666, 16
        %v7772 = vrot.slane %v7770, 7
        %v7773 = vshll.u32 %v7666, 16
        %v7775 = vor.u32 %v7772, %v7773
        %v7776 = vrot.slane %v7772, 4
        %v7778 = vshrl.u32 %v7667, 16
        %v7780 = vrot.slane %v7778, 7
        %v7781 = vshll.u32 %v7667, 16
        %v7783 = vor.u32 %v7780, %v7781
        %v7784 = vsel %vm421, %v7776, %v7783
        %v7785 = vrot.slane %v7780, 4
        %v7787 = vshrl.u32 %v7668, 16
        %v7789 = vrot.slane %v7787, 7
        %v7790 = vshll.u32 %v7668, 16
        %v7792 = vor.u32 %v7789, %v7790
        %v7793 = vrot.slane %v7789, 4
        %v7795 = vshrl.u32 %v7669, 16
        %v7797 = vrot.slane %v7795, 7
        %v7798 = vshll.u32 %v7669, 16
        %v7800 = vor.u32 %v7797, %v7798
        %v7801 = vsel %vm421, %v7793, %v7800
        %v7802 = vrot.slane %v7797, 4
        %v7804 = vshrl.u32 %v7670, 16
        %v7806 = vrot.slane %v7804, 7
        %v7807 = vshll.u32 %v7670, 16
        %v7809 = vor.u32 %v7806, %v7807
        %v7810 = vrot.slane %v7806, 4
        %v7812 = vshrl.u32 %v7671, 16
        %v7814 = vrot.slane %v7812, 7
        %v7815 = vshll.u32 %v7671, 16
        %v7817 = vor.u32 %v7814, %v7815
        %v7818 = vsel %vm421, %v7810, %v7817
        %v7819 = vrot.slane %v7814, 4
        %v7821 = vshrl.u32 %v7672, 16
        %v7823 = vrot.slane %v7821, 7
        %v7824 = vshll.u32 %v7672, 16
        %v7826 = vor.u32 %v7823, %v7824
        %v7827 = vrot.slane %v7823, 4
        %v7829 = vshrl.u32 %v7673, 16
        %v7831 = vrot.slane %v7829, 7
        %v7832 = vshll.u32 %v7673, 16
        %v7834 = vor.u32 %v7831, %v7832
        %v7835 = vsel %vm421, %v7827, %v7834
        %v7836 = vrot.slane %v7831, 4
        %v7838 = vshrl.u32 %v7674, 16
        %v7840 = vrot.slane %v7838, 7
        %v7841 = vshll.u32 %v7674, 16
        %v7843 = vor.u32 %v7840, %v7841
        %v7844 = vrot.slane %v7840, 4
        %v7846 = vshrl.u32 %v7675, 16
        %v7848 = vrot.slane %v7846, 7
        %v7849 = vshll.u32 %v7675, 16
        %v7851 = vor.u32 %v7848, %v7849
        %v7852 = vsel %vm421, %v7844, %v7851
        %v7853 = vrot.slane %v7848, 4
        %v7855 = vshrl.u32 %v7676, 16
        %v7857 = vrot.slane %v7855, 7
        %v7858 = vshll.u32 %v7676, 16
        %v7860 = vor.u32 %v7857, %v7858
        %v7861 = vrot.slane %v7857, 4
        %v7863 = vshrl.u32 %v7677, 16
        %v7865 = vrot.slane %v7863, 7
        %v7866 = vshll.u32 %v7677, 16
        %v7868 = vor.u32 %v7865, %v7866
        %v7869 = vsel %vm421, %v7861, %v7868
        %v7870 = vrot.slane %v7865, 4
        %v7872 = vshrl.u32 %v7678, 16
        %v7874 = vrot.slane %v7872, 7
        %v7875 = vshll.u32 %v7678, 16
        %v7877 = vor.u32 %v7874, %v7875
        %v7878 = vrot.slane %v7874, 4
        %v7880 = vshrl.u32 %v7679, 16
        %v7882 = vrot.slane %v7880, 7
        %v7883 = vshll.u32 %v7679, 16
        %v7885 = vor.u32 %v7882, %v7883
        %v7886 = vsel %vm421, %v7878, %v7885
        %v7887 = vrot.slane %v7882, 4
        %v7889 = vshrl.u32 %v7680, 16
        %v7891 = vrot.slane %v7889, 7
        %v7892 = vshll.u32 %v7680, 16
        %v7894 = vor.u32 %v7891, %v7892
        %v7895 = vrot.slane %v7891, 4
        %v7897 = vshrl.u32 %v7681, 16
        %v7899 = vrot.slane %v7897, 7
        %v7900 = vshll.u32 %v7681, 16
        %v7902 = vor.u32 %v7899, %v7900
        %v7903 = vsel %vm421, %v7895, %v7902
        %v7904 = vrot.slane %v7899, 4
        %v7906 = vshrl.u32 %v7682, 16
        %v7908 = vrot.slane %v7906, 7
        %v7909 = vshll.u32 %v7682, 16
        %v7911 = vor.u32 %v7908, %v7909
        %v7912 = vrot.slane %v7908, 4
        %v7914 = vshrl.u32 %v7683, 16
        %v7916 = vrot.slane %v7914, 7
        %v7917 = vshll.u32 %v7683, 16
        %v7919 = vor.u32 %v7916, %v7917
        %v7920 = vsel %vm421, %v7912, %v7919
        %v7921 = vrot.slane %v7916, 4
        %v7923 = vshrl.u32 %v7684, 16
        %v7925 = vrot.slane %v7923, 7
        %v7926 = vshll.u32 %v7684, 16
        %v7928 = vor.u32 %v7925, %v7926
        %v7929 = vrot.slane %v7925, 4
        %v7931 = vshrl.u32 %v7685, 16
        %v7933 = vrot.slane %v7931, 7
        %v7934 = vshll.u32 %v7685, 16
        %v7936 = vor.u32 %v7933, %v7934
        %v7937 = vsel %vm421, %v7929, %v7936
        %v7938 = vrot.slane %v7933, 4
        %v7940 = vshrl.u32 %v7686, 16
        %v7942 = vrot.slane %v7940, 7
        %v7943 = vshll.u32 %v7686, 16
        %v7945 = vor.u32 %v7942, %v7943
        %v7946 = vrot.slane %v7942, 4
        %v7948 = vshrl.u32 %v7687, 16
        %v7950 = vrot.slane %v7948, 7
        %v7951 = vshll.u32 %v7687, 16
        %v7953 = vor.u32 %v7950, %v7951
        %v7954 = vsel %vm421, %v7946, %v7953
        %v7955 = vrot.slane %v7950, 4
        %v7957 = vshrl.u32 %v7688, 16
        %v7959 = vrot.slane %v7957, 7
        %v7960 = vshll.u32 %v7688, 16
        %v7962 = vor.u32 %v7959, %v7960
        %v7963 = vrot.slane %v7959, 4
        %v7965 = vshrl.u32 %v7689, 16
        %v7967 = vrot.slane %v7965, 7
        %v7968 = vshll.u32 %v7689, 16
        %v7970 = vor.u32 %v7967, %v7968
        %v7971 = vsel %vm421, %v7963, %v7970
        %v7972 = vrot.slane %v7967, 4
        %v7974 = vshrl.u32 %v7690, 16
        %v7976 = vrot.slane %v7974, 7
        %v7977 = vshll.u32 %v7690, 16
        %v7979 = vor.u32 %v7976, %v7977
        %v7980 = vrot.slane %v7976, 4
        %v7982 = vshrl.u32 %v7691, 16
        %v7984 = vrot.slane %v7982, 7
        %v7985 = vshll.u32 %v7691, 16
        %v7987 = vor.u32 %v7984, %v7985
        %v7988 = vsel %vm421, %v7980, %v7987
        %v7989 = vrot.slane %v7984, 4
        %v7991 = vshrl.u32 %v7692, 16
        %v7993 = vrot.slane %v7991, 7
        %v7994 = vshll.u32 %v7692, 16
        %v7996 = vor.u32 %v7993, %v7994
        %v7997 = vrot.slane %v7993, 4
        %v7999 = vshrl.u32 %v7693, 16
        %v8001 = vrot.slane %v7999, 7
        %v8002 = vshll.u32 %v7693, 16
        %v8004 = vor.u32 %v8001, %v8002
        %v8005 = vsel %vm421, %v7997, %v8004
        %v8006 = vrot.slane %v8001, 4
        %v8008 = vshrl.u32 %v7694, 16
        %v8010 = vrot.slane %v8008, 7
        %v8011 = vshll.u32 %v7694, 16
        %v8013 = vor.u32 %v8010, %v8011
        %v8014 = vrot.slane %v8010, 4
        %v8016 = vshrl.u32 %v7695, 16
        %v8018 = vrot.slane %v8016, 7
        %v8019 = vshll.u32 %v7695, 16
        %v8021 = vor.u32 %v8018, %v8019
        %v8022 = vsel %vm421, %v8014, %v8021
        %v8023 = vrot.slane %v8018, 4
        %s8072 = scalar_lea.vmem [#allocation4], 12
        %vm8073 = vcmask 519168
        %vm8074 = vmand %vm8073, %vm744
        %v8075 = vld [vmem:[%s8072] sm:$0xf]
        %v8076 = vsel %vm8074, %v7758, %v8075
        %8077 = vst [vmem:[%s8072] sm:$0xf] %v8076
        %8078 = vst.msk [vmem:[%s8072 + $0x4] sm:$0xf] %vm7696, %v7767
        %vm8079 = vcmask 516096
        %vm8080 = vmand %vm8079, %vm419
        %v8081 = vld [vmem:[%s8072 + $0x8] sm:$0x1]
        %v8082 = vsel %vm8080, %v7768, %v8081
        %8083 = vst [vmem:[%s8072 + $0x8] sm:$0x1] %v8082
        %v8084 = vld [vmem:[%s8072 + $0xc] sm:$0xf]
        %v8085 = vsel %vm8074, %v7775, %v8084
        %8086 = vst [vmem:[%s8072 + $0xc] sm:$0xf] %v8085
        %8087 = vst.msk [vmem:[%s8072 + $0x10] sm:$0xf] %vm7696, %v7784
        %v8088 = vld [vmem:[%s8072 + $0x14] sm:$0x1]
        %v8089 = vsel %vm8080, %v7785, %v8088
        %8090 = vst [vmem:[%s8072 + $0x14] sm:$0x1] %v8089
        %v8091 = vld [vmem:[%s8072 + $0x18] sm:$0xf]
        %v8092 = vsel %vm8074, %v7792, %v8091
        %8093 = vst [vmem:[%s8072 + $0x18] sm:$0xf] %v8092
        %8094 = vst.msk [vmem:[%s8072 + $0x1c] sm:$0xf] %vm7696, %v7801
        %v8095 = vld [vmem:[%s8072 + $0x20] sm:$0x1]
        %v8096 = vsel %vm8080, %v7802, %v8095
        %8097 = vst [vmem:[%s8072 + $0x20] sm:$0x1] %v8096
        %v8098 = vld [vmem:[%s8072 + $0x24] sm:$0xf]
        %v8099 = vsel %vm8074, %v7809, %v8098
        %8100 = vst [vmem:[%s8072 + $0x24] sm:$0xf] %v8099
        %8101 = vst.msk [vmem:[%s8072 + $0x28] sm:$0xf] %vm7696, %v7818
        %v8102 = vld [vmem:[%s8072 + $0x2c] sm:$0x1]
        %v8103 = vsel %vm8080, %v7819, %v8102
        %8104 = vst [vmem:[%s8072 + $0x2c] sm:$0x1] %v8103
        %v8105 = vld [vmem:[%s8072 + $0x30] sm:$0xf]
        %v8106 = vsel %vm8074, %v7826, %v8105
        %8107 = vst [vmem:[%s8072 + $0x30] sm:$0xf] %v8106
        %8108 = vst.msk [vmem:[%s8072 + $0x34] sm:$0xf] %vm7696, %v7835
        %v8109 = vld [vmem:[%s8072 + $0x38] sm:$0x1]
        %v8110 = vsel %vm8080, %v7836, %v8109
        %8111 = vst [vmem:[%s8072 + $0x38] sm:$0x1] %v8110
        %v8112 = vld [vmem:[%s8072 + $0x3c] sm:$0xf]
        %v8113 = vsel %vm8074, %v7843, %v8112
        %8114 = vst [vmem:[%s8072 + $0x3c] sm:$0xf] %v8113
        %8115 = vst.msk [vmem:[%s8072 + $0x40] sm:$0xf] %vm7696, %v7852
        %v8116 = vld [vmem:[%s8072 + $0x44] sm:$0x1]
        %v8117 = vsel %vm8080, %v7853, %v8116
        %8118 = vst [vmem:[%s8072 + $0x44] sm:$0x1] %v8117
        %v8119 = vld [vmem:[%s8072 + $0x48] sm:$0xf]
        %v8120 = vsel %vm8074, %v7860, %v8119
        %8121 = vst [vmem:[%s8072 + $0x48] sm:$0xf] %v8120
        %8122 = vst.msk [vmem:[%s8072 + $0x4c] sm:$0xf] %vm7696, %v7869
        %v8123 = vld [vmem:[%s8072 + $0x50] sm:$0x1]
        %v8124 = vsel %vm8080, %v7870, %v8123
        %8125 = vst [vmem:[%s8072 + $0x50] sm:$0x1] %v8124
        %v8126 = vld [vmem:[%s8072 + $0x54] sm:$0xf]
        %v8127 = vsel %vm8074, %v7877, %v8126
        %8128 = vst [vmem:[%s8072 + $0x54] sm:$0xf] %v8127
        %8129 = vst.msk [vmem:[%s8072 + $0x58] sm:$0xf] %vm7696, %v7886
        %v8130 = vld [vmem:[%s8072 + $0x5c] sm:$0x1]
        %v8131 = vsel %vm8080, %v7887, %v8130
        %8132 = vst [vmem:[%s8072 + $0x5c] sm:$0x1] %v8131
        %v8133 = vld [vmem:[%s8072 + $0x60] sm:$0xf]
        %v8134 = vsel %vm8074, %v7894, %v8133
        %8135 = vst [vmem:[%s8072 + $0x60] sm:$0xf] %v8134
        %8136 = vst.msk [vmem:[%s8072 + $0x64] sm:$0xf] %vm7696, %v7903
        %v8137 = vld [vmem:[%s8072 + $0x68] sm:$0x1]
        %v8138 = vsel %vm8080, %v7904, %v8137
        %8139 = vst [vmem:[%s8072 + $0x68] sm:$0x1] %v8138
        %v8140 = vld [vmem:[%s8072 + $0x6c] sm:$0xf]
        %v8141 = vsel %vm8074, %v7911, %v8140
        %8142 = vst [vmem:[%s8072 + $0x6c] sm:$0xf] %v8141
        %8143 = vst.msk [vmem:[%s8072 + $0x70] sm:$0xf] %vm7696, %v7920
        %v8144 = vld [vmem:[%s8072 + $0x74] sm:$0x1]
        %v8145 = vsel %vm8080, %v7921, %v8144
        %8146 = vst [vmem:[%s8072 + $0x74] sm:$0x1] %v8145
        %v8147 = vld [vmem:[%s8072 + $0x78] sm:$0xf]
        %v8148 = vsel %vm8074, %v7928, %v8147
        %8149 = vst [vmem:[%s8072 + $0x78] sm:$0xf] %v8148
        %8150 = vst.msk [vmem:[%s8072 + $0x7c] sm:$0xf] %vm7696, %v7937
        %v8151 = vld [vmem:[%s8072 + $0x80] sm:$0x1]
        %v8152 = vsel %vm8080, %v7938, %v8151
        %8153 = vst [vmem:[%s8072 + $0x80] sm:$0x1] %v8152
        %v8154 = vld [vmem:[%s8072 + $0x84] sm:$0xf]
        %v8155 = vsel %vm8074, %v7945, %v8154
        %8156 = vst [vmem:[%s8072 + $0x84] sm:$0xf] %v8155
        %8157 = vst.msk [vmem:[%s8072 + $0x88] sm:$0xf] %vm7696, %v7954
        %v8158 = vld [vmem:[%s8072 + $0x8c] sm:$0x1]
        %v8159 = vsel %vm8080, %v7955, %v8158
        %8160 = vst [vmem:[%s8072 + $0x8c] sm:$0x1] %v8159
        %v8161 = vld [vmem:[%s8072 + $0x90] sm:$0xf]
        %v8162 = vsel %vm8074, %v7962, %v8161
        %8163 = vst [vmem:[%s8072 + $0x90] sm:$0xf] %v8162
        %8164 = vst.msk [vmem:[%s8072 + $0x94] sm:$0xf] %vm7696, %v7971
        %v8165 = vld [vmem:[%s8072 + $0x98] sm:$0x1]
        %v8166 = vsel %vm8080, %v7972, %v8165
        %8167 = vst [vmem:[%s8072 + $0x98] sm:$0x1] %v8166
        %v8168 = vld [vmem:[%s8072 + $0x9c] sm:$0xf]
        %v8169 = vsel %vm8074, %v7979, %v8168
        %8170 = vst [vmem:[%s8072 + $0x9c] sm:$0xf] %v8169
        %8171 = vst.msk [vmem:[%s8072 + $0xa0] sm:$0xf] %vm7696, %v7988
        %v8172 = vld [vmem:[%s8072 + $0xa4] sm:$0x1]
        %v8173 = vsel %vm8080, %v7989, %v8172
        %8174 = vst [vmem:[%s8072 + $0xa4] sm:$0x1] %v8173
        %v8175 = vld [vmem:[%s8072 + $0xa8] sm:$0xf]
        %v8176 = vsel %vm8074, %v7996, %v8175
        %8177 = vst [vmem:[%s8072 + $0xa8] sm:$0xf] %v8176
        %8178 = vst.msk [vmem:[%s8072 + $0xac] sm:$0xf] %vm7696, %v8005
        %v8179 = vld [vmem:[%s8072 + $0xb0] sm:$0x1]
        %v8180 = vsel %vm8080, %v8006, %v8179
        %8181 = vst [vmem:[%s8072 + $0xb0] sm:$0x1] %v8180
        %v8182 = vld [vmem:[%s8072 + $0xb4] sm:$0xf]
        %v8183 = vsel %vm8074, %v8013, %v8182
        %8184 = vst [vmem:[%s8072 + $0xb4] sm:$0xf] %v8183
        %8185 = vst.msk [vmem:[%s8072 + $0xb8] sm:$0xf] %vm7696, %v8022
        %v8186 = vld [vmem:[%s8072 + $0xbc] sm:$0x1]
        %v8187 = vsel %vm8080, %v8023, %v8186
        %8188 = vst [vmem:[%s8072 + $0xbc] sm:$0x1] %v8187
        %v8189 = vld [vmem:[#allocation4] sm:$0xf]
        %v8190 = vld [vmem:[#allocation4 + $0x4] sm:$0xf]
        %v8191 = vld [vmem:[#allocation4 + $0xc] sm:$0xf]
        %v8192 = vld [vmem:[#allocation4 + $0x10] sm:$0xf]
        %v8193 = vld [vmem:[#allocation4 + $0x18] sm:$0xf]
        %v8194 = vld [vmem:[#allocation4 + $0x1c] sm:$0xf]
        %v8195 = vld [vmem:[#allocation4 + $0x24] sm:$0xf]
        %v8196 = vld [vmem:[#allocation4 + $0x28] sm:$0xf]
        %v8197 = vld [vmem:[#allocation4 + $0x30] sm:$0xf]
        %v8198 = vld [vmem:[#allocation4 + $0x34] sm:$0xf]
        %v8199 = vld [vmem:[#allocation4 + $0x3c] sm:$0xf]
        %v8200 = vld [vmem:[#allocation4 + $0x40] sm:$0xf]
        %v8201 = vld [vmem:[#allocation4 + $0x48] sm:$0xf]
        %v8202 = vld [vmem:[#allocation4 + $0x4c] sm:$0xf]
        %v8203 = vld [vmem:[#allocation4 + $0x54] sm:$0xf]
        %v8204 = vld [vmem:[#allocation4 + $0x58] sm:$0xf]
        %v8205 = vld [vmem:[#allocation4 + $0x60] sm:$0xf]
        %v8206 = vld [vmem:[#allocation4 + $0x64] sm:$0xf]
        %v8207 = vld [vmem:[#allocation4 + $0x6c] sm:$0xf]
        %v8208 = vld [vmem:[#allocation4 + $0x70] sm:$0xf]
        %v8209 = vld [vmem:[#allocation4 + $0x78] sm:$0xf]
        %v8210 = vld [vmem:[#allocation4 + $0x7c] sm:$0xf]
        %v8211 = vld [vmem:[#allocation4 + $0x84] sm:$0xf]
        %v8212 = vld [vmem:[#allocation4 + $0x88] sm:$0xf]
        %v8213 = vld [vmem:[#allocation4 + $0x90] sm:$0xf]
        %v8214 = vld [vmem:[#allocation4 + $0x94] sm:$0xf]
        %v8215 = vld [vmem:[#allocation4 + $0x9c] sm:$0xf]
        %v8216 = vld [vmem:[#allocation4 + $0xa0] sm:$0xf]
        %v8217 = vld [vmem:[#allocation4 + $0xa8] sm:$0xf]
        %v8218 = vld [vmem:[#allocation4 + $0xac] sm:$0xf]
        %v8219 = vld [vmem:[#allocation4 + $0xb4] sm:$0xf]
        %v8220 = vld [vmem:[#allocation4 + $0xb8] sm:$0xf]
        %v8221 = vld [vmem:[#allocation4 + $0x8] sm:$0x1]
        %v8222 = vld [vmem:[#allocation4 + $0x14] sm:$0x1]
        %v8223 = vld [vmem:[#allocation4 + $0x20] sm:$0x1]
        %v8224 = vld [vmem:[#allocation4 + $0x2c] sm:$0x1]
        %v8225 = vld [vmem:[#allocation4 + $0x38] sm:$0x1]
        %v8226 = vld [vmem:[#allocation4 + $0x44] sm:$0x1]
        %v8227 = vld [vmem:[#allocation4 + $0x50] sm:$0x1]
        %v8228 = vld [vmem:[#allocation4 + $0x5c] sm:$0x1]
        %v8229 = vld [vmem:[#allocation4 + $0x68] sm:$0x1]
        %v8230 = vld [vmem:[#allocation4 + $0x74] sm:$0x1]
        %v8231 = vld [vmem:[#allocation4 + $0x80] sm:$0x1]
        %v8232 = vld [vmem:[#allocation4 + $0x8c] sm:$0x1]
        %v8233 = vld [vmem:[#allocation4 + $0x98] sm:$0x1]
        %v8234 = vld [vmem:[#allocation4 + $0xa4] sm:$0x1]
        %v8235 = vld [vmem:[#allocation4 + $0xb0] sm:$0x1]
        %v8236 = vld [vmem:[#allocation4 + $0xbc] sm:$0x1]
        %v8238 = vshrl.u32 %v8189, 16
        %v8240 = vrot.slane %v8238, 4
        %v8241 = vshll.u32 %v8189, 16
        %v8243 = vrot.slane %v8241, 5
        %v8244 = vor.u32 %v8240, %v8243
        %v8245 = vrot.slane %v8244, 4
        %v8247 = vshll.u32 %v8190, 16
        %v8249 = vrot.slane %v8247, 5
        %v8250 = vsel %vm910, %v8245, %v8249
        %v8251 = vshrl.u32 %v8190, 16
        %v8253 = vrot.slane %v8251, 4
        %v8254 = vor.u32 %v8253, %v8249
        %v8255 = vrot.slane %v8254, 4
        %v8257 = vshll.u32 %v8221, 16
        %v8259 = vrot.slane %v8257, 5
        %v8260 = vsel %vm910, %v8255, %v8259
        %v8262 = vshrl.u32 %v8191, 16
        %v8264 = vrot.slane %v8262, 4
        %v8265 = vshll.u32 %v8191, 16
        %v8267 = vrot.slane %v8265, 5
        %v8268 = vor.u32 %v8264, %v8267
        %v8269 = vrot.slane %v8268, 4
        %v8271 = vshll.u32 %v8192, 16
        %v8273 = vrot.slane %v8271, 5
        %v8274 = vsel %vm910, %v8269, %v8273
        %v8275 = vshrl.u32 %v8192, 16
        %v8277 = vrot.slane %v8275, 4
        %v8278 = vor.u32 %v8277, %v8273
        %v8279 = vrot.slane %v8278, 4
        %v8281 = vshll.u32 %v8222, 16
        %v8283 = vrot.slane %v8281, 5
        %v8284 = vsel %vm910, %v8279, %v8283
        %v8286 = vshrl.u32 %v8193, 16
        %v8288 = vrot.slane %v8286, 4
        %v8289 = vshll.u32 %v8193, 16
        %v8291 = vrot.slane %v8289, 5
        %v8292 = vor.u32 %v8288, %v8291
        %v8293 = vrot.slane %v8292, 4
        %v8295 = vshll.u32 %v8194, 16
        %v8297 = vrot.slane %v8295, 5
        %v8298 = vsel %vm910, %v8293, %v8297
        %v8299 = vshrl.u32 %v8194, 16
        %v8301 = vrot.slane %v8299, 4
        %v8302 = vor.u32 %v8301, %v8297
        %v8303 = vrot.slane %v8302, 4
        %v8305 = vshll.u32 %v8223, 16
        %v8307 = vrot.slane %v8305, 5
        %v8308 = vsel %vm910, %v8303, %v8307
        %v8310 = vshrl.u32 %v8195, 16
        %v8312 = vrot.slane %v8310, 4
        %v8313 = vshll.u32 %v8195, 16
        %v8315 = vrot.slane %v8313, 5
        %v8316 = vor.u32 %v8312, %v8315
        %v8317 = vrot.slane %v8316, 4
        %v8319 = vshll.u32 %v8196, 16
        %v8321 = vrot.slane %v8319, 5
        %v8322 = vsel %vm910, %v8317, %v8321
        %v8323 = vshrl.u32 %v8196, 16
        %v8325 = vrot.slane %v8323, 4
        %v8326 = vor.u32 %v8325, %v8321
        %v8327 = vrot.slane %v8326, 4
        %v8329 = vshll.u32 %v8224, 16
        %v8331 = vrot.slane %v8329, 5
        %v8332 = vsel %vm910, %v8327, %v8331
        %v8334 = vshrl.u32 %v8197, 16
        %v8336 = vrot.slane %v8334, 4
        %v8337 = vshll.u32 %v8197, 16
        %v8339 = vrot.slane %v8337, 5
        %v8340 = vor.u32 %v8336, %v8339
        %v8341 = vrot.slane %v8340, 4
        %v8343 = vshll.u32 %v8198, 16
        %v8345 = vrot.slane %v8343, 5
        %v8346 = vsel %vm910, %v8341, %v8345
        %v8347 = vshrl.u32 %v8198, 16
        %v8349 = vrot.slane %v8347, 4
        %v8350 = vor.u32 %v8349, %v8345
        %v8351 = vrot.slane %v8350, 4
        %v8353 = vshll.u32 %v8225, 16
        %v8355 = vrot.slane %v8353, 5
        %v8356 = vsel %vm910, %v8351, %v8355
        %v8358 = vshrl.u32 %v8199, 16
        %v8360 = vrot.slane %v8358, 4
        %v8361 = vshll.u32 %v8199, 16
        %v8363 = vrot.slane %v8361, 5
        %v8364 = vor.u32 %v8360, %v8363
        %v8365 = vrot.slane %v8364, 4
        %v8367 = vshll.u32 %v8200, 16
        %v8369 = vrot.slane %v8367, 5
        %v8370 = vsel %vm910, %v8365, %v8369
        %v8371 = vshrl.u32 %v8200, 16
        %v8373 = vrot.slane %v8371, 4
        %v8374 = vor.u32 %v8373, %v8369
        %v8375 = vrot.slane %v8374, 4
        %v8377 = vshll.u32 %v8226, 16
        %v8379 = vrot.slane %v8377, 5
        %v8380 = vsel %vm910, %v8375, %v8379
        %v8382 = vshrl.u32 %v8201, 16
        %v8384 = vrot.slane %v8382, 4
        %v8385 = vshll.u32 %v8201, 16
        %v8387 = vrot.slane %v8385, 5
        %v8388 = vor.u32 %v8384, %v8387
        %v8389 = vrot.slane %v8388, 4
        %v8391 = vshll.u32 %v8202, 16
        %v8393 = vrot.slane %v8391, 5
        %v8394 = vsel %vm910, %v8389, %v8393
        %v8395 = vshrl.u32 %v8202, 16
        %v8397 = vrot.slane %v8395, 4
        %v8398 = vor.u32 %v8397, %v8393
        %v8399 = vrot.slane %v8398, 4
        %v8401 = vshll.u32 %v8227, 16
        %v8403 = vrot.slane %v8401, 5
        %v8404 = vsel %vm910, %v8399, %v8403
        %v8406 = vshrl.u32 %v8203, 16
        %v8408 = vrot.slane %v8406, 4
        %v8409 = vshll.u32 %v8203, 16
        %v8411 = vrot.slane %v8409, 5
        %v8412 = vor.u32 %v8408, %v8411
        %v8413 = vrot.slane %v8412, 4
        %v8415 = vshll.u32 %v8204, 16
        %v8417 = vrot.slane %v8415, 5
        %v8418 = vsel %vm910, %v8413, %v8417
        %v8419 = vshrl.u32 %v8204, 16
        %v8421 = vrot.slane %v8419, 4
        %v8422 = vor.u32 %v8421, %v8417
        %v8423 = vrot.slane %v8422, 4
        %v8425 = vshll.u32 %v8228, 16
        %v8427 = vrot.slane %v8425, 5
        %v8428 = vsel %vm910, %v8423, %v8427
        %v8430 = vshrl.u32 %v8205, 16
        %v8432 = vrot.slane %v8430, 4
        %v8433 = vshll.u32 %v8205, 16
        %v8435 = vrot.slane %v8433, 5
        %v8436 = vor.u32 %v8432, %v8435
        %v8437 = vrot.slane %v8436, 4
        %v8439 = vshll.u32 %v8206, 16
        %v8441 = vrot.slane %v8439, 5
        %v8442 = vsel %vm910, %v8437, %v8441
        %v8443 = vshrl.u32 %v8206, 16
        %v8445 = vrot.slane %v8443, 4
        %v8446 = vor.u32 %v8445, %v8441
        %v8447 = vrot.slane %v8446, 4
        %v8449 = vshll.u32 %v8229, 16
        %v8451 = vrot.slane %v8449, 5
        %v8452 = vsel %vm910, %v8447, %v8451
        %v8454 = vshrl.u32 %v8207, 16
        %v8456 = vrot.slane %v8454, 4
        %v8457 = vshll.u32 %v8207, 16
        %v8459 = vrot.slane %v8457, 5
        %v8460 = vor.u32 %v8456, %v8459
        %v8461 = vrot.slane %v8460, 4
        %v8463 = vshll.u32 %v8208, 16
        %v8465 = vrot.slane %v8463, 5
        %v8466 = vsel %vm910, %v8461, %v8465
        %v8467 = vshrl.u32 %v8208, 16
        %v8469 = vrot.slane %v8467, 4
        %v8470 = vor.u32 %v8469, %v8465
        %v8471 = vrot.slane %v8470, 4
        %v8473 = vshll.u32 %v8230, 16
        %v8475 = vrot.slane %v8473, 5
        %v8476 = vsel %vm910, %v8471, %v8475
        %v8478 = vshrl.u32 %v8209, 16
        %v8480 = vrot.slane %v8478, 4
        %v8481 = vshll.u32 %v8209, 16
        %v8483 = vrot.slane %v8481, 5
        %v8484 = vor.u32 %v8480, %v8483
        %v8485 = vrot.slane %v8484, 4
        %v8487 = vshll.u32 %v8210, 16
        %v8489 = vrot.slane %v8487, 5
        %v8490 = vsel %vm910, %v8485, %v8489
        %v8491 = vshrl.u32 %v8210, 16
        %v8493 = vrot.slane %v8491, 4
        %v8494 = vor.u32 %v8493, %v8489
        %v8495 = vrot.slane %v8494, 4
        %v8497 = vshll.u32 %v8231, 16
        %v8499 = vrot.slane %v8497, 5
        %v8500 = vsel %vm910, %v8495, %v8499
        %v8502 = vshrl.u32 %v8211, 16
        %v8504 = vrot.slane %v8502, 4
        %v8505 = vshll.u32 %v8211, 16
        %v8507 = vrot.slane %v8505, 5
        %v8508 = vor.u32 %v8504, %v8507
        %v8509 = vrot.slane %v8508, 4
        %v8511 = vshll.u32 %v8212, 16
        %v8513 = vrot.slane %v8511, 5
        %v8514 = vsel %vm910, %v8509, %v8513
        %v8515 = vshrl.u32 %v8212, 16
        %v8517 = vrot.slane %v8515, 4
        %v8518 = vor.u32 %v8517, %v8513
        %v8519 = vrot.slane %v8518, 4
        %v8521 = vshll.u32 %v8232, 16
        %v8523 = vrot.slane %v8521, 5
        %v8524 = vsel %vm910, %v8519, %v8523
        %v8526 = vshrl.u32 %v8213, 16
        %v8528 = vrot.slane %v8526, 4
        %v8529 = vshll.u32 %v8213, 16
        %v8531 = vrot.slane %v8529, 5
        %v8532 = vor.u32 %v8528, %v8531
        %v8533 = vrot.slane %v8532, 4
        %v8535 = vshll.u32 %v8214, 16
        %v8537 = vrot.slane %v8535, 5
        %v8538 = vsel %vm910, %v8533, %v8537
        %v8539 = vshrl.u32 %v8214, 16
        %v8541 = vrot.slane %v8539, 4
        %v8542 = vor.u32 %v8541, %v8537
        %v8543 = vrot.slane %v8542, 4
        %v8545 = vshll.u32 %v8233, 16
        %v8547 = vrot.slane %v8545, 5
        %v8548 = vsel %vm910, %v8543, %v8547
        %v8550 = vshrl.u32 %v8215, 16
        %v8552 = vrot.slane %v8550, 4
        %v8553 = vshll.u32 %v8215, 16
        %v8555 = vrot.slane %v8553, 5
        %v8556 = vor.u32 %v8552, %v8555
        %v8557 = vrot.slane %v8556, 4
        %v8559 = vshll.u32 %v8216, 16
        %v8561 = vrot.slane %v8559, 5
        %v8562 = vsel %vm910, %v8557, %v8561
        %v8563 = vshrl.u32 %v8216, 16
        %v8565 = vrot.slane %v8563, 4
        %v8566 = vor.u32 %v8565, %v8561
        %v8567 = vrot.slane %v8566, 4
        %v8569 = vshll.u32 %v8234, 16
        %v8571 = vrot.slane %v8569, 5
        %v8572 = vsel %vm910, %v8567, %v8571
        %v8574 = vshrl.u32 %v8217, 16
        %v8576 = vrot.slane %v8574, 4
        %v8577 = vshll.u32 %v8217, 16
        %v8579 = vrot.slane %v8577, 5
        %v8580 = vor.u32 %v8576, %v8579
        %v8581 = vrot.slane %v8580, 4
        %v8583 = vshll.u32 %v8218, 16
        %v8585 = vrot.slane %v8583, 5
        %v8586 = vsel %vm910, %v8581, %v8585
        %v8587 = vshrl.u32 %v8218, 16
        %v8589 = vrot.slane %v8587, 4
        %v8590 = vor.u32 %v8589, %v8585
        %v8591 = vrot.slane %v8590, 4
        %v8593 = vshll.u32 %v8235, 16
        %v8595 = vrot.slane %v8593, 5
        %v8596 = vsel %vm910, %v8591, %v8595
        %v8598 = vshrl.u32 %v8219, 16
        %v8600 = vrot.slane %v8598, 4
        %v8601 = vshll.u32 %v8219, 16
        %v8603 = vrot.slane %v8601, 5
        %v8604 = vor.u32 %v8600, %v8603
        %v8605 = vrot.slane %v8604, 4
        %v8607 = vshll.u32 %v8220, 16
        %v8609 = vrot.slane %v8607, 5
        %v8610 = vsel %vm910, %v8605, %v8609
        %v8611 = vshrl.u32 %v8220, 16
        %v8613 = vrot.slane %v8611, 4
        %v8614 = vor.u32 %v8613, %v8609
        %v8615 = vrot.slane %v8614, 4
        %v8617 = vshll.u32 %v8236, 16
        %v8619 = vrot.slane %v8617, 5
        %v8620 = vsel %vm910, %v8615, %v8619
        %v8621 = vld [vmem:[#allocation4] sm:$0xe]
        %v8622 = vld [vmem:[#allocation4 + $0xc] sm:$0xe]
        %v8623 = vld [vmem:[#allocation4 + $0x18] sm:$0xe]
        %v8624 = vld [vmem:[#allocation4 + $0x24] sm:$0xe]
        %v8625 = vld [vmem:[#allocation4 + $0x30] sm:$0xe]
        %v8626 = vld [vmem:[#allocation4 + $0x3c] sm:$0xe]
        %v8627 = vld [vmem:[#allocation4 + $0x48] sm:$0xe]
        %v8628 = vld [vmem:[#allocation4 + $0x54] sm:$0xe]
        %v8629 = vld [vmem:[#allocation4 + $0x60] sm:$0xe]
        %v8630 = vld [vmem:[#allocation4 + $0x6c] sm:$0xe]
        %v8631 = vld [vmem:[#allocation4 + $0x78] sm:$0xe]
        %v8632 = vld [vmem:[#allocation4 + $0x84] sm:$0xe]
        %v8633 = vld [vmem:[#allocation4 + $0x90] sm:$0xe]
        %v8634 = vld [vmem:[#allocation4 + $0x9c] sm:$0xe]
        %v8635 = vld [vmem:[#allocation4 + $0xa8] sm:$0xe]
        %v8636 = vld [vmem:[#allocation4 + $0xb4] sm:$0xe]
        %v8685 = vrot.slane %v8621, 5
        %v8686 = vrot.slane %v8685, 4
        %v8687 = vrot.slane %v8190, 5
        %v8688 = vsel %vm1361, %v8686, %v8687
        %v8689 = vrot.slane %v8687, 4
        %v8690 = vrot.slane %v8221, 5
        %v8691 = vsel %vm1361, %v8689, %v8690
        %v8692 = vrot.slane %v8622, 5
        %v8693 = vrot.slane %v8692, 4
        %v8694 = vrot.slane %v8192, 5
        %v8695 = vsel %vm1361, %v8693, %v8694
        %v8696 = vrot.slane %v8694, 4
        %v8697 = vrot.slane %v8222, 5
        %v8698 = vsel %vm1361, %v8696, %v8697
        %v8699 = vrot.slane %v8623, 5
        %v8700 = vrot.slane %v8699, 4
        %v8701 = vrot.slane %v8194, 5
        %v8702 = vsel %vm1361, %v8700, %v8701
        %v8703 = vrot.slane %v8701, 4
        %v8704 = vrot.slane %v8223, 5
        %v8705 = vsel %vm1361, %v8703, %v8704
        %v8706 = vrot.slane %v8624, 5
        %v8707 = vrot.slane %v8706, 4
        %v8708 = vrot.slane %v8196, 5
        %v8709 = vsel %vm1361, %v8707, %v8708
        %v8710 = vrot.slane %v8708, 4
        %v8711 = vrot.slane %v8224, 5
        %v8712 = vsel %vm1361, %v8710, %v8711
        %v8713 = vrot.slane %v8625, 5
        %v8714 = vrot.slane %v8713, 4
        %v8715 = vrot.slane %v8198, 5
        %v8716 = vsel %vm1361, %v8714, %v8715
        %v8717 = vrot.slane %v8715, 4
        %v8718 = vrot.slane %v8225, 5
        %v8719 = vsel %vm1361, %v8717, %v8718
        %v8720 = vrot.slane %v8626, 5
        %v8721 = vrot.slane %v8720, 4
        %v8722 = vrot.slane %v8200, 5
        %v8723 = vsel %vm1361, %v8721, %v8722
        %v8724 = vrot.slane %v8722, 4
        %v8725 = vrot.slane %v8226, 5
        %v8726 = vsel %vm1361, %v8724, %v8725
        %v8727 = vrot.slane %v8627, 5
        %v8728 = vrot.slane %v8727, 4
        %v8729 = vrot.slane %v8202, 5
        %v8730 = vsel %vm1361, %v8728, %v8729
        %v8731 = vrot.slane %v8729, 4
        %v8732 = vrot.slane %v8227, 5
        %v8733 = vsel %vm1361, %v8731, %v8732
        %v8734 = vrot.slane %v8628, 5
        %v8735 = vrot.slane %v8734, 4
        %v8736 = vrot.slane %v8204, 5
        %v8737 = vsel %vm1361, %v8735, %v8736
        %v8738 = vrot.slane %v8736, 4
        %v8739 = vrot.slane %v8228, 5
        %v8740 = vsel %vm1361, %v8738, %v8739
        %v8741 = vrot.slane %v8629, 5
        %v8742 = vrot.slane %v8741, 4
        %v8743 = vrot.slane %v8206, 5
        %v8744 = vsel %vm1361, %v8742, %v8743
        %v8745 = vrot.slane %v8743, 4
        %v8746 = vrot.slane %v8229, 5
        %v8747 = vsel %vm1361, %v8745, %v8746
        %v8748 = vrot.slane %v8630, 5
        %v8749 = vrot.slane %v8748, 4
        %v8750 = vrot.slane %v8208, 5
        %v8751 = vsel %vm1361, %v8749, %v8750
        %v8752 = vrot.slane %v8750, 4
        %v8753 = vrot.slane %v8230, 5
        %v8754 = vsel %vm1361, %v8752, %v8753
        %v8755 = vrot.slane %v8631, 5
        %v8756 = vrot.slane %v8755, 4
        %v8757 = vrot.slane %v8210, 5
        %v8758 = vsel %vm1361, %v8756, %v8757
        %v8759 = vrot.slane %v8757, 4
        %v8760 = vrot.slane %v8231, 5
        %v8761 = vsel %vm1361, %v8759, %v8760
        %v8762 = vrot.slane %v8632, 5
        %v8763 = vrot.slane %v8762, 4
        %v8764 = vrot.slane %v8212, 5
        %v8765 = vsel %vm1361, %v8763, %v8764
        %v8766 = vrot.slane %v8764, 4
        %v8767 = vrot.slane %v8232, 5
        %v8768 = vsel %vm1361, %v8766, %v8767
        %v8769 = vrot.slane %v8633, 5
        %v8770 = vrot.slane %v8769, 4
        %v8771 = vrot.slane %v8214, 5
        %v8772 = vsel %vm1361, %v8770, %v8771
        %v8773 = vrot.slane %v8771, 4
        %v8774 = vrot.slane %v8233, 5
        %v8775 = vsel %vm1361, %v8773, %v8774
        %v8776 = vrot.slane %v8634, 5
        %v8777 = vrot.slane %v8776, 4
        %v8778 = vrot.slane %v8216, 5
        %v8779 = vsel %vm1361, %v8777, %v8778
        %v8780 = vrot.slane %v8778, 4
        %v8781 = vrot.slane %v8234, 5
        %v8782 = vsel %vm1361, %v8780, %v8781
        %v8783 = vrot.slane %v8635, 5
        %v8784 = vrot.slane %v8783, 4
        %v8785 = vrot.slane %v8218, 5
        %v8786 = vsel %vm1361, %v8784, %v8785
        %v8787 = vrot.slane %v8785, 4
        %v8788 = vrot.slane %v8235, 5
        %v8789 = vsel %vm1361, %v8787, %v8788
        %v8790 = vrot.slane %v8636, 5
        %v8791 = vrot.slane %v8790, 4
        %v8792 = vrot.slane %v8220, 5
        %v8793 = vsel %vm1361, %v8791, %v8792
        %v8794 = vrot.slane %v8792, 4
        %v8795 = vrot.slane %v8236, 5
        %v8796 = vsel %vm1361, %v8794, %v8795
        %v8797 = vld [vmem:[%s8072] sm:$0xf]
        %v8798 = vld [vmem:[%s8072 + $0x4] sm:$0xf]
        %v8799 = vld [vmem:[%s8072 + $0xc] sm:$0xf]
        %v8800 = vld [vmem:[%s8072 + $0x10] sm:$0xf]
        %v8801 = vld [vmem:[%s8072 + $0x18] sm:$0xf]
        %v8802 = vld [vmem:[%s8072 + $0x1c] sm:$0xf]
        %v8803 = vld [vmem:[%s8072 + $0x24] sm:$0xf]
        %v8804 = vld [vmem:[%s8072 + $0x28] sm:$0xf]
        %v8805 = vld [vmem:[%s8072 + $0x30] sm:$0xf]
        %v8806 = vld [vmem:[%s8072 + $0x34] sm:$0xf]
        %v8807 = vld [vmem:[%s8072 + $0x3c] sm:$0xf]
        %v8808 = vld [vmem:[%s8072 + $0x40] sm:$0xf]
        %v8809 = vld [vmem:[%s8072 + $0x48] sm:$0xf]
        %v8810 = vld [vmem:[%s8072 + $0x4c] sm:$0xf]
        %v8811 = vld [vmem:[%s8072 + $0x54] sm:$0xf]
        %v8812 = vld [vmem:[%s8072 + $0x58] sm:$0xf]
        %v8813 = vld [vmem:[%s8072 + $0x60] sm:$0xf]
        %v8814 = vld [vmem:[%s8072 + $0x64] sm:$0xf]
        %v8815 = vld [vmem:[%s8072 + $0x6c] sm:$0xf]
        %v8816 = vld [vmem:[%s8072 + $0x70] sm:$0xf]
        %v8817 = vld [vmem:[%s8072 + $0x78] sm:$0xf]
        %v8818 = vld [vmem:[%s8072 + $0x7c] sm:$0xf]
        %v8819 = vld [vmem:[%s8072 + $0x84] sm:$0xf]
        %v8820 = vld [vmem:[%s8072 + $0x88] sm:$0xf]
        %v8821 = vld [vmem:[%s8072 + $0x90] sm:$0xf]
        %v8822 = vld [vmem:[%s8072 + $0x94] sm:$0xf]
        %v8823 = vld [vmem:[%s8072 + $0x9c] sm:$0xf]
        %v8824 = vld [vmem:[%s8072 + $0xa0] sm:$0xf]
        %v8825 = vld [vmem:[%s8072 + $0xa8] sm:$0xf]
        %v8826 = vld [vmem:[%s8072 + $0xac] sm:$0xf]
        %v8827 = vld [vmem:[%s8072 + $0xb4] sm:$0xf]
        %v8828 = vld [vmem:[%s8072 + $0xb8] sm:$0xf]
        %v8829 = vld [vmem:[%s8072 + $0x8] sm:$0x1]
        %v8830 = vld [vmem:[%s8072 + $0x14] sm:$0x1]
        %v8831 = vld [vmem:[%s8072 + $0x20] sm:$0x1]
        %v8832 = vld [vmem:[%s8072 + $0x2c] sm:$0x1]
        %v8833 = vld [vmem:[%s8072 + $0x38] sm:$0x1]
        %v8834 = vld [vmem:[%s8072 + $0x44] sm:$0x1]
        %v8835 = vld [vmem:[%s8072 + $0x50] sm:$0x1]
        %v8836 = vld [vmem:[%s8072 + $0x5c] sm:$0x1]
        %v8837 = vld [vmem:[%s8072 + $0x68] sm:$0x1]
        %v8838 = vld [vmem:[%s8072 + $0x74] sm:$0x1]
        %v8839 = vld [vmem:[%s8072 + $0x80] sm:$0x1]
        %v8840 = vld [vmem:[%s8072 + $0x8c] sm:$0x1]
        %v8841 = vld [vmem:[%s8072 + $0x98] sm:$0x1]
        %v8842 = vld [vmem:[%s8072 + $0xa4] sm:$0x1]
        %v8843 = vld [vmem:[%s8072 + $0xb0] sm:$0x1]
        %v8844 = vld [vmem:[%s8072 + $0xbc] sm:$0x1]
        %v8846 = vshrl.u32 %v8797, 16
        %v8848 = vrot.slane %v8846, 4
        %v8849 = vshll.u32 %v8797, 16
        %v8851 = vrot.slane %v8849, 5
        %v8852 = vor.u32 %v8848, %v8851
        %v8853 = vrot.slane %v8852, 4
        %v8855 = vshll.u32 %v8798, 16
        %v8857 = vrot.slane %v8855, 5
        %v8858 = vsel %vm910, %v8853, %v8857
        %v8859 = vshrl.u32 %v8798, 16
        %v8861 = vrot.slane %v8859, 4
        %v8862 = vor.u32 %v8861, %v8857
        %v8863 = vrot.slane %v8862, 4
        %v8865 = vshll.u32 %v8829, 16
        %v8867 = vrot.slane %v8865, 5
        %v8868 = vsel %vm910, %v8863, %v8867
        %v8870 = vshrl.u32 %v8799, 16
        %v8872 = vrot.slane %v8870, 4
        %v8873 = vshll.u32 %v8799, 16
        %v8875 = vrot.slane %v8873, 5
        %v8876 = vor.u32 %v8872, %v8875
        %v8877 = vrot.slane %v8876, 4
        %v8879 = vshll.u32 %v8800, 16
        %v8881 = vrot.slane %v8879, 5
        %v8882 = vsel %vm910, %v8877, %v8881
        %v8883 = vshrl.u32 %v8800, 16
        %v8885 = vrot.slane %v8883, 4
        %v8886 = vor.u32 %v8885, %v8881
        %v8887 = vrot.slane %v8886, 4
        %v8889 = vshll.u32 %v8830, 16
        %v8891 = vrot.slane %v8889, 5
        %v8892 = vsel %vm910, %v8887, %v8891
        %v8894 = vshrl.u32 %v8801, 16
        %v8896 = vrot.slane %v8894, 4
        %v8897 = vshll.u32 %v8801, 16
        %v8899 = vrot.slane %v8897, 5
        %v8900 = vor.u32 %v8896, %v8899
        %v8901 = vrot.slane %v8900, 4
        %v8903 = vshll.u32 %v8802, 16
        %v8905 = vrot.slane %v8903, 5
        %v8906 = vsel %vm910, %v8901, %v8905
        %v8907 = vshrl.u32 %v8802, 16
        %v8909 = vrot.slane %v8907, 4
        %v8910 = vor.u32 %v8909, %v8905
        %v8911 = vrot.slane %v8910, 4
        %v8913 = vshll.u32 %v8831, 16
        %v8915 = vrot.slane %v8913, 5
        %v8916 = vsel %vm910, %v8911, %v8915
        %v8918 = vshrl.u32 %v8803, 16
        %v8920 = vrot.slane %v8918, 4
        %v8921 = vshll.u32 %v8803, 16
        %v8923 = vrot.slane %v8921, 5
        %v8924 = vor.u32 %v8920, %v8923
        %v8925 = vrot.slane %v8924, 4
        %v8927 = vshll.u32 %v8804, 16
        %v8929 = vrot.slane %v8927, 5
        %v8930 = vsel %vm910, %v8925, %v8929
        %v8931 = vshrl.u32 %v8804, 16
        %v8933 = vrot.slane %v8931, 4
        %v8934 = vor.u32 %v8933, %v8929
        %v8935 = vrot.slane %v8934, 4
        %v8937 = vshll.u32 %v8832, 16
        %v8939 = vrot.slane %v8937, 5
        %v8940 = vsel %vm910, %v8935, %v8939
        %v8942 = vshrl.u32 %v8805, 16
        %v8944 = vrot.slane %v8942, 4
        %v8945 = vshll.u32 %v8805, 16
        %v8947 = vrot.slane %v8945, 5
        %v8948 = vor.u32 %v8944, %v8947
        %v8949 = vrot.slane %v8948, 4
        %v8951 = vshll.u32 %v8806, 16
        %v8953 = vrot.slane %v8951, 5
        %v8954 = vsel %vm910, %v8949, %v8953
        %v8955 = vshrl.u32 %v8806, 16
        %v8957 = vrot.slane %v8955, 4
        %v8958 = vor.u32 %v8957, %v8953
        %v8959 = vrot.slane %v8958, 4
        %v8961 = vshll.u32 %v8833, 16
        %v8963 = vrot.slane %v8961, 5
        %v8964 = vsel %vm910, %v8959, %v8963
        %v8966 = vshrl.u32 %v8807, 16
        %v8968 = vrot.slane %v8966, 4
        %v8969 = vshll.u32 %v8807, 16
        %v8971 = vrot.slane %v8969, 5
        %v8972 = vor.u32 %v8968, %v8971
        %v8973 = vrot.slane %v8972, 4
        %v8975 = vshll.u32 %v8808, 16
        %v8977 = vrot.slane %v8975, 5
        %v8978 = vsel %vm910, %v8973, %v8977
        %v8979 = vshrl.u32 %v8808, 16
        %v8981 = vrot.slane %v8979, 4
        %v8982 = vor.u32 %v8981, %v8977
        %v8983 = vrot.slane %v8982, 4
        %v8985 = vshll.u32 %v8834, 16
        %v8987 = vrot.slane %v8985, 5
        %v8988 = vsel %vm910, %v8983, %v8987
        %v8990 = vshrl.u32 %v8809, 16
        %v8992 = vrot.slane %v8990, 4
        %v8993 = vshll.u32 %v8809, 16
        %v8995 = vrot.slane %v8993, 5
        %v8996 = vor.u32 %v8992, %v8995
        %v8997 = vrot.slane %v8996, 4
        %v8999 = vshll.u32 %v8810, 16
        %v9001 = vrot.slane %v8999, 5
        %v9002 = vsel %vm910, %v8997, %v9001
        %v9003 = vshrl.u32 %v8810, 16
        %v9005 = vrot.slane %v9003, 4
        %v9006 = vor.u32 %v9005, %v9001
        %v9007 = vrot.slane %v9006, 4
        %v9009 = vshll.u32 %v8835, 16
        %v9011 = vrot.slane %v9009, 5
        %v9012 = vsel %vm910, %v9007, %v9011
        %v9014 = vshrl.u32 %v8811, 16
        %v9016 = vrot.slane %v9014, 4
        %v9017 = vshll.u32 %v8811, 16
        %v9019 = vrot.slane %v9017, 5
        %v9020 = vor.u32 %v9016, %v9019
        %v9021 = vrot.slane %v9020, 4
        %v9023 = vshll.u32 %v8812, 16
        %v9025 = vrot.slane %v9023, 5
        %v9026 = vsel %vm910, %v9021, %v9025
        %v9027 = vshrl.u32 %v8812, 16
        %v9029 = vrot.slane %v9027, 4
        %v9030 = vor.u32 %v9029, %v9025
        %v9031 = vrot.slane %v9030, 4
        %v9033 = vshll.u32 %v8836, 16
        %v9035 = vrot.slane %v9033, 5
        %v9036 = vsel %vm910, %v9031, %v9035
        %v9038 = vshrl.u32 %v8813, 16
        %v9040 = vrot.slane %v9038, 4
        %v9041 = vshll.u32 %v8813, 16
        %v9043 = vrot.slane %v9041, 5
        %v9044 = vor.u32 %v9040, %v9043
        %v9045 = vrot.slane %v9044, 4
        %v9047 = vshll.u32 %v8814, 16
        %v9049 = vrot.slane %v9047, 5
        %v9050 = vsel %vm910, %v9045, %v9049
        %v9051 = vshrl.u32 %v8814, 16
        %v9053 = vrot.slane %v9051, 4
        %v9054 = vor.u32 %v9053, %v9049
        %v9055 = vrot.slane %v9054, 4
        %v9057 = vshll.u32 %v8837, 16
        %v9059 = vrot.slane %v9057, 5
        %v9060 = vsel %vm910, %v9055, %v9059
        %v9062 = vshrl.u32 %v8815, 16
        %v9064 = vrot.slane %v9062, 4
        %v9065 = vshll.u32 %v8815, 16
        %v9067 = vrot.slane %v9065, 5
        %v9068 = vor.u32 %v9064, %v9067
        %v9069 = vrot.slane %v9068, 4
        %v9071 = vshll.u32 %v8816, 16
        %v9073 = vrot.slane %v9071, 5
        %v9074 = vsel %vm910, %v9069, %v9073
        %v9075 = vshrl.u32 %v8816, 16
        %v9077 = vrot.slane %v9075, 4
        %v9078 = vor.u32 %v9077, %v9073
        %v9079 = vrot.slane %v9078, 4
        %v9081 = vshll.u32 %v8838, 16
        %v9083 = vrot.slane %v9081, 5
        %v9084 = vsel %vm910, %v9079, %v9083
        %v9086 = vshrl.u32 %v8817, 16
        %v9088 = vrot.slane %v9086, 4
        %v9089 = vshll.u32 %v8817, 16
        %v9091 = vrot.slane %v9089, 5
        %v9092 = vor.u32 %v9088, %v9091
        %v9093 = vrot.slane %v9092, 4
        %v9095 = vshll.u32 %v8818, 16
        %v9097 = vrot.slane %v9095, 5
        %v9098 = vsel %vm910, %v9093, %v9097
        %v9099 = vshrl.u32 %v8818, 16
        %v9101 = vrot.slane %v9099, 4
        %v9102 = vor.u32 %v9101, %v9097
        %v9103 = vrot.slane %v9102, 4
        %v9105 = vshll.u32 %v8839, 16
        %v9107 = vrot.slane %v9105, 5
        %v9108 = vsel %vm910, %v9103, %v9107
        %v9110 = vshrl.u32 %v8819, 16
        %v9112 = vrot.slane %v9110, 4
        %v9113 = vshll.u32 %v8819, 16
        %v9115 = vrot.slane %v9113, 5
        %v9116 = vor.u32 %v9112, %v9115
        %v9117 = vrot.slane %v9116, 4
        %v9119 = vshll.u32 %v8820, 16
        %v9121 = vrot.slane %v9119, 5
        %v9122 = vsel %vm910, %v9117, %v9121
        %v9123 = vshrl.u32 %v8820, 16
        %v9125 = vrot.slane %v9123, 4
        %v9126 = vor.u32 %v9125, %v9121
        %v9127 = vrot.slane %v9126, 4
        %v9129 = vshll.u32 %v8840, 16
        %v9131 = vrot.slane %v9129, 5
        %v9132 = vsel %vm910, %v9127, %v9131
        %v9134 = vshrl.u32 %v8821, 16
        %v9136 = vrot.slane %v9134, 4
        %v9137 = vshll.u32 %v8821, 16
        %v9139 = vrot.slane %v9137, 5
        %v9140 = vor.u32 %v9136, %v9139
        %v9141 = vrot.slane %v9140, 4
        %v9143 = vshll.u32 %v8822, 16
        %v9145 = vrot.slane %v9143, 5
        %v9146 = vsel %vm910, %v9141, %v9145
        %v9147 = vshrl.u32 %v8822, 16
        %v9149 = vrot.slane %v9147, 4
        %v9150 = vor.u32 %v9149, %v9145
        %v9151 = vrot.slane %v9150, 4
        %v9153 = vshll.u32 %v8841, 16
        %v9155 = vrot.slane %v9153, 5
        %v9156 = vsel %vm910, %v9151, %v9155
        %v9158 = vshrl.u32 %v8823, 16
        %v9160 = vrot.slane %v9158, 4
        %v9161 = vshll.u32 %v8823, 16
        %v9163 = vrot.slane %v9161, 5
        %v9164 = vor.u32 %v9160, %v9163
        %v9165 = vrot.slane %v9164, 4
        %v9167 = vshll.u32 %v8824, 16
        %v9169 = vrot.slane %v9167, 5
        %v9170 = vsel %vm910, %v9165, %v9169
        %v9171 = vshrl.u32 %v8824, 16
        %v9173 = vrot.slane %v9171, 4
        %v9174 = vor.u32 %v9173, %v9169
        %v9175 = vrot.slane %v9174, 4
        %v9177 = vshll.u32 %v8842, 16
        %v9179 = vrot.slane %v9177, 5
        %v9180 = vsel %vm910, %v9175, %v9179
        %v9182 = vshrl.u32 %v8825, 16
        %v9184 = vrot.slane %v9182, 4
        %v9185 = vshll.u32 %v8825, 16
        %v9187 = vrot.slane %v9185, 5
        %v9188 = vor.u32 %v9184, %v9187
        %v9189 = vrot.slane %v9188, 4
        %v9191 = vshll.u32 %v8826, 16
        %v9193 = vrot.slane %v9191, 5
        %v9194 = vsel %vm910, %v9189, %v9193
        %v9195 = vshrl.u32 %v8826, 16
        %v9197 = vrot.slane %v9195, 4
        %v9198 = vor.u32 %v9197, %v9193
        %v9199 = vrot.slane %v9198, 4
        %v9201 = vshll.u32 %v8843, 16
        %v9203 = vrot.slane %v9201, 5
        %v9204 = vsel %vm910, %v9199, %v9203
        %v9206 = vshrl.u32 %v8827, 16
        %v9208 = vrot.slane %v9206, 4
        %v9209 = vshll.u32 %v8827, 16
        %v9211 = vrot.slane %v9209, 5
        %v9212 = vor.u32 %v9208, %v9211
        %v9213 = vrot.slane %v9212, 4
        %v9215 = vshll.u32 %v8828, 16
        %v9217 = vrot.slane %v9215, 5
        %v9218 = vsel %vm910, %v9213, %v9217
        %v9219 = vshrl.u32 %v8828, 16
        %v9221 = vrot.slane %v9219, 4
        %v9222 = vor.u32 %v9221, %v9217
        %v9223 = vrot.slane %v9222, 4
        %v9225 = vshll.u32 %v8844, 16
        %v9227 = vrot.slane %v9225, 5
        %v9228 = vsel %vm910, %v9223, %v9227
        %v9229 = vld [vmem:[%s8072] sm:$0xe]
        %v9230 = vld [vmem:[%s8072 + $0xc] sm:$0xe]
        %v9231 = vld [vmem:[%s8072 + $0x18] sm:$0xe]
        %v9232 = vld [vmem:[%s8072 + $0x24] sm:$0xe]
        %v9233 = vld [vmem:[%s8072 + $0x30] sm:$0xe]
        %v9234 = vld [vmem:[%s8072 + $0x3c] sm:$0xe]
        %v9235 = vld [vmem:[%s8072 + $0x48] sm:$0xe]
        %v9236 = vld [vmem:[%s8072 + $0x54] sm:$0xe]
        %v9237 = vld [vmem:[%s8072 + $0x60] sm:$0xe]
        %v9238 = vld [vmem:[%s8072 + $0x6c] sm:$0xe]
        %v9239 = vld [vmem:[%s8072 + $0x78] sm:$0xe]
        %v9240 = vld [vmem:[%s8072 + $0x84] sm:$0xe]
        %v9241 = vld [vmem:[%s8072 + $0x90] sm:$0xe]
        %v9242 = vld [vmem:[%s8072 + $0x9c] sm:$0xe]
        %v9243 = vld [vmem:[%s8072 + $0xa8] sm:$0xe]
        %v9244 = vld [vmem:[%s8072 + $0xb4] sm:$0xe]
        %v9293 = vrot.slane %v9229, 5
        %v9294 = vrot.slane %v9293, 4
        %v9295 = vrot.slane %v8798, 5
        %v9296 = vsel %vm1361, %v9294, %v9295
        %v9297 = vrot.slane %v9295, 4
        %v9298 = vrot.slane %v8829, 5
        %v9299 = vsel %vm1361, %v9297, %v9298
        %v9300 = vrot.slane %v9230, 5
        %v9301 = vrot.slane %v9300, 4
        %v9302 = vrot.slane %v8800, 5
        %v9303 = vsel %vm1361, %v9301, %v9302
        %v9304 = vrot.slane %v9302, 4
        %v9305 = vrot.slane %v8830, 5
        %v9306 = vsel %vm1361, %v9304, %v9305
        %v9307 = vrot.slane %v9231, 5
        %v9308 = vrot.slane %v9307, 4
        %v9309 = vrot.slane %v8802, 5
        %v9310 = vsel %vm1361, %v9308, %v9309
        %v9311 = vrot.slane %v9309, 4
        %v9312 = vrot.slane %v8831, 5
        %v9313 = vsel %vm1361, %v9311, %v9312
        %v9314 = vrot.slane %v9232, 5
        %v9315 = vrot.slane %v9314, 4
        %v9316 = vrot.slane %v8804, 5
        %v9317 = vsel %vm1361, %v9315, %v9316
        %v9318 = vrot.slane %v9316, 4
        %v9319 = vrot.slane %v8832, 5
        %v9320 = vsel %vm1361, %v9318, %v9319
        %v9321 = vrot.slane %v9233, 5
        %v9322 = vrot.slane %v9321, 4
        %v9323 = vrot.slane %v8806, 5
        %v9324 = vsel %vm1361, %v9322, %v9323
        %v9325 = vrot.slane %v9323, 4
        %v9326 = vrot.slane %v8833, 5
        %v9327 = vsel %vm1361, %v9325, %v9326
        %v9328 = vrot.slane %v9234, 5
        %v9329 = vrot.slane %v9328, 4
        %v9330 = vrot.slane %v8808, 5
        %v9331 = vsel %vm1361, %v9329, %v9330
        %v9332 = vrot.slane %v9330, 4
        %v9333 = vrot.slane %v8834, 5
        %v9334 = vsel %vm1361, %v9332, %v9333
        %v9335 = vrot.slane %v9235, 5
        %v9336 = vrot.slane %v9335, 4
        %v9337 = vrot.slane %v8810, 5
        %v9338 = vsel %vm1361, %v9336, %v9337
        %v9339 = vrot.slane %v9337, 4
        %v9340 = vrot.slane %v8835, 5
        %v9341 = vsel %vm1361, %v9339, %v9340
        %v9342 = vrot.slane %v9236, 5
        %v9343 = vrot.slane %v9342, 4
        %v9344 = vrot.slane %v8812, 5
        %v9345 = vsel %vm1361, %v9343, %v9344
        %v9346 = vrot.slane %v9344, 4
        %v9347 = vrot.slane %v8836, 5
        %v9348 = vsel %vm1361, %v9346, %v9347
        %v9349 = vrot.slane %v9237, 5
        %v9350 = vrot.slane %v9349, 4
        %v9351 = vrot.slane %v8814, 5
        %v9352 = vsel %vm1361, %v9350, %v9351
        %v9353 = vrot.slane %v9351, 4
        %v9354 = vrot.slane %v8837, 5
        %v9355 = vsel %vm1361, %v9353, %v9354
        %v9356 = vrot.slane %v9238, 5
        %v9357 = vrot.slane %v9356, 4
        %v9358 = vrot.slane %v8816, 5
        %v9359 = vsel %vm1361, %v9357, %v9358
        %v9360 = vrot.slane %v9358, 4
        %v9361 = vrot.slane %v8838, 5
        %v9362 = vsel %vm1361, %v9360, %v9361
        %v9363 = vrot.slane %v9239, 5
        %v9364 = vrot.slane %v9363, 4
        %v9365 = vrot.slane %v8818, 5
        %v9366 = vsel %vm1361, %v9364, %v9365
        %v9367 = vrot.slane %v9365, 4
        %v9368 = vrot.slane %v8839, 5
        %v9369 = vsel %vm1361, %v9367, %v9368
        %v9370 = vrot.slane %v9240, 5
        %v9371 = vrot.slane %v9370, 4
        %v9372 = vrot.slane %v8820, 5
        %v9373 = vsel %vm1361, %v9371, %v9372
        %v9374 = vrot.slane %v9372, 4
        %v9375 = vrot.slane %v8840, 5
        %v9376 = vsel %vm1361, %v9374, %v9375
        %v9377 = vrot.slane %v9241, 5
        %v9378 = vrot.slane %v9377, 4
        %v9379 = vrot.slane %v8822, 5
        %v9380 = vsel %vm1361, %v9378, %v9379
        %v9381 = vrot.slane %v9379, 4
        %v9382 = vrot.slane %v8841, 5
        %v9383 = vsel %vm1361, %v9381, %v9382
        %v9384 = vrot.slane %v9242, 5
        %v9385 = vrot.slane %v9384, 4
        %v9386 = vrot.slane %v8824, 5
        %v9387 = vsel %vm1361, %v9385, %v9386
        %v9388 = vrot.slane %v9386, 4
        %v9389 = vrot.slane %v8842, 5
        %v9390 = vsel %vm1361, %v9388, %v9389
        %v9391 = vrot.slane %v9243, 5
        %v9392 = vrot.slane %v9391, 4
        %v9393 = vrot.slane %v8826, 5
        %v9394 = vsel %vm1361, %v9392, %v9393
        %v9395 = vrot.slane %v9393, 4
        %v9396 = vrot.slane %v8843, 5
        %v9397 = vsel %vm1361, %v9395, %v9396
        %v9398 = vrot.slane %v9244, 5
        %v9399 = vrot.slane %v9398, 4
        %v9400 = vrot.slane %v8828, 5
        %v9401 = vsel %vm1361, %v9399, %v9400
        %v9402 = vrot.slane %v9400, 4
        %v9403 = vrot.slane %v8844, 5
        %v9404 = vsel %vm1361, %v9402, %v9403
        %s9405 = scalar_lea.vmem [#allocation4], 24
        %v9406 = vld [vmem:[%s9405] sm:$0xf]
        %v9407 = vld [vmem:[%s9405 + $0x4] sm:$0xf]
        %v9408 = vld [vmem:[%s9405 + $0xc] sm:$0xf]
        %v9409 = vld [vmem:[%s9405 + $0x10] sm:$0xf]
        %v9410 = vld [vmem:[%s9405 + $0x18] sm:$0xf]
        %v9411 = vld [vmem:[%s9405 + $0x1c] sm:$0xf]
        %v9412 = vld [vmem:[%s9405 + $0x24] sm:$0xf]
        %v9413 = vld [vmem:[%s9405 + $0x28] sm:$0xf]
        %v9414 = vld [vmem:[%s9405 + $0x30] sm:$0xf]
        %v9415 = vld [vmem:[%s9405 + $0x34] sm:$0xf]
        %v9416 = vld [vmem:[%s9405 + $0x3c] sm:$0xf]
        %v9417 = vld [vmem:[%s9405 + $0x40] sm:$0xf]
        %v9418 = vld [vmem:[%s9405 + $0x48] sm:$0xf]
        %v9419 = vld [vmem:[%s9405 + $0x4c] sm:$0xf]
        %v9420 = vld [vmem:[%s9405 + $0x54] sm:$0xf]
        %v9421 = vld [vmem:[%s9405 + $0x58] sm:$0xf]
        %v9422 = vld [vmem:[%s9405 + $0x60] sm:$0xf]
        %v9423 = vld [vmem:[%s9405 + $0x64] sm:$0xf]
        %v9424 = vld [vmem:[%s9405 + $0x6c] sm:$0xf]
        %v9425 = vld [vmem:[%s9405 + $0x70] sm:$0xf]
        %v9426 = vld [vmem:[%s9405 + $0x78] sm:$0xf]
        %v9427 = vld [vmem:[%s9405 + $0x7c] sm:$0xf]
        %v9428 = vld [vmem:[%s9405 + $0x84] sm:$0xf]
        %v9429 = vld [vmem:[%s9405 + $0x88] sm:$0xf]
        %v9430 = vld [vmem:[%s9405 + $0x90] sm:$0xf]
        %v9431 = vld [vmem:[%s9405 + $0x94] sm:$0xf]
        %v9432 = vld [vmem:[%s9405 + $0x9c] sm:$0xf]
        %v9433 = vld [vmem:[%s9405 + $0xa0] sm:$0xf]
        %v9434 = vld [vmem:[%s9405 + $0xa8] sm:$0xf]
        %v9435 = vld [vmem:[%s9405 + $0xac] sm:$0xf]
        %v9436 = vld [vmem:[%s9405 + $0xb4] sm:$0xf]
        %v9437 = vld [vmem:[%s9405 + $0xb8] sm:$0xf]
        %v9438 = vld [vmem:[%s9405 + $0x8] sm:$0x1]
        %v9439 = vld [vmem:[%s9405 + $0x14] sm:$0x1]
        %v9440 = vld [vmem:[%s9405 + $0x20] sm:$0x1]
        %v9441 = vld [vmem:[%s9405 + $0x2c] sm:$0x1]
        %v9442 = vld [vmem:[%s9405 + $0x38] sm:$0x1]
        %v9443 = vld [vmem:[%s9405 + $0x44] sm:$0x1]
        %v9444 = vld [vmem:[%s9405 + $0x50] sm:$0x1]
        %v9445 = vld [vmem:[%s9405 + $0x5c] sm:$0x1]
        %v9446 = vld [vmem:[%s9405 + $0x68] sm:$0x1]
        %v9447 = vld [vmem:[%s9405 + $0x74] sm:$0x1]
        %v9448 = vld [vmem:[%s9405 + $0x80] sm:$0x1]
        %v9449 = vld [vmem:[%s9405 + $0x8c] sm:$0x1]
        %v9450 = vld [vmem:[%s9405 + $0x98] sm:$0x1]
        %v9451 = vld [vmem:[%s9405 + $0xa4] sm:$0x1]
        %v9452 = vld [vmem:[%s9405 + $0xb0] sm:$0x1]
        %v9453 = vld [vmem:[%s9405 + $0xbc] sm:$0x1]
        %v9455 = vshrl.u32 %v9406, 16
        %v9457 = vrot.slane %v9455, 4
        %v9458 = vshll.u32 %v9406, 16
        %v9460 = vrot.slane %v9458, 5
        %v9461 = vor.u32 %v9457, %v9460
        %v9462 = vrot.slane %v9461, 4
        %v9464 = vshll.u32 %v9407, 16
        %v9466 = vrot.slane %v9464, 5
        %v9467 = vsel %vm910, %v9462, %v9466
        %v9468 = vshrl.u32 %v9407, 16
        %v9470 = vrot.slane %v9468, 4
        %v9471 = vor.u32 %v9470, %v9466
        %v9472 = vrot.slane %v9471, 4
        %v9474 = vshll.u32 %v9438, 16
        %v9476 = vrot.slane %v9474, 5
        %v9477 = vsel %vm910, %v9472, %v9476
        %v9479 = vshrl.u32 %v9408, 16
        %v9481 = vrot.slane %v9479, 4
        %v9482 = vshll.u32 %v9408, 16
        %v9484 = vrot.slane %v9482, 5
        %v9485 = vor.u32 %v9481, %v9484
        %v9486 = vrot.slane %v9485, 4
        %v9488 = vshll.u32 %v9409, 16
        %v9490 = vrot.slane %v9488, 5
        %v9491 = vsel %vm910, %v9486, %v9490
        %v9492 = vshrl.u32 %v9409, 16
        %v9494 = vrot.slane %v9492, 4
        %v9495 = vor.u32 %v9494, %v9490
        %v9496 = vrot.slane %v9495, 4
        %v9498 = vshll.u32 %v9439, 16
        %v9500 = vrot.slane %v9498, 5
        %v9501 = vsel %vm910, %v9496, %v9500
        %v9503 = vshrl.u32 %v9410, 16
        %v9505 = vrot.slane %v9503, 4
        %v9506 = vshll.u32 %v9410, 16
        %v9508 = vrot.slane %v9506, 5
        %v9509 = vor.u32 %v9505, %v9508
        %v9510 = vrot.slane %v9509, 4
        %v9512 = vshll.u32 %v9411, 16
        %v9514 = vrot.slane %v9512, 5
        %v9515 = vsel %vm910, %v9510, %v9514
        %v9516 = vshrl.u32 %v9411, 16
        %v9518 = vrot.slane %v9516, 4
        %v9519 = vor.u32 %v9518, %v9514
        %v9520 = vrot.slane %v9519, 4
        %v9522 = vshll.u32 %v9440, 16
        %v9524 = vrot.slane %v9522, 5
        %v9525 = vsel %vm910, %v9520, %v9524
        %v9527 = vshrl.u32 %v9412, 16
        %v9529 = vrot.slane %v9527, 4
        %v9530 = vshll.u32 %v9412, 16
        %v9532 = vrot.slane %v9530, 5
        %v9533 = vor.u32 %v9529, %v9532
        %v9534 = vrot.slane %v9533, 4
        %v9536 = vshll.u32 %v9413, 16
        %v9538 = vrot.slane %v9536, 5
        %v9539 = vsel %vm910, %v9534, %v9538
        %v9540 = vshrl.u32 %v9413, 16
        %v9542 = vrot.slane %v9540, 4
        %v9543 = vor.u32 %v9542, %v9538
        %v9544 = vrot.slane %v9543, 4
        %v9546 = vshll.u32 %v9441, 16
        %v9548 = vrot.slane %v9546, 5
        %v9549 = vsel %vm910, %v9544, %v9548
        %v9551 = vshrl.u32 %v9414, 16
        %v9553 = vrot.slane %v9551, 4
        %v9554 = vshll.u32 %v9414, 16
        %v9556 = vrot.slane %v9554, 5
        %v9557 = vor.u32 %v9553, %v9556
        %v9558 = vrot.slane %v9557, 4
        %v9560 = vshll.u32 %v9415, 16
        %v9562 = vrot.slane %v9560, 5
        %v9563 = vsel %vm910, %v9558, %v9562
        %v9564 = vshrl.u32 %v9415, 16
        %v9566 = vrot.slane %v9564, 4
        %v9567 = vor.u32 %v9566, %v9562
        %v9568 = vrot.slane %v9567, 4
        %v9570 = vshll.u32 %v9442, 16
        %v9572 = vrot.slane %v9570, 5
        %v9573 = vsel %vm910, %v9568, %v9572
        %v9575 = vshrl.u32 %v9416, 16
        %v9577 = vrot.slane %v9575, 4
        %v9578 = vshll.u32 %v9416, 16
        %v9580 = vrot.slane %v9578, 5
        %v9581 = vor.u32 %v9577, %v9580
        %v9582 = vrot.slane %v9581, 4
        %v9584 = vshll.u32 %v9417, 16
        %v9586 = vrot.slane %v9584, 5
        %v9587 = vsel %vm910, %v9582, %v9586
        %v9588 = vshrl.u32 %v9417, 16
        %v9590 = vrot.slane %v9588, 4
        %v9591 = vor.u32 %v9590, %v9586
        %v9592 = vrot.slane %v9591, 4
        %v9594 = vshll.u32 %v9443, 16
        %v9596 = vrot.slane %v9594, 5
        %v9597 = vsel %vm910, %v9592, %v9596
        %v9599 = vshrl.u32 %v9418, 16
        %v9601 = vrot.slane %v9599, 4
        %v9602 = vshll.u32 %v9418, 16
        %v9604 = vrot.slane %v9602, 5
        %v9605 = vor.u32 %v9601, %v9604
        %v9606 = vrot.slane %v9605, 4
        %v9608 = vshll.u32 %v9419, 16
        %v9610 = vrot.slane %v9608, 5
        %v9611 = vsel %vm910, %v9606, %v9610
        %v9612 = vshrl.u32 %v9419, 16
        %v9614 = vrot.slane %v9612, 4
        %v9615 = vor.u32 %v9614, %v9610
        %v9616 = vrot.slane %v9615, 4
        %v9618 = vshll.u32 %v9444, 16
        %v9620 = vrot.slane %v9618, 5
        %v9621 = vsel %vm910, %v9616, %v9620
        %v9623 = vshrl.u32 %v9420, 16
        %v9625 = vrot.slane %v9623, 4
        %v9626 = vshll.u32 %v9420, 16
        %v9628 = vrot.slane %v9626, 5
        %v9629 = vor.u32 %v9625, %v9628
        %v9630 = vrot.slane %v9629, 4
        %v9632 = vshll.u32 %v9421, 16
        %v9634 = vrot.slane %v9632, 5
        %v9635 = vsel %vm910, %v9630, %v9634
        %v9636 = vshrl.u32 %v9421, 16
        %v9638 = vrot.slane %v9636, 4
        %v9639 = vor.u32 %v9638, %v9634
        %v9640 = vrot.slane %v9639, 4
        %v9642 = vshll.u32 %v9445, 16
        %v9644 = vrot.slane %v9642, 5
        %v9645 = vsel %vm910, %v9640, %v9644
        %v9647 = vshrl.u32 %v9422, 16
        %v9649 = vrot.slane %v9647, 4
        %v9650 = vshll.u32 %v9422, 16
        %v9652 = vrot.slane %v9650, 5
        %v9653 = vor.u32 %v9649, %v9652
        %v9654 = vrot.slane %v9653, 4
        %v9656 = vshll.u32 %v9423, 16
        %v9658 = vrot.slane %v9656, 5
        %v9659 = vsel %vm910, %v9654, %v9658
        %v9660 = vshrl.u32 %v9423, 16
        %v9662 = vrot.slane %v9660, 4
        %v9663 = vor.u32 %v9662, %v9658
        %v9664 = vrot.slane %v9663, 4
        %v9666 = vshll.u32 %v9446, 16
        %v9668 = vrot.slane %v9666, 5
        %v9669 = vsel %vm910, %v9664, %v9668
        %v9671 = vshrl.u32 %v9424, 16
        %v9673 = vrot.slane %v9671, 4
        %v9674 = vshll.u32 %v9424, 16
        %v9676 = vrot.slane %v9674, 5
        %v9677 = vor.u32 %v9673, %v9676
        %v9678 = vrot.slane %v9677, 4
        %v9680 = vshll.u32 %v9425, 16
        %v9682 = vrot.slane %v9680, 5
        %v9683 = vsel %vm910, %v9678, %v9682
        %v9684 = vshrl.u32 %v9425, 16
        %v9686 = vrot.slane %v9684, 4
        %v9687 = vor.u32 %v9686, %v9682
        %v9688 = vrot.slane %v9687, 4
        %v9690 = vshll.u32 %v9447, 16
        %v9692 = vrot.slane %v9690, 5
        %v9693 = vsel %vm910, %v9688, %v9692
        %v9695 = vshrl.u32 %v9426, 16
        %v9697 = vrot.slane %v9695, 4
        %v9698 = vshll.u32 %v9426, 16
        %v9700 = vrot.slane %v9698, 5
        %v9701 = vor.u32 %v9697, %v9700
        %v9702 = vrot.slane %v9701, 4
        %v9704 = vshll.u32 %v9427, 16
        %v9706 = vrot.slane %v9704, 5
        %v9707 = vsel %vm910, %v9702, %v9706
        %v9708 = vshrl.u32 %v9427, 16
        %v9710 = vrot.slane %v9708, 4
        %v9711 = vor.u32 %v9710, %v9706
        %v9712 = vrot.slane %v9711, 4
        %v9714 = vshll.u32 %v9448, 16
        %v9716 = vrot.slane %v9714, 5
        %v9717 = vsel %vm910, %v9712, %v9716
        %v9719 = vshrl.u32 %v9428, 16
        %v9721 = vrot.slane %v9719, 4
        %v9722 = vshll.u32 %v9428, 16
        %v9724 = vrot.slane %v9722, 5
        %v9725 = vor.u32 %v9721, %v9724
        %v9726 = vrot.slane %v9725, 4
        %v9728 = vshll.u32 %v9429, 16
        %v9730 = vrot.slane %v9728, 5
        %v9731 = vsel %vm910, %v9726, %v9730
        %v9732 = vshrl.u32 %v9429, 16
        %v9734 = vrot.slane %v9732, 4
        %v9735 = vor.u32 %v9734, %v9730
        %v9736 = vrot.slane %v9735, 4
        %v9738 = vshll.u32 %v9449, 16
        %v9740 = vrot.slane %v9738, 5
        %v9741 = vsel %vm910, %v9736, %v9740
        %v9743 = vshrl.u32 %v9430, 16
        %v9745 = vrot.slane %v9743, 4
        %v9746 = vshll.u32 %v9430, 16
        %v9748 = vrot.slane %v9746, 5
        %v9749 = vor.u32 %v9745, %v9748
        %v9750 = vrot.slane %v9749, 4
        %v9752 = vshll.u32 %v9431, 16
        %v9754 = vrot.slane %v9752, 5
        %v9755 = vsel %vm910, %v9750, %v9754
        %v9756 = vshrl.u32 %v9431, 16
        %v9758 = vrot.slane %v9756, 4
        %v9759 = vor.u32 %v9758, %v9754
        %v9760 = vrot.slane %v9759, 4
        %v9762 = vshll.u32 %v9450, 16
        %v9764 = vrot.slane %v9762, 5
        %v9765 = vsel %vm910, %v9760, %v9764
        %v9767 = vshrl.u32 %v9432, 16
        %v9769 = vrot.slane %v9767, 4
        %v9770 = vshll.u32 %v9432, 16
        %v9772 = vrot.slane %v9770, 5
        %v9773 = vor.u32 %v9769, %v9772
        %v9774 = vrot.slane %v9773, 4
        %v9776 = vshll.u32 %v9433, 16
        %v9778 = vrot.slane %v9776, 5
        %v9779 = vsel %vm910, %v9774, %v9778
        %v9780 = vshrl.u32 %v9433, 16
        %v9782 = vrot.slane %v9780, 4
        %v9783 = vor.u32 %v9782, %v9778
        %v9784 = vrot.slane %v9783, 4
        %v9786 = vshll.u32 %v9451, 16
        %v9788 = vrot.slane %v9786, 5
        %v9789 = vsel %vm910, %v9784, %v9788
        %v9791 = vshrl.u32 %v9434, 16
        %v9793 = vrot.slane %v9791, 4
        %v9794 = vshll.u32 %v9434, 16
        %v9796 = vrot.slane %v9794, 5
        %v9797 = vor.u32 %v9793, %v9796
        %v9798 = vrot.slane %v9797, 4
        %v9800 = vshll.u32 %v9435, 16
        %v9802 = vrot.slane %v9800, 5
        %v9803 = vsel %vm910, %v9798, %v9802
        %v9804 = vshrl.u32 %v9435, 16
        %v9806 = vrot.slane %v9804, 4
        %v9807 = vor.u32 %v9806, %v9802
        %v9808 = vrot.slane %v9807, 4
        %v9810 = vshll.u32 %v9452, 16
        %v9812 = vrot.slane %v9810, 5
        %v9813 = vsel %vm910, %v9808, %v9812
        %v9815 = vshrl.u32 %v9436, 16
        %v9817 = vrot.slane %v9815, 4
        %v9818 = vshll.u32 %v9436, 16
        %v9820 = vrot.slane %v9818, 5
        %v9821 = vor.u32 %v9817, %v9820
        %v9822 = vrot.slane %v9821, 4
        %v9824 = vshll.u32 %v9437, 16
        %v9826 = vrot.slane %v9824, 5
        %v9827 = vsel %vm910, %v9822, %v9826
        %v9828 = vshrl.u32 %v9437, 16
        %v9830 = vrot.slane %v9828, 4
        %v9831 = vor.u32 %v9830, %v9826
        %v9832 = vrot.slane %v9831, 4
        %v9834 = vshll.u32 %v9453, 16
        %v9836 = vrot.slane %v9834, 5
        %v9837 = vsel %vm910, %v9832, %v9836
        %v9838 = vld [vmem:[%s9405] sm:$0xe]
        %v9839 = vld [vmem:[%s9405 + $0xc] sm:$0xe]
        %v9840 = vld [vmem:[%s9405 + $0x18] sm:$0xe]
        %v9841 = vld [vmem:[%s9405 + $0x24] sm:$0xe]
        %v9842 = vld [vmem:[%s9405 + $0x30] sm:$0xe]
        %v9843 = vld [vmem:[%s9405 + $0x3c] sm:$0xe]
        %v9844 = vld [vmem:[%s9405 + $0x48] sm:$0xe]
        %v9845 = vld [vmem:[%s9405 + $0x54] sm:$0xe]
        %v9846 = vld [vmem:[%s9405 + $0x60] sm:$0xe]
        %v9847 = vld [vmem:[%s9405 + $0x6c] sm:$0xe]
        %v9848 = vld [vmem:[%s9405 + $0x78] sm:$0xe]
        %v9849 = vld [vmem:[%s9405 + $0x84] sm:$0xe]
        %v9850 = vld [vmem:[%s9405 + $0x90] sm:$0xe]
        %v9851 = vld [vmem:[%s9405 + $0x9c] sm:$0xe]
        %v9852 = vld [vmem:[%s9405 + $0xa8] sm:$0xe]
        %v9853 = vld [vmem:[%s9405 + $0xb4] sm:$0xe]
        %v9902 = vrot.slane %v9838, 5
        %v9903 = vrot.slane %v9902, 4
        %v9904 = vrot.slane %v9407, 5
        %v9905 = vsel %vm1361, %v9903, %v9904
        %v9906 = vrot.slane %v9904, 4
        %v9907 = vrot.slane %v9438, 5
        %v9908 = vsel %vm1361, %v9906, %v9907
        %v9909 = vrot.slane %v9839, 5
        %v9910 = vrot.slane %v9909, 4
        %v9911 = vrot.slane %v9409, 5
        %v9912 = vsel %vm1361, %v9910, %v9911
        %v9913 = vrot.slane %v9911, 4
        %v9914 = vrot.slane %v9439, 5
        %v9915 = vsel %vm1361, %v9913, %v9914
        %v9916 = vrot.slane %v9840, 5
        %v9917 = vrot.slane %v9916, 4
        %v9918 = vrot.slane %v9411, 5
        %v9919 = vsel %vm1361, %v9917, %v9918
        %v9920 = vrot.slane %v9918, 4
        %v9921 = vrot.slane %v9440, 5
        %v9922 = vsel %vm1361, %v9920, %v9921
        %v9923 = vrot.slane %v9841, 5
        %v9924 = vrot.slane %v9923, 4
        %v9925 = vrot.slane %v9413, 5
        %v9926 = vsel %vm1361, %v9924, %v9925
        %v9927 = vrot.slane %v9925, 4
        %v9928 = vrot.slane %v9441, 5
        %v9929 = vsel %vm1361, %v9927, %v9928
        %v9930 = vrot.slane %v9842, 5
        %v9931 = vrot.slane %v9930, 4
        %v9932 = vrot.slane %v9415, 5
        %v9933 = vsel %vm1361, %v9931, %v9932
        %v9934 = vrot.slane %v9932, 4
        %v9935 = vrot.slane %v9442, 5
        %v9936 = vsel %vm1361, %v9934, %v9935
        %v9937 = vrot.slane %v9843, 5
        %v9938 = vrot.slane %v9937, 4
        %v9939 = vrot.slane %v9417, 5
        %v9940 = vsel %vm1361, %v9938, %v9939
        %v9941 = vrot.slane %v9939, 4
        %v9942 = vrot.slane %v9443, 5
        %v9943 = vsel %vm1361, %v9941, %v9942
        %v9944 = vrot.slane %v9844, 5
        %v9945 = vrot.slane %v9944, 4
        %v9946 = vrot.slane %v9419, 5
        %v9947 = vsel %vm1361, %v9945, %v9946
        %v9948 = vrot.slane %v9946, 4
        %v9949 = vrot.slane %v9444, 5
        %v9950 = vsel %vm1361, %v9948, %v9949
        %v9951 = vrot.slane %v9845, 5
        %v9952 = vrot.slane %v9951, 4
        %v9953 = vrot.slane %v9421, 5
        %v9954 = vsel %vm1361, %v9952, %v9953
        %v9955 = vrot.slane %v9953, 4
        %v9956 = vrot.slane %v9445, 5
        %v9957 = vsel %vm1361, %v9955, %v9956
        %v9958 = vrot.slane %v9846, 5
        %v9959 = vrot.slane %v9958, 4
        %v9960 = vrot.slane %v9423, 5
        %v9961 = vsel %vm1361, %v9959, %v9960
        %v9962 = vrot.slane %v9960, 4
        %v9963 = vrot.slane %v9446, 5
        %v9964 = vsel %vm1361, %v9962, %v9963
        %v9965 = vrot.slane %v9847, 5
        %v9966 = vrot.slane %v9965, 4
        %v9967 = vrot.slane %v9425, 5
        %v9968 = vsel %vm1361, %v9966, %v9967
        %v9969 = vrot.slane %v9967, 4
        %v9970 = vrot.slane %v9447, 5
        %v9971 = vsel %vm1361, %v9969, %v9970
        %v9972 = vrot.slane %v9848, 5
        %v9973 = vrot.slane %v9972, 4
        %v9974 = vrot.slane %v9427, 5
        %v9975 = vsel %vm1361, %v9973, %v9974
        %v9976 = vrot.slane %v9974, 4
        %v9977 = vrot.slane %v9448, 5
        %v9978 = vsel %vm1361, %v9976, %v9977
        %v9979 = vrot.slane %v9849, 5
        %v9980 = vrot.slane %v9979, 4
        %v9981 = vrot.slane %v9429, 5
        %v9982 = vsel %vm1361, %v9980, %v9981
        %v9983 = vrot.slane %v9981, 4
        %v9984 = vrot.slane %v9449, 5
        %v9985 = vsel %vm1361, %v9983, %v9984
        %v9986 = vrot.slane %v9850, 5
        %v9987 = vrot.slane %v9986, 4
        %v9988 = vrot.slane %v9431, 5
        %v9989 = vsel %vm1361, %v9987, %v9988
        %v9990 = vrot.slane %v9988, 4
        %v9991 = vrot.slane %v9450, 5
        %v9992 = vsel %vm1361, %v9990, %v9991
        %v9993 = vrot.slane %v9851, 5
        %v9994 = vrot.slane %v9993, 4
        %v9995 = vrot.slane %v9433, 5
        %v9996 = vsel %vm1361, %v9994, %v9995
        %v9997 = vrot.slane %v9995, 4
        %v9998 = vrot.slane %v9451, 5
        %v9999 = vsel %vm1361, %v9997, %v9998
        %v10000 = vrot.slane %v9852, 5
        %v10001 = vrot.slane %v10000, 4
        %v10002 = vrot.slane %v9435, 5
        %v10003 = vsel %vm1361, %v10001, %v10002
        %v10004 = vrot.slane %v10002, 4
        %v10005 = vrot.slane %v9452, 5
        %v10006 = vsel %vm1361, %v10004, %v10005
        %v10007 = vrot.slane %v9853, 5
        %v10008 = vrot.slane %v10007, 4
        %v10009 = vrot.slane %v9437, 5
        %v10010 = vsel %vm1361, %v10008, %v10009
        %v10011 = vrot.slane %v10009, 4
        %v10012 = vrot.slane %v9453, 5
        %v10013 = vsel %vm1361, %v10011, %v10012
        %v10030 = vunpack.c.l.b16 %v8189
        %v10031 = vunpack.c.l.b16 %v8190
        %v10032 = vunpack.c.l.b16 %v8191
        %v10033 = vunpack.c.l.b16 %v8192
        %v10034 = vunpack.c.l.b16 %v8193
        %v10035 = vunpack.c.l.b16 %v8194
        %v10036 = vunpack.c.l.b16 %v8195
        %v10037 = vunpack.c.l.b16 %v8196
        %v10038 = vunpack.c.l.b16 %v8197
        %v10039 = vunpack.c.l.b16 %v8198
        %v10040 = vunpack.c.l.b16 %v8199
        %v10041 = vunpack.c.l.b16 %v8200
        %v10042 = vunpack.c.l.b16 %v8201
        %v10043 = vunpack.c.l.b16 %v8202
        %v10044 = vunpack.c.l.b16 %v8203
        %v10045 = vunpack.c.l.b16 %v8204
        %v10046 = vunpack.c.l.b16 %v8205
        %v10047 = vunpack.c.l.b16 %v8206
        %v10048 = vunpack.c.l.b16 %v8207
        %v10049 = vunpack.c.l.b16 %v8208
        %v10050 = vunpack.c.l.b16 %v8209
        %v10051 = vunpack.c.l.b16 %v8210
        %v10052 = vunpack.c.l.b16 %v8211
        %v10053 = vunpack.c.l.b16 %v8212
        %v10054 = vunpack.c.l.b16 %v8213
        %v10055 = vunpack.c.l.b16 %v8214
        %v10056 = vunpack.c.l.b16 %v8215
        %v10057 = vunpack.c.l.b16 %v8216
        %v10058 = vunpack.c.l.b16 %v8217
        %v10059 = vunpack.c.l.b16 %v8218
        %v10060 = vunpack.c.l.b16 %v8219
        %v10061 = vunpack.c.l.b16 %v8220
        %v10062 = vpack.c.b16 %v10031, %v10030
        %v10063 = vpack.c.b16 %v10033, %v10032
        %v10064 = vpack.c.b16 %v10035, %v10034
        %v10065 = vpack.c.b16 %v10037, %v10036
        %v10066 = vpack.c.b16 %v10039, %v10038
        %v10067 = vpack.c.b16 %v10041, %v10040
        %v10068 = vpack.c.b16 %v10043, %v10042
        %v10069 = vpack.c.b16 %v10045, %v10044
        %v10070 = vpack.c.b16 %v10047, %v10046
        %v10071 = vpack.c.b16 %v10049, %v10048
        %v10072 = vpack.c.b16 %v10051, %v10050
        %v10073 = vpack.c.b16 %v10053, %v10052
        %v10074 = vpack.c.b16 %v10055, %v10054
        %v10075 = vpack.c.b16 %v10057, %v10056
        %v10076 = vpack.c.b16 %v10059, %v10058
        %v10077 = vpack.c.b16 %v10061, %v10060
        %v10078 = vunpack.c.l.b16 %v8250
        %v10079 = vunpack.c.l.b16 %v8260
        %v10080 = vunpack.c.l.b16 %v8274
        %v10081 = vunpack.c.l.b16 %v8284
        %v10082 = vunpack.c.l.b16 %v8298
        %v10083 = vunpack.c.l.b16 %v8308
        %v10084 = vunpack.c.l.b16 %v8322
        %v10085 = vunpack.c.l.b16 %v8332
        %v10086 = vunpack.c.l.b16 %v8346
        %v10087 = vunpack.c.l.b16 %v8356
        %v10088 = vunpack.c.l.b16 %v8370
        %v10089 = vunpack.c.l.b16 %v8380
        %v10090 = vunpack.c.l.b16 %v8394
        %v10091 = vunpack.c.l.b16 %v8404
        %v10092 = vunpack.c.l.b16 %v8418
        %v10093 = vunpack.c.l.b16 %v8428
        %v10094 = vunpack.c.l.b16 %v8442
        %v10095 = vunpack.c.l.b16 %v8452
        %v10096 = vunpack.c.l.b16 %v8466
        %v10097 = vunpack.c.l.b16 %v8476
        %v10098 = vunpack.c.l.b16 %v8490
        %v10099 = vunpack.c.l.b16 %v8500
        %v10100 = vunpack.c.l.b16 %v8514
        %v10101 = vunpack.c.l.b16 %v8524
        %v10102 = vunpack.c.l.b16 %v8538
        %v10103 = vunpack.c.l.b16 %v8548
        %v10104 = vunpack.c.l.b16 %v8562
        %v10105 = vunpack.c.l.b16 %v8572
        %v10106 = vunpack.c.l.b16 %v8586
        %v10107 = vunpack.c.l.b16 %v8596
        %v10108 = vunpack.c.l.b16 %v8610
        %v10109 = vunpack.c.l.b16 %v8620
        %v10110 = vpack.c.b16 %v10079, %v10078
        %v10111 = vpack.c.b16 %v10081, %v10080
        %v10112 = vpack.c.b16 %v10083, %v10082
        %v10113 = vpack.c.b16 %v10085, %v10084
        %v10114 = vpack.c.b16 %v10087, %v10086
        %v10115 = vpack.c.b16 %v10089, %v10088
        %v10116 = vpack.c.b16 %v10091, %v10090
        %v10117 = vpack.c.b16 %v10093, %v10092
        %v10118 = vpack.c.b16 %v10095, %v10094
        %v10119 = vpack.c.b16 %v10097, %v10096
        %v10120 = vpack.c.b16 %v10099, %v10098
        %v10121 = vpack.c.b16 %v10101, %v10100
        %v10122 = vpack.c.b16 %v10103, %v10102
        %v10123 = vpack.c.b16 %v10105, %v10104
        %v10124 = vpack.c.b16 %v10107, %v10106
        %v10125 = vpack.c.b16 %v10109, %v10108
        %10126 = vrot.lane.b32.xlu0 %v10110, 64
        %v10127 = vpop.permute.xlu0 %10126
        %10128 = vrot.lane.b32.xlu0 %v10111, 64
        %v10129 = vpop.permute.xlu0 %10128
        %10130 = vrot.lane.b32.xlu0 %v10112, 64
        %v10131 = vpop.permute.xlu0 %10130
        %10132 = vrot.lane.b32.xlu0 %v10113, 64
        %v10133 = vpop.permute.xlu0 %10132
        %10134 = vrot.lane.b32.xlu0 %v10114, 64
        %v10135 = vpop.permute.xlu0 %10134
        %10136 = vrot.lane.b32.xlu0 %v10115, 64
        %v10137 = vpop.permute.xlu0 %10136
        %10138 = vrot.lane.b32.xlu0 %v10116, 64
        %v10139 = vpop.permute.xlu0 %10138
        %10140 = vrot.lane.b32.xlu0 %v10117, 64
        %v10141 = vpop.permute.xlu0 %10140
        %10142 = vrot.lane.b32.xlu0 %v10118, 64
        %v10143 = vpop.permute.xlu0 %10142
        %10144 = vrot.lane.b32.xlu0 %v10119, 64
        %v10145 = vpop.permute.xlu0 %10144
        %10146 = vrot.lane.b32.xlu0 %v10120, 64
        %v10147 = vpop.permute.xlu0 %10146
        %10148 = vrot.lane.b32.xlu0 %v10121, 64
        %v10149 = vpop.permute.xlu0 %10148
        %10150 = vrot.lane.b32.xlu0 %v10122, 64
        %v10151 = vpop.permute.xlu0 %10150
        %10152 = vrot.lane.b32.xlu0 %v10123, 64
        %v10153 = vpop.permute.xlu0 %10152
        %10154 = vrot.lane.b32.xlu0 %v10124, 64
        %v10155 = vpop.permute.xlu0 %10154
        %10156 = vrot.lane.b32.xlu0 %v10125, 64
        %v10157 = vpop.permute.xlu0 %10156
        %v10158 = vunpack.c.l.b16 %v8688
        %v10159 = vunpack.c.l.b16 %v8691
        %v10160 = vunpack.c.l.b16 %v8695
        %v10161 = vunpack.c.l.b16 %v8698
        %v10162 = vunpack.c.l.b16 %v8702
        %v10163 = vunpack.c.l.b16 %v8705
        %v10164 = vunpack.c.l.b16 %v8709
        %v10165 = vunpack.c.l.b16 %v8712
        %v10166 = vunpack.c.l.b16 %v8716
        %v10167 = vunpack.c.l.b16 %v8719
        %v10168 = vunpack.c.l.b16 %v8723
        %v10169 = vunpack.c.l.b16 %v8726
        %v10170 = vunpack.c.l.b16 %v8730
        %v10171 = vunpack.c.l.b16 %v8733
        %v10172 = vunpack.c.l.b16 %v8737
        %v10173 = vunpack.c.l.b16 %v8740
        %v10174 = vunpack.c.l.b16 %v8744
        %v10175 = vunpack.c.l.b16 %v8747
        %v10176 = vunpack.c.l.b16 %v8751
        %v10177 = vunpack.c.l.b16 %v8754
        %v10178 = vunpack.c.l.b16 %v8758
        %v10179 = vunpack.c.l.b16 %v8761
        %v10180 = vunpack.c.l.b16 %v8765
        %v10181 = vunpack.c.l.b16 %v8768
        %v10182 = vunpack.c.l.b16 %v8772
        %v10183 = vunpack.c.l.b16 %v8775
        %v10184 = vunpack.c.l.b16 %v8779
        %v10185 = vunpack.c.l.b16 %v8782
        %v10186 = vunpack.c.l.b16 %v8786
        %v10187 = vunpack.c.l.b16 %v8789
        %v10188 = vunpack.c.l.b16 %v8793
        %v10189 = vunpack.c.l.b16 %v8796
        %v10190 = vpack.c.b16 %v10159, %v10158
        %v10191 = vpack.c.b16 %v10161, %v10160
        %v10192 = vpack.c.b16 %v10163, %v10162
        %v10193 = vpack.c.b16 %v10165, %v10164
        %v10194 = vpack.c.b16 %v10167, %v10166
        %v10195 = vpack.c.b16 %v10169, %v10168
        %v10196 = vpack.c.b16 %v10171, %v10170
        %v10197 = vpack.c.b16 %v10173, %v10172
        %v10198 = vpack.c.b16 %v10175, %v10174
        %v10199 = vpack.c.b16 %v10177, %v10176
        %v10200 = vpack.c.b16 %v10179, %v10178
        %v10201 = vpack.c.b16 %v10181, %v10180
        %v10202 = vpack.c.b16 %v10183, %v10182
        %v10203 = vpack.c.b16 %v10185, %v10184
        %v10204 = vpack.c.b16 %v10187, %v10186
        %v10205 = vpack.c.b16 %v10189, %v10188
        %v10222 = vunpack.c.l.b16 %v8797
        %v10223 = vunpack.c.l.b16 %v8798
        %v10224 = vunpack.c.l.b16 %v8799
        %v10225 = vunpack.c.l.b16 %v8800
        %v10226 = vunpack.c.l.b16 %v8801
        %v10227 = vunpack.c.l.b16 %v8802
        %v10228 = vunpack.c.l.b16 %v8803
        %v10229 = vunpack.c.l.b16 %v8804
        %v10230 = vunpack.c.l.b16 %v8805
        %v10231 = vunpack.c.l.b16 %v8806
        %v10232 = vunpack.c.l.b16 %v8807
        %v10233 = vunpack.c.l.b16 %v8808
        %v10234 = vunpack.c.l.b16 %v8809
        %v10235 = vunpack.c.l.b16 %v8810
        %v10236 = vunpack.c.l.b16 %v8811
        %v10237 = vunpack.c.l.b16 %v8812
        %v10238 = vunpack.c.l.b16 %v8813
        %v10239 = vunpack.c.l.b16 %v8814
        %v10240 = vunpack.c.l.b16 %v8815
        %v10241 = vunpack.c.l.b16 %v8816
        %v10242 = vunpack.c.l.b16 %v8817
        %v10243 = vunpack.c.l.b16 %v8818
        %v10244 = vunpack.c.l.b16 %v8819
        %v10245 = vunpack.c.l.b16 %v8820
        %v10246 = vunpack.c.l.b16 %v8821
        %v10247 = vunpack.c.l.b16 %v8822
        %v10248 = vunpack.c.l.b16 %v8823
        %v10249 = vunpack.c.l.b16 %v8824
        %v10250 = vunpack.c.l.b16 %v8825
        %v10251 = vunpack.c.l.b16 %v8826
        %v10252 = vunpack.c.l.b16 %v8827
        %v10253 = vunpack.c.l.b16 %v8828
        %v10254 = vpack.c.b16 %v10223, %v10222
        %v10255 = vpack.c.b16 %v10225, %v10224
        %v10256 = vpack.c.b16 %v10227, %v10226
        %v10257 = vpack.c.b16 %v10229, %v10228
        %v10258 = vpack.c.b16 %v10231, %v10230
        %v10259 = vpack.c.b16 %v10233, %v10232
        %v10260 = vpack.c.b16 %v10235, %v10234
        %v10261 = vpack.c.b16 %v10237, %v10236
        %v10262 = vpack.c.b16 %v10239, %v10238
        %v10263 = vpack.c.b16 %v10241, %v10240
        %v10264 = vpack.c.b16 %v10243, %v10242
        %v10265 = vpack.c.b16 %v10245, %v10244
        %v10266 = vpack.c.b16 %v10247, %v10246
        %v10267 = vpack.c.b16 %v10249, %v10248
        %v10268 = vpack.c.b16 %v10251, %v10250
        %v10269 = vpack.c.b16 %v10253, %v10252
        %10270 = vrot.lane.b32.xlu0 %v10254, 64
        %v10271 = vpop.permute.xlu0 %10270
        %10272 = vrot.lane.b32.xlu0 %v10255, 64
        %v10273 = vpop.permute.xlu0 %10272
        %10274 = vrot.lane.b32.xlu0 %v10256, 64
        %v10275 = vpop.permute.xlu0 %10274
        %10276 = vrot.lane.b32.xlu0 %v10257, 64
        %v10277 = vpop.permute.xlu0 %10276
        %10278 = vrot.lane.b32.xlu0 %v10258, 64
        %v10279 = vpop.permute.xlu0 %10278
        %10280 = vrot.lane.b32.xlu0 %v10259, 64
        %v10281 = vpop.permute.xlu0 %10280
        %10282 = vrot.lane.b32.xlu0 %v10260, 64
        %v10283 = vpop.permute.xlu0 %10282
        %10284 = vrot.lane.b32.xlu0 %v10261, 64
        %v10285 = vpop.permute.xlu0 %10284
        %10286 = vrot.lane.b32.xlu0 %v10262, 64
        %v10287 = vpop.permute.xlu0 %10286
        %10288 = vrot.lane.b32.xlu0 %v10263, 64
        %v10289 = vpop.permute.xlu0 %10288
        %10290 = vrot.lane.b32.xlu0 %v10264, 64
        %v10291 = vpop.permute.xlu0 %10290
        %10292 = vrot.lane.b32.xlu0 %v10265, 64
        %v10293 = vpop.permute.xlu0 %10292
        %10294 = vrot.lane.b32.xlu0 %v10266, 64
        %v10295 = vpop.permute.xlu0 %10294
        %10296 = vrot.lane.b32.xlu0 %v10267, 64
        %v10297 = vpop.permute.xlu0 %10296
        %10298 = vrot.lane.b32.xlu0 %v10268, 64
        %v10299 = vpop.permute.xlu0 %10298
        %10300 = vrot.lane.b32.xlu0 %v10269, 64
        %v10301 = vpop.permute.xlu0 %10300
        %v10302 = vunpack.c.l.b16 %v8858
        %v10303 = vunpack.c.l.b16 %v8868
        %v10304 = vunpack.c.l.b16 %v8882
        %v10305 = vunpack.c.l.b16 %v8892
        %v10306 = vunpack.c.l.b16 %v8906
        %v10307 = vunpack.c.l.b16 %v8916
        %v10308 = vunpack.c.l.b16 %v8930
        %v10309 = vunpack.c.l.b16 %v8940
        %v10310 = vunpack.c.l.b16 %v8954
        %v10311 = vunpack.c.l.b16 %v8964
        %v10312 = vunpack.c.l.b16 %v8978
        %v10313 = vunpack.c.l.b16 %v8988
        %v10314 = vunpack.c.l.b16 %v9002
        %v10315 = vunpack.c.l.b16 %v9012
        %v10316 = vunpack.c.l.b16 %v9026
        %v10317 = vunpack.c.l.b16 %v9036
        %v10318 = vunpack.c.l.b16 %v9050
        %v10319 = vunpack.c.l.b16 %v9060
        %v10320 = vunpack.c.l.b16 %v9074
        %v10321 = vunpack.c.l.b16 %v9084
        %v10322 = vunpack.c.l.b16 %v9098
        %v10323 = vunpack.c.l.b16 %v9108
        %v10324 = vunpack.c.l.b16 %v9122
        %v10325 = vunpack.c.l.b16 %v9132
        %v10326 = vunpack.c.l.b16 %v9146
        %v10327 = vunpack.c.l.b16 %v9156
        %v10328 = vunpack.c.l.b16 %v9170
        %v10329 = vunpack.c.l.b16 %v9180
        %v10330 = vunpack.c.l.b16 %v9194
        %v10331 = vunpack.c.l.b16 %v9204
        %v10332 = vunpack.c.l.b16 %v9218
        %v10333 = vunpack.c.l.b16 %v9228
        %v10334 = vpack.c.b16 %v10303, %v10302
        %v10335 = vpack.c.b16 %v10305, %v10304
        %v10336 = vpack.c.b16 %v10307, %v10306
        %v10337 = vpack.c.b16 %v10309, %v10308
        %v10338 = vpack.c.b16 %v10311, %v10310
        %v10339 = vpack.c.b16 %v10313, %v10312
        %v10340 = vpack.c.b16 %v10315, %v10314
        %v10341 = vpack.c.b16 %v10317, %v10316
        %v10342 = vpack.c.b16 %v10319, %v10318
        %v10343 = vpack.c.b16 %v10321, %v10320
        %v10344 = vpack.c.b16 %v10323, %v10322
        %v10345 = vpack.c.b16 %v10325, %v10324
        %v10346 = vpack.c.b16 %v10327, %v10326
        %v10347 = vpack.c.b16 %v10329, %v10328
        %v10348 = vpack.c.b16 %v10331, %v10330
        %v10349 = vpack.c.b16 %v10333, %v10332
        %v10350 = vunpack.c.l.b16 %v9296
        %v10351 = vunpack.c.l.b16 %v9299
        %v10352 = vunpack.c.l.b16 %v9303
        %v10353 = vunpack.c.l.b16 %v9306
        %v10354 = vunpack.c.l.b16 %v9310
        %v10355 = vunpack.c.l.b16 %v9313
        %v10356 = vunpack.c.l.b16 %v9317
        %v10357 = vunpack.c.l.b16 %v9320
        %v10358 = vunpack.c.l.b16 %v9324
        %v10359 = vunpack.c.l.b16 %v9327
        %v10360 = vunpack.c.l.b16 %v9331
        %v10361 = vunpack.c.l.b16 %v9334
        %v10362 = vunpack.c.l.b16 %v9338
        %v10363 = vunpack.c.l.b16 %v9341
        %v10364 = vunpack.c.l.b16 %v9345
        %v10365 = vunpack.c.l.b16 %v9348
        %v10366 = vunpack.c.l.b16 %v9352
        %v10367 = vunpack.c.l.b16 %v9355
        %v10368 = vunpack.c.l.b16 %v9359
        %v10369 = vunpack.c.l.b16 %v9362
        %v10370 = vunpack.c.l.b16 %v9366
        %v10371 = vunpack.c.l.b16 %v9369
        %v10372 = vunpack.c.l.b16 %v9373
        %v10373 = vunpack.c.l.b16 %v9376
        %v10374 = vunpack.c.l.b16 %v9380
        %v10375 = vunpack.c.l.b16 %v9383
        %v10376 = vunpack.c.l.b16 %v9387
        %v10377 = vunpack.c.l.b16 %v9390
        %v10378 = vunpack.c.l.b16 %v9394
        %v10379 = vunpack.c.l.b16 %v9397
        %v10380 = vunpack.c.l.b16 %v9401
        %v10381 = vunpack.c.l.b16 %v9404
        %v10382 = vpack.c.b16 %v10351, %v10350
        %v10383 = vpack.c.b16 %v10353, %v10352
        %v10384 = vpack.c.b16 %v10355, %v10354
        %v10385 = vpack.c.b16 %v10357, %v10356
        %v10386 = vpack.c.b16 %v10359, %v10358
        %v10387 = vpack.c.b16 %v10361, %v10360
        %v10388 = vpack.c.b16 %v10363, %v10362
        %v10389 = vpack.c.b16 %v10365, %v10364
        %v10390 = vpack.c.b16 %v10367, %v10366
        %v10391 = vpack.c.b16 %v10369, %v10368
        %v10392 = vpack.c.b16 %v10371, %v10370
        %v10393 = vpack.c.b16 %v10373, %v10372
        %v10394 = vpack.c.b16 %v10375, %v10374
        %v10395 = vpack.c.b16 %v10377, %v10376
        %v10396 = vpack.c.b16 %v10379, %v10378
        %v10397 = vpack.c.b16 %v10381, %v10380
        %10398 = vrot.lane.b32.xlu0 %v10382, 64
        %v10399 = vpop.permute.xlu0 %10398
        %10400 = vrot.lane.b32.xlu0 %v10383, 64
        %v10401 = vpop.permute.xlu0 %10400
        %10402 = vrot.lane.b32.xlu0 %v10384, 64
        %v10403 = vpop.permute.xlu0 %10402
        %10404 = vrot.lane.b32.xlu0 %v10385, 64
        %v10405 = vpop.permute.xlu0 %10404
        %10406 = vrot.lane.b32.xlu0 %v10386, 64
        %v10407 = vpop.permute.xlu0 %10406
        %10408 = vrot.lane.b32.xlu0 %v10387, 64
        %v10409 = vpop.permute.xlu0 %10408
        %10410 = vrot.lane.b32.xlu0 %v10388, 64
        %v10411 = vpop.permute.xlu0 %10410
        %10412 = vrot.lane.b32.xlu0 %v10389, 64
        %v10413 = vpop.permute.xlu0 %10412
        %10414 = vrot.lane.b32.xlu0 %v10390, 64
        %v10415 = vpop.permute.xlu0 %10414
        %10416 = vrot.lane.b32.xlu0 %v10391, 64
        %v10417 = vpop.permute.xlu0 %10416
        %10418 = vrot.lane.b32.xlu0 %v10392, 64
        %v10419 = vpop.permute.xlu0 %10418
        %10420 = vrot.lane.b32.xlu0 %v10393, 64
        %v10421 = vpop.permute.xlu0 %10420
        %10422 = vrot.lane.b32.xlu0 %v10394, 64
        %v10423 = vpop.permute.xlu0 %10422
        %10424 = vrot.lane.b32.xlu0 %v10395, 64
        %v10425 = vpop.permute.xlu0 %10424
        %10426 = vrot.lane.b32.xlu0 %v10396, 64
        %v10427 = vpop.permute.xlu0 %10426
        %10428 = vrot.lane.b32.xlu0 %v10397, 64
        %v10429 = vpop.permute.xlu0 %10428
        %v10446 = vunpack.c.l.b16 %v9406
        %v10447 = vunpack.c.l.b16 %v9407
        %v10448 = vunpack.c.l.b16 %v9408
        %v10449 = vunpack.c.l.b16 %v9409
        %v10450 = vunpack.c.l.b16 %v9410
        %v10451 = vunpack.c.l.b16 %v9411
        %v10452 = vunpack.c.l.b16 %v9412
        %v10453 = vunpack.c.l.b16 %v9413
        %v10454 = vunpack.c.l.b16 %v9414
        %v10455 = vunpack.c.l.b16 %v9415
        %v10456 = vunpack.c.l.b16 %v9416
        %v10457 = vunpack.c.l.b16 %v9417
        %v10458 = vunpack.c.l.b16 %v9418
        %v10459 = vunpack.c.l.b16 %v9419
        %v10460 = vunpack.c.l.b16 %v9420
        %v10461 = vunpack.c.l.b16 %v9421
        %v10462 = vunpack.c.l.b16 %v9422
        %v10463 = vunpack.c.l.b16 %v9423
        %v10464 = vunpack.c.l.b16 %v9424
        %v10465 = vunpack.c.l.b16 %v9425
        %v10466 = vunpack.c.l.b16 %v9426
        %v10467 = vunpack.c.l.b16 %v9427
        %v10468 = vunpack.c.l.b16 %v9428
        %v10469 = vunpack.c.l.b16 %v9429
        %v10470 = vunpack.c.l.b16 %v9430
        %v10471 = vunpack.c.l.b16 %v9431
        %v10472 = vunpack.c.l.b16 %v9432
        %v10473 = vunpack.c.l.b16 %v9433
        %v10474 = vunpack.c.l.b16 %v9434
        %v10475 = vunpack.c.l.b16 %v9435
        %v10476 = vunpack.c.l.b16 %v9436
        %v10477 = vunpack.c.l.b16 %v9437
        %v10478 = vpack.c.b16 %v10447, %v10446
        %v10479 = vpack.c.b16 %v10449, %v10448
        %v10480 = vpack.c.b16 %v10451, %v10450
        %v10481 = vpack.c.b16 %v10453, %v10452
        %v10482 = vpack.c.b16 %v10455, %v10454
        %v10483 = vpack.c.b16 %v10457, %v10456
        %v10484 = vpack.c.b16 %v10459, %v10458
        %v10485 = vpack.c.b16 %v10461, %v10460
        %v10486 = vpack.c.b16 %v10463, %v10462
        %v10487 = vpack.c.b16 %v10465, %v10464
        %v10488 = vpack.c.b16 %v10467, %v10466
        %v10489 = vpack.c.b16 %v10469, %v10468
        %v10490 = vpack.c.b16 %v10471, %v10470
        %v10491 = vpack.c.b16 %v10473, %v10472
        %v10492 = vpack.c.b16 %v10475, %v10474
        %v10493 = vpack.c.b16 %v10477, %v10476
        %v10494 = vunpack.c.l.b16 %v9467
        %v10495 = vunpack.c.l.b16 %v9477
        %v10496 = vunpack.c.l.b16 %v9491
        %v10497 = vunpack.c.l.b16 %v9501
        %v10498 = vunpack.c.l.b16 %v9515
        %v10499 = vunpack.c.l.b16 %v9525
        %v10500 = vunpack.c.l.b16 %v9539
        %v10501 = vunpack.c.l.b16 %v9549
        %v10502 = vunpack.c.l.b16 %v9563
        %v10503 = vunpack.c.l.b16 %v9573
        %v10504 = vunpack.c.l.b16 %v9587
        %v10505 = vunpack.c.l.b16 %v9597
        %v10506 = vunpack.c.l.b16 %v9611
        %v10507 = vunpack.c.l.b16 %v9621
        %v10508 = vunpack.c.l.b16 %v9635
        %v10509 = vunpack.c.l.b16 %v9645
        %v10510 = vunpack.c.l.b16 %v9659
        %v10511 = vunpack.c.l.b16 %v9669
        %v10512 = vunpack.c.l.b16 %v9683
        %v10513 = vunpack.c.l.b16 %v9693
        %v10514 = vunpack.c.l.b16 %v9707
        %v10515 = vunpack.c.l.b16 %v9717
        %v10516 = vunpack.c.l.b16 %v9731
        %v10517 = vunpack.c.l.b16 %v9741
        %v10518 = vunpack.c.l.b16 %v9755
        %v10519 = vunpack.c.l.b16 %v9765
        %v10520 = vunpack.c.l.b16 %v9779
        %v10521 = vunpack.c.l.b16 %v9789
        %v10522 = vunpack.c.l.b16 %v9803
        %v10523 = vunpack.c.l.b16 %v9813
        %v10524 = vunpack.c.l.b16 %v9827
        %v10525 = vunpack.c.l.b16 %v9837
        %v10526 = vpack.c.b16 %v10495, %v10494
        %v10527 = vpack.c.b16 %v10497, %v10496
        %v10528 = vpack.c.b16 %v10499, %v10498
        %v10529 = vpack.c.b16 %v10501, %v10500
        %v10530 = vpack.c.b16 %v10503, %v10502
        %v10531 = vpack.c.b16 %v10505, %v10504
        %v10532 = vpack.c.b16 %v10507, %v10506
        %v10533 = vpack.c.b16 %v10509, %v10508
        %v10534 = vpack.c.b16 %v10511, %v10510
        %v10535 = vpack.c.b16 %v10513, %v10512
        %v10536 = vpack.c.b16 %v10515, %v10514
        %v10537 = vpack.c.b16 %v10517, %v10516
        %v10538 = vpack.c.b16 %v10519, %v10518
        %v10539 = vpack.c.b16 %v10521, %v10520
        %v10540 = vpack.c.b16 %v10523, %v10522
        %v10541 = vpack.c.b16 %v10525, %v10524
        %10542 = vrot.lane.b32.xlu0 %v10526, 64
        %v10543 = vpop.permute.xlu0 %10542
        %10544 = vrot.lane.b32.xlu0 %v10527, 64
        %v10545 = vpop.permute.xlu0 %10544
        %10546 = vrot.lane.b32.xlu0 %v10528, 64
        %v10547 = vpop.permute.xlu0 %10546
        %10548 = vrot.lane.b32.xlu0 %v10529, 64
        %v10549 = vpop.permute.xlu0 %10548
        %10550 = vrot.lane.b32.xlu0 %v10530, 64
        %v10551 = vpop.permute.xlu0 %10550
        %10552 = vrot.lane.b32.xlu0 %v10531, 64
        %v10553 = vpop.permute.xlu0 %10552
        %10554 = vrot.lane.b32.xlu0 %v10532, 64
        %v10555 = vpop.permute.xlu0 %10554
        %10556 = vrot.lane.b32.xlu0 %v10533, 64
        %v10557 = vpop.permute.xlu0 %10556
        %10558 = vrot.lane.b32.xlu0 %v10534, 64
        %v10559 = vpop.permute.xlu0 %10558
        %10560 = vrot.lane.b32.xlu0 %v10535, 64
        %v10561 = vpop.permute.xlu0 %10560
        %10562 = vrot.lane.b32.xlu0 %v10536, 64
        %v10563 = vpop.permute.xlu0 %10562
        %10564 = vrot.lane.b32.xlu0 %v10537, 64
        %v10565 = vpop.permute.xlu0 %10564
        %10566 = vrot.lane.b32.xlu0 %v10538, 64
        %v10567 = vpop.permute.xlu0 %10566
        %10568 = vrot.lane.b32.xlu0 %v10539, 64
        %v10569 = vpop.permute.xlu0 %10568
        %10570 = vrot.lane.b32.xlu0 %v10540, 64
        %v10571 = vpop.permute.xlu0 %10570
        %10572 = vrot.lane.b32.xlu0 %v10541, 64
        %v10573 = vpop.permute.xlu0 %10572
        %v10574 = vunpack.c.l.b16 %v9905
        %v10575 = vunpack.c.l.b16 %v9908
        %v10576 = vunpack.c.l.b16 %v9912
        %v10577 = vunpack.c.l.b16 %v9915
        %v10578 = vunpack.c.l.b16 %v9919
        %v10579 = vunpack.c.l.b16 %v9922
        %v10580 = vunpack.c.l.b16 %v9926
        %v10581 = vunpack.c.l.b16 %v9929
        %v10582 = vunpack.c.l.b16 %v9933
        %v10583 = vunpack.c.l.b16 %v9936
        %v10584 = vunpack.c.l.b16 %v9940
        %v10585 = vunpack.c.l.b16 %v9943
        %v10586 = vunpack.c.l.b16 %v9947
        %v10587 = vunpack.c.l.b16 %v9950
        %v10588 = vunpack.c.l.b16 %v9954
        %v10589 = vunpack.c.l.b16 %v9957
        %v10590 = vunpack.c.l.b16 %v9961
        %v10591 = vunpack.c.l.b16 %v9964
        %v10592 = vunpack.c.l.b16 %v9968
        %v10593 = vunpack.c.l.b16 %v9971
        %v10594 = vunpack.c.l.b16 %v9975
        %v10595 = vunpack.c.l.b16 %v9978
        %v10596 = vunpack.c.l.b16 %v9982
        %v10597 = vunpack.c.l.b16 %v9985
        %v10598 = vunpack.c.l.b16 %v9989
        %v10599 = vunpack.c.l.b16 %v9992
        %v10600 = vunpack.c.l.b16 %v9996
        %v10601 = vunpack.c.l.b16 %v9999
        %v10602 = vunpack.c.l.b16 %v10003
        %v10603 = vunpack.c.l.b16 %v10006
        %v10604 = vunpack.c.l.b16 %v10010
        %v10605 = vunpack.c.l.b16 %v10013
        %v10606 = vpack.c.b16 %v10575, %v10574
        %v10607 = vpack.c.b16 %v10577, %v10576
        %v10608 = vpack.c.b16 %v10579, %v10578
        %v10609 = vpack.c.b16 %v10581, %v10580
        %v10610 = vpack.c.b16 %v10583, %v10582
        %v10611 = vpack.c.b16 %v10585, %v10584
        %v10612 = vpack.c.b16 %v10587, %v10586
        %v10613 = vpack.c.b16 %v10589, %v10588
        %v10614 = vpack.c.b16 %v10591, %v10590
        %v10615 = vpack.c.b16 %v10593, %v10592
        %v10616 = vpack.c.b16 %v10595, %v10594
        %v10617 = vpack.c.b16 %v10597, %v10596
        %v10618 = vpack.c.b16 %v10599, %v10598
        %v10619 = vpack.c.b16 %v10601, %v10600
        %v10620 = vpack.c.b16 %v10603, %v10602
        %v10621 = vpack.c.b16 %v10605, %v10604
        %v10624 = vsel %vm6959, %v10062, %v10127
        %v10628 = vsel %vm6959, %v10063, %v10129
        %v10632 = vsel %vm6959, %v10064, %v10131
        %v10636 = vsel %vm6959, %v10065, %v10133
        %v10640 = vsel %vm6959, %v10066, %v10135
        %v10644 = vsel %vm6959, %v10067, %v10137
        %v10648 = vsel %vm6959, %v10068, %v10139
        %v10652 = vsel %vm6959, %v10069, %v10141
        %v10656 = vsel %vm6959, %v10070, %v10143
        %v10660 = vsel %vm6959, %v10071, %v10145
        %v10664 = vsel %vm6959, %v10072, %v10147
        %v10668 = vsel %vm6959, %v10073, %v10149
        %v10672 = vsel %vm6959, %v10074, %v10151
        %v10676 = vsel %vm6959, %v10075, %v10153
        %v10680 = vsel %vm6959, %v10076, %v10155
        %v10684 = vsel %vm6959, %v10077, %v10157
        %v10688 = vsel %vm6959, %v10190, %v10271
        %v10692 = vsel %vm6959, %v10191, %v10273
        %v10696 = vsel %vm6959, %v10192, %v10275
        %v10700 = vsel %vm6959, %v10193, %v10277
        %v10704 = vsel %vm6959, %v10194, %v10279
        %v10708 = vsel %vm6959, %v10195, %v10281
        %v10712 = vsel %vm6959, %v10196, %v10283
        %v10716 = vsel %vm6959, %v10197, %v10285
        %v10720 = vsel %vm6959, %v10198, %v10287
        %v10724 = vsel %vm6959, %v10199, %v10289
        %v10728 = vsel %vm6959, %v10200, %v10291
        %v10732 = vsel %vm6959, %v10201, %v10293
        %v10736 = vsel %vm6959, %v10202, %v10295
        %v10740 = vsel %vm6959, %v10203, %v10297
        %v10744 = vsel %vm6959, %v10204, %v10299
        %v10748 = vsel %vm6959, %v10205, %v10301
        %v10752 = vsel %vm6959, %v10334, %v10399
        %v10756 = vsel %vm6959, %v10335, %v10401
        %v10760 = vsel %vm6959, %v10336, %v10403
        %v10764 = vsel %vm6959, %v10337, %v10405
        %v10768 = vsel %vm6959, %v10338, %v10407
        %v10772 = vsel %vm6959, %v10339, %v10409
        %v10776 = vsel %vm6959, %v10340, %v10411
        %v10780 = vsel %vm6959, %v10341, %v10413
        %v10784 = vsel %vm6959, %v10342, %v10415
        %v10788 = vsel %vm6959, %v10343, %v10417
        %v10792 = vsel %vm6959, %v10344, %v10419
        %v10796 = vsel %vm6959, %v10345, %v10421
        %v10800 = vsel %vm6959, %v10346, %v10423
        %v10804 = vsel %vm6959, %v10347, %v10425
        %v10808 = vsel %vm6959, %v10348, %v10427
        %v10812 = vsel %vm6959, %v10349, %v10429
        %v10816 = vsel %vm6959, %v10478, %v10543
        %v10820 = vsel %vm6959, %v10479, %v10545
        %v10824 = vsel %vm6959, %v10480, %v10547
        %v10828 = vsel %vm6959, %v10481, %v10549
        %v10832 = vsel %vm6959, %v10482, %v10551
        %v10836 = vsel %vm6959, %v10483, %v10553
        %v10840 = vsel %vm6959, %v10484, %v10555
        %v10844 = vsel %vm6959, %v10485, %v10557
        %v10848 = vsel %vm6959, %v10486, %v10559
        %v10852 = vsel %vm6959, %v10487, %v10561
        %v10856 = vsel %vm6959, %v10488, %v10563
        %v10860 = vsel %vm6959, %v10489, %v10565
        %v10864 = vsel %vm6959, %v10490, %v10567
        %v10868 = vsel %vm6959, %v10491, %v10569
        %v10872 = vsel %vm6959, %v10492, %v10571
        %v10876 = vsel %vm6959, %v10493, %v10573
        %v10878 = vld [vmem:[%s5] sm:$0xf]
        %v10879 = vld [vmem:[%s5 + $0x4] sm:$0xf]
        %v10880 = vld [vmem:[%s5 + $0x8] sm:$0xf]
        %v10881 = vld [vmem:[%s5 + $0xc] sm:$0xf]
        %v10882 = vld [vmem:[%s5 + $0x10] sm:$0xf]
        %v10883 = vld [vmem:[%s5 + $0x14] sm:$0xf]
        %v10884 = vld [vmem:[%s5 + $0x18] sm:$0xf]
        %v10885 = vld [vmem:[%s5 + $0x1c] sm:$0xf]
        %v10886 = vld [vmem:[%s5 + $0x20] sm:$0xf]
        %v10887 = vld [vmem:[%s5 + $0x24] sm:$0xf]
        %v10888 = vld [vmem:[%s5 + $0x28] sm:$0xf]
        %v10889 = vld [vmem:[%s5 + $0x2c] sm:$0xf]
        %v10890 = vld [vmem:[%s5 + $0x30] sm:$0xf]
        %v10891 = vld [vmem:[%s5 + $0x34] sm:$0xf]
        %v10892 = vld [vmem:[%s5 + $0x38] sm:$0xf]
        %v10893 = vld [vmem:[%s5 + $0x3c] sm:$0xf]
        %v10894 = vld [vmem:[%s5 + $0x40] sm:$0xf]
        %v10895 = vld [vmem:[%s5 + $0x44] sm:$0xf]
        %v10896 = vld [vmem:[%s5 + $0x48] sm:$0xf]
        %v10897 = vld [vmem:[%s5 + $0x4c] sm:$0xf]
        %v10898 = vld [vmem:[%s5 + $0x50] sm:$0xf]
        %v10899 = vld [vmem:[%s5 + $0x54] sm:$0xf]
        %v10900 = vld [vmem:[%s5 + $0x58] sm:$0xf]
        %v10901 = vld [vmem:[%s5 + $0x5c] sm:$0xf]
        %v10902 = vld [vmem:[%s5 + $0x60] sm:$0xf]
        %v10903 = vld [vmem:[%s5 + $0x64] sm:$0xf]
        %v10904 = vld [vmem:[%s5 + $0x68] sm:$0xf]
        %v10905 = vld [vmem:[%s5 + $0x6c] sm:$0xf]
        %v10906 = vld [vmem:[%s5 + $0x70] sm:$0xf]
        %v10907 = vld [vmem:[%s5 + $0x74] sm:$0xf]
        %v10908 = vld [vmem:[%s5 + $0x78] sm:$0xf]
        %v10909 = vld [vmem:[%s5 + $0x7c] sm:$0xf]
        %v10910 = vld [vmem:[%s5 + $0x80] sm:$0xf]
        %v10911 = vld [vmem:[%s5 + $0x84] sm:$0xf]
        %v10912 = vld [vmem:[%s5 + $0x88] sm:$0xf]
        %v10913 = vld [vmem:[%s5 + $0x8c] sm:$0xf]
        %v10914 = vld [vmem:[%s5 + $0x90] sm:$0xf]
        %v10915 = vld [vmem:[%s5 + $0x94] sm:$0xf]
        %v10916 = vld [vmem:[%s5 + $0x98] sm:$0xf]
        %v10917 = vld [vmem:[%s5 + $0x9c] sm:$0xf]
        %v10918 = vld [vmem:[%s5 + $0xa0] sm:$0xf]
        %v10919 = vld [vmem:[%s5 + $0xa4] sm:$0xf]
        %v10920 = vld [vmem:[%s5 + $0xa8] sm:$0xf]
        %v10921 = vld [vmem:[%s5 + $0xac] sm:$0xf]
        %v10922 = vld [vmem:[%s5 + $0xb0] sm:$0xf]
        %v10923 = vld [vmem:[%s5 + $0xb4] sm:$0xf]
        %v10924 = vld [vmem:[%s5 + $0xb8] sm:$0xf]
        %v10925 = vld [vmem:[%s5 + $0xbc] sm:$0xf]
        %v10926 = vld [vmem:[%s5 + $0xc0] sm:$0xf]
        %v10927 = vld [vmem:[%s5 + $0xc4] sm:$0xf]
        %v10928 = vld [vmem:[%s5 + $0xc8] sm:$0xf]
        %v10929 = vld [vmem:[%s5 + $0xcc] sm:$0xf]
        %v10930 = vld [vmem:[%s5 + $0xd0] sm:$0xf]
        %v10931 = vld [vmem:[%s5 + $0xd4] sm:$0xf]
        %v10932 = vld [vmem:[%s5 + $0xd8] sm:$0xf]
        %v10933 = vld [vmem:[%s5 + $0xdc] sm:$0xf]
        %v10934 = vld [vmem:[%s5 + $0xe0] sm:$0xf]
        %v10935 = vld [vmem:[%s5 + $0xe4] sm:$0xf]
        %v10936 = vld [vmem:[%s5 + $0xe8] sm:$0xf]
        %v10937 = vld [vmem:[%s5 + $0xec] sm:$0xf]
        %v10938 = vld [vmem:[%s5 + $0xf0] sm:$0xf]
        %v10939 = vld [vmem:[%s5 + $0xf4] sm:$0xf]
        %v10940 = vld [vmem:[%s5 + $0xf8] sm:$0xf]
        %v10941 = vld [vmem:[%s5 + $0xfc] sm:$0xf]
        %v10942 = vld [vmem:[%s5 + $0x100] sm:$0xf]
        %v10943 = vld [vmem:[%s5 + $0x104] sm:$0xf]
        %v10944 = vld [vmem:[%s5 + $0x108] sm:$0xf]
        %v10945 = vld [vmem:[%s5 + $0x10c] sm:$0xf]
        %v10946 = vld [vmem:[%s5 + $0x110] sm:$0xf]
        %v10947 = vld [vmem:[%s5 + $0x114] sm:$0xf]
        %v10948 = vld [vmem:[%s5 + $0x118] sm:$0xf]
        %v10949 = vld [vmem:[%s5 + $0x11c] sm:$0xf]
        %v10950 = vld [vmem:[%s6] sm:$0x1]
        %v10952 = vperm.slane %v10950, 0
        %v11026 = vunpack.c.l.b16 %v10878
        %v11027 = vunpack.c.l.b16 %v10879
        %v11028 = vunpack.c.l.b16 %v10880
        %v11029 = vunpack.c.l.b16 %v10881
        %v11030 = vunpack.c.l.b16 %v10882
        %v11031 = vunpack.c.l.b16 %v10883
        %v11032 = vunpack.c.l.b16 %v10884
        %v11033 = vunpack.c.l.b16 %v10885
        %v11034 = vunpack.c.l.b16 %v10886
        %v11035 = vunpack.c.l.b16 %v10887
        %v11036 = vunpack.c.l.b16 %v10888
        %v11037 = vunpack.c.l.b16 %v10889
        %v11038 = vunpack.c.l.b16 %v10890
        %v11039 = vunpack.c.l.b16 %v10891
        %v11040 = vunpack.c.l.b16 %v10892
        %v11041 = vunpack.c.l.b16 %v10893
        %v11042 = vunpack.c.l.b16 %v10894
        %v11043 = vunpack.c.l.b16 %v10895
        %v11044 = vunpack.c.l.b16 %v10896
        %v11045 = vunpack.c.l.b16 %v10897
        %v11046 = vunpack.c.l.b16 %v10898
        %v11047 = vunpack.c.l.b16 %v10899
        %v11048 = vunpack.c.l.b16 %v10900
        %v11049 = vunpack.c.l.b16 %v10901
        %v11050 = vunpack.c.l.b16 %v10902
        %v11051 = vunpack.c.l.b16 %v10903
        %v11052 = vunpack.c.l.b16 %v10904
        %v11053 = vunpack.c.l.b16 %v10905
        %v11054 = vunpack.c.l.b16 %v10906
        %v11055 = vunpack.c.l.b16 %v10907
        %v11056 = vunpack.c.l.b16 %v10908
        %v11057 = vunpack.c.l.b16 %v10909
        %v11058 = vunpack.c.l.b16 %v10910
        %v11059 = vunpack.c.l.b16 %v10911
        %v11060 = vunpack.c.l.b16 %v10912
        %v11061 = vunpack.c.l.b16 %v10913
        %v11062 = vunpack.c.l.b16 %v10914
        %v11063 = vunpack.c.l.b16 %v10915
        %v11064 = vunpack.c.l.b16 %v10916
        %v11065 = vunpack.c.l.b16 %v10917
        %v11066 = vunpack.c.l.b16 %v10918
        %v11067 = vunpack.c.l.b16 %v10919
        %v11068 = vunpack.c.l.b16 %v10920
        %v11069 = vunpack.c.l.b16 %v10921
        %v11070 = vunpack.c.l.b16 %v10922
        %v11071 = vunpack.c.l.b16 %v10923
        %v11072 = vunpack.c.l.b16 %v10924
        %v11073 = vunpack.c.l.b16 %v10925
        %v11074 = vunpack.c.l.b16 %v10926
        %v11075 = vunpack.c.l.b16 %v10927
        %v11076 = vunpack.c.l.b16 %v10928
        %v11077 = vunpack.c.l.b16 %v10929
        %v11078 = vunpack.c.l.b16 %v10930
        %v11079 = vunpack.c.l.b16 %v10931
        %v11080 = vunpack.c.l.b16 %v10932
        %v11081 = vunpack.c.l.b16 %v10933
        %v11082 = vunpack.c.l.b16 %v10934
        %v11083 = vunpack.c.l.b16 %v10935
        %v11084 = vunpack.c.l.b16 %v10936
        %v11085 = vunpack.c.l.b16 %v10937
        %v11086 = vunpack.c.l.b16 %v10938
        %v11087 = vunpack.c.l.b16 %v10939
        %v11088 = vunpack.c.l.b16 %v10940
        %v11089 = vunpack.c.l.b16 %v10941
        %v11090 = vunpack.c.l.b16 %v10942
        %v11091 = vunpack.c.l.b16 %v10943
        %v11092 = vunpack.c.l.b16 %v10944
        %v11093 = vunpack.c.l.b16 %v10945
        %v11094 = vunpack.c.l.b16 %v10946
        %v11095 = vunpack.c.l.b16 %v10947
        %v11096 = vunpack.c.l.b16 %v10948
        %v11097 = vunpack.c.l.b16 %v10949
        %v11098 = vpack.c.b16 %v11027, %v11026
        %v11099 = vpack.c.b16 %v11029, %v11028
        %v11100 = vpack.c.b16 %v11031, %v11030
        %v11101 = vpack.c.b16 %v11033, %v11032
        %v11102 = vpack.c.b16 %v11035, %v11034
        %v11103 = vpack.c.b16 %v11037, %v11036
        %v11104 = vpack.c.b16 %v11039, %v11038
        %v11105 = vpack.c.b16 %v11041, %v11040
        %v11106 = vpack.c.b16 %v11043, %v11042
        %v11107 = vpack.c.b16 %v11045, %v11044
        %v11108 = vpack.c.b16 %v11047, %v11046
        %v11109 = vpack.c.b16 %v11049, %v11048
        %v11110 = vpack.c.b16 %v11051, %v11050
        %v11111 = vpack.c.b16 %v11053, %v11052
        %v11112 = vpack.c.b16 %v11055, %v11054
        %v11113 = vpack.c.b16 %v11057, %v11056
        %v11114 = vpack.c.b16 %v11059, %v11058
        %v11115 = vpack.c.b16 %v11061, %v11060
        %v11116 = vpack.c.b16 %v11063, %v11062
        %v11117 = vpack.c.b16 %v11065, %v11064
        %v11118 = vpack.c.b16 %v11067, %v11066
        %v11119 = vpack.c.b16 %v11069, %v11068
        %v11120 = vpack.c.b16 %v11071, %v11070
        %v11121 = vpack.c.b16 %v11073, %v11072
        %v11122 = vpack.c.b16 %v11075, %v11074
        %v11123 = vpack.c.b16 %v11077, %v11076
        %v11124 = vpack.c.b16 %v11079, %v11078
        %v11125 = vpack.c.b16 %v11081, %v11080
        %v11126 = vpack.c.b16 %v11083, %v11082
        %v11127 = vpack.c.b16 %v11085, %v11084
        %v11128 = vpack.c.b16 %v11087, %v11086
        %v11129 = vpack.c.b16 %v11089, %v11088
        %v11130 = vpack.c.b16 %v11091, %v11090
        %v11131 = vpack.c.b16 %v11093, %v11092
        %v11132 = vpack.c.b16 %v11095, %v11094
        %v11133 = vpack.c.b16 %v11097, %v11096
        %v11171 = vsel %vm6959, %v10606, 0
        %v11174 = vsel %vm6959, %v10607, 0
        %v11177 = vsel %vm6959, %v10608, 0
        %v11180 = vsel %vm6959, %v10609, 0
        %v11183 = vsel %vm6959, %v10610, 0
        %v11186 = vsel %vm6959, %v10611, 0
        %v11189 = vsel %vm6959, %v10612, 0
        %v11192 = vsel %vm6959, %v10613, 0
        %v11195 = vsel %vm6959, %v10614, 0
        %v11198 = vsel %vm6959, %v10615, 0
        %v11201 = vsel %vm6959, %v10616, 0
        %v11204 = vsel %vm6959, %v10617, 0
        %v11207 = vsel %vm6959, %v10618, 0
        %v11210 = vsel %vm6959, %v10619, 0
        %v11213 = vsel %vm6959, %v10620, 0
        %v11216 = vsel %vm6959, %v10621, 0
        %11218 = vmatpush.bf16.msra.mxu0 %v11105
        %11219 = vmatpush.bf16.msra.mxu0 %v11104
        %11220 = vmatpush.bf16.msra.mxu0 %v11103
        %11221 = vmatpush.bf16.msra.mxu0 %v11102
        %11222 = vmatpush.bf16.msra.mxu0 %v11101
        %11223 = vmatpush.bf16.msra.mxu0 %v11100
        %11224 = vmatpush.bf16.msra.mxu0 %v11099
        %11225 = vmatpush.bf16.msra.mxu0 %v11098
        %11226 = vmatmul.bf16.gmra.mxu0 %v10624
        %v11227 = vpop.f32.mrf.mxu0
        %v11228 = vadd.f32 %v10952, %v11227
        %v11229 = vpop.f32.mrf.mxu0
        %v11230 = vadd.f32 %v10952, %v11229
        %11231 = vmatmul.bf16.gmra.mxu0 %v10628
        %v11232 = vpop.f32.mrf.mxu0
        %v11233 = vadd.f32 %v10952, %v11232
        %v11234 = vpop.f32.mrf.mxu0
        %v11235 = vadd.f32 %v10952, %v11234
        %11236 = vmatmul.bf16.gmra.mxu0 %v10632
        %v11237 = vpop.f32.mrf.mxu0
        %v11238 = vadd.f32 %v10952, %v11237
        %v11239 = vpop.f32.mrf.mxu0
        %v11240 = vadd.f32 %v10952, %v11239
        %11241 = vmatmul.bf16.gmra.mxu0 %v10636
        %v11242 = vpop.f32.mrf.mxu0
        %v11243 = vadd.f32 %v10952, %v11242
        %v11244 = vpop.f32.mrf.mxu0
        %v11245 = vadd.f32 %v10952, %v11244
        %11246 = vmatmul.bf16.gmra.mxu0 %v10640
        %v11247 = vpop.f32.mrf.mxu0
        %v11248 = vadd.f32 %v10952, %v11247
        %v11249 = vpop.f32.mrf.mxu0
        %v11250 = vadd.f32 %v10952, %v11249
        %11251 = vmatmul.bf16.gmra.mxu0 %v10644
        %v11252 = vpop.f32.mrf.mxu0
        %v11253 = vadd.f32 %v10952, %v11252
        %v11254 = vpop.f32.mrf.mxu0
        %v11255 = vadd.f32 %v10952, %v11254
        %11256 = vmatmul.bf16.gmra.mxu0 %v10648
        %v11257 = vpop.f32.mrf.mxu0
        %v11258 = vadd.f32 %v10952, %v11257
        %v11259 = vpop.f32.mrf.mxu0
        %v11260 = vadd.f32 %v10952, %v11259
        %11261 = vmatmul.bf16.gmra.mxu0 %v10652
        %v11262 = vpop.f32.mrf.mxu0
        %v11263 = vadd.f32 %v10952, %v11262
        %v11264 = vpop.f32.mrf.mxu0
        %v11265 = vadd.f32 %v10952, %v11264
        %11266 = vmatmul.bf16.gmra.mxu0 %v10656
        %v11267 = vpop.f32.mrf.mxu0
        %v11268 = vadd.f32 %v10952, %v11267
        %v11269 = vpop.f32.mrf.mxu0
        %v11270 = vadd.f32 %v10952, %v11269
        %11271 = vmatmul.bf16.gmra.mxu0 %v10660
        %v11272 = vpop.f32.mrf.mxu0
        %v11273 = vadd.f32 %v10952, %v11272
        %v11274 = vpop.f32.mrf.mxu0
        %v11275 = vadd.f32 %v10952, %v11274
        %11276 = vmatmul.bf16.gmra.mxu0 %v10664
        %v11277 = vpop.f32.mrf.mxu0
        %v11278 = vadd.f32 %v10952, %v11277
        %v11279 = vpop.f32.mrf.mxu0
        %v11280 = vadd.f32 %v10952, %v11279
        %11281 = vmatmul.bf16.gmra.mxu0 %v10668
        %v11282 = vpop.f32.mrf.mxu0
        %v11283 = vadd.f32 %v10952, %v11282
        %v11284 = vpop.f32.mrf.mxu0
        %v11285 = vadd.f32 %v10952, %v11284
        %11286 = vmatmul.bf16.gmra.mxu0 %v10672
        %v11287 = vpop.f32.mrf.mxu0
        %v11288 = vadd.f32 %v10952, %v11287
        %v11289 = vpop.f32.mrf.mxu0
        %v11290 = vadd.f32 %v10952, %v11289
        %11291 = vmatmul.bf16.gmra.mxu0 %v10676
        %v11292 = vpop.f32.mrf.mxu0
        %v11293 = vadd.f32 %v10952, %v11292
        %v11294 = vpop.f32.mrf.mxu0
        %v11295 = vadd.f32 %v10952, %v11294
        %11296 = vmatmul.bf16.gmra.mxu0 %v10680
        %v11297 = vpop.f32.mrf.mxu0
        %v11298 = vadd.f32 %v10952, %v11297
        %v11299 = vpop.f32.mrf.mxu0
        %v11300 = vadd.f32 %v10952, %v11299
        %11301 = vmatmul.bf16.gmra.mxu0 %v10684
        %v11302 = vpop.f32.mrf.mxu0
        %v11303 = vadd.f32 %v10952, %v11302
        %v11304 = vpop.f32.mrf.mxu0
        %v11305 = vadd.f32 %v10952, %v11304
        %11306 = vdwg.mxu0
        %11307 = vmatpush.bf16.msra.mxu0 %v11113
        %11308 = vmatpush.bf16.msra.mxu0 %v11112
        %11309 = vmatpush.bf16.msra.mxu0 %v11111
        %11310 = vmatpush.bf16.msra.mxu0 %v11110
        %11311 = vmatpush.bf16.msra.mxu0 %v11109
        %11312 = vmatpush.bf16.msra.mxu0 %v11108
        %11313 = vmatpush.bf16.msra.mxu0 %v11107
        %11314 = vmatpush.bf16.msra.mxu0 %v11106
        %11315 = vmatmul.bf16.gmra.mxu0 %v10688
        %v11316 = vpop.f32.mrf.mxu0
        %v11317 = vadd.f32 %v11228, %v11316
        %v11318 = vpop.f32.mrf.mxu0
        %v11319 = vadd.f32 %v11230, %v11318
        %11320 = vmatmul.bf16.gmra.mxu0 %v10692
        %v11321 = vpop.f32.mrf.mxu0
        %v11322 = vadd.f32 %v11233, %v11321
        %v11323 = vpop.f32.mrf.mxu0
        %v11324 = vadd.f32 %v11235, %v11323
        %11325 = vmatmul.bf16.gmra.mxu0 %v10696
        %v11326 = vpop.f32.mrf.mxu0
        %v11327 = vadd.f32 %v11238, %v11326
        %v11328 = vpop.f32.mrf.mxu0
        %v11329 = vadd.f32 %v11240, %v11328
        %11330 = vmatmul.bf16.gmra.mxu0 %v10700
        %v11331 = vpop.f32.mrf.mxu0
        %v11332 = vadd.f32 %v11243, %v11331
        %v11333 = vpop.f32.mrf.mxu0
        %v11334 = vadd.f32 %v11245, %v11333
        %11335 = vmatmul.bf16.gmra.mxu0 %v10704
        %v11336 = vpop.f32.mrf.mxu0
        %v11337 = vadd.f32 %v11248, %v11336
        %v11338 = vpop.f32.mrf.mxu0
        %v11339 = vadd.f32 %v11250, %v11338
        %11340 = vmatmul.bf16.gmra.mxu0 %v10708
        %v11341 = vpop.f32.mrf.mxu0
        %v11342 = vadd.f32 %v11253, %v11341
        %v11343 = vpop.f32.mrf.mxu0
        %v11344 = vadd.f32 %v11255, %v11343
        %11345 = vmatmul.bf16.gmra.mxu0 %v10712
        %v11346 = vpop.f32.mrf.mxu0
        %v11347 = vadd.f32 %v11258, %v11346
        %v11348 = vpop.f32.mrf.mxu0
        %v11349 = vadd.f32 %v11260, %v11348
        %11350 = vmatmul.bf16.gmra.mxu0 %v10716
        %v11351 = vpop.f32.mrf.mxu0
        %v11352 = vadd.f32 %v11263, %v11351
        %v11353 = vpop.f32.mrf.mxu0
        %v11354 = vadd.f32 %v11265, %v11353
        %11355 = vmatmul.bf16.gmra.mxu0 %v10720
        %v11356 = vpop.f32.mrf.mxu0
        %v11357 = vadd.f32 %v11268, %v11356
        %v11358 = vpop.f32.mrf.mxu0
        %v11359 = vadd.f32 %v11270, %v11358
        %11360 = vmatmul.bf16.gmra.mxu0 %v10724
        %v11361 = vpop.f32.mrf.mxu0
        %v11362 = vadd.f32 %v11273, %v11361
        %v11363 = vpop.f32.mrf.mxu0
        %v11364 = vadd.f32 %v11275, %v11363
        %11365 = vmatmul.bf16.gmra.mxu0 %v10728
        %v11366 = vpop.f32.mrf.mxu0
        %v11367 = vadd.f32 %v11278, %v11366
        %v11368 = vpop.f32.mrf.mxu0
        %v11369 = vadd.f32 %v11280, %v11368
        %11370 = vmatmul.bf16.gmra.mxu0 %v10732
        %v11371 = vpop.f32.mrf.mxu0
        %v11372 = vadd.f32 %v11283, %v11371
        %v11373 = vpop.f32.mrf.mxu0
        %v11374 = vadd.f32 %v11285, %v11373
        %11375 = vmatmul.bf16.gmra.mxu0 %v10736
        %v11376 = vpop.f32.mrf.mxu0
        %v11377 = vadd.f32 %v11288, %v11376
        %v11378 = vpop.f32.mrf.mxu0
        %v11379 = vadd.f32 %v11290, %v11378
        %11380 = vmatmul.bf16.gmra.mxu0 %v10740
        %v11381 = vpop.f32.mrf.mxu0
        %v11382 = vadd.f32 %v11293, %v11381
        %v11383 = vpop.f32.mrf.mxu0
        %v11384 = vadd.f32 %v11295, %v11383
        %11385 = vmatmul.bf16.gmra.mxu0 %v10744
        %v11386 = vpop.f32.mrf.mxu0
        %v11387 = vadd.f32 %v11298, %v11386
        %v11388 = vpop.f32.mrf.mxu0
        %v11389 = vadd.f32 %v11300, %v11388
        %11390 = vmatmul.bf16.gmra.mxu0 %v10748
        %v11391 = vpop.f32.mrf.mxu0
        %v11392 = vadd.f32 %v11303, %v11391
        %v11393 = vpop.f32.mrf.mxu0
        %v11394 = vadd.f32 %v11305, %v11393
        %11395 = vdwg.mxu0
        %11396 = vmatpush.bf16.msra.mxu0 %v11121
        %11397 = vmatpush.bf16.msra.mxu0 %v11120
        %11398 = vmatpush.bf16.msra.mxu0 %v11119
        %11399 = vmatpush.bf16.msra.mxu0 %v11118
        %11400 = vmatpush.bf16.msra.mxu0 %v11117
        %11401 = vmatpush.bf16.msra.mxu0 %v11116
        %11402 = vmatpush.bf16.msra.mxu0 %v11115
        %11403 = vmatpush.bf16.msra.mxu0 %v11114
        %11404 = vmatmul.bf16.gmra.mxu0 %v10752
        %v11405 = vpop.f32.mrf.mxu0
        %v11406 = vadd.f32 %v11317, %v11405
        %v11407 = vpop.f32.mrf.mxu0
        %v11408 = vadd.f32 %v11319, %v11407
        %11409 = vmatmul.bf16.gmra.mxu0 %v10756
        %v11410 = vpop.f32.mrf.mxu0
        %v11411 = vadd.f32 %v11322, %v11410
        %v11412 = vpop.f32.mrf.mxu0
        %v11413 = vadd.f32 %v11324, %v11412
        %11414 = vmatmul.bf16.gmra.mxu0 %v10760
        %v11415 = vpop.f32.mrf.mxu0
        %v11416 = vadd.f32 %v11327, %v11415
        %v11417 = vpop.f32.mrf.mxu0
        %v11418 = vadd.f32 %v11329, %v11417
        %11419 = vmatmul.bf16.gmra.mxu0 %v10764
        %v11420 = vpop.f32.mrf.mxu0
        %v11421 = vadd.f32 %v11332, %v11420
        %v11422 = vpop.f32.mrf.mxu0
        %v11423 = vadd.f32 %v11334, %v11422
        %11424 = vmatmul.bf16.gmra.mxu0 %v10768
        %v11425 = vpop.f32.mrf.mxu0
        %v11426 = vadd.f32 %v11337, %v11425
        %v11427 = vpop.f32.mrf.mxu0
        %v11428 = vadd.f32 %v11339, %v11427
        %11429 = vmatmul.bf16.gmra.mxu0 %v10772
        %v11430 = vpop.f32.mrf.mxu0
        %v11431 = vadd.f32 %v11342, %v11430
        %v11432 = vpop.f32.mrf.mxu0
        %v11433 = vadd.f32 %v11344, %v11432
        %11434 = vmatmul.bf16.gmra.mxu0 %v10776
        %v11435 = vpop.f32.mrf.mxu0
        %v11436 = vadd.f32 %v11347, %v11435
        %v11437 = vpop.f32.mrf.mxu0
        %v11438 = vadd.f32 %v11349, %v11437
        %11439 = vmatmul.bf16.gmra.mxu0 %v10780
        %v11440 = vpop.f32.mrf.mxu0
        %v11441 = vadd.f32 %v11352, %v11440
        %v11442 = vpop.f32.mrf.mxu0
        %v11443 = vadd.f32 %v11354, %v11442
        %11444 = vmatmul.bf16.gmra.mxu0 %v10784
        %v11445 = vpop.f32.mrf.mxu0
        %v11446 = vadd.f32 %v11357, %v11445
        %v11447 = vpop.f32.mrf.mxu0
        %v11448 = vadd.f32 %v11359, %v11447
        %11449 = vmatmul.bf16.gmra.mxu0 %v10788
        %v11450 = vpop.f32.mrf.mxu0
        %v11451 = vadd.f32 %v11362, %v11450
        %v11452 = vpop.f32.mrf.mxu0
        %v11453 = vadd.f32 %v11364, %v11452
        %11454 = vmatmul.bf16.gmra.mxu0 %v10792
        %v11455 = vpop.f32.mrf.mxu0
        %v11456 = vadd.f32 %v11367, %v11455
        %v11457 = vpop.f32.mrf.mxu0
        %v11458 = vadd.f32 %v11369, %v11457
        %11459 = vmatmul.bf16.gmra.mxu0 %v10796
        %v11460 = vpop.f32.mrf.mxu0
        %v11461 = vadd.f32 %v11372, %v11460
        %v11462 = vpop.f32.mrf.mxu0
        %v11463 = vadd.f32 %v11374, %v11462
        %11464 = vmatmul.bf16.gmra.mxu0 %v10800
        %v11465 = vpop.f32.mrf.mxu0
        %v11466 = vadd.f32 %v11377, %v11465
        %v11467 = vpop.f32.mrf.mxu0
        %v11468 = vadd.f32 %v11379, %v11467
        %11469 = vmatmul.bf16.gmra.mxu0 %v10804
        %v11470 = vpop.f32.mrf.mxu0
        %v11471 = vadd.f32 %v11382, %v11470
        %v11472 = vpop.f32.mrf.mxu0
        %v11473 = vadd.f32 %v11384, %v11472
        %11474 = vmatmul.bf16.gmra.mxu0 %v10808
        %v11475 = vpop.f32.mrf.mxu0
        %v11476 = vadd.f32 %v11387, %v11475
        %v11477 = vpop.f32.mrf.mxu0
        %v11478 = vadd.f32 %v11389, %v11477
        %11479 = vmatmul.bf16.gmra.mxu0 %v10812
        %v11480 = vpop.f32.mrf.mxu0
        %v11481 = vadd.f32 %v11392, %v11480
        %v11482 = vpop.f32.mrf.mxu0
        %v11483 = vadd.f32 %v11394, %v11482
        %11484 = vdwg.mxu0
        %11485 = vmatpush.bf16.msra.mxu0 %v11129
        %11486 = vmatpush.bf16.msra.mxu0 %v11128
        %11487 = vmatpush.bf16.msra.mxu0 %v11127
        %11488 = vmatpush.bf16.msra.mxu0 %v11126
        %11489 = vmatpush.bf16.msra.mxu0 %v11125
        %11490 = vmatpush.bf16.msra.mxu0 %v11124
        %11491 = vmatpush.bf16.msra.mxu0 %v11123
        %11492 = vmatpush.bf16.msra.mxu0 %v11122
        %11493 = vmatmul.bf16.gmra.mxu0 %v10816
        %v11494 = vpop.f32.mrf.mxu0
        %v11495 = vadd.f32 %v11406, %v11494
        %v11496 = vpop.f32.mrf.mxu0
        %v11497 = vadd.f32 %v11408, %v11496
        %11498 = vmatmul.bf16.gmra.mxu0 %v10820
        %v11499 = vpop.f32.mrf.mxu0
        %v11500 = vadd.f32 %v11411, %v11499
        %v11501 = vpop.f32.mrf.mxu0
        %v11502 = vadd.f32 %v11413, %v11501
        %11503 = vmatmul.bf16.gmra.mxu0 %v10824
        %v11504 = vpop.f32.mrf.mxu0
        %v11505 = vadd.f32 %v11416, %v11504
        %v11506 = vpop.f32.mrf.mxu0
        %v11507 = vadd.f32 %v11418, %v11506
        %11508 = vmatmul.bf16.gmra.mxu0 %v10828
        %v11509 = vpop.f32.mrf.mxu0
        %v11510 = vadd.f32 %v11421, %v11509
        %v11511 = vpop.f32.mrf.mxu0
        %v11512 = vadd.f32 %v11423, %v11511
        %11513 = vmatmul.bf16.gmra.mxu0 %v10832
        %v11514 = vpop.f32.mrf.mxu0
        %v11515 = vadd.f32 %v11426, %v11514
        %v11516 = vpop.f32.mrf.mxu0
        %v11517 = vadd.f32 %v11428, %v11516
        %11518 = vmatmul.bf16.gmra.mxu0 %v10836
        %v11519 = vpop.f32.mrf.mxu0
        %v11520 = vadd.f32 %v11431, %v11519
        %v11521 = vpop.f32.mrf.mxu0
        %v11522 = vadd.f32 %v11433, %v11521
        %11523 = vmatmul.bf16.gmra.mxu0 %v10840
        %v11524 = vpop.f32.mrf.mxu0
        %v11525 = vadd.f32 %v11436, %v11524
        %v11526 = vpop.f32.mrf.mxu0
        %v11527 = vadd.f32 %v11438, %v11526
        %11528 = vmatmul.bf16.gmra.mxu0 %v10844
        %v11529 = vpop.f32.mrf.mxu0
        %v11530 = vadd.f32 %v11441, %v11529
        %v11531 = vpop.f32.mrf.mxu0
        %v11532 = vadd.f32 %v11443, %v11531
        %11533 = vmatmul.bf16.gmra.mxu0 %v10848
        %v11534 = vpop.f32.mrf.mxu0
        %v11535 = vadd.f32 %v11446, %v11534
        %v11536 = vpop.f32.mrf.mxu0
        %v11537 = vadd.f32 %v11448, %v11536
        %11538 = vmatmul.bf16.gmra.mxu0 %v10852
        %v11539 = vpop.f32.mrf.mxu0
        %v11540 = vadd.f32 %v11451, %v11539
        %v11541 = vpop.f32.mrf.mxu0
        %v11542 = vadd.f32 %v11453, %v11541
        %11543 = vmatmul.bf16.gmra.mxu0 %v10856
        %v11544 = vpop.f32.mrf.mxu0
        %v11545 = vadd.f32 %v11456, %v11544
        %v11546 = vpop.f32.mrf.mxu0
        %v11547 = vadd.f32 %v11458, %v11546
        %11548 = vmatmul.bf16.gmra.mxu0 %v10860
        %v11549 = vpop.f32.mrf.mxu0
        %v11550 = vadd.f32 %v11461, %v11549
        %v11551 = vpop.f32.mrf.mxu0
        %v11552 = vadd.f32 %v11463, %v11551
        %11553 = vmatmul.bf16.gmra.mxu0 %v10864
        %v11554 = vpop.f32.mrf.mxu0
        %v11555 = vadd.f32 %v11466, %v11554
        %v11556 = vpop.f32.mrf.mxu0
        %v11557 = vadd.f32 %v11468, %v11556
        %11558 = vmatmul.bf16.gmra.mxu0 %v10868
        %v11559 = vpop.f32.mrf.mxu0
        %v11560 = vadd.f32 %v11471, %v11559
        %v11561 = vpop.f32.mrf.mxu0
        %v11562 = vadd.f32 %v11473, %v11561
        %11563 = vmatmul.bf16.gmra.mxu0 %v10872
        %v11564 = vpop.f32.mrf.mxu0
        %v11565 = vadd.f32 %v11476, %v11564
        %v11566 = vpop.f32.mrf.mxu0
        %v11567 = vadd.f32 %v11478, %v11566
        %11568 = vmatmul.bf16.gmra.mxu0 %v10876
        %v11569 = vpop.f32.mrf.mxu0
        %v11570 = vadd.f32 %v11481, %v11569
        %v11571 = vpop.f32.mrf.mxu0
        %v11572 = vadd.f32 %v11483, %v11571
        %11573 = vdwg.mxu0
        %11574 = vmatpush.bf16.msra.mxu0 0
        %11575 = vmatpush.bf16.msra.mxu0 0
        %11576 = vmatpush.bf16.msra.mxu0 0
        %11577 = vmatpush.bf16.msra.mxu0 0
        %11578 = vmatpush.bf16.msra.mxu0 %v11133
        %11579 = vmatpush.bf16.msra.mxu0 %v11132
        %11580 = vmatpush.bf16.msra.mxu0 %v11131
        %11581 = vmatpush.bf16.msra.mxu0 %v11130
        %11582 = vmatmul.bf16.gmra.mxu0 %v11171
        %v11583 = vpop.f32.mrf.mxu0
        %v11584 = vadd.f32 %v11495, %v11583
        %v11585 = vpop.f32.mrf.mxu0
        %v11586 = vadd.f32 %v11497, %v11585
        %11587 = vmatmul.bf16.gmra.mxu0 %v11174
        %v11588 = vpop.f32.mrf.mxu0
        %v11589 = vadd.f32 %v11500, %v11588
        %v11590 = vpop.f32.mrf.mxu0
        %v11591 = vadd.f32 %v11502, %v11590
        %11592 = vmatmul.bf16.gmra.mxu0 %v11177
        %v11593 = vpop.f32.mrf.mxu0
        %v11594 = vadd.f32 %v11505, %v11593
        %v11595 = vpop.f32.mrf.mxu0
        %v11596 = vadd.f32 %v11507, %v11595
        %11597 = vmatmul.bf16.gmra.mxu0 %v11180
        %v11598 = vpop.f32.mrf.mxu0
        %v11599 = vadd.f32 %v11510, %v11598
        %v11600 = vpop.f32.mrf.mxu0
        %v11601 = vadd.f32 %v11512, %v11600
        %11602 = vmatmul.bf16.gmra.mxu0 %v11183
        %v11603 = vpop.f32.mrf.mxu0
        %v11604 = vadd.f32 %v11515, %v11603
        %v11605 = vpop.f32.mrf.mxu0
        %v11606 = vadd.f32 %v11517, %v11605
        %11607 = vmatmul.bf16.gmra.mxu0 %v11186
        %v11608 = vpop.f32.mrf.mxu0
        %v11609 = vadd.f32 %v11520, %v11608
        %v11610 = vpop.f32.mrf.mxu0
        %v11611 = vadd.f32 %v11522, %v11610
        %11612 = vmatmul.bf16.gmra.mxu0 %v11189
        %v11613 = vpop.f32.mrf.mxu0
        %v11614 = vadd.f32 %v11525, %v11613
        %v11615 = vpop.f32.mrf.mxu0
        %v11616 = vadd.f32 %v11527, %v11615
        %11617 = vmatmul.bf16.gmra.mxu0 %v11192
        %v11618 = vpop.f32.mrf.mxu0
        %v11619 = vadd.f32 %v11530, %v11618
        %v11620 = vpop.f32.mrf.mxu0
        %v11621 = vadd.f32 %v11532, %v11620
        %11622 = vmatmul.bf16.gmra.mxu0 %v11195
        %v11623 = vpop.f32.mrf.mxu0
        %v11624 = vadd.f32 %v11535, %v11623
        %v11625 = vpop.f32.mrf.mxu0
        %v11626 = vadd.f32 %v11537, %v11625
        %11627 = vmatmul.bf16.gmra.mxu0 %v11198
        %v11628 = vpop.f32.mrf.mxu0
        %v11629 = vadd.f32 %v11540, %v11628
        %v11630 = vpop.f32.mrf.mxu0
        %v11631 = vadd.f32 %v11542, %v11630
        %11632 = vmatmul.bf16.gmra.mxu0 %v11201
        %v11633 = vpop.f32.mrf.mxu0
        %v11634 = vadd.f32 %v11545, %v11633
        %v11635 = vpop.f32.mrf.mxu0
        %v11636 = vadd.f32 %v11547, %v11635
        %11637 = vmatmul.bf16.gmra.mxu0 %v11204
        %v11638 = vpop.f32.mrf.mxu0
        %v11639 = vadd.f32 %v11550, %v11638
        %v11640 = vpop.f32.mrf.mxu0
        %v11641 = vadd.f32 %v11552, %v11640
        %11642 = vmatmul.bf16.gmra.mxu0 %v11207
        %v11643 = vpop.f32.mrf.mxu0
        %v11644 = vadd.f32 %v11555, %v11643
        %v11645 = vpop.f32.mrf.mxu0
        %v11646 = vadd.f32 %v11557, %v11645
        %11647 = vmatmul.bf16.gmra.mxu0 %v11210
        %v11648 = vpop.f32.mrf.mxu0
        %v11649 = vadd.f32 %v11560, %v11648
        %v11650 = vpop.f32.mrf.mxu0
        %v11651 = vadd.f32 %v11562, %v11650
        %11652 = vmatmul.bf16.gmra.mxu0 %v11213
        %v11653 = vpop.f32.mrf.mxu0
        %v11654 = vadd.f32 %v11565, %v11653
        %v11655 = vpop.f32.mrf.mxu0
        %v11656 = vadd.f32 %v11567, %v11655
        %11657 = vmatmul.bf16.gmra.mxu0 %v11216
        %v11658 = vpop.f32.mrf.mxu0
        %v11659 = vadd.f32 %v11570, %v11658
        %v11660 = vpop.f32.mrf.mxu0
        %v11661 = vadd.f32 %v11572, %v11660
        %11662 = vdwg.mxu0
        %v11663 = vmax.f32 %v11584, 0.0
        %v11664 = vmax.f32 %v11586, 0.0
        %v11665 = vmax.f32 %v11589, 0.0
        %v11666 = vmax.f32 %v11591, 0.0
        %v11667 = vmax.f32 %v11594, 0.0
        %v11668 = vmax.f32 %v11596, 0.0
        %v11669 = vmax.f32 %v11599, 0.0
        %v11670 = vmax.f32 %v11601, 0.0
        %v11671 = vmax.f32 %v11604, 0.0
        %v11672 = vmax.f32 %v11606, 0.0
        %v11673 = vmax.f32 %v11609, 0.0
        %v11674 = vmax.f32 %v11611, 0.0
        %v11675 = vmax.f32 %v11614, 0.0
        %v11676 = vmax.f32 %v11616, 0.0
        %v11677 = vmax.f32 %v11619, 0.0
        %v11678 = vmax.f32 %v11621, 0.0
        %v11679 = vmax.f32 %v11624, 0.0
        %v11680 = vmax.f32 %v11626, 0.0
        %v11681 = vmax.f32 %v11629, 0.0
        %v11682 = vmax.f32 %v11631, 0.0
        %v11683 = vmax.f32 %v11634, 0.0
        %v11684 = vmax.f32 %v11636, 0.0
        %v11685 = vmax.f32 %v11639, 0.0
        %v11686 = vmax.f32 %v11641, 0.0
        %v11687 = vmax.f32 %v11644, 0.0
        %v11688 = vmax.f32 %v11646, 0.0
        %v11689 = vmax.f32 %v11649, 0.0
        %v11690 = vmax.f32 %v11651, 0.0
        %v11691 = vmax.f32 %v11654, 0.0
        %v11692 = vmax.f32 %v11656, 0.0
        %v11693 = vmax.f32 %v11659, 0.0
        %v11694 = vmax.f32 %v11661, 0.0
        %v11695 = vadd.f32 %v11663, %v11664
        %v11696 = vadd.f32 %v11695, %v11665
        %v11697 = vadd.f32 %v11696, %v11666
        %v11698 = vadd.f32 %v11697, %v11667
        %v11699 = vadd.f32 %v11698, %v11668
        %v11700 = vadd.f32 %v11699, %v11669
        %v11701 = vadd.f32 %v11700, %v11670
        %v11702 = vadd.f32 %v11701, %v11671
        %v11703 = vadd.f32 %v11702, %v11672
        %v11704 = vadd.f32 %v11703, %v11673
        %v11705 = vadd.f32 %v11704, %v11674
        %v11706 = vadd.f32 %v11705, %v11675
        %v11707 = vadd.f32 %v11706, %v11676
        %v11708 = vadd.f32 %v11707, %v11677
        %v11709 = vadd.f32 %v11708, %v11678
        %v11710 = vadd.f32 %v11709, %v11679
        %v11711 = vadd.f32 %v11710, %v11680
        %v11712 = vadd.f32 %v11711, %v11681
        %v11713 = vadd.f32 %v11712, %v11682
        %v11714 = vadd.f32 %v11713, %v11683
        %v11715 = vadd.f32 %v11714, %v11684
        %v11716 = vadd.f32 %v11715, %v11685
        %v11717 = vadd.f32 %v11716, %v11686
        %v11718 = vadd.f32 %v11717, %v11687
        %v11719 = vadd.f32 %v11718, %v11688
        %v11720 = vadd.f32 %v11719, %v11689
        %v11721 = vadd.f32 %v11720, %v11690
        %v11722 = vadd.f32 %v11721, %v11691
        %v11723 = vadd.f32 %v11722, %v11692
        %v11724 = vadd.f32 %v11723, %v11693
        %v11725 = vadd.f32 %v11724, %v11694
        %v11726 = vrot.slane %v11725, 4
        %v11727 = vadd.f32 %v11725, %v11726
        %v11728 = vrot.slane %v11727, 2
        %v11729 = vadd.f32 %v11727, %v11728
        %v11730 = vrot.slane %v11729, 1
        %v11731 = vadd.f32 %v11729, %v11730
        %v11732 = vrcp.pop 256.0
        %v11733 = vmul.f32 256.0, %v11732
        %v11734 = vsub.f32 1.0, %v11733
        %v11735 = vmul.f32 %v11732, %v11734
        %v11736 = vadd.f32 %v11732, %v11735
        %vm11737 = vweird.f32 %v11732
        %v11738 = vsel %vm11737, %v11732, %v11736
        %v11739 = vmul.f32 %v11731, %v11738
        %v11740 = vld [vmem:[%s7] sm:$0xff]
        %v11741 = vld [vmem:[%s7 + $0x8] sm:$0xff]
        %v11742 = vld [vmem:[%s7 + $0x10] sm:$0xff]
        %v11743 = vld [vmem:[%s7 + $0x18] sm:$0xff]
        %v11744 = vld [vmem:[%s7 + $0x20] sm:$0xff]
        %v11745 = vld [vmem:[%s7 + $0x28] sm:$0xff]
        %v11746 = vld [vmem:[%s7 + $0x30] sm:$0xff]
        %v11747 = vld [vmem:[%s7 + $0x38] sm:$0xff]
        %v11748 = vld [vmem:[%s7 + $0x40] sm:$0xff]
        %v11749 = vld [vmem:[%s7 + $0x48] sm:$0xff]
        %v11750 = vld [vmem:[%s7 + $0x50] sm:$0xff]
        %v11751 = vld [vmem:[%s7 + $0x58] sm:$0xff]
        %v11752 = vld [vmem:[%s7 + $0x60] sm:$0xff]
        %v11753 = vld [vmem:[%s7 + $0x68] sm:$0xff]
        %v11754 = vld [vmem:[%s7 + $0x70] sm:$0xff]
        %v11755 = vld [vmem:[%s7 + $0x78] sm:$0xff]
        %v11756 = vld [vmem:[%s8] sm:$0x1]
        %11757 = vmatpush.msra.mxu0 %v11755
        %11758 = vmatpush.msra.mxu0 %v11754
        %11759 = vmatpush.msra.mxu0 %v11753
        %11760 = vmatpush.msra.mxu0 %v11752
        %11761 = vmatpush.msra.mxu0 %v11751
        %11762 = vmatpush.msra.mxu0 %v11750
        %11763 = vmatpush.msra.mxu0 %v11749
        %11764 = vmatpush.msra.mxu0 %v11748
        %11765 = vmatpush.msra.mxu0 %v11747
        %11766 = vmatpush.msra.mxu0 %v11746
        %11767 = vmatpush.msra.mxu0 %v11745
        %11768 = vmatpush.msra.mxu0 %v11744
        %11769 = vmatpush.msra.mxu0 %v11743
        %11770 = vmatpush.msra.mxu0 %v11742
        %11771 = vmatpush.msra.mxu0 %v11741
        %11772 = vmatpush.msra.mxu0 %v11740
        %11773 = vmatmul.f32.gmra.mxu0 %v11739
        %v11774 = vpop.f32.mrf.mxu0
        %v11775 = vadd.f32 %v11756, %v11774
        %11776 = vdwg.mxu0
        %11777 = vst [vmem:[%s324] sm:$0x1] %v11775
        %s11778 = sand.u32 %s225, 1
        %s11779 = scalar_lea.sflag [#allocation6], %s11778
        %s11780 = sand.u32 %s225, 1
        %s11781 = scalar_lea.vmem [#allocation5], %s11780
        // Predicated region
        $region57: #{cnn_forward.1} parent=55 // pred_check
          %p11782 = pneg %p235
        $region58: #{cnn_forward.1} parent=55 // pred_check_branch
          %11784 = sbr.rel (%p11782) target = $region60
        $region59: #{cnn_forward.1} parent=55 // pred_region
          %11786 = vsyncadd %s11779, 0
          %s11787 = scalar_lea.hbm %s9, %s23
          %s11789 = sshll.u32 %s11781, 4
          %s11790 = int_to_ptr.vmem [resolvable:$true] %s11789
          %s11791 = sshll.u32 %s11787, 4
          %s11792 = int_to_ptr.hbm [resolvable:$true] %s11791
          %11794 = dma.vmem_to_hbm [thread:$0]  %s11790, 16, %s11792, %s11779
        $region60: #{cnn_forward.1} parent=55 // pred_fallthru
          _
      $region56: #{cnn_forward.1} parent=5 // pred_fallthru
        _
      %p11795 = scmp.le.s32.totalorder 2, %s18
      // Predicated region
      $region61: #{cnn_forward.1} parent=5 // pred_check
        %p11796 = pneg %p11795
      $region62: #{cnn_forward.1} parent=5 // pred_check_branch
        %11798 = sbr.rel (%p11796) target = $region64
      $region63: #{cnn_forward.1} parent=5 // pred_region
        %s11799 = ssub.s32 %s18, 2
        // Predicated region
        $region65: #{cnn_forward.1} parent=63 // pred_check
          %p11800 = pneg %p241
        $region66: #{cnn_forward.1} parent=63 // pred_check_branch
          %11802 = sbr.rel (%p11800) target = $region68
        $region67: #{cnn_forward.1} parent=63 // pred_region
          %s11803 = sand.u32 %s226, 1
          %s11804 = scalar_lea.sflag [#allocation6], %s11803
          %s11805 = sand.u32 %s226, 1
          %s11806 = scalar_lea.vmem [#allocation5], %s11805
          %11808 = dma.done %s11804, 16
        $region68: #{cnn_forward.1} parent=63 // pred_fallthru
          _
      $region64: #{cnn_forward.1} parent=5 // pred_fallthru
        _
    $region6: #{cnn_forward.1} parent=1 // loop_footer
      %s22 = sadd.s32 1, %s18
    $region7: #{cnn_forward.1} parent=1 // loop_footer_branch
      %17 = sbr.rel target = $region3
    $region8: #{cnn_forward.1} parent=1 // loop_exit
      _
    %11809 = vsyncpa [#allocation6], 1
    %s11810 = scalar_lea.sflag [#allocation6], 1
    %11811 = vsyncpa %s11810, 1

</llo_original>
